<compile_context>
chip_gen: v7x
topology: tpu7x:2x2x1
jax: 0.10.0
libtpu: 0.0.40
codegen_flags: <defaults>
</compile_context>

<pallas_src>
import math

import numpy as np
import jax
import jax.numpy as jnp
from jax.experimental import pallas as pl
from jax.experimental.pallas import tpu as pltpu

# ----------------- small, module-consistent config -----------------
BATCH = 2
INPUT_SIZE = 16          # opt.input_size
WINDOW_SIZE = [2, 2, 2]  # opt.window_size
INNER_SIZE = 3           # opt.inner_size
D_MODEL = 32             # opt.d_model
D_INNER_HID = 64         # opt.d_inner_hid
N_HEAD = 4               # opt.n_head
D_K = 8                  # opt.d_k
D_V = 8                  # opt.d_v
N_LAYER = 2              # opt.n_layer
COV_SIZE = 3             # opt.covariate_size
NUM_SEQ = 8              # opt.num_seq
LN_EPS_ENC = 1e-6        # LayerNorm eps inside encoder sublayers
LN_EPS_BOT = 1e-5        # nn.LayerNorm default (Bottleneck_Construct)
BN_EPS = 1e-5            # nn.BatchNorm1d default


def _compute_all_size(input_size, window_size):
    all_size = [input_size]
    for w in window_size:
        all_size.append(all_size[-1] // w)
    return all_size


ALL_SIZE = _compute_all_size(INPUT_SIZE, WINDOW_SIZE)   # [16, 8, 4, 2]
SEQ_LEN = sum(ALL_SIZE)                                 # 30
N_SCALES = len(ALL_SIZE)                                # 4
T_PAD = ALL_SIZE[0]                                     # padded per-level time length
N_TAPS = sum(WINDOW_SIZE)                               # total conv taps (6)
N_LVL = len(WINDOW_SIZE)
EMB_FEATS = 3 + COV_SIZE + 1                            # conv taps + covariates + series-id
EMB_IN_WIDTH = ((EMB_FEATS + 7) // 8) * 8               # pre-padded contraction dim (8)

# batch-folded row counts
BL = BATCH * INPUT_SIZE                                 # 32 finest-scale rows
BT = BATCH * T_PAD                                      # 32 conv rows
BS = BATCH * SEQ_LEN                                    # 60 full-sequence rows
PRED_PAD = 128                                          # lane-dense output (cols 0/1 = mean/var)

# row indices inside the packed bias/gain slab
VEC_DOWN_B = 0
VEC_CSCM_SHIFT = 1        # + level (3 rows)
VEC_UP_B = 4
VEC_BOT_G = 5
VEC_BOT_B = 6
VEC_BO = 7                # + layer
VEC_LN1_G = 9
VEC_LN1_B = 11
VEC_B1 = 13
VEC_B2 = 15
VEC_LN2_G = 17
VEC_LN2_B = 19
VEC_ROWS = 24
VEC_WIDTH = 64


# ----------------- static pyramid helpers (numpy, build-time) -----------------
def get_mask(input_size, window_size, inner_size):
    all_size = [input_size]
    for w in window_size:
        all_size.append(math.floor(all_size[-1] / w))
    seq_len = sum(all_size)
    mask = np.zeros((seq_len, seq_len), dtype=np.float32)
    inner_window = inner_size // 2
    for layer_idx in range(len(all_size)):
        start = sum(all_size[:layer_idx])
        for i in range(start, start + all_size[layer_idx]):
            left = max(i - inner_window, start)
            right = min(i + inner_window + 1, start + all_size[layer_idx])
            mask[i, left:right] = 1
    for layer_idx in range(1, len(all_size)):
        start = sum(all_size[:layer_idx])
        for i in range(start, start + all_size[layer_idx]):
            left = (start - all_size[layer_idx - 1]) + (i - start) * window_size[layer_idx - 1]
            if i == start + all_size[layer_idx] - 1:
                right = start
            else:
                right = (start - all_size[layer_idx - 1]) + (i - start + 1) * window_size[layer_idx - 1]
            mask[i, left:right] = 1
            mask[left:right, i] = 1
    return (1.0 - mask).astype(np.float32), all_size   # 1.0 == masked (True in torch)


def refer_points(all_sizes, window_size):
    input_size = all_sizes[0]
    indexes = np.zeros((input_size, len(all_sizes)), dtype=np.int32)
    for i in range(input_size):
        indexes[i, 0] = i
        former = i
        for j in range(1, len(all_sizes)):
            start = sum(all_sizes[:j])
            inner_idx = former - (start - all_sizes[j - 1])
            former = start + min(inner_idx // window_size[j - 1], all_sizes[j] - 1)
            indexes[i, j] = former
    return indexes  # [input_size, n_scales]


def position_embedding(input_size, d_model):
    pos = np.arange(input_size, dtype=np.float64)[:, None]
    vec = np.array([math.pow(10000.0, 2.0 * (i // 2) / d_model) for i in range(d_model)],
                   dtype=np.float64)[None, :]
    ang = pos / vec
    even = (np.arange(d_model) % 2 == 0)[None, :]
    return np.where(even, np.sin(ang), np.cos(ang)).astype(np.float32)


def build_constants():
    """Data-independent constant matrices, already block-diagonal over the folded batch."""
    mask_np, all_size = get_mask(INPUT_SIZE, WINDOW_SIZE, INNER_SIZE)
    assert list(all_size) == list(ALL_SIZE)
    idx_np = refer_points(all_size, WINDOW_SIZE)
    pos_np = position_embedding(INPUT_SIZE, D_MODEL)

    eye_b = np.eye(BATCH, dtype=np.float32)

    # Additive attention-mask bias (replaces compare+select); cross-batch blocks fully masked.
    allowed = np.kron(eye_b, 1.0 - mask_np)                    # 1 == may attend
    mask_bias = (-1e9 * (1.0 - allowed)).astype(np.float32)    # [BS, BS]

    # Strided-conv tap selection (one-hot), per tap, block-diagonal over batch.
    sel = np.zeros((N_TAPS, T_PAD, T_PAD), np.float32)
    tap = 0
    for ci, w in enumerate(WINDOW_SIZE):
        t_out = ALL_SIZE[ci + 1]
        for k in range(w):
            for o in range(t_out):
                sel[tap, o, o * w + k] = 1.0
            tap += 1
    sel_bd = np.stack([np.kron(eye_b, sel[t]) for t in range(N_TAPS)])   # [6, BT, BT]

    # Placement matrices: [0] = finest scale rows, [1+ci] = conv level ci rows.
    place = []
    pseq = np.zeros((SEQ_LEN, T_PAD), np.float32)
    for r in range(INPUT_SIZE):
        pseq[r, r] = 1.0
    place.append(pseq)
    off = INPUT_SIZE
    for ci in range(N_LVL):
        n = ALL_SIZE[ci + 1]
        pm = np.zeros((SEQ_LEN, T_PAD), np.float32)
        for j in range(n):
            pm[off + j, j] = 1.0
        place.append(pm)
        off += n
    place_bd = np.stack([np.kron(eye_b, pm) for pm in place])            # [4, BS, BT]

    # Pyramid gather (torch.gather) as per-scale one-hot row selection, block-diagonal.
    gsel = np.zeros((N_SCALES, INPUT_SIZE, SEQ_LEN), np.float32)
    for t in range(INPUT_SIZE):
        for sc in range(N_SCALES):
            gsel[sc, t, idx_np[t, sc]] = 1.0
    gsel_bd = np.stack([np.kron(eye_b, gsel[sc]) for sc in range(N_SCALES)])  # [4, BL, BS]

    return {'mask_bias': mask_bias, 'sel': sel_bd, 'place': place_bd,
            'gsel': gsel_bd, 'pos': pos_np}


# ----------------- the single fused Pallas kernel -----------------
OP_ORDER = ('emb_w', 'emb_add', 'down_w', 'conv_w', 'sel', 'up_w', 'place',
            'mask_bias', 'ab', 'w1', 'w2', 'gsel', 'pred', 'vec')


def _pyraformer_kernel(emb_in_ref, emb_w_ref, emb_add_ref, down_w_ref, conv_w_ref,
                       sel_ref, up_w_ref, place_ref, mask_ref, ab_ref,
                       w1_ref, w2_ref, gsel_ref, pred_ref, vec_ref, out_ref):
    f32 = jnp.float32
    bf16 = jnp.bfloat16

    def mm(a, b):
        # bf16 MXU inputs, f32 accumulate.
        return jnp.dot(a.astype(bf16), b.astype(bf16), preferred_element_type=f32)

    def layer_norm(x, g, b, eps):
        mu = jnp.mean(x, axis=-1, keepdims=True)
        var = jnp.mean((x - mu) ** 2, axis=-1, keepdims=True)
        return (x - mu) * jax.lax.rsqrt(var + eps) * g + b

    vec = vec_ref[...]                                                     # [VEC_ROWS, 64] f32

    def vrow(r, w=D_MODEL):
        return vec[r:r + 1, 0:w]

    # ---------------- SingleStepEmbedding (conv taps + covariate linear + pos emb) ----------------
    emb = mm(emb_in_ref[...], emb_w_ref[...]) + emb_add_ref[...]           # [BL, D] f32

    # ---------------- Bottleneck_Construct (CSCM) ----------------
    temp = mm(emb, down_w_ref[...]) + vrow(VEC_DOWN_B, D_K)                # [BT, D_K]
    seq = mm(place_ref[0], emb)                                            # finest-scale rows
    for ci in range(N_LVL):
        # Conv1d(d_k, d_k, kernel=w, stride=w): one wide tap matmul, then one-hot row selects.
        tw = mm(temp, conv_w_ref[ci])                                      # [BT, 2*D_K]
        y = (mm(sel_ref[2 * ci], tw[:, 0:D_K]) +
             mm(sel_ref[2 * ci + 1], tw[:, D_K:2 * D_K]) +
             vrow(VEC_CSCM_SHIFT + ci, D_K))                               # conv bias + BN folded
        y = jnp.where(y > 0.0, y, jnp.exp(jnp.minimum(y, 0.0)) - 1.0)      # ELU(alpha=1)
        temp = y
        # up-projection of this scale, placed at its rows of the full sequence.
        seq = seq + mm(place_ref[1 + ci], mm(y, up_w_ref[...]) + vrow(VEC_UP_B))
    seq = layer_norm(seq, vrow(VEC_BOT_G), vrow(VEC_BOT_B), LN_EPS_BOT)    # [BS, D]

    # ---------------- Encoder layers (post-norm MHA + FFN), fused head projections ----------------
    mask_bias = mask_ref[...]
    for li in range(N_LAYER):
        x = seq
        x_b = x.astype(bf16)
        xab = jnp.dot(x_b, ab_ref[li], preferred_element_type=f32)         # [BS, 2*H*D]
        attn = jnp.zeros((BS, D_MODEL), f32)
        for h in range(N_HEAD):
            xa = xab[:, h * D_MODEL:(h + 1) * D_MODEL]                     # x @ A_h (1/sqrt(dk) folded)
            xb = xab[:, (N_HEAD + h) * D_MODEL:(N_HEAD + h + 1) * D_MODEL]  # x @ (Wv_h Wo_h)
            s = jax.lax.dot_general(xa.astype(bf16), x_b, (((1,), (1,)), ((), ())),
                                    preferred_element_type=f32)            # [BS, BS]
            s = s + mask_bias
            s = s - jnp.max(s, axis=-1, keepdims=True)
            p = jnp.exp(s)
            p = p * pl.reciprocal(jnp.sum(p, axis=-1, keepdims=True), approx=True)
            attn = attn + mm(p, xb)
        y = layer_norm(attn + vrow(VEC_BO + li) + x,
                       vrow(VEC_LN1_G + li), vrow(VEC_LN1_B + li), LN_EPS_ENC)
        h1 = mm(y, w1_ref[li]) + vrow(VEC_B1 + li, D_INNER_HID)
        h1 = 0.5 * h1 * (1.0 + jax.lax.erf(h1 * 0.7071067811865476))       # exact (erf) GELU
        y2 = mm(h1, w2_ref[li]) + vrow(VEC_B2 + li) + y
        seq = layer_norm(y2, vrow(VEC_LN2_G + li), vrow(VEC_LN2_B + li), LN_EPS_ENC)

    # ---------------- pyramid gather + fused mean/var predictors + softplus ----------------
    out = jnp.zeros((BL, PRED_PAD), f32)
    for sc in range(N_SCALES):
        out = out + mm(mm(gsel_ref[sc], seq), pred_ref[sc])
    # PyTorch Softplus (beta=1, threshold=20)
    out = jnp.where(out > 20.0, out, jnp.log1p(jnp.exp(jnp.minimum(out, 20.0))))
    out_ref[...] = out


# ----------------- forward wrapper -----------------
def forward(packed, data):
    B, L0, _ = data.shape

    # glue: assemble the pre-padded embedding input [x_{t-1}, x_t, x_{t+1}, covs, id, 0-pad]
    x0 = data[:, :, 0]
    covs = data[:, :, 1:1 + COV_SIZE]
    seq_id = (data[:, :, -1] / NUM_SEQ - 0.5)[:, :, None]
    cols = [jnp.roll(x0, 1, axis=1)[..., None], x0[..., None], jnp.roll(x0, -1, axis=1)[..., None],
            covs, seq_id]
    if EMB_IN_WIDTH > EMB_FEATS:
        cols.append(jnp.zeros((B, L0, EMB_IN_WIDTH - EMB_FEATS), jnp.float32))
    emb_in = (jnp.concatenate(cols, axis=-1)
              .reshape(B * L0, EMB_IN_WIDTH).astype(jnp.bfloat16))          # [BL, 8]

    operands = (emb_in,) + tuple(packed[k] for k in OP_ORDER)

    def _full_spec(arr):
        zeros = (0,) * arr.ndim
        return pl.BlockSpec(tuple(arr.shape), lambda i, z=zeros: z)

    in_specs = [_full_spec(op) for op in operands]

    res = pl.pallas_call(
        _pyraformer_kernel,
        grid=(1,),
        in_specs=in_specs,
        out_specs=pl.BlockSpec((BL, PRED_PAD), lambda i: (0, 0)),
        out_shape=jax.ShapeDtypeStruct((BL, PRED_PAD), jnp.float32),
        compiler_params=pltpu.CompilerParams(dimension_semantics=("arbitrary",)),
    )(*operands)

    out = res[:, :2].reshape(B, L0, 2)
    return out[:, :, 0], out[:, :, 1]               # (mean_pre, var_pre)


# ----------------- deterministic parameter init -----------------
def init_params(key):
    keys = jax.random.split(key, 32)
    ctr = iter(range(32))

    def nrm(shape, scale=0.1):
        return (scale * jax.random.normal(keys[next(ctr)], shape)).astype(jnp.float32)

    # SingleStepEmbedding: Conv1d(1, d_model, 3, circular, bias=False) rows + Linear(cov+1, d_model)
    conv_emb_w = nrm((3, D_MODEL))
    cov_w = nrm((COV_SIZE + 1, D_MODEL))
    emb_w = jnp.concatenate(
        [conv_emb_w, cov_w, jnp.zeros((EMB_IN_WIDTH - EMB_FEATS, D_MODEL), jnp.float32)], axis=0)

    params = {
        'emb_w': emb_w,
        'emb_b': nrm((1, D_MODEL)),
        'down_w': nrm((D_MODEL, D_K)),
        'down_b': nrm((1, D_K)),
        'conv_w': nrm((N_TAPS, D_K, D_K)),     # per (level, tap) conv matrix
        'conv_b': nrm((N_LVL, 1, D_K)),
        'bn_gamma': jnp.ones((N_LVL, 1, D_K), jnp.float32),
        'bn_beta': jnp.zeros((N_LVL, 1, D_K), jnp.float32),
        'bn_rmean': jnp.zeros((N_LVL, 1, D_K), jnp.float32),
        'bn_rvar': jnp.ones((N_LVL, 1, D_K), jnp.float32),
        'up_w': nrm((D_K, D_MODEL)),
        'up_b': nrm((1, D_MODEL)),
        'bot_ln_g': jnp.ones((1, D_MODEL), jnp.float32),
        'bot_ln_b': jnp.zeros((1, D_MODEL), jnp.float32),
        'wq': nrm((N_LAYER * N_HEAD, D_MODEL, D_K)),
        'wk': nrm((N_LAYER * N_HEAD, D_MODEL, D_K)),
        'wv': nrm((N_LAYER * N_HEAD, D_MODEL, D_V)),
        'wo': nrm((N_LAYER * N_HEAD, D_V, D_MODEL)),
        'bo': nrm((N_LAYER, 1, D_MODEL)),
        'ln1_g': jnp.ones((N_LAYER, 1, D_MODEL), jnp.float32),
        'ln1_b': jnp.zeros((N_LAYER, 1, D_MODEL), jnp.float32),
        'w1': nrm((N_LAYER, D_MODEL, D_INNER_HID)),
        'b1': nrm((N_LAYER, 1, D_INNER_HID)),
        'w2': nrm((N_LAYER, D_INNER_HID, D_MODEL)),
        'b2': nrm((N_LAYER, 1, D_MODEL)),
        'ln2_g': jnp.ones((N_LAYER, 1, D_MODEL), jnp.float32),
        'ln2_b': jnp.zeros((N_LAYER, 1, D_MODEL), jnp.float32),
        'pred_w': nrm((N_SCALES, D_MODEL, 2)),  # fused [mean | var] Predictor, chunked per scale
    }
    return params


# ----------------- one-time packing / algebraic fusion of the operands -----------------
def pack_inputs(params, consts):
    f32, bf16 = jnp.float32, jnp.bfloat16
    p = params
    assert all(w == 2 for w in WINDOW_SIZE)

    # BatchNorm1d (eval-mode running stats) folded into the conv tap weights / shift.
    bn_scale = p['bn_gamma'] * jax.lax.rsqrt(p['bn_rvar'] + BN_EPS)        # [L,1,D_K]
    bn_shift = p['bn_beta'] - p['bn_rmean'] * bn_scale
    cscm_shift = p['conv_b'] * bn_scale + bn_shift                          # [L,1,D_K]
    conv_lvl = []
    for ci in range(N_LVL):
        taps = [p['conv_w'][2 * ci + k] * bn_scale[ci] for k in range(WINDOW_SIZE[ci])]
        conv_lvl.append(jnp.concatenate(taps, axis=1))                      # [D_K, 2*D_K]
    conv_w = jnp.stack(conv_lvl)                                            # [L, D_K, 2*D_K]

    # Algebraic head fusion: A_h = Wq Wk^T / sqrt(d_k), B_h = Wv Wo, hcat over heads and A|B.
    inv_temp = 1.0 / math.sqrt(D_K)
    ab_layers = []
    for li in range(N_LAYER):
        a_heads = [p['wq'][li * N_HEAD + h] @ p['wk'][li * N_HEAD + h].T * inv_temp
                   for h in range(N_HEAD)]
        b_heads = [p['wv'][li * N_HEAD + h] @ p['wo'][li * N_HEAD + h]
                   for h in range(N_HEAD)]
        ab_layers.append(jnp.concatenate(a_heads + b_heads, axis=1))        # [D, 2*H*D]
    ab = jnp.stack(ab_layers)                                               # [N_LAYER, 32, 256]

    # fused mean|var predictor, zero-padded to a lane-dense 128-wide output.
    pred = jnp.pad(p['pred_w'], ((0, 0), (0, 0), (0, PRED_PAD - 2)))

    # row-vector bias/gain slab [VEC_ROWS, 64]
    def row(v):
        return jnp.pad(v, ((0, 0), (0, VEC_WIDTH - v.shape[1])))
    rows = [row(p['down_b'])]
    rows += [row(cscm_shift[ci]) for ci in range(N_LVL)]
    rows += [row(p['up_b']), row(p['bot_ln_g']), row(p['bot_ln_b'])]
    rows += [row(p['bo'][li]) for li in range(N_LAYER)]
    rows += [row(p['ln1_g'][li]) for li in range(N_LAYER)]
    rows += [row(p['ln1_b'][li]) for li in range(N_LAYER)]
    rows += [row(p['b1'][li]) for li in range(N_LAYER)]
    rows += [row(p['b2'][li]) for li in range(N_LAYER)]
    rows += [row(p['ln2_g'][li]) for li in range(N_LAYER)]
    rows += [row(p['ln2_b'][li]) for li in range(N_LAYER)]
    vec = jnp.concatenate(rows, axis=0)
    vec = jnp.pad(vec, ((0, VEC_ROWS - vec.shape[0]), (0, 0))).astype(f32)

    packed = {
        'emb_w': p['emb_w'].astype(bf16),
        'emb_add': (jnp.tile(jnp.asarray(consts['pos']), (BATCH, 1)) + p['emb_b']).astype(f32),
        'down_w': p['down_w'].astype(bf16),
        'conv_w': conv_w.astype(bf16),
        'sel': jnp.asarray(consts['sel']).astype(bf16),
        'up_w': p['up_w'].astype(bf16),
        'place': jnp.asarray(consts['place']).astype(bf16),
        'mask_bias': jnp.asarray(consts['mask_bias']).astype(f32),
        'ab': ab.astype(bf16),
        'w1': p['w1'].astype(bf16),
        'w2': p['w2'].astype(bf16),
        'gsel': jnp.asarray(consts['gsel']).astype(bf16),
        'pred': pred.astype(bf16),
        'vec': vec,
    }
    return packed


# ----------------- main -----------------
if __name__ == "__main__":
    key = jax.random.PRNGKey(0)
    pkey, dkey = jax.random.split(key)
    params = init_params(pkey)
    consts = build_constants()
    packed = pack_inputs(params, consts)

    # data: [B, input_size, 1 + cov_size + 1]  (value, covariates..., series-id)
    vals = jax.random.normal(dkey, (BATCH, INPUT_SIZE, 1 + COV_SIZE), jnp.float32)
    seq_id = jnp.broadcast_to(
        (jnp.arange(BATCH) % NUM_SEQ).astype(jnp.float32)[:, None, None],
        (BATCH, INPUT_SIZE, 1))
    data = jnp.concatenate([vals, seq_id], axis=-1)

    fwd = jax.jit(forward)
    mean_pre, var_pre = fwd(packed, data)
    jax.block_until_ready((mean_pre, var_pre))

    assert mean_pre.shape == (BATCH, INPUT_SIZE)
    assert var_pre.shape == (BATCH, INPUT_SIZE)
    assert bool(jnp.all(jnp.isfinite(mean_pre))) and bool(jnp.all(jnp.isfinite(var_pre)))
    assert bool(jnp.all(mean_pre >= 0.0)) and bool(jnp.all(var_pre >= 0.0))  # softplus outputs
    print("KERNEL_OK")
</pallas_src>

<mosaic_0001>
module attributes {stable_mosaic.version = 11 : i64} {
  func.func @_pyraformer_kernel(%arg0: i32, %arg1: memref<32x8xbf16, #tpu.memory_space<vmem>>, %arg2: memref<8x32xbf16, #tpu.memory_space<vmem>>, %arg3: memref<32x32xf32, #tpu.memory_space<vmem>>, %arg4: memref<32x8xbf16, #tpu.memory_space<vmem>>, %arg5: memref<3x8x16xbf16, #tpu.memory_space<vmem>>, %arg6: memref<6x32x32xbf16, #tpu.memory_space<vmem>>, %arg7: memref<8x32xbf16, #tpu.memory_space<vmem>>, %arg8: memref<4x60x32xbf16, #tpu.memory_space<vmem>>, %arg9: memref<60x60xf32, #tpu.memory_space<vmem>>, %arg10: memref<2x32x256xbf16, #tpu.memory_space<vmem>>, %arg11: memref<2x32x64xbf16, #tpu.memory_space<vmem>>, %arg12: memref<2x64x32xbf16, #tpu.memory_space<vmem>>, %arg13: memref<4x32x60xbf16, #tpu.memory_space<vmem>>, %arg14: memref<4x32x128xbf16, #tpu.memory_space<vmem>>, %arg15: memref<24x64xf32, #tpu.memory_space<vmem>>, %arg16: memref<32x128xf32, #tpu.memory_space<vmem>>) attributes {dimension_semantics = [#tpu.dimension_semantics<arbitrary>], iteration_bounds = array<i64: 1>, scalar_prefetch = 0 : i64, scratch_operands = 0 : i64, tpu.core_type = #tpu.core_type<tc>, window_params = [{pipeline_mode = #tpu.pipeline_mode<synchronous>, transform_indices = @transform_0, window_bounds = array<i64: 32, 8>}, {pipeline_mode = #tpu.pipeline_mode<synchronous>, transform_indices = @transform_1, window_bounds = array<i64: 8, 32>}, {pipeline_mode = #tpu.pipeline_mode<synchronous>, transform_indices = @transform_2, window_bounds = array<i64: 32, 32>}, {pipeline_mode = #tpu.pipeline_mode<synchronous>, transform_indices = @transform_3, window_bounds = array<i64: 32, 8>}, {pipeline_mode = #tpu.pipeline_mode<synchronous>, transform_indices = @transform_4, window_bounds = array<i64: 3, 8, 16>}, {pipeline_mode = #tpu.pipeline_mode<synchronous>, transform_indices = @transform_5, window_bounds = array<i64: 6, 32, 32>}, {pipeline_mode = #tpu.pipeline_mode<synchronous>, transform_indices = @transform_6, window_bounds = array<i64: 8, 32>}, {pipeline_mode = #tpu.pipeline_mode<synchronous>, transform_indices = @transform_7, window_bounds = array<i64: 4, 60, 32>}, {pipeline_mode = #tpu.pipeline_mode<synchronous>, transform_indices = @transform_8, window_bounds = array<i64: 60, 60>}, {pipeline_mode = #tpu.pipeline_mode<synchronous>, transform_indices = @transform_9, window_bounds = array<i64: 2, 32, 256>}, {pipeline_mode = #tpu.pipeline_mode<synchronous>, transform_indices = @transform_10, window_bounds = array<i64: 2, 32, 64>}, {pipeline_mode = #tpu.pipeline_mode<synchronous>, transform_indices = @transform_11, window_bounds = array<i64: 2, 64, 32>}, {pipeline_mode = #tpu.pipeline_mode<synchronous>, transform_indices = @transform_12, window_bounds = array<i64: 4, 32, 60>}, {pipeline_mode = #tpu.pipeline_mode<synchronous>, transform_indices = @transform_13, window_bounds = array<i64: 4, 32, 128>}, {pipeline_mode = #tpu.pipeline_mode<synchronous>, transform_indices = @transform_14, window_bounds = array<i64: 24, 64>}, {pipeline_mode = #tpu.pipeline_mode<synchronous>, transform_indices = @transform_15, window_bounds = array<i64: 32, 128>}]} {
    %c0 = arith.constant 0 : index
    %c0_0 = arith.constant 0 : index
    %0 = vector.load %arg15[%c0, %c0_0] : memref<24x64xf32, #tpu.memory_space<vmem>>, vector<24x64xf32>
    %c0_1 = arith.constant 0 : index
    %c0_2 = arith.constant 0 : index
    %1 = vector.load %arg1[%c0_1, %c0_2] : memref<32x8xbf16, #tpu.memory_space<vmem>>, vector<32x8xbf16>
    %c0_3 = arith.constant 0 : index
    %c0_4 = arith.constant 0 : index
    %2 = vector.load %arg2[%c0_3, %c0_4] : memref<8x32xbf16, #tpu.memory_space<vmem>>, vector<8x32xbf16>
    %cst = arith.constant dense<0.000000e+00> : vector<32x32xf32>
    %3 = tpu.matmul %1, %2, %cst {dimension_numbers = #tpu.dot_dimension_numbers<[1], [0], [0], [1], [0, 0, 1, 1], [], []>} : vector<32x8xbf16>, vector<8x32xbf16>, vector<32x32xf32> -> vector<32x32xf32>
    %c0_5 = arith.constant 0 : index
    %c0_6 = arith.constant 0 : index
    %4 = vector.load %arg3[%c0_5, %c0_6] : memref<32x32xf32, #tpu.memory_space<vmem>>, vector<32x32xf32>
    %5 = arith.addf %3, %4 : vector<32x32xf32>
    %c0_7 = arith.constant 0 : index
    %c0_8 = arith.constant 0 : index
    %6 = vector.load %arg4[%c0_7, %c0_8] : memref<32x8xbf16, #tpu.memory_space<vmem>>, vector<32x8xbf16>
    %7 = arith.truncf %5 : vector<32x32xf32> to vector<32x32xbf16>
    %cst_9 = arith.constant dense<0.000000e+00> : vector<32x8xf32>
    %8 = tpu.matmul %7, %6, %cst_9 {dimension_numbers = #tpu.dot_dimension_numbers<[1], [0], [0], [1], [0, 0, 1, 1], [], []>} : vector<32x32xbf16>, vector<32x8xbf16>, vector<32x8xf32> -> vector<32x8xf32>
    %9 = vector.extract_strided_slice %0 {offsets = [0, 0], sizes = [1, 8], strides = [1, 1]} : vector<24x64xf32> to vector<1x8xf32>
    %10 = vector.broadcast %9 : vector<1x8xf32> to vector<32x8xf32>
    %11 = arith.addf %8, %10 : vector<32x8xf32>
    %c0_10 = arith.constant 0 : index
    %c0_11 = arith.constant 0 : index
    %c0_12 = arith.constant 0 : index
    %12 = vector.load %arg8[%c0_10, %c0_11, %c0_12] : memref<4x60x32xbf16, #tpu.memory_space<vmem>>, vector<1x60x32xbf16>
    %13 = vector.shape_cast %12 : vector<1x60x32xbf16> to vector<60x32xbf16>
    %14 = arith.truncf %5 : vector<32x32xf32> to vector<32x32xbf16>
    %cst_13 = arith.constant dense<0.000000e+00> : vector<60x32xf32>
    %15 = tpu.matmul %13, %14, %cst_13 {dimension_numbers = #tpu.dot_dimension_numbers<[1], [0], [0], [1], [0, 0, 1, 1], [], []>} : vector<60x32xbf16>, vector<32x32xbf16>, vector<60x32xf32> -> vector<60x32xf32>
    %c0_14 = arith.constant 0 : index
    %c0_15 = arith.constant 0 : index
    %c0_16 = arith.constant 0 : index
    %16 = vector.load %arg5[%c0_14, %c0_15, %c0_16] : memref<3x8x16xbf16, #tpu.memory_space<vmem>>, vector<1x8x16xbf16>
    %17 = vector.shape_cast %16 : vector<1x8x16xbf16> to vector<8x16xbf16>
    %18 = arith.truncf %11 : vector<32x8xf32> to vector<32x8xbf16>
    %cst_17 = arith.constant dense<0.000000e+00> : vector<32x16xf32>
    %19 = tpu.matmul %18, %17, %cst_17 {dimension_numbers = #tpu.dot_dimension_numbers<[1], [0], [0], [1], [0, 0, 1, 1], [], []>} : vector<32x8xbf16>, vector<8x16xbf16>, vector<32x16xf32> -> vector<32x16xf32>
    %c0_18 = arith.constant 0 : index
    %c0_19 = arith.constant 0 : index
    %c0_20 = arith.constant 0 : index
    %20 = vector.load %arg6[%c0_18, %c0_19, %c0_20] : memref<6x32x32xbf16, #tpu.memory_space<vmem>>, vector<1x32x32xbf16>
    %21 = vector.shape_cast %20 : vector<1x32x32xbf16> to vector<32x32xbf16>
    %22 = vector.extract_strided_slice %19 {offsets = [0, 0], sizes = [32, 8], strides = [1, 1]} : vector<32x16xf32> to vector<32x8xf32>
    %23 = arith.truncf %22 : vector<32x8xf32> to vector<32x8xbf16>
    %cst_21 = arith.constant dense<0.000000e+00> : vector<32x8xf32>
    %24 = tpu.matmul %21, %23, %cst_21 {dimension_numbers = #tpu.dot_dimension_numbers<[1], [0], [0], [1], [0, 0, 1, 1], [], []>} : vector<32x32xbf16>, vector<32x8xbf16>, vector<32x8xf32> -> vector<32x8xf32>
    %c1 = arith.constant 1 : index
    %c0_22 = arith.constant 0 : index
    %c0_23 = arith.constant 0 : index
    %25 = vector.load %arg6[%c1, %c0_22, %c0_23] : memref<6x32x32xbf16, #tpu.memory_space<vmem>>, vector<1x32x32xbf16>
    %26 = vector.shape_cast %25 : vector<1x32x32xbf16> to vector<32x32xbf16>
    %27 = vector.extract_strided_slice %19 {offsets = [0, 8], sizes = [32, 8], strides = [1, 1]} : vector<32x16xf32> to vector<32x8xf32>
    %28 = arith.truncf %27 : vector<32x8xf32> to vector<32x8xbf16>
    %cst_24 = arith.constant dense<0.000000e+00> : vector<32x8xf32>
    %29 = tpu.matmul %26, %28, %cst_24 {dimension_numbers = #tpu.dot_dimension_numbers<[1], [0], [0], [1], [0, 0, 1, 1], [], []>} : vector<32x32xbf16>, vector<32x8xbf16>, vector<32x8xf32> -> vector<32x8xf32>
    %30 = arith.addf %24, %29 : vector<32x8xf32>
    %31 = vector.extract_strided_slice %0 {offsets = [1, 0], sizes = [1, 8], strides = [1, 1]} : vector<24x64xf32> to vector<1x8xf32>
    %32 = vector.broadcast %31 : vector<1x8xf32> to vector<32x8xf32>
    %33 = arith.addf %30, %32 : vector<32x8xf32>
    %cst_25 = arith.constant 0.000000e+00 : f32
    %34 = vector.broadcast %cst_25 : f32 to vector<32x8xf32>
    %35 = arith.cmpf ogt, %33, %34 : vector<32x8xf32>
    %cst_26 = arith.constant 0.000000e+00 : f32
    %36 = vector.broadcast %cst_26 : f32 to vector<32x8xf32>
    %37 = arith.minimumf %33, %36 : vector<32x8xf32>
    %38 = math.exp %37 : vector<32x8xf32>
    %cst_27 = arith.constant 1.000000e+00 : f32
    %39 = vector.broadcast %cst_27 : f32 to vector<32x8xf32>
    %40 = arith.subf %38, %39 : vector<32x8xf32>
    %41 = arith.select %35, %33, %40 : vector<32x8xi1>, vector<32x8xf32>
    %c1_28 = arith.constant 1 : index
    %c0_29 = arith.constant 0 : index
    %c0_30 = arith.constant 0 : index
    %42 = vector.load %arg8[%c1_28, %c0_29, %c0_30] : memref<4x60x32xbf16, #tpu.memory_space<vmem>>, vector<1x60x32xbf16>
    %43 = vector.shape_cast %42 : vector<1x60x32xbf16> to vector<60x32xbf16>
    %c0_31 = arith.constant 0 : index
    %c0_32 = arith.constant 0 : index
    %44 = vector.load %arg7[%c0_31, %c0_32] : memref<8x32xbf16, #tpu.memory_space<vmem>>, vector<8x32xbf16>
    %45 = arith.truncf %41 : vector<32x8xf32> to vector<32x8xbf16>
    %cst_33 = arith.constant dense<0.000000e+00> : vector<32x32xf32>
    %46 = tpu.matmul %45, %44, %cst_33 {dimension_numbers = #tpu.dot_dimension_numbers<[1], [0], [0], [1], [0, 0, 1, 1], [], []>} : vector<32x8xbf16>, vector<8x32xbf16>, vector<32x32xf32> -> vector<32x32xf32>
    %47 = vector.extract_strided_slice %0 {offsets = [4, 0], sizes = [1, 32], strides = [1, 1]} : vector<24x64xf32> to vector<1x32xf32>
    %48 = vector.broadcast %47 : vector<1x32xf32> to vector<32x32xf32>
    %49 = arith.addf %46, %48 : vector<32x32xf32>
    %50 = arith.truncf %49 : vector<32x32xf32> to vector<32x32xbf16>
    %cst_34 = arith.constant dense<0.000000e+00> : vector<60x32xf32>
    %51 = tpu.matmul %43, %50, %cst_34 {dimension_numbers = #tpu.dot_dimension_numbers<[1], [0], [0], [1], [0, 0, 1, 1], [], []>} : vector<60x32xbf16>, vector<32x32xbf16>, vector<60x32xf32> -> vector<60x32xf32>
    %52 = arith.addf %15, %51 : vector<60x32xf32>
    %c1_35 = arith.constant 1 : index
    %c0_36 = arith.constant 0 : index
    %c0_37 = arith.constant 0 : index
    %53 = vector.load %arg5[%c1_35, %c0_36, %c0_37] : memref<3x8x16xbf16, #tpu.memory_space<vmem>>, vector<1x8x16xbf16>
    %54 = vector.shape_cast %53 : vector<1x8x16xbf16> to vector<8x16xbf16>
    %55 = arith.truncf %41 : vector<32x8xf32> to vector<32x8xbf16>
    %cst_38 = arith.constant dense<0.000000e+00> : vector<32x16xf32>
    %56 = tpu.matmul %55, %54, %cst_38 {dimension_numbers = #tpu.dot_dimension_numbers<[1], [0], [0], [1], [0, 0, 1, 1], [], []>} : vector<32x8xbf16>, vector<8x16xbf16>, vector<32x16xf32> -> vector<32x16xf32>
    %c2 = arith.constant 2 : index
    %c0_39 = arith.constant 0 : index
    %c0_40 = arith.constant 0 : index
    %57 = vector.load %arg6[%c2, %c0_39, %c0_40] : memref<6x32x32xbf16, #tpu.memory_space<vmem>>, vector<1x32x32xbf16>
    %58 = vector.shape_cast %57 : vector<1x32x32xbf16> to vector<32x32xbf16>
    %59 = vector.extract_strided_slice %56 {offsets = [0, 0], sizes = [32, 8], strides = [1, 1]} : vector<32x16xf32> to vector<32x8xf32>
    %60 = arith.truncf %59 : vector<32x8xf32> to vector<32x8xbf16>
    %cst_41 = arith.constant dense<0.000000e+00> : vector<32x8xf32>
    %61 = tpu.matmul %58, %60, %cst_41 {dimension_numbers = #tpu.dot_dimension_numbers<[1], [0], [0], [1], [0, 0, 1, 1], [], []>} : vector<32x32xbf16>, vector<32x8xbf16>, vector<32x8xf32> -> vector<32x8xf32>
    %c3 = arith.constant 3 : index
    %c0_42 = arith.constant 0 : index
    %c0_43 = arith.constant 0 : index
    %62 = vector.load %arg6[%c3, %c0_42, %c0_43] : memref<6x32x32xbf16, #tpu.memory_space<vmem>>, vector<1x32x32xbf16>
    %63 = vector.shape_cast %62 : vector<1x32x32xbf16> to vector<32x32xbf16>
    %64 = vector.extract_strided_slice %56 {offsets = [0, 8], sizes = [32, 8], strides = [1, 1]} : vector<32x16xf32> to vector<32x8xf32>
    %65 = arith.truncf %64 : vector<32x8xf32> to vector<32x8xbf16>
    %cst_44 = arith.constant dense<0.000000e+00> : vector<32x8xf32>
    %66 = tpu.matmul %63, %65, %cst_44 {dimension_numbers = #tpu.dot_dimension_numbers<[1], [0], [0], [1], [0, 0, 1, 1], [], []>} : vector<32x32xbf16>, vector<32x8xbf16>, vector<32x8xf32> -> vector<32x8xf32>
    %67 = arith.addf %61, %66 : vector<32x8xf32>
    %68 = vector.extract_strided_slice %0 {offsets = [2, 0], sizes = [1, 8], strides = [1, 1]} : vector<24x64xf32> to vector<1x8xf32>
    %69 = vector.broadcast %68 : vector<1x8xf32> to vector<32x8xf32>
    %70 = arith.addf %67, %69 : vector<32x8xf32>
    %cst_45 = arith.constant 0.000000e+00 : f32
    %71 = vector.broadcast %cst_45 : f32 to vector<32x8xf32>
    %72 = arith.cmpf ogt, %70, %71 : vector<32x8xf32>
    %cst_46 = arith.constant 0.000000e+00 : f32
    %73 = vector.broadcast %cst_46 : f32 to vector<32x8xf32>
    %74 = arith.minimumf %70, %73 : vector<32x8xf32>
    %75 = math.exp %74 : vector<32x8xf32>
    %cst_47 = arith.constant 1.000000e+00 : f32
    %76 = vector.broadcast %cst_47 : f32 to vector<32x8xf32>
    %77 = arith.subf %75, %76 : vector<32x8xf32>
    %78 = arith.select %72, %70, %77 : vector<32x8xi1>, vector<32x8xf32>
    %c2_48 = arith.constant 2 : index
    %c0_49 = arith.constant 0 : index
    %c0_50 = arith.constant 0 : index
    %79 = vector.load %arg8[%c2_48, %c0_49, %c0_50] : memref<4x60x32xbf16, #tpu.memory_space<vmem>>, vector<1x60x32xbf16>
    %80 = vector.shape_cast %79 : vector<1x60x32xbf16> to vector<60x32xbf16>
    %c0_51 = arith.constant 0 : index
    %c0_52 = arith.constant 0 : index
    %81 = vector.load %arg7[%c0_51, %c0_52] : memref<8x32xbf16, #tpu.memory_space<vmem>>, vector<8x32xbf16>
    %82 = arith.truncf %78 : vector<32x8xf32> to vector<32x8xbf16>
    %cst_53 = arith.constant dense<0.000000e+00> : vector<32x32xf32>
    %83 = tpu.matmul %82, %81, %cst_53 {dimension_numbers = #tpu.dot_dimension_numbers<[1], [0], [0], [1], [0, 0, 1, 1], [], []>} : vector<32x8xbf16>, vector<8x32xbf16>, vector<32x32xf32> -> vector<32x32xf32>
    %84 = vector.extract_strided_slice %0 {offsets = [4, 0], sizes = [1, 32], strides = [1, 1]} : vector<24x64xf32> to vector<1x32xf32>
    %85 = vector.broadcast %84 : vector<1x32xf32> to vector<32x32xf32>
    %86 = arith.addf %83, %85 : vector<32x32xf32>
    %87 = arith.truncf %86 : vector<32x32xf32> to vector<32x32xbf16>
    %cst_54 = arith.constant dense<0.000000e+00> : vector<60x32xf32>
    %88 = tpu.matmul %80, %87, %cst_54 {dimension_numbers = #tpu.dot_dimension_numbers<[1], [0], [0], [1], [0, 0, 1, 1], [], []>} : vector<60x32xbf16>, vector<32x32xbf16>, vector<60x32xf32> -> vector<60x32xf32>
    %89 = arith.addf %52, %88 : vector<60x32xf32>
    %c2_55 = arith.constant 2 : index
    %c0_56 = arith.constant 0 : index
    %c0_57 = arith.constant 0 : index
    %90 = vector.load %arg5[%c2_55, %c0_56, %c0_57] : memref<3x8x16xbf16, #tpu.memory_space<vmem>>, vector<1x8x16xbf16>
    %91 = vector.shape_cast %90 : vector<1x8x16xbf16> to vector<8x16xbf16>
    %92 = arith.truncf %78 : vector<32x8xf32> to vector<32x8xbf16>
    %cst_58 = arith.constant dense<0.000000e+00> : vector<32x16xf32>
    %93 = tpu.matmul %92, %91, %cst_58 {dimension_numbers = #tpu.dot_dimension_numbers<[1], [0], [0], [1], [0, 0, 1, 1], [], []>} : vector<32x8xbf16>, vector<8x16xbf16>, vector<32x16xf32> -> vector<32x16xf32>
    %c4 = arith.constant 4 : index
    %c0_59 = arith.constant 0 : index
    %c0_60 = arith.constant 0 : index
    %94 = vector.load %arg6[%c4, %c0_59, %c0_60] : memref<6x32x32xbf16, #tpu.memory_space<vmem>>, vector<1x32x32xbf16>
    %95 = vector.shape_cast %94 : vector<1x32x32xbf16> to vector<32x32xbf16>
    %96 = vector.extract_strided_slice %93 {offsets = [0, 0], sizes = [32, 8], strides = [1, 1]} : vector<32x16xf32> to vector<32x8xf32>
    %97 = arith.truncf %96 : vector<32x8xf32> to vector<32x8xbf16>
    %cst_61 = arith.constant dense<0.000000e+00> : vector<32x8xf32>
    %98 = tpu.matmul %95, %97, %cst_61 {dimension_numbers = #tpu.dot_dimension_numbers<[1], [0], [0], [1], [0, 0, 1, 1], [], []>} : vector<32x32xbf16>, vector<32x8xbf16>, vector<32x8xf32> -> vector<32x8xf32>
    %c5 = arith.constant 5 : index
    %c0_62 = arith.constant 0 : index
    %c0_63 = arith.constant 0 : index
    %99 = vector.load %arg6[%c5, %c0_62, %c0_63] : memref<6x32x32xbf16, #tpu.memory_space<vmem>>, vector<1x32x32xbf16>
    %100 = vector.shape_cast %99 : vector<1x32x32xbf16> to vector<32x32xbf16>
    %101 = vector.extract_strided_slice %93 {offsets = [0, 8], sizes = [32, 8], strides = [1, 1]} : vector<32x16xf32> to vector<32x8xf32>
    %102 = arith.truncf %101 : vector<32x8xf32> to vector<32x8xbf16>
    %cst_64 = arith.constant dense<0.000000e+00> : vector<32x8xf32>
    %103 = tpu.matmul %100, %102, %cst_64 {dimension_numbers = #tpu.dot_dimension_numbers<[1], [0], [0], [1], [0, 0, 1, 1], [], []>} : vector<32x32xbf16>, vector<32x8xbf16>, vector<32x8xf32> -> vector<32x8xf32>
    %104 = arith.addf %98, %103 : vector<32x8xf32>
    %105 = vector.extract_strided_slice %0 {offsets = [3, 0], sizes = [1, 8], strides = [1, 1]} : vector<24x64xf32> to vector<1x8xf32>
    %106 = vector.broadcast %105 : vector<1x8xf32> to vector<32x8xf32>
    %107 = arith.addf %104, %106 : vector<32x8xf32>
    %cst_65 = arith.constant 0.000000e+00 : f32
    %108 = vector.broadcast %cst_65 : f32 to vector<32x8xf32>
    %109 = arith.cmpf ogt, %107, %108 : vector<32x8xf32>
    %cst_66 = arith.constant 0.000000e+00 : f32
    %110 = vector.broadcast %cst_66 : f32 to vector<32x8xf32>
    %111 = arith.minimumf %107, %110 : vector<32x8xf32>
    %112 = math.exp %111 : vector<32x8xf32>
    %cst_67 = arith.constant 1.000000e+00 : f32
    %113 = vector.broadcast %cst_67 : f32 to vector<32x8xf32>
    %114 = arith.subf %112, %113 : vector<32x8xf32>
    %115 = arith.select %109, %107, %114 : vector<32x8xi1>, vector<32x8xf32>
    %c3_68 = arith.constant 3 : index
    %c0_69 = arith.constant 0 : index
    %c0_70 = arith.constant 0 : index
    %116 = vector.load %arg8[%c3_68, %c0_69, %c0_70] : memref<4x60x32xbf16, #tpu.memory_space<vmem>>, vector<1x60x32xbf16>
    %117 = vector.shape_cast %116 : vector<1x60x32xbf16> to vector<60x32xbf16>
    %c0_71 = arith.constant 0 : index
    %c0_72 = arith.constant 0 : index
    %118 = vector.load %arg7[%c0_71, %c0_72] : memref<8x32xbf16, #tpu.memory_space<vmem>>, vector<8x32xbf16>
    %119 = arith.truncf %115 : vector<32x8xf32> to vector<32x8xbf16>
    %cst_73 = arith.constant dense<0.000000e+00> : vector<32x32xf32>
    %120 = tpu.matmul %119, %118, %cst_73 {dimension_numbers = #tpu.dot_dimension_numbers<[1], [0], [0], [1], [0, 0, 1, 1], [], []>} : vector<32x8xbf16>, vector<8x32xbf16>, vector<32x32xf32> -> vector<32x32xf32>
    %121 = vector.extract_strided_slice %0 {offsets = [4, 0], sizes = [1, 32], strides = [1, 1]} : vector<24x64xf32> to vector<1x32xf32>
    %122 = vector.broadcast %121 : vector<1x32xf32> to vector<32x32xf32>
    %123 = arith.addf %120, %122 : vector<32x32xf32>
    %124 = arith.truncf %123 : vector<32x32xf32> to vector<32x32xbf16>
    %cst_74 = arith.constant dense<0.000000e+00> : vector<60x32xf32>
    %125 = tpu.matmul %117, %124, %cst_74 {dimension_numbers = #tpu.dot_dimension_numbers<[1], [0], [0], [1], [0, 0, 1, 1], [], []>} : vector<60x32xbf16>, vector<32x32xbf16>, vector<60x32xf32> -> vector<60x32xf32>
    %126 = arith.addf %89, %125 : vector<60x32xf32>
    %127 = vector.extract_strided_slice %0 {offsets = [5, 0], sizes = [1, 32], strides = [1, 1]} : vector<24x64xf32> to vector<1x32xf32>
    %128 = vector.extract_strided_slice %0 {offsets = [6, 0], sizes = [1, 32], strides = [1, 1]} : vector<24x64xf32> to vector<1x32xf32>
    %cst_75 = arith.constant dense<0.000000e+00> : vector<60xf32>
    %129 = vector.multi_reduction <add>, %126, %cst_75 [1] : vector<60x32xf32> to vector<60xf32>
    %130 = vector.shape_cast %129 : vector<60xf32> to vector<60x1xf32>
    %cst_76 = arith.constant 3.200000e+01 : f32
    %131 = vector.broadcast %cst_76 : f32 to vector<60x1xf32>
    %132 = arith.divf %130, %131 : vector<60x1xf32>
    %133 = vector.broadcast %132 : vector<60x1xf32> to vector<60x32xf32>
    %134 = arith.subf %126, %133 : vector<60x32xf32>
    %135 = arith.mulf %134, %134 : vector<60x32xf32>
    %cst_77 = arith.constant dense<0.000000e+00> : vector<60xf32>
    %136 = vector.multi_reduction <add>, %135, %cst_77 [1] : vector<60x32xf32> to vector<60xf32>
    %137 = vector.shape_cast %136 : vector<60xf32> to vector<60x1xf32>
    %cst_78 = arith.constant 3.200000e+01 : f32
    %138 = vector.broadcast %cst_78 : f32 to vector<60x1xf32>
    %139 = arith.divf %137, %138 : vector<60x1xf32>
    %140 = vector.broadcast %132 : vector<60x1xf32> to vector<60x32xf32>
    %141 = arith.subf %126, %140 : vector<60x32xf32>
    %cst_79 = arith.constant 9.99999974E-6 : f32
    %142 = vector.broadcast %cst_79 : f32 to vector<60x1xf32>
    %143 = arith.addf %139, %142 : vector<60x1xf32>
    %144 = math.rsqrt %143 : vector<60x1xf32>
    %145 = vector.broadcast %144 : vector<60x1xf32> to vector<60x32xf32>
    %146 = arith.mulf %141, %145 : vector<60x32xf32>
    %147 = vector.broadcast %127 : vector<1x32xf32> to vector<60x32xf32>
    %148 = arith.mulf %146, %147 : vector<60x32xf32>
    %149 = vector.broadcast %128 : vector<1x32xf32> to vector<60x32xf32>
    %150 = arith.addf %148, %149 : vector<60x32xf32>
    %c0_80 = arith.constant 0 : index
    %c0_81 = arith.constant 0 : index
    %151 = vector.load %arg9[%c0_80, %c0_81] : memref<60x60xf32, #tpu.memory_space<vmem>>, vector<60x60xf32>
    %152 = arith.truncf %150 : vector<60x32xf32> to vector<60x32xbf16>
    %c0_82 = arith.constant 0 : index
    %c0_83 = arith.constant 0 : index
    %c0_84 = arith.constant 0 : index
    %153 = vector.load %arg10[%c0_82, %c0_83, %c0_84] : memref<2x32x256xbf16, #tpu.memory_space<vmem>>, vector<1x32x256xbf16>
    %154 = vector.shape_cast %153 : vector<1x32x256xbf16> to vector<32x256xbf16>
    %cst_85 = arith.constant dense<0.000000e+00> : vector<60x256xf32>
    %155 = tpu.matmul %152, %154, %cst_85 {dimension_numbers = #tpu.dot_dimension_numbers<[1], [0], [0], [1], [0, 0, 1, 1], [], []>} : vector<60x32xbf16>, vector<32x256xbf16>, vector<60x256xf32> -> vector<60x256xf32>
    %cst_86 = arith.constant 0.000000e+00 : f32
    %156 = vector.broadcast %cst_86 : f32 to vector<60x32xf32>
    %157 = vector.extract_strided_slice %155 {offsets = [0, 0], sizes = [60, 32], strides = [1, 1]} : vector<60x256xf32> to vector<60x32xf32>
    %158 = vector.extract_strided_slice %155 {offsets = [0, 128], sizes = [60, 32], strides = [1, 1]} : vector<60x256xf32> to vector<60x32xf32>
    %159 = arith.truncf %157 : vector<60x32xf32> to vector<60x32xbf16>
    %cst_87 = arith.constant dense<0.000000e+00> : vector<60x60xf32>
    %160 = tpu.matmul %159, %152, %cst_87 {dimension_numbers = #tpu.dot_dimension_numbers<[1], [1], [0], [0], [0, 0, 1, 0], [], []>} : vector<60x32xbf16>, vector<60x32xbf16>, vector<60x60xf32> -> vector<60x60xf32>
    %161 = arith.addf %160, %151 : vector<60x60xf32>
    %cst_88 = arith.constant dense<0xFF800000> : vector<60xf32>
    %162 = vector.multi_reduction <maximumf>, %161, %cst_88 [1] : vector<60x60xf32> to vector<60xf32>
    %163 = vector.shape_cast %162 : vector<60xf32> to vector<60x1xf32>
    %164 = vector.broadcast %163 : vector<60x1xf32> to vector<60x60xf32>
    %165 = arith.subf %161, %164 : vector<60x60xf32>
    %166 = math.exp %165 : vector<60x60xf32>
    %cst_89 = arith.constant dense<0.000000e+00> : vector<60xf32>
    %167 = vector.multi_reduction <add>, %166, %cst_89 [1] : vector<60x60xf32> to vector<60xf32>
    %168 = vector.shape_cast %167 : vector<60xf32> to vector<60x1xf32>
    %169 = tpu.reciprocal %168 {approx = true} : vector<60x1xf32> -> vector<60x1xf32>
    %170 = vector.broadcast %169 : vector<60x1xf32> to vector<60x60xf32>
    %171 = arith.mulf %166, %170 : vector<60x60xf32>
    %172 = arith.truncf %171 : vector<60x60xf32> to vector<60x60xbf16>
    %173 = arith.truncf %158 : vector<60x32xf32> to vector<60x32xbf16>
    %cst_90 = arith.constant dense<0.000000e+00> : vector<60x32xf32>
    %174 = tpu.matmul %172, %173, %cst_90 {dimension_numbers = #tpu.dot_dimension_numbers<[1], [0], [0], [1], [0, 0, 1, 1], [], []>} : vector<60x60xbf16>, vector<60x32xbf16>, vector<60x32xf32> -> vector<60x32xf32>
    %175 = arith.addf %156, %174 : vector<60x32xf32>
    %176 = vector.extract_strided_slice %155 {offsets = [0, 32], sizes = [60, 32], strides = [1, 1]} : vector<60x256xf32> to vector<60x32xf32>
    %177 = vector.extract_strided_slice %155 {offsets = [0, 160], sizes = [60, 32], strides = [1, 1]} : vector<60x256xf32> to vector<60x32xf32>
    %178 = arith.truncf %176 : vector<60x32xf32> to vector<60x32xbf16>
    %cst_91 = arith.constant dense<0.000000e+00> : vector<60x60xf32>
    %179 = tpu.matmul %178, %152, %cst_91 {dimension_numbers = #tpu.dot_dimension_numbers<[1], [1], [0], [0], [0, 0, 1, 0], [], []>} : vector<60x32xbf16>, vector<60x32xbf16>, vector<60x60xf32> -> vector<60x60xf32>
    %180 = arith.addf %179, %151 : vector<60x60xf32>
    %cst_92 = arith.constant dense<0xFF800000> : vector<60xf32>
    %181 = vector.multi_reduction <maximumf>, %180, %cst_92 [1] : vector<60x60xf32> to vector<60xf32>
    %182 = vector.shape_cast %181 : vector<60xf32> to vector<60x1xf32>
    %183 = vector.broadcast %182 : vector<60x1xf32> to vector<60x60xf32>
    %184 = arith.subf %180, %183 : vector<60x60xf32>
    %185 = math.exp %184 : vector<60x60xf32>
    %cst_93 = arith.constant dense<0.000000e+00> : vector<60xf32>
    %186 = vector.multi_reduction <add>, %185, %cst_93 [1] : vector<60x60xf32> to vector<60xf32>
    %187 = vector.shape_cast %186 : vector<60xf32> to vector<60x1xf32>
    %188 = tpu.reciprocal %187 {approx = true} : vector<60x1xf32> -> vector<60x1xf32>
    %189 = vector.broadcast %188 : vector<60x1xf32> to vector<60x60xf32>
    %190 = arith.mulf %185, %189 : vector<60x60xf32>
    %191 = arith.truncf %190 : vector<60x60xf32> to vector<60x60xbf16>
    %192 = arith.truncf %177 : vector<60x32xf32> to vector<60x32xbf16>
    %cst_94 = arith.constant dense<0.000000e+00> : vector<60x32xf32>
    %193 = tpu.matmul %191, %192, %cst_94 {dimension_numbers = #tpu.dot_dimension_numbers<[1], [0], [0], [1], [0, 0, 1, 1], [], []>} : vector<60x60xbf16>, vector<60x32xbf16>, vector<60x32xf32> -> vector<60x32xf32>
    %194 = arith.addf %175, %193 : vector<60x32xf32>
    %195 = vector.extract_strided_slice %155 {offsets = [0, 64], sizes = [60, 32], strides = [1, 1]} : vector<60x256xf32> to vector<60x32xf32>
    %196 = vector.extract_strided_slice %155 {offsets = [0, 192], sizes = [60, 32], strides = [1, 1]} : vector<60x256xf32> to vector<60x32xf32>
    %197 = arith.truncf %195 : vector<60x32xf32> to vector<60x32xbf16>
    %cst_95 = arith.constant dense<0.000000e+00> : vector<60x60xf32>
    %198 = tpu.matmul %197, %152, %cst_95 {dimension_numbers = #tpu.dot_dimension_numbers<[1], [1], [0], [0], [0, 0, 1, 0], [], []>} : vector<60x32xbf16>, vector<60x32xbf16>, vector<60x60xf32> -> vector<60x60xf32>
    %199 = arith.addf %198, %151 : vector<60x60xf32>
    %cst_96 = arith.constant dense<0xFF800000> : vector<60xf32>
    %200 = vector.multi_reduction <maximumf>, %199, %cst_96 [1] : vector<60x60xf32> to vector<60xf32>
    %201 = vector.shape_cast %200 : vector<60xf32> to vector<60x1xf32>
    %202 = vector.broadcast %201 : vector<60x1xf32> to vector<60x60xf32>
    %203 = arith.subf %199, %202 : vector<60x60xf32>
    %204 = math.exp %203 : vector<60x60xf32>
    %cst_97 = arith.constant dense<0.000000e+00> : vector<60xf32>
    %205 = vector.multi_reduction <add>, %204, %cst_97 [1] : vector<60x60xf32> to vector<60xf32>
    %206 = vector.shape_cast %205 : vector<60xf32> to vector<60x1xf32>
    %207 = tpu.reciprocal %206 {approx = true} : vector<60x1xf32> -> vector<60x1xf32>
    %208 = vector.broadcast %207 : vector<60x1xf32> to vector<60x60xf32>
    %209 = arith.mulf %204, %208 : vector<60x60xf32>
    %210 = arith.truncf %209 : vector<60x60xf32> to vector<60x60xbf16>
    %211 = arith.truncf %196 : vector<60x32xf32> to vector<60x32xbf16>
    %cst_98 = arith.constant dense<0.000000e+00> : vector<60x32xf32>
    %212 = tpu.matmul %210, %211, %cst_98 {dimension_numbers = #tpu.dot_dimension_numbers<[1], [0], [0], [1], [0, 0, 1, 1], [], []>} : vector<60x60xbf16>, vector<60x32xbf16>, vector<60x32xf32> -> vector<60x32xf32>
    %213 = arith.addf %194, %212 : vector<60x32xf32>
    %214 = vector.extract_strided_slice %155 {offsets = [0, 96], sizes = [60, 32], strides = [1, 1]} : vector<60x256xf32> to vector<60x32xf32>
    %215 = vector.extract_strided_slice %155 {offsets = [0, 224], sizes = [60, 32], strides = [1, 1]} : vector<60x256xf32> to vector<60x32xf32>
    %216 = arith.truncf %214 : vector<60x32xf32> to vector<60x32xbf16>
    %cst_99 = arith.constant dense<0.000000e+00> : vector<60x60xf32>
    %217 = tpu.matmul %216, %152, %cst_99 {dimension_numbers = #tpu.dot_dimension_numbers<[1], [1], [0], [0], [0, 0, 1, 0], [], []>} : vector<60x32xbf16>, vector<60x32xbf16>, vector<60x60xf32> -> vector<60x60xf32>
    %218 = arith.addf %217, %151 : vector<60x60xf32>
    %cst_100 = arith.constant dense<0xFF800000> : vector<60xf32>
    %219 = vector.multi_reduction <maximumf>, %218, %cst_100 [1] : vector<60x60xf32> to vector<60xf32>
    %220 = vector.shape_cast %219 : vector<60xf32> to vector<60x1xf32>
    %221 = vector.broadcast %220 : vector<60x1xf32> to vector<60x60xf32>
    %222 = arith.subf %218, %221 : vector<60x60xf32>
    %223 = math.exp %222 : vector<60x60xf32>
    %cst_101 = arith.constant dense<0.000000e+00> : vector<60xf32>
    %224 = vector.multi_reduction <add>, %223, %cst_101 [1] : vector<60x60xf32> to vector<60xf32>
    %225 = vector.shape_cast %224 : vector<60xf32> to vector<60x1xf32>
    %226 = tpu.reciprocal %225 {approx = true} : vector<60x1xf32> -> vector<60x1xf32>
    %227 = vector.broadcast %226 : vector<60x1xf32> to vector<60x60xf32>
    %228 = arith.mulf %223, %227 : vector<60x60xf32>
    %229 = arith.truncf %228 : vector<60x60xf32> to vector<60x60xbf16>
    %230 = arith.truncf %215 : vector<60x32xf32> to vector<60x32xbf16>
    %cst_102 = arith.constant dense<0.000000e+00> : vector<60x32xf32>
    %231 = tpu.matmul %229, %230, %cst_102 {dimension_numbers = #tpu.dot_dimension_numbers<[1], [0], [0], [1], [0, 0, 1, 1], [], []>} : vector<60x60xbf16>, vector<60x32xbf16>, vector<60x32xf32> -> vector<60x32xf32>
    %232 = arith.addf %213, %231 : vector<60x32xf32>
    %233 = vector.extract_strided_slice %0 {offsets = [7, 0], sizes = [1, 32], strides = [1, 1]} : vector<24x64xf32> to vector<1x32xf32>
    %234 = vector.broadcast %233 : vector<1x32xf32> to vector<60x32xf32>
    %235 = arith.addf %232, %234 : vector<60x32xf32>
    %236 = arith.addf %235, %150 : vector<60x32xf32>
    %237 = vector.extract_strided_slice %0 {offsets = [9, 0], sizes = [1, 32], strides = [1, 1]} : vector<24x64xf32> to vector<1x32xf32>
    %238 = vector.extract_strided_slice %0 {offsets = [11, 0], sizes = [1, 32], strides = [1, 1]} : vector<24x64xf32> to vector<1x32xf32>
    %cst_103 = arith.constant dense<0.000000e+00> : vector<60xf32>
    %239 = vector.multi_reduction <add>, %236, %cst_103 [1] : vector<60x32xf32> to vector<60xf32>
    %240 = vector.shape_cast %239 : vector<60xf32> to vector<60x1xf32>
    %cst_104 = arith.constant 3.200000e+01 : f32
    %241 = vector.broadcast %cst_104 : f32 to vector<60x1xf32>
    %242 = arith.divf %240, %241 : vector<60x1xf32>
    %243 = vector.broadcast %242 : vector<60x1xf32> to vector<60x32xf32>
    %244 = arith.subf %236, %243 : vector<60x32xf32>
    %245 = arith.mulf %244, %244 : vector<60x32xf32>
    %cst_105 = arith.constant dense<0.000000e+00> : vector<60xf32>
    %246 = vector.multi_reduction <add>, %245, %cst_105 [1] : vector<60x32xf32> to vector<60xf32>
    %247 = vector.shape_cast %246 : vector<60xf32> to vector<60x1xf32>
    %cst_106 = arith.constant 3.200000e+01 : f32
    %248 = vector.broadcast %cst_106 : f32 to vector<60x1xf32>
    %249 = arith.divf %247, %248 : vector<60x1xf32>
    %250 = vector.broadcast %242 : vector<60x1xf32> to vector<60x32xf32>
    %251 = arith.subf %236, %250 : vector<60x32xf32>
    %cst_107 = arith.constant 9.99999997E-7 : f32
    %252 = vector.broadcast %cst_107 : f32 to vector<60x1xf32>
    %253 = arith.addf %249, %252 : vector<60x1xf32>
    %254 = math.rsqrt %253 : vector<60x1xf32>
    %255 = vector.broadcast %254 : vector<60x1xf32> to vector<60x32xf32>
    %256 = arith.mulf %251, %255 : vector<60x32xf32>
    %257 = vector.broadcast %237 : vector<1x32xf32> to vector<60x32xf32>
    %258 = arith.mulf %256, %257 : vector<60x32xf32>
    %259 = vector.broadcast %238 : vector<1x32xf32> to vector<60x32xf32>
    %260 = arith.addf %258, %259 : vector<60x32xf32>
    %c0_108 = arith.constant 0 : index
    %c0_109 = arith.constant 0 : index
    %c0_110 = arith.constant 0 : index
    %261 = vector.load %arg11[%c0_108, %c0_109, %c0_110] : memref<2x32x64xbf16, #tpu.memory_space<vmem>>, vector<1x32x64xbf16>
    %262 = vector.shape_cast %261 : vector<1x32x64xbf16> to vector<32x64xbf16>
    %263 = arith.truncf %260 : vector<60x32xf32> to vector<60x32xbf16>
    %cst_111 = arith.constant dense<0.000000e+00> : vector<60x64xf32>
    %264 = tpu.matmul %263, %262, %cst_111 {dimension_numbers = #tpu.dot_dimension_numbers<[1], [0], [0], [1], [0, 0, 1, 1], [], []>} : vector<60x32xbf16>, vector<32x64xbf16>, vector<60x64xf32> -> vector<60x64xf32>
    %265 = vector.extract_strided_slice %0 {offsets = [13, 0], sizes = [1, 64], strides = [1, 1]} : vector<24x64xf32> to vector<1x64xf32>
    %266 = vector.broadcast %265 : vector<1x64xf32> to vector<60x64xf32>
    %267 = arith.addf %264, %266 : vector<60x64xf32>
    %cst_112 = arith.constant 5.000000e-01 : f32
    %268 = vector.broadcast %cst_112 : f32 to vector<60x64xf32>
    %269 = arith.mulf %268, %267 : vector<60x64xf32>
    %cst_113 = arith.constant 0.707106769 : f32
    %270 = vector.broadcast %cst_113 : f32 to vector<60x64xf32>
    %271 = arith.mulf %267, %270 : vector<60x64xf32>
    %272 = math.erf %271 : vector<60x64xf32>
    %cst_114 = arith.constant 1.000000e+00 : f32
    %273 = vector.broadcast %cst_114 : f32 to vector<60x64xf32>
    %274 = arith.addf %273, %272 : vector<60x64xf32>
    %275 = arith.mulf %269, %274 : vector<60x64xf32>
    %c0_115 = arith.constant 0 : index
    %c0_116 = arith.constant 0 : index
    %c0_117 = arith.constant 0 : index
    %276 = vector.load %arg12[%c0_115, %c0_116, %c0_117] : memref<2x64x32xbf16, #tpu.memory_space<vmem>>, vector<1x64x32xbf16>
    %277 = vector.shape_cast %276 : vector<1x64x32xbf16> to vector<64x32xbf16>
    %278 = arith.truncf %275 : vector<60x64xf32> to vector<60x64xbf16>
    %cst_118 = arith.constant dense<0.000000e+00> : vector<60x32xf32>
    %279 = tpu.matmul %278, %277, %cst_118 {dimension_numbers = #tpu.dot_dimension_numbers<[1], [0], [0], [1], [0, 0, 1, 1], [], []>} : vector<60x64xbf16>, vector<64x32xbf16>, vector<60x32xf32> -> vector<60x32xf32>
    %280 = vector.extract_strided_slice %0 {offsets = [15, 0], sizes = [1, 32], strides = [1, 1]} : vector<24x64xf32> to vector<1x32xf32>
    %281 = vector.broadcast %280 : vector<1x32xf32> to vector<60x32xf32>
    %282 = arith.addf %279, %281 : vector<60x32xf32>
    %283 = arith.addf %282, %260 : vector<60x32xf32>
    %284 = vector.extract_strided_slice %0 {offsets = [17, 0], sizes = [1, 32], strides = [1, 1]} : vector<24x64xf32> to vector<1x32xf32>
    %285 = vector.extract_strided_slice %0 {offsets = [19, 0], sizes = [1, 32], strides = [1, 1]} : vector<24x64xf32> to vector<1x32xf32>
    %cst_119 = arith.constant dense<0.000000e+00> : vector<60xf32>
    %286 = vector.multi_reduction <add>, %283, %cst_119 [1] : vector<60x32xf32> to vector<60xf32>
    %287 = vector.shape_cast %286 : vector<60xf32> to vector<60x1xf32>
    %cst_120 = arith.constant 3.200000e+01 : f32
    %288 = vector.broadcast %cst_120 : f32 to vector<60x1xf32>
    %289 = arith.divf %287, %288 : vector<60x1xf32>
    %290 = vector.broadcast %289 : vector<60x1xf32> to vector<60x32xf32>
    %291 = arith.subf %283, %290 : vector<60x32xf32>
    %292 = arith.mulf %291, %291 : vector<60x32xf32>
    %cst_121 = arith.constant dense<0.000000e+00> : vector<60xf32>
    %293 = vector.multi_reduction <add>, %292, %cst_121 [1] : vector<60x32xf32> to vector<60xf32>
    %294 = vector.shape_cast %293 : vector<60xf32> to vector<60x1xf32>
    %cst_122 = arith.constant 3.200000e+01 : f32
    %295 = vector.broadcast %cst_122 : f32 to vector<60x1xf32>
    %296 = arith.divf %294, %295 : vector<60x1xf32>
    %297 = vector.broadcast %289 : vector<60x1xf32> to vector<60x32xf32>
    %298 = arith.subf %283, %297 : vector<60x32xf32>
    %cst_123 = arith.constant 9.99999997E-7 : f32
    %299 = vector.broadcast %cst_123 : f32 to vector<60x1xf32>
    %300 = arith.addf %296, %299 : vector<60x1xf32>
    %301 = math.rsqrt %300 : vector<60x1xf32>
    %302 = vector.broadcast %301 : vector<60x1xf32> to vector<60x32xf32>
    %303 = arith.mulf %298, %302 : vector<60x32xf32>
    %304 = vector.broadcast %284 : vector<1x32xf32> to vector<60x32xf32>
    %305 = arith.mulf %303, %304 : vector<60x32xf32>
    %306 = vector.broadcast %285 : vector<1x32xf32> to vector<60x32xf32>
    %307 = arith.addf %305, %306 : vector<60x32xf32>
    %308 = arith.truncf %307 : vector<60x32xf32> to vector<60x32xbf16>
    %c1_124 = arith.constant 1 : index
    %c0_125 = arith.constant 0 : index
    %c0_126 = arith.constant 0 : index
    %309 = vector.load %arg10[%c1_124, %c0_125, %c0_126] : memref<2x32x256xbf16, #tpu.memory_space<vmem>>, vector<1x32x256xbf16>
    %310 = vector.shape_cast %309 : vector<1x32x256xbf16> to vector<32x256xbf16>
    %cst_127 = arith.constant dense<0.000000e+00> : vector<60x256xf32>
    %311 = tpu.matmul %308, %310, %cst_127 {dimension_numbers = #tpu.dot_dimension_numbers<[1], [0], [0], [1], [0, 0, 1, 1], [], []>} : vector<60x32xbf16>, vector<32x256xbf16>, vector<60x256xf32> -> vector<60x256xf32>
    %cst_128 = arith.constant 0.000000e+00 : f32
    %312 = vector.broadcast %cst_128 : f32 to vector<60x32xf32>
    %313 = vector.extract_strided_slice %311 {offsets = [0, 0], sizes = [60, 32], strides = [1, 1]} : vector<60x256xf32> to vector<60x32xf32>
    %314 = vector.extract_strided_slice %311 {offsets = [0, 128], sizes = [60, 32], strides = [1, 1]} : vector<60x256xf32> to vector<60x32xf32>
    %315 = arith.truncf %313 : vector<60x32xf32> to vector<60x32xbf16>
    %cst_129 = arith.constant dense<0.000000e+00> : vector<60x60xf32>
    %316 = tpu.matmul %315, %308, %cst_129 {dimension_numbers = #tpu.dot_dimension_numbers<[1], [1], [0], [0], [0, 0, 1, 0], [], []>} : vector<60x32xbf16>, vector<60x32xbf16>, vector<60x60xf32> -> vector<60x60xf32>
    %317 = arith.addf %316, %151 : vector<60x60xf32>
    %cst_130 = arith.constant dense<0xFF800000> : vector<60xf32>
    %318 = vector.multi_reduction <maximumf>, %317, %cst_130 [1] : vector<60x60xf32> to vector<60xf32>
    %319 = vector.shape_cast %318 : vector<60xf32> to vector<60x1xf32>
    %320 = vector.broadcast %319 : vector<60x1xf32> to vector<60x60xf32>
    %321 = arith.subf %317, %320 : vector<60x60xf32>
    %322 = math.exp %321 : vector<60x60xf32>
    %cst_131 = arith.constant dense<0.000000e+00> : vector<60xf32>
    %323 = vector.multi_reduction <add>, %322, %cst_131 [1] : vector<60x60xf32> to vector<60xf32>
    %324 = vector.shape_cast %323 : vector<60xf32> to vector<60x1xf32>
    %325 = tpu.reciprocal %324 {approx = true} : vector<60x1xf32> -> vector<60x1xf32>
    %326 = vector.broadcast %325 : vector<60x1xf32> to vector<60x60xf32>
    %327 = arith.mulf %322, %326 : vector<60x60xf32>
    %328 = arith.truncf %327 : vector<60x60xf32> to vector<60x60xbf16>
    %329 = arith.truncf %314 : vector<60x32xf32> to vector<60x32xbf16>
    %cst_132 = arith.constant dense<0.000000e+00> : vector<60x32xf32>
    %330 = tpu.matmul %328, %329, %cst_132 {dimension_numbers = #tpu.dot_dimension_numbers<[1], [0], [0], [1], [0, 0, 1, 1], [], []>} : vector<60x60xbf16>, vector<60x32xbf16>, vector<60x32xf32> -> vector<60x32xf32>
    %331 = arith.addf %312, %330 : vector<60x32xf32>
    %332 = vector.extract_strided_slice %311 {offsets = [0, 32], sizes = [60, 32], strides = [1, 1]} : vector<60x256xf32> to vector<60x32xf32>
    %333 = vector.extract_strided_slice %311 {offsets = [0, 160], sizes = [60, 32], strides = [1, 1]} : vector<60x256xf32> to vector<60x32xf32>
    %334 = arith.truncf %332 : vector<60x32xf32> to vector<60x32xbf16>
    %cst_133 = arith.constant dense<0.000000e+00> : vector<60x60xf32>
    %335 = tpu.matmul %334, %308, %cst_133 {dimension_numbers = #tpu.dot_dimension_numbers<[1], [1], [0], [0], [0, 0, 1, 0], [], []>} : vector<60x32xbf16>, vector<60x32xbf16>, vector<60x60xf32> -> vector<60x60xf32>
    %336 = arith.addf %335, %151 : vector<60x60xf32>
    %cst_134 = arith.constant dense<0xFF800000> : vector<60xf32>
    %337 = vector.multi_reduction <maximumf>, %336, %cst_134 [1] : vector<60x60xf32> to vector<60xf32>
    %338 = vector.shape_cast %337 : vector<60xf32> to vector<60x1xf32>
    %339 = vector.broadcast %338 : vector<60x1xf32> to vector<60x60xf32>
    %340 = arith.subf %336, %339 : vector<60x60xf32>
    %341 = math.exp %340 : vector<60x60xf32>
    %cst_135 = arith.constant dense<0.000000e+00> : vector<60xf32>
    %342 = vector.multi_reduction <add>, %341, %cst_135 [1] : vector<60x60xf32> to vector<60xf32>
    %343 = vector.shape_cast %342 : vector<60xf32> to vector<60x1xf32>
    %344 = tpu.reciprocal %343 {approx = true} : vector<60x1xf32> -> vector<60x1xf32>
    %345 = vector.broadcast %344 : vector<60x1xf32> to vector<60x60xf32>
    %346 = arith.mulf %341, %345 : vector<60x60xf32>
    %347 = arith.truncf %346 : vector<60x60xf32> to vector<60x60xbf16>
    %348 = arith.truncf %333 : vector<60x32xf32> to vector<60x32xbf16>
    %cst_136 = arith.constant dense<0.000000e+00> : vector<60x32xf32>
    %349 = tpu.matmul %347, %348, %cst_136 {dimension_numbers = #tpu.dot_dimension_numbers<[1], [0], [0], [1], [0, 0, 1, 1], [], []>} : vector<60x60xbf16>, vector<60x32xbf16>, vector<60x32xf32> -> vector<60x32xf32>
    %350 = arith.addf %331, %349 : vector<60x32xf32>
    %351 = vector.extract_strided_slice %311 {offsets = [0, 64], sizes = [60, 32], strides = [1, 1]} : vector<60x256xf32> to vector<60x32xf32>
    %352 = vector.extract_strided_slice %311 {offsets = [0, 192], sizes = [60, 32], strides = [1, 1]} : vector<60x256xf32> to vector<60x32xf32>
    %353 = arith.truncf %351 : vector<60x32xf32> to vector<60x32xbf16>
    %cst_137 = arith.constant dense<0.000000e+00> : vector<60x60xf32>
    %354 = tpu.matmul %353, %308, %cst_137 {dimension_numbers = #tpu.dot_dimension_numbers<[1], [1], [0], [0], [0, 0, 1, 0], [], []>} : vector<60x32xbf16>, vector<60x32xbf16>, vector<60x60xf32> -> vector<60x60xf32>
    %355 = arith.addf %354, %151 : vector<60x60xf32>
    %cst_138 = arith.constant dense<0xFF800000> : vector<60xf32>
    %356 = vector.multi_reduction <maximumf>, %355, %cst_138 [1] : vector<60x60xf32> to vector<60xf32>
    %357 = vector.shape_cast %356 : vector<60xf32> to vector<60x1xf32>
    %358 = vector.broadcast %357 : vector<60x1xf32> to vector<60x60xf32>
    %359 = arith.subf %355, %358 : vector<60x60xf32>
    %360 = math.exp %359 : vector<60x60xf32>
    %cst_139 = arith.constant dense<0.000000e+00> : vector<60xf32>
    %361 = vector.multi_reduction <add>, %360, %cst_139 [1] : vector<60x60xf32> to vector<60xf32>
    %362 = vector.shape_cast %361 : vector<60xf32> to vector<60x1xf32>
    %363 = tpu.reciprocal %362 {approx = true} : vector<60x1xf32> -> vector<60x1xf32>
    %364 = vector.broadcast %363 : vector<60x1xf32> to vector<60x60xf32>
    %365 = arith.mulf %360, %364 : vector<60x60xf32>
    %366 = arith.truncf %365 : vector<60x60xf32> to vector<60x60xbf16>
    %367 = arith.truncf %352 : vector<60x32xf32> to vector<60x32xbf16>
    %cst_140 = arith.constant dense<0.000000e+00> : vector<60x32xf32>
    %368 = tpu.matmul %366, %367, %cst_140 {dimension_numbers = #tpu.dot_dimension_numbers<[1], [0], [0], [1], [0, 0, 1, 1], [], []>} : vector<60x60xbf16>, vector<60x32xbf16>, vector<60x32xf32> -> vector<60x32xf32>
    %369 = arith.addf %350, %368 : vector<60x32xf32>
    %370 = vector.extract_strided_slice %311 {offsets = [0, 96], sizes = [60, 32], strides = [1, 1]} : vector<60x256xf32> to vector<60x32xf32>
    %371 = vector.extract_strided_slice %311 {offsets = [0, 224], sizes = [60, 32], strides = [1, 1]} : vector<60x256xf32> to vector<60x32xf32>
    %372 = arith.truncf %370 : vector<60x32xf32> to vector<60x32xbf16>
    %cst_141 = arith.constant dense<0.000000e+00> : vector<60x60xf32>
    %373 = tpu.matmul %372, %308, %cst_141 {dimension_numbers = #tpu.dot_dimension_numbers<[1], [1], [0], [0], [0, 0, 1, 0], [], []>} : vector<60x32xbf16>, vector<60x32xbf16>, vector<60x60xf32> -> vector<60x60xf32>
    %374 = arith.addf %373, %151 : vector<60x60xf32>
    %cst_142 = arith.constant dense<0xFF800000> : vector<60xf32>
    %375 = vector.multi_reduction <maximumf>, %374, %cst_142 [1] : vector<60x60xf32> to vector<60xf32>
    %376 = vector.shape_cast %375 : vector<60xf32> to vector<60x1xf32>
    %377 = vector.broadcast %376 : vector<60x1xf32> to vector<60x60xf32>
    %378 = arith.subf %374, %377 : vector<60x60xf32>
    %379 = math.exp %378 : vector<60x60xf32>
    %cst_143 = arith.constant dense<0.000000e+00> : vector<60xf32>
    %380 = vector.multi_reduction <add>, %379, %cst_143 [1] : vector<60x60xf32> to vector<60xf32>
    %381 = vector.shape_cast %380 : vector<60xf32> to vector<60x1xf32>
    %382 = tpu.reciprocal %381 {approx = true} : vector<60x1xf32> -> vector<60x1xf32>
    %383 = vector.broadcast %382 : vector<60x1xf32> to vector<60x60xf32>
    %384 = arith.mulf %379, %383 : vector<60x60xf32>
    %385 = arith.truncf %384 : vector<60x60xf32> to vector<60x60xbf16>
    %386 = arith.truncf %371 : vector<60x32xf32> to vector<60x32xbf16>
    %cst_144 = arith.constant dense<0.000000e+00> : vector<60x32xf32>
    %387 = tpu.matmul %385, %386, %cst_144 {dimension_numbers = #tpu.dot_dimension_numbers<[1], [0], [0], [1], [0, 0, 1, 1], [], []>} : vector<60x60xbf16>, vector<60x32xbf16>, vector<60x32xf32> -> vector<60x32xf32>
    %388 = arith.addf %369, %387 : vector<60x32xf32>
    %389 = vector.extract_strided_slice %0 {offsets = [8, 0], sizes = [1, 32], strides = [1, 1]} : vector<24x64xf32> to vector<1x32xf32>
    %390 = vector.broadcast %389 : vector<1x32xf32> to vector<60x32xf32>
    %391 = arith.addf %388, %390 : vector<60x32xf32>
    %392 = arith.addf %391, %307 : vector<60x32xf32>
    %393 = vector.extract_strided_slice %0 {offsets = [10, 0], sizes = [1, 32], strides = [1, 1]} : vector<24x64xf32> to vector<1x32xf32>
    %394 = vector.extract_strided_slice %0 {offsets = [12, 0], sizes = [1, 32], strides = [1, 1]} : vector<24x64xf32> to vector<1x32xf32>
    %cst_145 = arith.constant dense<0.000000e+00> : vector<60xf32>
    %395 = vector.multi_reduction <add>, %392, %cst_145 [1] : vector<60x32xf32> to vector<60xf32>
    %396 = vector.shape_cast %395 : vector<60xf32> to vector<60x1xf32>
    %cst_146 = arith.constant 3.200000e+01 : f32
    %397 = vector.broadcast %cst_146 : f32 to vector<60x1xf32>
    %398 = arith.divf %396, %397 : vector<60x1xf32>
    %399 = vector.broadcast %398 : vector<60x1xf32> to vector<60x32xf32>
    %400 = arith.subf %392, %399 : vector<60x32xf32>
    %401 = arith.mulf %400, %400 : vector<60x32xf32>
    %cst_147 = arith.constant dense<0.000000e+00> : vector<60xf32>
    %402 = vector.multi_reduction <add>, %401, %cst_147 [1] : vector<60x32xf32> to vector<60xf32>
    %403 = vector.shape_cast %402 : vector<60xf32> to vector<60x1xf32>
    %cst_148 = arith.constant 3.200000e+01 : f32
    %404 = vector.broadcast %cst_148 : f32 to vector<60x1xf32>
    %405 = arith.divf %403, %404 : vector<60x1xf32>
    %406 = vector.broadcast %398 : vector<60x1xf32> to vector<60x32xf32>
    %407 = arith.subf %392, %406 : vector<60x32xf32>
    %cst_149 = arith.constant 9.99999997E-7 : f32
    %408 = vector.broadcast %cst_149 : f32 to vector<60x1xf32>
    %409 = arith.addf %405, %408 : vector<60x1xf32>
    %410 = math.rsqrt %409 : vector<60x1xf32>
    %411 = vector.broadcast %410 : vector<60x1xf32> to vector<60x32xf32>
    %412 = arith.mulf %407, %411 : vector<60x32xf32>
    %413 = vector.broadcast %393 : vector<1x32xf32> to vector<60x32xf32>
    %414 = arith.mulf %412, %413 : vector<60x32xf32>
    %415 = vector.broadcast %394 : vector<1x32xf32> to vector<60x32xf32>
    %416 = arith.addf %414, %415 : vector<60x32xf32>
    %c1_150 = arith.constant 1 : index
    %c0_151 = arith.constant 0 : index
    %c0_152 = arith.constant 0 : index
    %417 = vector.load %arg11[%c1_150, %c0_151, %c0_152] : memref<2x32x64xbf16, #tpu.memory_space<vmem>>, vector<1x32x64xbf16>
    %418 = vector.shape_cast %417 : vector<1x32x64xbf16> to vector<32x64xbf16>
    %419 = arith.truncf %416 : vector<60x32xf32> to vector<60x32xbf16>
    %cst_153 = arith.constant dense<0.000000e+00> : vector<60x64xf32>
    %420 = tpu.matmul %419, %418, %cst_153 {dimension_numbers = #tpu.dot_dimension_numbers<[1], [0], [0], [1], [0, 0, 1, 1], [], []>} : vector<60x32xbf16>, vector<32x64xbf16>, vector<60x64xf32> -> vector<60x64xf32>
    %421 = vector.extract_strided_slice %0 {offsets = [14, 0], sizes = [1, 64], strides = [1, 1]} : vector<24x64xf32> to vector<1x64xf32>
    %422 = vector.broadcast %421 : vector<1x64xf32> to vector<60x64xf32>
    %423 = arith.addf %420, %422 : vector<60x64xf32>
    %cst_154 = arith.constant 5.000000e-01 : f32
    %424 = vector.broadcast %cst_154 : f32 to vector<60x64xf32>
    %425 = arith.mulf %424, %423 : vector<60x64xf32>
    %cst_155 = arith.constant 0.707106769 : f32
    %426 = vector.broadcast %cst_155 : f32 to vector<60x64xf32>
    %427 = arith.mulf %423, %426 : vector<60x64xf32>
    %428 = math.erf %427 : vector<60x64xf32>
    %cst_156 = arith.constant 1.000000e+00 : f32
    %429 = vector.broadcast %cst_156 : f32 to vector<60x64xf32>
    %430 = arith.addf %429, %428 : vector<60x64xf32>
    %431 = arith.mulf %425, %430 : vector<60x64xf32>
    %c1_157 = arith.constant 1 : index
    %c0_158 = arith.constant 0 : index
    %c0_159 = arith.constant 0 : index
    %432 = vector.load %arg12[%c1_157, %c0_158, %c0_159] : memref<2x64x32xbf16, #tpu.memory_space<vmem>>, vector<1x64x32xbf16>
    %433 = vector.shape_cast %432 : vector<1x64x32xbf16> to vector<64x32xbf16>
    %434 = arith.truncf %431 : vector<60x64xf32> to vector<60x64xbf16>
    %cst_160 = arith.constant dense<0.000000e+00> : vector<60x32xf32>
    %435 = tpu.matmul %434, %433, %cst_160 {dimension_numbers = #tpu.dot_dimension_numbers<[1], [0], [0], [1], [0, 0, 1, 1], [], []>} : vector<60x64xbf16>, vector<64x32xbf16>, vector<60x32xf32> -> vector<60x32xf32>
    %436 = vector.extract_strided_slice %0 {offsets = [16, 0], sizes = [1, 32], strides = [1, 1]} : vector<24x64xf32> to vector<1x32xf32>
    %437 = vector.broadcast %436 : vector<1x32xf32> to vector<60x32xf32>
    %438 = arith.addf %435, %437 : vector<60x32xf32>
    %439 = arith.addf %438, %416 : vector<60x32xf32>
    %440 = vector.extract_strided_slice %0 {offsets = [18, 0], sizes = [1, 32], strides = [1, 1]} : vector<24x64xf32> to vector<1x32xf32>
    %441 = vector.extract_strided_slice %0 {offsets = [20, 0], sizes = [1, 32], strides = [1, 1]} : vector<24x64xf32> to vector<1x32xf32>
    %cst_161 = arith.constant dense<0.000000e+00> : vector<60xf32>
    %442 = vector.multi_reduction <add>, %439, %cst_161 [1] : vector<60x32xf32> to vector<60xf32>
    %443 = vector.shape_cast %442 : vector<60xf32> to vector<60x1xf32>
    %cst_162 = arith.constant 3.200000e+01 : f32
    %444 = vector.broadcast %cst_162 : f32 to vector<60x1xf32>
    %445 = arith.divf %443, %444 : vector<60x1xf32>
    %446 = vector.broadcast %445 : vector<60x1xf32> to vector<60x32xf32>
    %447 = arith.subf %439, %446 : vector<60x32xf32>
    %448 = arith.mulf %447, %447 : vector<60x32xf32>
    %cst_163 = arith.constant dense<0.000000e+00> : vector<60xf32>
    %449 = vector.multi_reduction <add>, %448, %cst_163 [1] : vector<60x32xf32> to vector<60xf32>
    %450 = vector.shape_cast %449 : vector<60xf32> to vector<60x1xf32>
    %cst_164 = arith.constant 3.200000e+01 : f32
    %451 = vector.broadcast %cst_164 : f32 to vector<60x1xf32>
    %452 = arith.divf %450, %451 : vector<60x1xf32>
    %453 = vector.broadcast %445 : vector<60x1xf32> to vector<60x32xf32>
    %454 = arith.subf %439, %453 : vector<60x32xf32>
    %cst_165 = arith.constant 9.99999997E-7 : f32
    %455 = vector.broadcast %cst_165 : f32 to vector<60x1xf32>
    %456 = arith.addf %452, %455 : vector<60x1xf32>
    %457 = math.rsqrt %456 : vector<60x1xf32>
    %458 = vector.broadcast %457 : vector<60x1xf32> to vector<60x32xf32>
    %459 = arith.mulf %454, %458 : vector<60x32xf32>
    %460 = vector.broadcast %440 : vector<1x32xf32> to vector<60x32xf32>
    %461 = arith.mulf %459, %460 : vector<60x32xf32>
    %462 = vector.broadcast %441 : vector<1x32xf32> to vector<60x32xf32>
    %463 = arith.addf %461, %462 : vector<60x32xf32>
    %cst_166 = arith.constant 0.000000e+00 : f32
    %464 = vector.broadcast %cst_166 : f32 to vector<32x128xf32>
    %c0_167 = arith.constant 0 : index
    %c0_168 = arith.constant 0 : index
    %c0_169 = arith.constant 0 : index
    %465 = vector.load %arg13[%c0_167, %c0_168, %c0_169] : memref<4x32x60xbf16, #tpu.memory_space<vmem>>, vector<1x32x60xbf16>
    %466 = vector.shape_cast %465 : vector<1x32x60xbf16> to vector<32x60xbf16>
    %467 = arith.truncf %463 : vector<60x32xf32> to vector<60x32xbf16>
    %cst_170 = arith.constant dense<0.000000e+00> : vector<32x32xf32>
    %468 = tpu.matmul %466, %467, %cst_170 {dimension_numbers = #tpu.dot_dimension_numbers<[1], [0], [0], [1], [0, 0, 1, 1], [], []>} : vector<32x60xbf16>, vector<60x32xbf16>, vector<32x32xf32> -> vector<32x32xf32>
    %c0_171 = arith.constant 0 : index
    %c0_172 = arith.constant 0 : index
    %c0_173 = arith.constant 0 : index
    %469 = vector.load %arg14[%c0_171, %c0_172, %c0_173] : memref<4x32x128xbf16, #tpu.memory_space<vmem>>, vector<1x32x128xbf16>
    %470 = vector.shape_cast %469 : vector<1x32x128xbf16> to vector<32x128xbf16>
    %471 = arith.truncf %468 : vector<32x32xf32> to vector<32x32xbf16>
    %cst_174 = arith.constant dense<0.000000e+00> : vector<32x128xf32>
    %472 = tpu.matmul %471, %470, %cst_174 {dimension_numbers = #tpu.dot_dimension_numbers<[1], [0], [0], [1], [0, 0, 1, 1], [], []>} : vector<32x32xbf16>, vector<32x128xbf16>, vector<32x128xf32> -> vector<32x128xf32>
    %473 = arith.addf %464, %472 : vector<32x128xf32>
    %c1_175 = arith.constant 1 : index
    %c0_176 = arith.constant 0 : index
    %c0_177 = arith.constant 0 : index
    %474 = vector.load %arg13[%c1_175, %c0_176, %c0_177] : memref<4x32x60xbf16, #tpu.memory_space<vmem>>, vector<1x32x60xbf16>
    %475 = vector.shape_cast %474 : vector<1x32x60xbf16> to vector<32x60xbf16>
    %476 = arith.truncf %463 : vector<60x32xf32> to vector<60x32xbf16>
    %cst_178 = arith.constant dense<0.000000e+00> : vector<32x32xf32>
    %477 = tpu.matmul %475, %476, %cst_178 {dimension_numbers = #tpu.dot_dimension_numbers<[1], [0], [0], [1], [0, 0, 1, 1], [], []>} : vector<32x60xbf16>, vector<60x32xbf16>, vector<32x32xf32> -> vector<32x32xf32>
    %c1_179 = arith.constant 1 : index
    %c0_180 = arith.constant 0 : index
    %c0_181 = arith.constant 0 : index
    %478 = vector.load %arg14[%c1_179, %c0_180, %c0_181] : memref<4x32x128xbf16, #tpu.memory_space<vmem>>, vector<1x32x128xbf16>
    %479 = vector.shape_cast %478 : vector<1x32x128xbf16> to vector<32x128xbf16>
    %480 = arith.truncf %477 : vector<32x32xf32> to vector<32x32xbf16>
    %cst_182 = arith.constant dense<0.000000e+00> : vector<32x128xf32>
    %481 = tpu.matmul %480, %479, %cst_182 {dimension_numbers = #tpu.dot_dimension_numbers<[1], [0], [0], [1], [0, 0, 1, 1], [], []>} : vector<32x32xbf16>, vector<32x128xbf16>, vector<32x128xf32> -> vector<32x128xf32>
    %482 = arith.addf %473, %481 : vector<32x128xf32>
    %c2_183 = arith.constant 2 : index
    %c0_184 = arith.constant 0 : index
    %c0_185 = arith.constant 0 : index
    %483 = vector.load %arg13[%c2_183, %c0_184, %c0_185] : memref<4x32x60xbf16, #tpu.memory_space<vmem>>, vector<1x32x60xbf16>
    %484 = vector.shape_cast %483 : vector<1x32x60xbf16> to vector<32x60xbf16>
    %485 = arith.truncf %463 : vector<60x32xf32> to vector<60x32xbf16>
    %cst_186 = arith.constant dense<0.000000e+00> : vector<32x32xf32>
    %486 = tpu.matmul %484, %485, %cst_186 {dimension_numbers = #tpu.dot_dimension_numbers<[1], [0], [0], [1], [0, 0, 1, 1], [], []>} : vector<32x60xbf16>, vector<60x32xbf16>, vector<32x32xf32> -> vector<32x32xf32>
    %c2_187 = arith.constant 2 : index
    %c0_188 = arith.constant 0 : index
    %c0_189 = arith.constant 0 : index
    %487 = vector.load %arg14[%c2_187, %c0_188, %c0_189] : memref<4x32x128xbf16, #tpu.memory_space<vmem>>, vector<1x32x128xbf16>
    %488 = vector.shape_cast %487 : vector<1x32x128xbf16> to vector<32x128xbf16>
    %489 = arith.truncf %486 : vector<32x32xf32> to vector<32x32xbf16>
    %cst_190 = arith.constant dense<0.000000e+00> : vector<32x128xf32>
    %490 = tpu.matmul %489, %488, %cst_190 {dimension_numbers = #tpu.dot_dimension_numbers<[1], [0], [0], [1], [0, 0, 1, 1], [], []>} : vector<32x32xbf16>, vector<32x128xbf16>, vector<32x128xf32> -> vector<32x128xf32>
    %491 = arith.addf %482, %490 : vector<32x128xf32>
    %c3_191 = arith.constant 3 : index
    %c0_192 = arith.constant 0 : index
    %c0_193 = arith.constant 0 : index
    %492 = vector.load %arg13[%c3_191, %c0_192, %c0_193] : memref<4x32x60xbf16, #tpu.memory_space<vmem>>, vector<1x32x60xbf16>
    %493 = vector.shape_cast %492 : vector<1x32x60xbf16> to vector<32x60xbf16>
    %494 = arith.truncf %463 : vector<60x32xf32> to vector<60x32xbf16>
    %cst_194 = arith.constant dense<0.000000e+00> : vector<32x32xf32>
    %495 = tpu.matmul %493, %494, %cst_194 {dimension_numbers = #tpu.dot_dimension_numbers<[1], [0], [0], [1], [0, 0, 1, 1], [], []>} : vector<32x60xbf16>, vector<60x32xbf16>, vector<32x32xf32> -> vector<32x32xf32>
    %c3_195 = arith.constant 3 : index
    %c0_196 = arith.constant 0 : index
    %c0_197 = arith.constant 0 : index
    %496 = vector.load %arg14[%c3_195, %c0_196, %c0_197] : memref<4x32x128xbf16, #tpu.memory_space<vmem>>, vector<1x32x128xbf16>
    %497 = vector.shape_cast %496 : vector<1x32x128xbf16> to vector<32x128xbf16>
    %498 = arith.truncf %495 : vector<32x32xf32> to vector<32x32xbf16>
    %cst_198 = arith.constant dense<0.000000e+00> : vector<32x128xf32>
    %499 = tpu.matmul %498, %497, %cst_198 {dimension_numbers = #tpu.dot_dimension_numbers<[1], [0], [0], [1], [0, 0, 1, 1], [], []>} : vector<32x32xbf16>, vector<32x128xbf16>, vector<32x128xf32> -> vector<32x128xf32>
    %500 = arith.addf %491, %499 : vector<32x128xf32>
    %cst_199 = arith.constant 2.000000e+01 : f32
    %501 = vector.broadcast %cst_199 : f32 to vector<32x128xf32>
    %502 = arith.cmpf ogt, %500, %501 : vector<32x128xf32>
    %cst_200 = arith.constant 2.000000e+01 : f32
    %503 = vector.broadcast %cst_200 : f32 to vector<32x128xf32>
    %504 = arith.minimumf %500, %503 : vector<32x128xf32>
    %505 = math.exp %504 : vector<32x128xf32>
    %506 = math.log1p %505 : vector<32x128xf32>
    %507 = arith.select %502, %500, %506 : vector<32x128xi1>, vector<32x128xf32>
    %c0_201 = arith.constant 0 : index
    %c0_202 = arith.constant 0 : index
    %508 = vector.load %arg16[%c0_201, %c0_202] : memref<32x128xf32, #tpu.memory_space<vmem>>, vector<32x128xf32>
    tpu.vector_store %arg16[%c0_201, %c0_202], %507 {strides = array<i32>} : memref<32x128xf32, #tpu.memory_space<vmem>>, vector<32x128xf32>,
    return
  }
  func.func @transform_0(%arg0: i32) -> (i32, i32) {
    %c0_i32 = arith.constant 0 : i32
    %c0_i32_0 = arith.constant 0 : i32
    %c0_i32_1 = arith.constant 0 : i32
    return %c0_i32, %c0_i32_0 : i32, i32
  }
  func.func @transform_1(%arg0: i32) -> (i32, i32) {
    %c0_i32 = arith.constant 0 : i32
    %c0_i32_0 = arith.constant 0 : i32
    %c0_i32_1 = arith.constant 0 : i32
    return %c0_i32, %c0_i32_0 : i32, i32
  }
  func.func @transform_2(%arg0: i32) -> (i32, i32) {
    %c0_i32 = arith.constant 0 : i32
    %c0_i32_0 = arith.constant 0 : i32
    %c0_i32_1 = arith.constant 0 : i32
    return %c0_i32, %c0_i32_0 : i32, i32
  }
  func.func @transform_3(%arg0: i32) -> (i32, i32) {
    %c0_i32 = arith.constant 0 : i32
    %c0_i32_0 = arith.constant 0 : i32
    %c0_i32_1 = arith.constant 0 : i32
    return %c0_i32, %c0_i32_0 : i32, i32
  }
  func.func @transform_4(%arg0: i32) -> (i32, i32, i32) {
    %c0_i32 = arith.constant 0 : i32
    %c0_i32_0 = arith.constant 0 : i32
    %c0_i32_1 = arith.constant 0 : i32
    %c0_i32_2 = arith.constant 0 : i32
    return %c0_i32, %c0_i32_0, %c0_i32_1 : i32, i32, i32
  }
  func.func @transform_5(%arg0: i32) -> (i32, i32, i32) {
    %c0_i32 = arith.constant 0 : i32
    %c0_i32_0 = arith.constant 0 : i32
    %c0_i32_1 = arith.constant 0 : i32
    %c0_i32_2 = arith.constant 0 : i32
    return %c0_i32, %c0_i32_0, %c0_i32_1 : i32, i32, i32
  }
  func.func @transform_6(%arg0: i32) -> (i32, i32) {
    %c0_i32 = arith.constant 0 : i32
    %c0_i32_0 = arith.constant 0 : i32
    %c0_i32_1 = arith.constant 0 : i32
    return %c0_i32, %c0_i32_0 : i32, i32
  }
  func.func @transform_7(%arg0: i32) -> (i32, i32, i32) {
    %c0_i32 = arith.constant 0 : i32
    %c0_i32_0 = arith.constant 0 : i32
    %c0_i32_1 = arith.constant 0 : i32
    %c0_i32_2 = arith.constant 0 : i32
    return %c0_i32, %c0_i32_0, %c0_i32_1 : i32, i32, i32
  }
  func.func @transform_8(%arg0: i32) -> (i32, i32) {
    %c0_i32 = arith.constant 0 : i32
    %c0_i32_0 = arith.constant 0 : i32
    %c0_i32_1 = arith.constant 0 : i32
    return %c0_i32, %c0_i32_0 : i32, i32
  }
  func.func @transform_9(%arg0: i32) -> (i32, i32, i32) {
    %c0_i32 = arith.constant 0 : i32
    %c0_i32_0 = arith.constant 0 : i32
    %c0_i32_1 = arith.constant 0 : i32
    %c0_i32_2 = arith.constant 0 : i32
    return %c0_i32, %c0_i32_0, %c0_i32_1 : i32, i32, i32
  }
  func.func @transform_10(%arg0: i32) -> (i32, i32, i32) {
    %c0_i32 = arith.constant 0 : i32
    %c0_i32_0 = arith.constant 0 : i32
    %c0_i32_1 = arith.constant 0 : i32
    %c0_i32_2 = arith.constant 0 : i32
    return %c0_i32, %c0_i32_0, %c0_i32_1 : i32, i32, i32
  }
  func.func @transform_11(%arg0: i32) -> (i32, i32, i32) {
    %c0_i32 = arith.constant 0 : i32
    %c0_i32_0 = arith.constant 0 : i32
    %c0_i32_1 = arith.constant 0 : i32
    %c0_i32_2 = arith.constant 0 : i32
    return %c0_i32, %c0_i32_0, %c0_i32_1 : i32, i32, i32
  }
  func.func @transform_12(%arg0: i32) -> (i32, i32, i32) {
    %c0_i32 = arith.constant 0 : i32
    %c0_i32_0 = arith.constant 0 : i32
    %c0_i32_1 = arith.constant 0 : i32
    %c0_i32_2 = arith.constant 0 : i32
    return %c0_i32, %c0_i32_0, %c0_i32_1 : i32, i32, i32
  }
  func.func @transform_13(%arg0: i32) -> (i32, i32, i32) {
    %c0_i32 = arith.constant 0 : i32
    %c0_i32_0 = arith.constant 0 : i32
    %c0_i32_1 = arith.constant 0 : i32
    %c0_i32_2 = arith.constant 0 : i32
    return %c0_i32, %c0_i32_0, %c0_i32_1 : i32, i32, i32
  }
  func.func @transform_14(%arg0: i32) -> (i32, i32) {
    %c0_i32 = arith.constant 0 : i32
    %c0_i32_0 = arith.constant 0 : i32
    %c0_i32_1 = arith.constant 0 : i32
    return %c0_i32, %c0_i32_0 : i32, i32
  }
  func.func @transform_15(%arg0: i32) -> (i32, i32) {
    %c0_i32 = arith.constant 0 : i32
    %c0_i32_0 = arith.constant 0 : i32
    %c0_i32_1 = arith.constant 0 : i32
    return %c0_i32, %c0_i32_0 : i32, i32
  }
}

</mosaic_0001>

<llo_original>
// kernel: forward.1
$region0: #{forward.1}
  #allocation0 [shape = 'u32[]', space=smem, size = 0x4, offset = 0x4, fixed_abs, tag = 'smem constant byte address 0x4 - core index']
  #allocation1 [shape = 'u32[144,128]{1,0:T(1,128)}', space=vmem, size = 0x12000, scoped, tag = 'internal scratch']
  %s0 = inlined_call_operand.vmem [shape: bf16[32,8], index: 0, kind: input, shape index: {}]
  %s1 = inlined_call_operand.hbm [shape: bf16[8,32], index: 1, kind: input, shape index: {}]
  %s2 = inlined_call_operand.hbm [shape: f32[32,32], index: 2, kind: input, shape index: {}]
  %s3 = inlined_call_operand.vmem [shape: bf16[32,8], index: 3, kind: input, shape index: {}]
  %s4 = inlined_call_operand.hbm [shape: bf16[3,8,16], index: 4, kind: input, shape index: {}]
  %s5 = inlined_call_operand.vmem [shape: bf16[6,32,32], index: 5, kind: input, shape index: {}]
  %s6 = inlined_call_operand.hbm [shape: bf16[8,32], index: 6, kind: input, shape index: {}]
  %s7 = inlined_call_operand.vmem [shape: bf16[4,60,32], index: 7, kind: input, shape index: {}]
  %s8 = inlined_call_operand.vmem [shape: f32[60,60], index: 8, kind: input, shape index: {}]
  %s9 = inlined_call_operand.vmem [shape: bf16[2,32,256], index: 9, kind: input, shape index: {}]
  %s10 = inlined_call_operand.hbm [shape: bf16[2,32,64], index: 10, kind: input, shape index: {}]
  %s11 = inlined_call_operand.vmem [shape: bf16[2,64,32], index: 11, kind: input, shape index: {}]
  %s12 = inlined_call_operand.vmem [shape: bf16[4,32,60], index: 12, kind: input, shape index: {}]
  %s13 = inlined_call_operand.vmem [shape: bf16[4,32,128], index: 13, kind: input, shape index: {}]
  %s14 = inlined_call_operand.hbm [shape: f32[24,64], index: 14, kind: input, shape index: {}]
  %s15 = inlined_call_operand.vmem [shape: f32[32,128], index: 15, kind: output, shape index: {}]
  %s16 = sld [smem:[#allocation0]]
  $region94: #{forward.1} parent=0
    _
  %s18 = ssub.s32 1, %s16
  %s19 = scalar_select 0, %s18, %s16
  $region1: #{forward.1} parent=0
    #allocation2 [shape = 'u8[2048]{0}', space=vmem, size = 0x800, scoped, tag = 'input window, operand 1, single buffered']
    #allocation3 [shape = 's32[1]{0}', space=sflag, size = 0x4, scoped, tag = 'scoped memory for forward.1']
    #allocation4 [shape = 'u8[16384]{0}', space=vmem, size = 0x4000, scoped, tag = 'input window, operand 2, single buffered']
    #allocation5 [shape = 's32[1]{0}', space=sflag, size = 0x4, scoped, tag = 'scoped memory for forward.1']
    #allocation6 [shape = 'u8[6144]{0}', space=vmem, size = 0x1800, scoped, tag = 'input window, operand 4, single buffered']
    #allocation7 [shape = 'u8[2048]{0}', space=vmem, size = 0x800, scoped, tag = 'input window, operand 6, single buffered']
    #allocation8 [shape = 's32[1]{0}', space=sflag, size = 0x4, scoped, tag = 'scoped memory for forward.1']
    #allocation9 [shape = 'u8[16384]{0}', space=vmem, size = 0x4000, scoped, tag = 'input window, operand 10, single buffered']
    #allocation10 [shape = 'u8[12288]{0}', space=vmem, size = 0x3000, scoped, tag = 'input window, operand 14, single buffered']
    #allocation11 [shape = 's32[1]{0}', space=sflag, size = 0x4, scoped, tag = 'scoped memory for forward.1']
    %20 = vsyncpa [#allocation3], 0
    %21 = vsyncpa [#allocation5], 0
    %22 = vsyncpa [#allocation8], 0
    %23 = vsyncpa [#allocation11], 0
    // Predicated region
    $region2: #{forward.1} parent=1 // pred_check
      _
    $region3: #{forward.1} parent=1 // pred_check_branch
      %25 = sbr.rel (0) target = $region5
    $region4: #{forward.1} parent=1 // pred_region
      _
    $region5: #{forward.1} parent=1 // pred_fallthru
      _
    // Predicated region
    $region6: #{forward.1} parent=1 // pred_check
      _
    $region7: #{forward.1} parent=1 // pred_check_branch
      %27 = sbr.rel (0) target = $region9
    $region8: #{forward.1} parent=1 // pred_region
      %s29 = ssub.s32 64, 64
      %30 = vsyncadd [#allocation3], %s29
      %s32 = sshll.u32 [#allocation2], 4
      %s33 = int_to_ptr.vmem [resolvable:$true] %s32
      %35 = dma.hbm_to_vmem [thread:$0]  %s1, 64, %s33, [#allocation3]
    $region9: #{forward.1} parent=1 // pred_fallthru
      _
    // Predicated region
    $region10: #{forward.1} parent=1 // pred_check
      _
    $region11: #{forward.1} parent=1 // pred_check_branch
      %37 = sbr.rel (0) target = $region13
    $region12: #{forward.1} parent=1 // pred_region
      %s39 = ssub.s32 512, 512
      %40 = vsyncadd [#allocation5], %s39
      %s41 = sshll.u32 [#allocation4], 4
      %s42 = int_to_ptr.vmem [resolvable:$true] %s41
      %47 = dma.hbm_to_vmem [thread:$0]  %s2, 512, %s42, [#allocation5], 128, 128, 8
    $region13: #{forward.1} parent=1 // pred_fallthru
      _
    // Predicated region
    $region14: #{forward.1} parent=1 // pred_check
      _
    $region15: #{forward.1} parent=1 // pred_check_branch
      %49 = sbr.rel (0) target = $region17
    $region16: #{forward.1} parent=1 // pred_region
      _
    $region17: #{forward.1} parent=1 // pred_fallthru
      _
    // Predicated region
    $region18: #{forward.1} parent=1 // pred_check
      _
    $region19: #{forward.1} parent=1 // pred_check_branch
      %51 = sbr.rel (0) target = $region21
    $region20: #{forward.1} parent=1 // pred_region
      %s53 = ssub.s32 192, 192
      %54 = vsyncadd [#allocation5], %s53
      %s55 = sshll.u32 [#allocation6], 4
      %s56 = int_to_ptr.vmem [resolvable:$true] %s55
      %61 = dma.hbm_to_vmem [thread:$0]  %s4, 192, %s56, [#allocation5], 64, 64, 4
    $region21: #{forward.1} parent=1 // pred_fallthru
      _
    // Predicated region
    $region22: #{forward.1} parent=1 // pred_check
      _
    $region23: #{forward.1} parent=1 // pred_check_branch
      %63 = sbr.rel (0) target = $region25
    $region24: #{forward.1} parent=1 // pred_region
      _
    $region25: #{forward.1} parent=1 // pred_fallthru
      _
    // Predicated region
    $region26: #{forward.1} parent=1 // pred_check
      _
    $region27: #{forward.1} parent=1 // pred_check_branch
      %65 = sbr.rel (0) target = $region29
    $region28: #{forward.1} parent=1 // pred_region
      %s67 = ssub.s32 64, 64
      %68 = vsyncadd [#allocation8], %s67
      %s70 = sshll.u32 [#allocation7], 4
      %s71 = int_to_ptr.vmem [resolvable:$true] %s70
      %73 = dma.hbm_to_vmem [thread:$0]  %s6, 64, %s71, [#allocation8]
    $region29: #{forward.1} parent=1 // pred_fallthru
      _
    // Predicated region
    $region30: #{forward.1} parent=1 // pred_check
      _
    $region31: #{forward.1} parent=1 // pred_check_branch
      %75 = sbr.rel (0) target = $region33
    $region32: #{forward.1} parent=1 // pred_region
      _
    $region33: #{forward.1} parent=1 // pred_fallthru
      _
    // Predicated region
    $region34: #{forward.1} parent=1 // pred_check
      _
    $region35: #{forward.1} parent=1 // pred_check_branch
      %77 = sbr.rel (0) target = $region37
    $region36: #{forward.1} parent=1 // pred_region
      _
    $region37: #{forward.1} parent=1 // pred_fallthru
      _
    // Predicated region
    $region38: #{forward.1} parent=1 // pred_check
      _
    $region39: #{forward.1} parent=1 // pred_check_branch
      %79 = sbr.rel (0) target = $region41
    $region40: #{forward.1} parent=1 // pred_region
      _
    $region41: #{forward.1} parent=1 // pred_fallthru
      _
    // Predicated region
    $region42: #{forward.1} parent=1 // pred_check
      _
    $region43: #{forward.1} parent=1 // pred_check_branch
      %81 = sbr.rel (0) target = $region45
    $region44: #{forward.1} parent=1 // pred_region
      %s83 = ssub.s32 512, 512
      %84 = vsyncadd [#allocation8], %s83
      %s85 = sshll.u32 [#allocation9], 4
      %s86 = int_to_ptr.vmem [resolvable:$true] %s85
      %91 = dma.hbm_to_vmem [thread:$0]  %s10, 512, %s86, [#allocation8], 64, 64, 4
    $region45: #{forward.1} parent=1 // pred_fallthru
      _
    // Predicated region
    $region46: #{forward.1} parent=1 // pred_check
      _
    $region47: #{forward.1} parent=1 // pred_check_branch
      %93 = sbr.rel (0) target = $region49
    $region48: #{forward.1} parent=1 // pred_region
      _
    $region49: #{forward.1} parent=1 // pred_fallthru
      _
    // Predicated region
    $region50: #{forward.1} parent=1 // pred_check
      _
    $region51: #{forward.1} parent=1 // pred_check_branch
      %95 = sbr.rel (0) target = $region53
    $region52: #{forward.1} parent=1 // pred_region
      _
    $region53: #{forward.1} parent=1 // pred_fallthru
      _
    // Predicated region
    $region54: #{forward.1} parent=1 // pred_check
      _
    $region55: #{forward.1} parent=1 // pred_check_branch
      %97 = sbr.rel (0) target = $region57
    $region56: #{forward.1} parent=1 // pred_region
      _
    $region57: #{forward.1} parent=1 // pred_fallthru
      _
    // Predicated region
    $region58: #{forward.1} parent=1 // pred_check
      _
    $region59: #{forward.1} parent=1 // pred_check_branch
      %99 = sbr.rel (0) target = $region61
    $region60: #{forward.1} parent=1 // pred_region
      %s101 = ssub.s32 384, 384
      %102 = vsyncadd [#allocation11], %s101
      %s103 = sshll.u32 [#allocation10], 4
      %s104 = int_to_ptr.vmem [resolvable:$true] %s103
      %109 = dma.hbm_to_vmem [thread:$0]  %s14, 384, %s104, [#allocation11], 128, 128, 8
    $region61: #{forward.1} parent=1 // pred_fallthru
      _
    // Predicated region
    $region62: #{forward.1} parent=1 // pred_check
      _
    $region63: #{forward.1} parent=1 // pred_check_branch
      %111 = sbr.rel (0) target = $region65
    $region64: #{forward.1} parent=1 // pred_region
      %112 = dma.done [#allocation3], 64
    $region65: #{forward.1} parent=1 // pred_fallthru
      _
    // Predicated region
    $region66: #{forward.1} parent=1 // pred_check
      _
    $region67: #{forward.1} parent=1 // pred_check_branch
      %114 = sbr.rel (0) target = $region69
    $region68: #{forward.1} parent=1 // pred_region
      %115 = dma.done [#allocation5], 512
    $region69: #{forward.1} parent=1 // pred_fallthru
      _
    // Predicated region
    $region70: #{forward.1} parent=1 // pred_check
      _
    $region71: #{forward.1} parent=1 // pred_check_branch
      %117 = sbr.rel (0) target = $region73
    $region72: #{forward.1} parent=1 // pred_region
      %118 = dma.done [#allocation5], 192
    $region73: #{forward.1} parent=1 // pred_fallthru
      _
    // Predicated region
    $region74: #{forward.1} parent=1 // pred_check
      _
    $region75: #{forward.1} parent=1 // pred_check_branch
      %120 = sbr.rel (0) target = $region77
    $region76: #{forward.1} parent=1 // pred_region
      %121 = dma.done [#allocation8], 64
    $region77: #{forward.1} parent=1 // pred_fallthru
      _
    // Predicated region
    $region78: #{forward.1} parent=1 // pred_check
      _
    $region79: #{forward.1} parent=1 // pred_check_branch
      %123 = sbr.rel (0) target = $region81
    $region80: #{forward.1} parent=1 // pred_region
      %124 = dma.done [#allocation8], 512
    $region81: #{forward.1} parent=1 // pred_fallthru
      _
    // Predicated region
    $region82: #{forward.1} parent=1 // pred_check
      _
    $region83: #{forward.1} parent=1 // pred_check_branch
      %126 = sbr.rel (0) target = $region85
    $region84: #{forward.1} parent=1 // pred_region
      %127 = dma.done [#allocation11], 384
    $region85: #{forward.1} parent=1 // pred_fallthru
      _
    %v129 = vld [vmem:[#allocation10] sm:$0xff]
    %v130 = vld [vmem:[#allocation10 + $0x8] sm:$0xff]
    %v131 = vld [vmem:[#allocation10 + $0x10] sm:$0xff]
    %v132 = vld [vmem:[%s0] sm:$0xf]
    %v133 = vld [vmem:[%s0 + $0x4] sm:$0xf]
    %v134 = vld [vmem:[%s0 + $0x8] sm:$0xf]
    %v135 = vld [vmem:[%s0 + $0xc] sm:$0xf]
    %v136 = vld [vmem:[#allocation2] sm:$0xf]
    %v137 = vld [vmem:[#allocation4] sm:$0xff]
    %v138 = vld [vmem:[#allocation4 + $0x8] sm:$0xff]
    %v139 = vld [vmem:[#allocation4 + $0x10] sm:$0xff]
    %v140 = vld [vmem:[#allocation4 + $0x18] sm:$0xff]
    %v145 = vunpack.c.l.b16 %v132
    %v146 = vunpack.c.l.b16 %v133
    %v147 = vunpack.c.l.b16 %v134
    %v148 = vunpack.c.l.b16 %v135
    %v149 = vpack.c.b16 %v146, %v145
    %v150 = vpack.c.b16 %v148, %v147
    %vm151 = vcmask 64512
    %v153 = vsel %vm151, %v149, 0
    %v156 = vsel %vm151, %v150, 0
    %vm158 = vcmask 1043456
    %v160 = vsel %vm158, %v136, 0
    %162 = vmatprep.subr.bf16.mxu0 0
    %163 = vmatpush1.bf16.msra.mxu0 %v160
    %164 = vmatprep.subr.bf16.mxu0 0
    %165 = vmatpush1.bf16.msra.mxu0 0
    %166 = vmatprep.subr.bf16.mxu0 0
    %167 = vmatpush1.bf16.msra.mxu0 0
    %168 = vmatprep.subr.bf16.mxu0 0
    %169 = vmatpush1.bf16.msra.mxu0 0
    %170 = vmatprep.subr.bf16.mxu0 0
    %171 = vmatpush1.bf16.msra.mxu0 0
    %172 = vmatprep.subr.bf16.mxu0 0
    %173 = vmatpush1.bf16.msra.mxu0 0
    %174 = vmatprep.subr.bf16.mxu0 0
    %175 = vmatpush1.bf16.msra.mxu0 0
    %176 = vmatprep.subr.bf16.mxu0 0
    %177 = vmatpush1.bf16.msra.mxu0 0
    %178 = vmatprep.subr.bf16.mxu0 0
    %179 = vmatpush1.bf16.msra.mxu0 0
    %180 = vmatprep.subr.bf16.mxu0 0
    %181 = vmatpush1.bf16.msra.mxu0 0
    %182 = vmatprep.subr.bf16.mxu0 0
    %183 = vmatpush1.bf16.msra.mxu0 0
    %184 = vmatprep.subr.bf16.mxu0 0
    %185 = vmatpush1.bf16.msra.mxu0 0
    %186 = vmatprep.subr.bf16.mxu0 0
    %187 = vmatpush1.bf16.msra.mxu0 0
    %188 = vmatprep.subr.bf16.mxu0 0
    %189 = vmatpush1.bf16.msra.mxu0 0
    %190 = vmatprep.subr.bf16.mxu0 0
    %191 = vmatpush1.bf16.msra.mxu0 0
    %192 = vmatprep.subr.bf16.mxu0 0
    %193 = vmatpush1.bf16.msra.mxu0 0
    %194 = vmatprep.mubr.bf16.mxu0 0
    %195 = vmatmul.mubr.bf16.gmra.mrb[0].mxu0 %v153
    %v196 = vpop.f32.mrb[0].mxu0
    %v197 = vadd.f32 %v137, %v196
    %v198 = vpop.f32.mrb[0].mxu0
    %v199 = vpop.f32.mrb[0].mxu0
    %v200 = vadd.f32 %v138, %v199
    %v201 = vpop.f32.mrb[0].mxu0
    %202 = vmatprep.mubr.bf16.mxu0 0
    %203 = vmatmul.mubr.bf16.gmra.mrb[0].mxu0 %v156
    %v204 = vpop.f32.mrb[0].mxu0
    %v205 = vadd.f32 %v139, %v204
    %v206 = vpop.f32.mrb[0].mxu0
    %v207 = vpop.f32.mrb[0].mxu0
    %v208 = vadd.f32 %v140, %v207
    %v209 = vpop.f32.mrb[0].mxu0
    %210 = vdwg.mxu0
    %v211 = vld [vmem:[%s3] sm:$0xf]
    %v212 = vld [vmem:[%s3 + $0x4] sm:$0xf]
    %v213 = vld [vmem:[%s3 + $0x8] sm:$0xf]
    %v214 = vld [vmem:[%s3 + $0xc] sm:$0xf]
    %v215 = vpack.c.bf16 %v200, %v197
    %v216 = vpack.c.bf16 %v208, %v205
    %v217 = vlaneseq
    %v218 = vshrl.u32 %v217, 7
    %v219 = vsub.s32 0, %v218
    %v220 = vrot.slane %v129, %v219
    %v225 = vunpack.c.l.b16 %v211
    %v226 = vunpack.c.l.b16 %v212
    %v227 = vunpack.c.l.b16 %v213
    %v228 = vunpack.c.l.b16 %v214
    %v229 = vpack.c.b16 %v226, %v225
    %v230 = vpack.c.b16 %v228, %v227
    %vm233 = vcmask 261120
    %v235 = vsel %vm233, %v215, 0
    %v238 = vsel %vm233, %v216, 0
    %240 = vmatprep.subr.bf16.mxu0 0
    %241 = vmatpush1.bf16.msra.mxu0 %v229
    %242 = vmatprep.subr.bf16.mxu0 0
    %243 = vmatpush1.bf16.msra.mxu0 %v230
    %244 = vmatprep.subr.bf16.mxu0 0
    %245 = vmatpush1.bf16.msra.mxu0 0
    %246 = vmatprep.subr.bf16.mxu0 0
    %247 = vmatpush1.bf16.msra.mxu0 0
    %248 = vmatprep.subr.bf16.mxu0 0
    %249 = vmatpush1.bf16.msra.mxu0 0
    %250 = vmatprep.subr.bf16.mxu0 0
    %251 = vmatpush1.bf16.msra.mxu0 0
    %252 = vmatprep.subr.bf16.mxu0 0
    %253 = vmatpush1.bf16.msra.mxu0 0
    %254 = vmatprep.subr.bf16.mxu0 0
    %255 = vmatpush1.bf16.msra.mxu0 0
    %256 = vmatprep.subr.bf16.mxu0 0
    %257 = vmatpush1.bf16.msra.mxu0 0
    %258 = vmatprep.subr.bf16.mxu0 0
    %259 = vmatpush1.bf16.msra.mxu0 0
    %260 = vmatprep.subr.bf16.mxu0 0
    %261 = vmatpush1.bf16.msra.mxu0 0
    %262 = vmatprep.subr.bf16.mxu0 0
    %263 = vmatpush1.bf16.msra.mxu0 0
    %264 = vmatprep.subr.bf16.mxu0 0
    %265 = vmatpush1.bf16.msra.mxu0 0
    %266 = vmatprep.subr.bf16.mxu0 0
    %267 = vmatpush1.bf16.msra.mxu0 0
    %268 = vmatprep.subr.bf16.mxu0 0
    %269 = vmatpush1.bf16.msra.mxu0 0
    %270 = vmatprep.subr.bf16.mxu0 0
    %271 = vmatpush1.bf16.msra.mxu0 0
    %272 = vmatprep.mubr.bf16.mxu0 0
    %273 = vmatmul.mubr.bf16.gmra.mrb[0].mxu0 %v235
    %v274 = vpop.f32.mrb[0].mxu0
    %v275 = vadd.f32 %v220, %v274
    %v276 = vpop.f32.mrb[0].mxu0
    %v277 = vpop.f32.mrb[0].mxu0
    %v278 = vadd.f32 %v220, %v277
    %v279 = vpop.f32.mrb[0].mxu0
    %280 = vmatprep.mubr.bf16.mxu0 0
    %281 = vmatmul.mubr.bf16.gmra.mrb[0].mxu0 %v238
    %v282 = vpop.f32.mrb[0].mxu0
    %v283 = vadd.f32 %v220, %v282
    %v284 = vpop.f32.mrb[0].mxu0
    %v285 = vpop.f32.mrb[0].mxu0
    %v286 = vadd.f32 %v220, %v285
    %v287 = vpop.f32.mrb[0].mxu0
    %288 = vdwg.mxu0
    %v289 = vld [vmem:[%s7] sm:$0xf]
    %v290 = vld [vmem:[%s7 + $0x4] sm:$0xf]
    %v291 = vld [vmem:[%s7 + $0x8] sm:$0xf]
    %v292 = vld [vmem:[%s7 + $0xc] sm:$0xf]
    %v293 = vld [vmem:[%s7 + $0x10] sm:$0xf]
    %v294 = vld [vmem:[%s7 + $0x14] sm:$0xf]
    %v295 = vld [vmem:[%s7 + $0x18] sm:$0xf]
    %v296 = vld [vmem:[%s7 + $0x1c] sm:$0x3]
    %v297 = vld [vmem:[#allocation6] sm:$0xf]
    %v298 = vpack.c.bf16 %v278, %v275
    %v299 = vpack.c.bf16 %v286, %v283
    %v301 = vsel %vm151, %v298, 0
    %v304 = vsel %vm151, %v299, 0
    %v307 = vsel %vm158, %v297, 0
    %309 = vmatprep.subr.bf16.mxu0 0
    %310 = vmatpush1.bf16.msra.mxu0 %v307
    %311 = vmatprep.subr.bf16.mxu0 0
    %312 = vmatpush1.bf16.msra.mxu0 0
    %313 = vmatprep.subr.bf16.mxu0 0
    %314 = vmatpush1.bf16.msra.mxu0 0
    %315 = vmatprep.subr.bf16.mxu0 0
    %316 = vmatpush1.bf16.msra.mxu0 0
    %317 = vmatprep.subr.bf16.mxu0 0
    %318 = vmatpush1.bf16.msra.mxu0 0
    %319 = vmatprep.subr.bf16.mxu0 0
    %320 = vmatpush1.bf16.msra.mxu0 0
    %321 = vmatprep.subr.bf16.mxu0 0
    %322 = vmatpush1.bf16.msra.mxu0 0
    %323 = vmatprep.subr.bf16.mxu0 0
    %324 = vmatpush1.bf16.msra.mxu0 0
    %325 = vmatprep.subr.bf16.mxu0 0
    %326 = vmatpush1.bf16.msra.mxu0 0
    %327 = vmatprep.subr.bf16.mxu0 0
    %328 = vmatpush1.bf16.msra.mxu0 0
    %329 = vmatprep.subr.bf16.mxu0 0
    %330 = vmatpush1.bf16.msra.mxu0 0
    %331 = vmatprep.subr.bf16.mxu0 0
    %332 = vmatpush1.bf16.msra.mxu0 0
    %333 = vmatprep.subr.bf16.mxu0 0
    %334 = vmatpush1.bf16.msra.mxu0 0
    %335 = vmatprep.subr.bf16.mxu0 0
    %336 = vmatpush1.bf16.msra.mxu0 0
    %337 = vmatprep.subr.bf16.mxu0 0
    %338 = vmatpush1.bf16.msra.mxu0 0
    %339 = vmatprep.subr.bf16.mxu0 0
    %340 = vmatpush1.bf16.msra.mxu0 0
    %341 = vmatprep.mubr.bf16.mxu0 0
    %342 = vmatmul.mubr.bf16.gmra.mrb[0].mxu0 %v301
    %v343 = vpop.f32.mrb[0].mxu0
    %v344 = vadd.f32 0.0, %v343
    %v345 = vpop.f32.mrb[0].mxu0
    %v346 = vpop.f32.mrb[0].mxu0
    %v347 = vadd.f32 0.0, %v346
    %v348 = vpop.f32.mrb[0].mxu0
    %349 = vmatprep.mubr.bf16.mxu0 0
    %350 = vmatmul.mubr.bf16.gmra.mrb[0].mxu0 %v304
    %v351 = vpop.f32.mrb[0].mxu0
    %v352 = vadd.f32 0.0, %v351
    %v353 = vpop.f32.mrb[0].mxu0
    %v354 = vpop.f32.mrb[0].mxu0
    %v355 = vadd.f32 0.0, %v354
    %v356 = vpop.f32.mrb[0].mxu0
    %357 = vdwg.mxu0
    %v358 = vld [vmem:[%s5] sm:$0xf]
    %v359 = vld [vmem:[%s5 + $0x4] sm:$0xf]
    %v360 = vld [vmem:[%s5 + $0x8] sm:$0xf]
    %v361 = vld [vmem:[%s5 + $0xc] sm:$0xf]
    %v362 = vpack.c.bf16 %v347, %v344
    %v363 = vpack.c.bf16 %v355, %v352
    %s364 = scalar_lea.vmem %s5, 16
    %v365 = vld [vmem:[%s364] sm:$0xf]
    %v366 = vld [vmem:[%s364 + $0x4] sm:$0xf]
    %v367 = vld [vmem:[%s364 + $0x8] sm:$0xf]
    %v368 = vld [vmem:[%s364 + $0xc] sm:$0xf]
    %v373 = vunpack.c.l.b16 %v365
    %v374 = vunpack.c.l.b16 %v366
    %v375 = vunpack.c.l.b16 %v367
    %v376 = vunpack.c.l.b16 %v368
    %v377 = vpack.c.b16 %v374, %v373
    %v378 = vpack.c.b16 %v376, %v375
    %381 = vrot.lane.b32.xlu0 %v362, 120
    %v382 = vpop.permute.xlu0 %381
    %383 = vrot.lane.b32.xlu0 %v363, 120
    %v384 = vpop.permute.xlu0 %383
    %v388 = vsel %vm233, %v377, 0
    %v391 = vsel %vm233, %v378, 0
    %393 = vmatprep.subr.bf16.mxu0 0
    %394 = vmatpush1.bf16.msra.mxu0 %v382
    %395 = vmatprep.subr.bf16.mxu0 0
    %396 = vmatpush1.bf16.msra.mxu0 %v384
    %397 = vmatprep.subr.bf16.mxu0 0
    %398 = vmatpush1.bf16.msra.mxu0 0
    %399 = vmatprep.subr.bf16.mxu0 0
    %400 = vmatpush1.bf16.msra.mxu0 0
    %401 = vmatprep.subr.bf16.mxu0 0
    %402 = vmatpush1.bf16.msra.mxu0 0
    %403 = vmatprep.subr.bf16.mxu0 0
    %404 = vmatpush1.bf16.msra.mxu0 0
    %405 = vmatprep.subr.bf16.mxu0 0
    %406 = vmatpush1.bf16.msra.mxu0 0
    %407 = vmatprep.subr.bf16.mxu0 0
    %408 = vmatpush1.bf16.msra.mxu0 0
    %409 = vmatprep.subr.bf16.mxu0 0
    %410 = vmatpush1.bf16.msra.mxu0 0
    %411 = vmatprep.subr.bf16.mxu0 0
    %412 = vmatpush1.bf16.msra.mxu0 0
    %413 = vmatprep.subr.bf16.mxu0 0
    %414 = vmatpush1.bf16.msra.mxu0 0
    %415 = vmatprep.subr.bf16.mxu0 0
    %416 = vmatpush1.bf16.msra.mxu0 0
    %417 = vmatprep.subr.bf16.mxu0 0
    %418 = vmatpush1.bf16.msra.mxu0 0
    %419 = vmatprep.subr.bf16.mxu0 0
    %420 = vmatpush1.bf16.msra.mxu0 0
    %421 = vmatprep.subr.bf16.mxu0 0
    %422 = vmatpush1.bf16.msra.mxu0 0
    %423 = vmatprep.subr.bf16.mxu0 0
    %424 = vmatpush1.bf16.msra.mxu0 0
    %425 = vmatprep.mubr.bf16.mxu0 0
    %426 = vmatmul.mubr.bf16.gmra.mrb[0].mxu0 %v388
    %v427 = vpop.f32.mrb[0].mxu0
    %v428 = vadd.f32 0.0, %v427
    %v429 = vpop.f32.mrb[0].mxu0
    %v430 = vpop.f32.mrb[0].mxu0
    %v431 = vadd.f32 0.0, %v430
    %v432 = vpop.f32.mrb[0].mxu0
    %433 = vmatprep.mubr.bf16.mxu0 0
    %434 = vmatmul.mubr.bf16.gmra.mrb[0].mxu0 %v391
    %v435 = vpop.f32.mrb[0].mxu0
    %v436 = vadd.f32 0.0, %v435
    %v437 = vpop.f32.mrb[0].mxu0
    %v438 = vpop.f32.mrb[0].mxu0
    %v439 = vadd.f32 0.0, %v438
    %v440 = vpop.f32.mrb[0].mxu0
    %441 = vdwg.mxu0
    %v446 = vunpack.c.l.b16 %v358
    %v447 = vunpack.c.l.b16 %v359
    %v448 = vunpack.c.l.b16 %v360
    %v449 = vunpack.c.l.b16 %v361
    %v450 = vpack.c.b16 %v447, %v446
    %v451 = vpack.c.b16 %v449, %v448
    %v453 = vsel %vm233, %v450, 0
    %v456 = vsel %vm233, %v451, 0
    %458 = vmatprep.subr.bf16.mxu0 0
    %459 = vmatpush1.bf16.msra.mxu0 %v362
    %460 = vmatprep.subr.bf16.mxu0 0
    %461 = vmatpush1.bf16.msra.mxu0 %v363
    %462 = vmatprep.subr.bf16.mxu0 0
    %463 = vmatpush1.bf16.msra.mxu0 0
    %464 = vmatprep.subr.bf16.mxu0 0
    %465 = vmatpush1.bf16.msra.mxu0 0
    %466 = vmatprep.subr.bf16.mxu0 0
    %467 = vmatpush1.bf16.msra.mxu0 0
    %468 = vmatprep.subr.bf16.mxu0 0
    %469 = vmatpush1.bf16.msra.mxu0 0
    %470 = vmatprep.subr.bf16.mxu0 0
    %471 = vmatpush1.bf16.msra.mxu0 0
    %472 = vmatprep.subr.bf16.mxu0 0
    %473 = vmatpush1.bf16.msra.mxu0 0
    %474 = vmatprep.subr.bf16.mxu0 0
    %475 = vmatpush1.bf16.msra.mxu0 0
    %476 = vmatprep.subr.bf16.mxu0 0
    %477 = vmatpush1.bf16.msra.mxu0 0
    %478 = vmatprep.subr.bf16.mxu0 0
    %479 = vmatpush1.bf16.msra.mxu0 0
    %480 = vmatprep.subr.bf16.mxu0 0
    %481 = vmatpush1.bf16.msra.mxu0 0
    %482 = vmatprep.subr.bf16.mxu0 0
    %483 = vmatpush1.bf16.msra.mxu0 0
    %484 = vmatprep.subr.bf16.mxu0 0
    %485 = vmatpush1.bf16.msra.mxu0 0
    %486 = vmatprep.subr.bf16.mxu0 0
    %487 = vmatpush1.bf16.msra.mxu0 0
    %488 = vmatprep.subr.bf16.mxu0 0
    %489 = vmatpush1.bf16.msra.mxu0 0
    %490 = vmatprep.mubr.bf16.mxu0 0
    %491 = vmatmul.mubr.bf16.gmra.mrb[0].mxu0 %v453
    %v492 = vpop.f32.mrb[0].mxu0
    %v493 = vadd.f32 %v428, %v492
    %v494 = vpop.f32.mrb[0].mxu0
    %v495 = vpop.f32.mrb[0].mxu0
    %v496 = vadd.f32 %v431, %v495
    %v497 = vpop.f32.mrb[0].mxu0
    %498 = vmatprep.mubr.bf16.mxu0 0
    %499 = vmatmul.mubr.bf16.gmra.mrb[0].mxu0 %v456
    %v500 = vpop.f32.mrb[0].mxu0
    %v501 = vadd.f32 %v436, %v500
    %v502 = vpop.f32.mrb[0].mxu0
    %v503 = vpop.f32.mrb[0].mxu0
    %v504 = vadd.f32 %v439, %v503
    %v505 = vpop.f32.mrb[0].mxu0
    %506 = vdwg.mxu0
    %v507 = vlaneseq
    %v508 = vshrl.u32 %v507, 7
    %v509 = vsub.s32 1, %v508
    %v510 = vrot.slane %v129, %v509
    %v511 = vadd.f32 %v493, %v510
    %v512 = vadd.f32 %v496, %v510
    %v513 = vadd.f32 %v501, %v510
    %v514 = vadd.f32 %v504, %v510
    %vm515 = vcmp.gt.f32.partialorder %v511, 0.0
    %vm516 = vcmp.gt.f32.partialorder %v512, 0.0
    %vm517 = vcmp.gt.f32.partialorder %v513, 0.0
    %vm518 = vcmp.gt.f32.partialorder %v514, 0.0
    %v519 = vmin.f32 %v511, 0.0
    %v520 = vmin.f32 %v512, 0.0
    %v521 = vmin.f32 %v513, 0.0
    %v522 = vmin.f32 %v514, 0.0
    %v523 = vmul.f32 %v519, 1.442695
    %v524 = vpow.pop %v523
    %v525 = vmul.f32 %v520, 1.442695
    %v526 = vpow.pop %v525
    %v527 = vmul.f32 %v521, 1.442695
    %v528 = vpow.pop %v527
    %v529 = vmul.f32 %v522, 1.442695
    %v530 = vpow.pop %v529
    %v531 = vsub.f32 %v524, 1.0
    %v532 = vsub.f32 %v526, 1.0
    %v533 = vsub.f32 %v528, 1.0
    %v534 = vsub.f32 %v530, 1.0
    %v535 = vsel %vm515, %v511, %v531
    %v536 = vsel %vm516, %v512, %v532
    %v537 = vsel %vm517, %v513, %v533
    %v538 = vsel %vm518, %v514, %v534
    %s539 = scalar_lea.vmem %s7, 32
    %v540 = vld [vmem:[%s539] sm:$0xf]
    %v541 = vld [vmem:[%s539 + $0x4] sm:$0xf]
    %v542 = vld [vmem:[%s539 + $0x8] sm:$0xf]
    %v543 = vld [vmem:[%s539 + $0xc] sm:$0xf]
    %v544 = vld [vmem:[%s539 + $0x10] sm:$0xf]
    %v545 = vld [vmem:[%s539 + $0x14] sm:$0xf]
    %v546 = vld [vmem:[%s539 + $0x18] sm:$0xf]
    %v547 = vld [vmem:[%s539 + $0x1c] sm:$0x3]
    %v548 = vld [vmem:[#allocation7] sm:$0xf]
    %v549 = vpack.c.bf16 %v536, %v535
    %v550 = vpack.c.bf16 %v538, %v537
    %v551 = vlaneseq
    %v552 = vshrl.u32 %v551, 7
    %v553 = vsub.s32 4, %v552
    %v554 = vrot.slane %v129, %v553
    %v556 = vsel %vm151, %v549, 0
    %v559 = vsel %vm151, %v550, 0
    %v562 = vsel %vm158, %v548, 0
    %564 = vmatprep.subr.bf16.mxu0 0
    %565 = vmatpush1.bf16.msra.mxu0 %v562
    %566 = vmatprep.subr.bf16.mxu0 0
    %567 = vmatpush1.bf16.msra.mxu0 0
    %568 = vmatprep.subr.bf16.mxu0 0
    %569 = vmatpush1.bf16.msra.mxu0 0
    %570 = vmatprep.subr.bf16.mxu0 0
    %571 = vmatpush1.bf16.msra.mxu0 0
    %572 = vmatprep.subr.bf16.mxu0 0
    %573 = vmatpush1.bf16.msra.mxu0 0
    %574 = vmatprep.subr.bf16.mxu0 0
    %575 = vmatpush1.bf16.msra.mxu0 0
    %576 = vmatprep.subr.bf16.mxu0 0
    %577 = vmatpush1.bf16.msra.mxu0 0
    %578 = vmatprep.subr.bf16.mxu0 0
    %579 = vmatpush1.bf16.msra.mxu0 0
    %580 = vmatprep.subr.bf16.mxu0 0
    %581 = vmatpush1.bf16.msra.mxu0 0
    %582 = vmatprep.subr.bf16.mxu0 0
    %583 = vmatpush1.bf16.msra.mxu0 0
    %584 = vmatprep.subr.bf16.mxu0 0
    %585 = vmatpush1.bf16.msra.mxu0 0
    %586 = vmatprep.subr.bf16.mxu0 0
    %587 = vmatpush1.bf16.msra.mxu0 0
    %588 = vmatprep.subr.bf16.mxu0 0
    %589 = vmatpush1.bf16.msra.mxu0 0
    %590 = vmatprep.subr.bf16.mxu0 0
    %591 = vmatpush1.bf16.msra.mxu0 0
    %592 = vmatprep.subr.bf16.mxu0 0
    %593 = vmatpush1.bf16.msra.mxu0 0
    %594 = vmatprep.subr.bf16.mxu0 0
    %595 = vmatpush1.bf16.msra.mxu0 0
    %596 = vmatprep.mubr.bf16.mxu0 0
    %597 = vmatmul.mubr.bf16.gmra.mrb[0].mxu0 %v556
    %v598 = vpop.f32.mrb[0].mxu0
    %v599 = vadd.f32 %v554, %v598
    %v600 = vpop.f32.mrb[0].mxu0
    %v601 = vpop.f32.mrb[0].mxu0
    %v602 = vadd.f32 %v554, %v601
    %v603 = vpop.f32.mrb[0].mxu0
    %604 = vmatprep.mubr.bf16.mxu0 0
    %605 = vmatmul.mubr.bf16.gmra.mrb[0].mxu0 %v559
    %v606 = vpop.f32.mrb[0].mxu0
    %v607 = vadd.f32 %v554, %v606
    %v608 = vpop.f32.mrb[0].mxu0
    %v609 = vpop.f32.mrb[0].mxu0
    %v610 = vadd.f32 %v554, %v609
    %v611 = vpop.f32.mrb[0].mxu0
    %612 = vdwg.mxu0
    %v613 = vpack.c.bf16 %v602, %v599
    %v614 = vpack.c.bf16 %v610, %v607
    %v623 = vunpack.c.l.b16 %v540
    %v624 = vunpack.c.l.b16 %v541
    %v625 = vunpack.c.l.b16 %v542
    %v626 = vunpack.c.l.b16 %v543
    %v627 = vunpack.c.l.b16 %v544
    %v628 = vunpack.c.l.b16 %v545
    %v629 = vunpack.c.l.b16 %v546
    %v630 = vunpack.c.l.b16 %v547
    %v631 = vpack.c.b16 %v624, %v623
    %v632 = vpack.c.b16 %v626, %v625
    %v633 = vpack.c.b16 %v628, %v627
    %v634 = vpack.c.b16 %v630, %v629
    %v636 = vsel %vm233, %v631, 0
    %v639 = vsel %vm233, %v632, 0
    %v642 = vsel %vm233, %v633, 0
    %v645 = vsel %vm233, %v634, 0
    %647 = vmatprep.subr.bf16.mxu0 0
    %648 = vmatpush1.bf16.msra.mxu0 %v613
    %649 = vmatprep.subr.bf16.mxu0 0
    %650 = vmatpush1.bf16.msra.mxu0 %v614
    %651 = vmatprep.subr.bf16.mxu0 0
    %652 = vmatpush1.bf16.msra.mxu0 0
    %653 = vmatprep.subr.bf16.mxu0 0
    %654 = vmatpush1.bf16.msra.mxu0 0
    %655 = vmatprep.subr.bf16.mxu0 0
    %656 = vmatpush1.bf16.msra.mxu0 0
    %657 = vmatprep.subr.bf16.mxu0 0
    %658 = vmatpush1.bf16.msra.mxu0 0
    %659 = vmatprep.subr.bf16.mxu0 0
    %660 = vmatpush1.bf16.msra.mxu0 0
    %661 = vmatprep.subr.bf16.mxu0 0
    %662 = vmatpush1.bf16.msra.mxu0 0
    %663 = vmatprep.subr.bf16.mxu0 0
    %664 = vmatpush1.bf16.msra.mxu0 0
    %665 = vmatprep.subr.bf16.mxu0 0
    %666 = vmatpush1.bf16.msra.mxu0 0
    %667 = vmatprep.subr.bf16.mxu0 0
    %668 = vmatpush1.bf16.msra.mxu0 0
    %669 = vmatprep.subr.bf16.mxu0 0
    %670 = vmatpush1.bf16.msra.mxu0 0
    %671 = vmatprep.subr.bf16.mxu0 0
    %672 = vmatpush1.bf16.msra.mxu0 0
    %673 = vmatprep.subr.bf16.mxu0 0
    %674 = vmatpush1.bf16.msra.mxu0 0
    %675 = vmatprep.subr.bf16.mxu0 0
    %676 = vmatpush1.bf16.msra.mxu0 0
    %677 = vmatprep.subr.bf16.mxu0 0
    %678 = vmatpush1.bf16.msra.mxu0 0
    %679 = vmatprep.mubr.bf16.mxu0 0
    %680 = vmatmul.mubr.bf16.gmra.mrb[0].mxu0 %v636
    %v681 = vpop.f32.mrb[0].mxu0
    %v682 = vadd.f32 0.0, %v681
    %v683 = vpop.f32.mrb[0].mxu0
    %v684 = vpop.f32.mrb[0].mxu0
    %v685 = vadd.f32 0.0, %v684
    %v686 = vpop.f32.mrb[0].mxu0
    %687 = vmatprep.mubr.bf16.mxu0 0
    %688 = vmatmul.mubr.bf16.gmra.mrb[0].mxu0 %v639
    %v689 = vpop.f32.mrb[0].mxu0
    %v690 = vadd.f32 0.0, %v689
    %v691 = vpop.f32.mrb[0].mxu0
    %v692 = vpop.f32.mrb[0].mxu0
    %v693 = vadd.f32 0.0, %v692
    %v694 = vpop.f32.mrb[0].mxu0
    %695 = vmatprep.mubr.bf16.mxu0 0
    %696 = vmatmul.mubr.bf16.gmra.mrb[0].mxu0 %v642
    %v697 = vpop.f32.mrb[0].mxu0
    %v698 = vadd.f32 0.0, %v697
    %v699 = vpop.f32.mrb[0].mxu0
    %v700 = vpop.f32.mrb[0].mxu0
    %v701 = vadd.f32 0.0, %v700
    %v702 = vpop.f32.mrb[0].mxu0
    %703 = vmatprep.mubr.bf16.mxu0 0
    %704 = vmatmul.mubr.bf16.gmra.mrb[0].mxu0 %v645
    %v705 = vpop.f32.mrb[0].mxu0
    %v706 = vadd.f32 0.0, %v705
    %v707 = vpop.f32.mrb[0].mxu0
    %v708 = vpop.f32.mrb[0].mxu0
    %v709 = vadd.f32 0.0, %v708
    %v710 = vpop.f32.mrb[0].mxu0
    %711 = vdwg.mxu0
    %v720 = vunpack.c.l.b16 %v289
    %v721 = vunpack.c.l.b16 %v290
    %v722 = vunpack.c.l.b16 %v291
    %v723 = vunpack.c.l.b16 %v292
    %v724 = vunpack.c.l.b16 %v293
    %v725 = vunpack.c.l.b16 %v294
    %v726 = vunpack.c.l.b16 %v295
    %v727 = vunpack.c.l.b16 %v296
    %v728 = vpack.c.b16 %v721, %v720
    %v729 = vpack.c.b16 %v723, %v722
    %v730 = vpack.c.b16 %v725, %v724
    %v731 = vpack.c.b16 %v727, %v726
    %v733 = vsel %vm233, %v728, 0
    %v736 = vsel %vm233, %v729, 0
    %v739 = vsel %vm233, %v730, 0
    %v742 = vsel %vm233, %v731, 0
    %744 = vmatprep.subr.bf16.mxu0 0
    %745 = vmatpush1.bf16.msra.mxu0 %v215
    %746 = vmatprep.subr.bf16.mxu0 0
    %747 = vmatpush1.bf16.msra.mxu0 %v216
    %748 = vmatprep.subr.bf16.mxu0 0
    %749 = vmatpush1.bf16.msra.mxu0 0
    %750 = vmatprep.subr.bf16.mxu0 0
    %751 = vmatpush1.bf16.msra.mxu0 0
    %752 = vmatprep.subr.bf16.mxu0 0
    %753 = vmatpush1.bf16.msra.mxu0 0
    %754 = vmatprep.subr.bf16.mxu0 0
    %755 = vmatpush1.bf16.msra.mxu0 0
    %756 = vmatprep.subr.bf16.mxu0 0
    %757 = vmatpush1.bf16.msra.mxu0 0
    %758 = vmatprep.subr.bf16.mxu0 0
    %759 = vmatpush1.bf16.msra.mxu0 0
    %760 = vmatprep.subr.bf16.mxu0 0
    %761 = vmatpush1.bf16.msra.mxu0 0
    %762 = vmatprep.subr.bf16.mxu0 0
    %763 = vmatpush1.bf16.msra.mxu0 0
    %764 = vmatprep.subr.bf16.mxu0 0
    %765 = vmatpush1.bf16.msra.mxu0 0
    %766 = vmatprep.subr.bf16.mxu0 0
    %767 = vmatpush1.bf16.msra.mxu0 0
    %768 = vmatprep.subr.bf16.mxu0 0
    %769 = vmatpush1.bf16.msra.mxu0 0
    %770 = vmatprep.subr.bf16.mxu0 0
    %771 = vmatpush1.bf16.msra.mxu0 0
    %772 = vmatprep.subr.bf16.mxu0 0
    %773 = vmatpush1.bf16.msra.mxu0 0
    %774 = vmatprep.subr.bf16.mxu0 0
    %775 = vmatpush1.bf16.msra.mxu0 0
    %776 = vmatprep.mubr.bf16.mxu0 0
    %777 = vmatmul.mubr.bf16.gmra.mrb[0].mxu0 %v733
    %v778 = vpop.f32.mrb[0].mxu0
    %v779 = vadd.f32 %v682, %v778
    %v780 = vpop.f32.mrb[0].mxu0
    %v781 = vpop.f32.mrb[0].mxu0
    %v782 = vadd.f32 %v685, %v781
    %v783 = vpop.f32.mrb[0].mxu0
    %784 = vmatprep.mubr.bf16.mxu0 0
    %785 = vmatmul.mubr.bf16.gmra.mrb[0].mxu0 %v736
    %v786 = vpop.f32.mrb[0].mxu0
    %v787 = vadd.f32 %v690, %v786
    %v788 = vpop.f32.mrb[0].mxu0
    %v789 = vpop.f32.mrb[0].mxu0
    %v790 = vadd.f32 %v693, %v789
    %v791 = vpop.f32.mrb[0].mxu0
    %792 = vmatprep.mubr.bf16.mxu0 0
    %793 = vmatmul.mubr.bf16.gmra.mrb[0].mxu0 %v739
    %v794 = vpop.f32.mrb[0].mxu0
    %v795 = vadd.f32 %v698, %v794
    %v796 = vpop.f32.mrb[0].mxu0
    %v797 = vpop.f32.mrb[0].mxu0
    %v798 = vadd.f32 %v701, %v797
    %v799 = vpop.f32.mrb[0].mxu0
    %800 = vmatprep.mubr.bf16.mxu0 0
    %801 = vmatmul.mubr.bf16.gmra.mrb[0].mxu0 %v742
    %v802 = vpop.f32.mrb[0].mxu0
    %v803 = vadd.f32 %v706, %v802
    %v804 = vpop.f32.mrb[0].mxu0
    %v805 = vpop.f32.mrb[0].mxu0
    %v806 = vadd.f32 %v709, %v805
    %v807 = vpop.f32.mrb[0].mxu0
    %808 = vdwg.mxu0
    %s809 = scalar_lea.vmem [#allocation6], 4
    %v810 = vld [vmem:[%s809] sm:$0xf]
    %v812 = vsel %vm158, %v810, 0
    %814 = vmatprep.subr.bf16.mxu0 0
    %815 = vmatpush1.bf16.msra.mxu0 %v812
    %816 = vmatprep.subr.bf16.mxu0 0
    %817 = vmatpush1.bf16.msra.mxu0 0
    %818 = vmatprep.subr.bf16.mxu0 0
    %819 = vmatpush1.bf16.msra.mxu0 0
    %820 = vmatprep.subr.bf16.mxu0 0
    %821 = vmatpush1.bf16.msra.mxu0 0
    %822 = vmatprep.subr.bf16.mxu0 0
    %823 = vmatpush1.bf16.msra.mxu0 0
    %824 = vmatprep.subr.bf16.mxu0 0
    %825 = vmatpush1.bf16.msra.mxu0 0
    %826 = vmatprep.subr.bf16.mxu0 0
    %827 = vmatpush1.bf16.msra.mxu0 0
    %828 = vmatprep.subr.bf16.mxu0 0
    %829 = vmatpush1.bf16.msra.mxu0 0
    %830 = vmatprep.subr.bf16.mxu0 0
    %831 = vmatpush1.bf16.msra.mxu0 0
    %832 = vmatprep.subr.bf16.mxu0 0
    %833 = vmatpush1.bf16.msra.mxu0 0
    %834 = vmatprep.subr.bf16.mxu0 0
    %835 = vmatpush1.bf16.msra.mxu0 0
    %836 = vmatprep.subr.bf16.mxu0 0
    %837 = vmatpush1.bf16.msra.mxu0 0
    %838 = vmatprep.subr.bf16.mxu0 0
    %839 = vmatpush1.bf16.msra.mxu0 0
    %840 = vmatprep.subr.bf16.mxu0 0
    %841 = vmatpush1.bf16.msra.mxu0 0
    %842 = vmatprep.subr.bf16.mxu0 0
    %843 = vmatpush1.bf16.msra.mxu0 0
    %844 = vmatprep.subr.bf16.mxu0 0
    %845 = vmatpush1.bf16.msra.mxu0 0
    %846 = vmatprep.mubr.bf16.mxu0 0
    %847 = vmatmul.mubr.bf16.gmra.mrb[0].mxu0 %v556
    %v848 = vpop.f32.mrb[0].mxu0
    %v849 = vadd.f32 0.0, %v848
    %v850 = vpop.f32.mrb[0].mxu0
    %v851 = vpop.f32.mrb[0].mxu0
    %v852 = vadd.f32 0.0, %v851
    %v853 = vpop.f32.mrb[0].mxu0
    %854 = vmatprep.mubr.bf16.mxu0 0
    %855 = vmatmul.mubr.bf16.gmra.mrb[0].mxu0 %v559
    %v856 = vpop.f32.mrb[0].mxu0
    %v857 = vadd.f32 0.0, %v856
    %v858 = vpop.f32.mrb[0].mxu0
    %v859 = vpop.f32.mrb[0].mxu0
    %v860 = vadd.f32 0.0, %v859
    %v861 = vpop.f32.mrb[0].mxu0
    %862 = vdwg.mxu0
    %s863 = scalar_lea.vmem %s5, 32
    %v864 = vld [vmem:[%s863] sm:$0xf]
    %v865 = vld [vmem:[%s863 + $0x4] sm:$0xf]
    %v866 = vld [vmem:[%s863 + $0x8] sm:$0xf]
    %v867 = vld [vmem:[%s863 + $0xc] sm:$0xf]
    %v868 = vpack.c.bf16 %v852, %v849
    %v869 = vpack.c.bf16 %v860, %v857
    %s870 = scalar_lea.vmem %s5, 48
    %v871 = vld [vmem:[%s870] sm:$0xf]
    %v872 = vld [vmem:[%s870 + $0x4] sm:$0xf]
    %v873 = vld [vmem:[%s870 + $0x8] sm:$0xf]
    %v874 = vld [vmem:[%s870 + $0xc] sm:$0xf]
    %v879 = vunpack.c.l.b16 %v871
    %v880 = vunpack.c.l.b16 %v872
    %v881 = vunpack.c.l.b16 %v873
    %v882 = vunpack.c.l.b16 %v874
    %v883 = vpack.c.b16 %v880, %v879
    %v884 = vpack.c.b16 %v882, %v881
    %887 = vrot.lane.b32.xlu0 %v868, 120
    %v888 = vpop.permute.xlu0 %887
    %889 = vrot.lane.b32.xlu0 %v869, 120
    %v890 = vpop.permute.xlu0 %889
    %v894 = vsel %vm233, %v883, 0
    %v897 = vsel %vm233, %v884, 0
    %899 = vmatprep.subr.bf16.mxu0 0
    %900 = vmatpush1.bf16.msra.mxu0 %v888
    %901 = vmatprep.subr.bf16.mxu0 0
    %902 = vmatpush1.bf16.msra.mxu0 %v890
    %903 = vmatprep.subr.bf16.mxu0 0
    %904 = vmatpush1.bf16.msra.mxu0 0
    %905 = vmatprep.subr.bf16.mxu0 0
    %906 = vmatpush1.bf16.msra.mxu0 0
    %907 = vmatprep.subr.bf16.mxu0 0
    %908 = vmatpush1.bf16.msra.mxu0 0
    %909 = vmatprep.subr.bf16.mxu0 0
    %910 = vmatpush1.bf16.msra.mxu0 0
    %911 = vmatprep.subr.bf16.mxu0 0
    %912 = vmatpush1.bf16.msra.mxu0 0
    %913 = vmatprep.subr.bf16.mxu0 0
    %914 = vmatpush1.bf16.msra.mxu0 0
    %915 = vmatprep.subr.bf16.mxu0 0
    %916 = vmatpush1.bf16.msra.mxu0 0
    %917 = vmatprep.subr.bf16.mxu0 0
    %918 = vmatpush1.bf16.msra.mxu0 0
    %919 = vmatprep.subr.bf16.mxu0 0
    %920 = vmatpush1.bf16.msra.mxu0 0
    %921 = vmatprep.subr.bf16.mxu0 0
    %922 = vmatpush1.bf16.msra.mxu0 0
    %923 = vmatprep.subr.bf16.mxu0 0
    %924 = vmatpush1.bf16.msra.mxu0 0
    %925 = vmatprep.subr.bf16.mxu0 0
    %926 = vmatpush1.bf16.msra.mxu0 0
    %927 = vmatprep.subr.bf16.mxu0 0
    %928 = vmatpush1.bf16.msra.mxu0 0
    %929 = vmatprep.subr.bf16.mxu0 0
    %930 = vmatpush1.bf16.msra.mxu0 0
    %931 = vmatprep.mubr.bf16.mxu0 0
    %932 = vmatmul.mubr.bf16.gmra.mrb[0].mxu0 %v894
    %v933 = vpop.f32.mrb[0].mxu0
    %v934 = vadd.f32 0.0, %v933
    %v935 = vpop.f32.mrb[0].mxu0
    %v936 = vpop.f32.mrb[0].mxu0
    %v937 = vadd.f32 0.0, %v936
    %v938 = vpop.f32.mrb[0].mxu0
    %939 = vmatprep.mubr.bf16.mxu0 0
    %940 = vmatmul.mubr.bf16.gmra.mrb[0].mxu0 %v897
    %v941 = vpop.f32.mrb[0].mxu0
    %v942 = vadd.f32 0.0, %v941
    %v943 = vpop.f32.mrb[0].mxu0
    %v944 = vpop.f32.mrb[0].mxu0
    %v945 = vadd.f32 0.0, %v944
    %v946 = vpop.f32.mrb[0].mxu0
    %947 = vdwg.mxu0
    %v952 = vunpack.c.l.b16 %v864
    %v953 = vunpack.c.l.b16 %v865
    %v954 = vunpack.c.l.b16 %v866
    %v955 = vunpack.c.l.b16 %v867
    %v956 = vpack.c.b16 %v953, %v952
    %v957 = vpack.c.b16 %v955, %v954
    %v959 = vsel %vm233, %v956, 0
    %v962 = vsel %vm233, %v957, 0
    %964 = vmatprep.subr.bf16.mxu0 0
    %965 = vmatpush1.bf16.msra.mxu0 %v868
    %966 = vmatprep.subr.bf16.mxu0 0
    %967 = vmatpush1.bf16.msra.mxu0 %v869
    %968 = vmatprep.subr.bf16.mxu0 0
    %969 = vmatpush1.bf16.msra.mxu0 0
    %970 = vmatprep.subr.bf16.mxu0 0
    %971 = vmatpush1.bf16.msra.mxu0 0
    %972 = vmatprep.subr.bf16.mxu0 0
    %973 = vmatpush1.bf16.msra.mxu0 0
    %974 = vmatprep.subr.bf16.mxu0 0
    %975 = vmatpush1.bf16.msra.mxu0 0
    %976 = vmatprep.subr.bf16.mxu0 0
    %977 = vmatpush1.bf16.msra.mxu0 0
    %978 = vmatprep.subr.bf16.mxu0 0
    %979 = vmatpush1.bf16.msra.mxu0 0
    %980 = vmatprep.subr.bf16.mxu0 0
    %981 = vmatpush1.bf16.msra.mxu0 0
    %982 = vmatprep.subr.bf16.mxu0 0
    %983 = vmatpush1.bf16.msra.mxu0 0
    %984 = vmatprep.subr.bf16.mxu0 0
    %985 = vmatpush1.bf16.msra.mxu0 0
    %986 = vmatprep.subr.bf16.mxu0 0
    %987 = vmatpush1.bf16.msra.mxu0 0
    %988 = vmatprep.subr.bf16.mxu0 0
    %989 = vmatpush1.bf16.msra.mxu0 0
    %990 = vmatprep.subr.bf16.mxu0 0
    %991 = vmatpush1.bf16.msra.mxu0 0
    %992 = vmatprep.subr.bf16.mxu0 0
    %993 = vmatpush1.bf16.msra.mxu0 0
    %994 = vmatprep.subr.bf16.mxu0 0
    %995 = vmatpush1.bf16.msra.mxu0 0
    %996 = vmatprep.mubr.bf16.mxu0 0
    %997 = vmatmul.mubr.bf16.gmra.mrb[0].mxu0 %v959
    %v998 = vpop.f32.mrb[0].mxu0
    %v999 = vadd.f32 %v934, %v998
    %v1000 = vpop.f32.mrb[0].mxu0
    %v1001 = vpop.f32.mrb[0].mxu0
    %v1002 = vadd.f32 %v937, %v1001
    %v1003 = vpop.f32.mrb[0].mxu0
    %1004 = vmatprep.mubr.bf16.mxu0 0
    %1005 = vmatmul.mubr.bf16.gmra.mrb[0].mxu0 %v962
    %v1006 = vpop.f32.mrb[0].mxu0
    %v1007 = vadd.f32 %v942, %v1006
    %v1008 = vpop.f32.mrb[0].mxu0
    %v1009 = vpop.f32.mrb[0].mxu0
    %v1010 = vadd.f32 %v945, %v1009
    %v1011 = vpop.f32.mrb[0].mxu0
    %1012 = vdwg.mxu0
    %v1013 = vlaneseq
    %v1014 = vshrl.u32 %v1013, 7
    %v1015 = vsub.s32 2, %v1014
    %v1016 = vrot.slane %v129, %v1015
    %v1017 = vadd.f32 %v999, %v1016
    %v1018 = vadd.f32 %v1002, %v1016
    %v1019 = vadd.f32 %v1007, %v1016
    %v1020 = vadd.f32 %v1010, %v1016
    %vm1021 = vcmp.gt.f32.partialorder %v1017, 0.0
    %vm1022 = vcmp.gt.f32.partialorder %v1018, 0.0
    %vm1023 = vcmp.gt.f32.partialorder %v1019, 0.0
    %vm1024 = vcmp.gt.f32.partialorder %v1020, 0.0
    %v1025 = vmin.f32 %v1017, 0.0
    %v1026 = vmin.f32 %v1018, 0.0
    %v1027 = vmin.f32 %v1019, 0.0
    %v1028 = vmin.f32 %v1020, 0.0
    %v1029 = vmul.f32 %v1025, 1.442695
    %v1030 = vpow.pop %v1029
    %v1031 = vmul.f32 %v1026, 1.442695
    %v1032 = vpow.pop %v1031
    %v1033 = vmul.f32 %v1027, 1.442695
    %v1034 = vpow.pop %v1033
    %v1035 = vmul.f32 %v1028, 1.442695
    %v1036 = vpow.pop %v1035
    %v1037 = vsub.f32 %v1030, 1.0
    %v1038 = vsub.f32 %v1032, 1.0
    %v1039 = vsub.f32 %v1034, 1.0
    %v1040 = vsub.f32 %v1036, 1.0
    %v1041 = vsel %vm1021, %v1017, %v1037
    %v1042 = vsel %vm1022, %v1018, %v1038
    %v1043 = vsel %vm1023, %v1019, %v1039
    %v1044 = vsel %vm1024, %v1020, %v1040
    %s1045 = scalar_lea.vmem %s7, 64
    %v1046 = vld [vmem:[%s1045] sm:$0xf]
    %v1047 = vld [vmem:[%s1045 + $0x4] sm:$0xf]
    %v1048 = vld [vmem:[%s1045 + $0x8] sm:$0xf]
    %v1049 = vld [vmem:[%s1045 + $0xc] sm:$0xf]
    %v1050 = vld [vmem:[%s1045 + $0x10] sm:$0xf]
    %v1051 = vld [vmem:[%s1045 + $0x14] sm:$0xf]
    %v1052 = vld [vmem:[%s1045 + $0x18] sm:$0xf]
    %v1053 = vld [vmem:[%s1045 + $0x1c] sm:$0x3]
    %v1054 = vpack.c.bf16 %v1042, %v1041
    %v1055 = vpack.c.bf16 %v1044, %v1043
    %v1057 = vsel %vm151, %v1054, 0
    %v1060 = vsel %vm151, %v1055, 0
    %1062 = vmatprep.subr.bf16.mxu0 0
    %1063 = vmatpush1.bf16.msra.mxu0 %v562
    %1064 = vmatprep.subr.bf16.mxu0 0
    %1065 = vmatpush1.bf16.msra.mxu0 0
    %1066 = vmatprep.subr.bf16.mxu0 0
    %1067 = vmatpush1.bf16.msra.mxu0 0
    %1068 = vmatprep.subr.bf16.mxu0 0
    %1069 = vmatpush1.bf16.msra.mxu0 0
    %1070 = vmatprep.subr.bf16.mxu0 0
    %1071 = vmatpush1.bf16.msra.mxu0 0
    %1072 = vmatprep.subr.bf16.mxu0 0
    %1073 = vmatpush1.bf16.msra.mxu0 0
    %1074 = vmatprep.subr.bf16.mxu0 0
    %1075 = vmatpush1.bf16.msra.mxu0 0
    %1076 = vmatprep.subr.bf16.mxu0 0
    %1077 = vmatpush1.bf16.msra.mxu0 0
    %1078 = vmatprep.subr.bf16.mxu0 0
    %1079 = vmatpush1.bf16.msra.mxu0 0
    %1080 = vmatprep.subr.bf16.mxu0 0
    %1081 = vmatpush1.bf16.msra.mxu0 0
    %1082 = vmatprep.subr.bf16.mxu0 0
    %1083 = vmatpush1.bf16.msra.mxu0 0
    %1084 = vmatprep.subr.bf16.mxu0 0
    %1085 = vmatpush1.bf16.msra.mxu0 0
    %1086 = vmatprep.subr.bf16.mxu0 0
    %1087 = vmatpush1.bf16.msra.mxu0 0
    %1088 = vmatprep.subr.bf16.mxu0 0
    %1089 = vmatpush1.bf16.msra.mxu0 0
    %1090 = vmatprep.subr.bf16.mxu0 0
    %1091 = vmatpush1.bf16.msra.mxu0 0
    %1092 = vmatprep.subr.bf16.mxu0 0
    %1093 = vmatpush1.bf16.msra.mxu0 0
    %1094 = vmatprep.mubr.bf16.mxu0 0
    %1095 = vmatmul.mubr.bf16.gmra.mrb[0].mxu0 %v1057
    %v1096 = vpop.f32.mrb[0].mxu0
    %v1097 = vadd.f32 %v554, %v1096
    %v1098 = vpop.f32.mrb[0].mxu0
    %v1099 = vpop.f32.mrb[0].mxu0
    %v1100 = vadd.f32 %v554, %v1099
    %v1101 = vpop.f32.mrb[0].mxu0
    %1102 = vmatprep.mubr.bf16.mxu0 0
    %1103 = vmatmul.mubr.bf16.gmra.mrb[0].mxu0 %v1060
    %v1104 = vpop.f32.mrb[0].mxu0
    %v1105 = vadd.f32 %v554, %v1104
    %v1106 = vpop.f32.mrb[0].mxu0
    %v1107 = vpop.f32.mrb[0].mxu0
    %v1108 = vadd.f32 %v554, %v1107
    %v1109 = vpop.f32.mrb[0].mxu0
    %1110 = vdwg.mxu0
    %v1111 = vpack.c.bf16 %v1100, %v1097
    %v1112 = vpack.c.bf16 %v1108, %v1105
    %v1121 = vunpack.c.l.b16 %v1046
    %v1122 = vunpack.c.l.b16 %v1047
    %v1123 = vunpack.c.l.b16 %v1048
    %v1124 = vunpack.c.l.b16 %v1049
    %v1125 = vunpack.c.l.b16 %v1050
    %v1126 = vunpack.c.l.b16 %v1051
    %v1127 = vunpack.c.l.b16 %v1052
    %v1128 = vunpack.c.l.b16 %v1053
    %v1129 = vpack.c.b16 %v1122, %v1121
    %v1130 = vpack.c.b16 %v1124, %v1123
    %v1131 = vpack.c.b16 %v1126, %v1125
    %v1132 = vpack.c.b16 %v1128, %v1127
    %v1134 = vsel %vm233, %v1129, 0
    %v1137 = vsel %vm233, %v1130, 0
    %v1140 = vsel %vm233, %v1131, 0
    %v1143 = vsel %vm233, %v1132, 0
    %1145 = vmatprep.subr.bf16.mxu0 0
    %1146 = vmatpush1.bf16.msra.mxu0 %v1111
    %1147 = vmatprep.subr.bf16.mxu0 0
    %1148 = vmatpush1.bf16.msra.mxu0 %v1112
    %1149 = vmatprep.subr.bf16.mxu0 0
    %1150 = vmatpush1.bf16.msra.mxu0 0
    %1151 = vmatprep.subr.bf16.mxu0 0
    %1152 = vmatpush1.bf16.msra.mxu0 0
    %1153 = vmatprep.subr.bf16.mxu0 0
    %1154 = vmatpush1.bf16.msra.mxu0 0
    %1155 = vmatprep.subr.bf16.mxu0 0
    %1156 = vmatpush1.bf16.msra.mxu0 0
    %1157 = vmatprep.subr.bf16.mxu0 0
    %1158 = vmatpush1.bf16.msra.mxu0 0
    %1159 = vmatprep.subr.bf16.mxu0 0
    %1160 = vmatpush1.bf16.msra.mxu0 0
    %1161 = vmatprep.subr.bf16.mxu0 0
    %1162 = vmatpush1.bf16.msra.mxu0 0
    %1163 = vmatprep.subr.bf16.mxu0 0
    %1164 = vmatpush1.bf16.msra.mxu0 0
    %1165 = vmatprep.subr.bf16.mxu0 0
    %1166 = vmatpush1.bf16.msra.mxu0 0
    %1167 = vmatprep.subr.bf16.mxu0 0
    %1168 = vmatpush1.bf16.msra.mxu0 0
    %1169 = vmatprep.subr.bf16.mxu0 0
    %1170 = vmatpush1.bf16.msra.mxu0 0
    %1171 = vmatprep.subr.bf16.mxu0 0
    %1172 = vmatpush1.bf16.msra.mxu0 0
    %1173 = vmatprep.subr.bf16.mxu0 0
    %1174 = vmatpush1.bf16.msra.mxu0 0
    %1175 = vmatprep.subr.bf16.mxu0 0
    %1176 = vmatpush1.bf16.msra.mxu0 0
    %1177 = vmatprep.mubr.bf16.mxu0 0
    %1178 = vmatmul.mubr.bf16.gmra.mrb[0].mxu0 %v1134
    %v1179 = vpop.f32.mrb[0].mxu0
    %v1180 = vadd.f32 0.0, %v1179
    %v1181 = vpop.f32.mrb[0].mxu0
    %v1182 = vpop.f32.mrb[0].mxu0
    %v1183 = vadd.f32 0.0, %v1182
    %v1184 = vpop.f32.mrb[0].mxu0
    %1185 = vmatprep.mubr.bf16.mxu0 0
    %1186 = vmatmul.mubr.bf16.gmra.mrb[0].mxu0 %v1137
    %v1187 = vpop.f32.mrb[0].mxu0
    %v1188 = vadd.f32 0.0, %v1187
    %v1189 = vpop.f32.mrb[0].mxu0
    %v1190 = vpop.f32.mrb[0].mxu0
    %v1191 = vadd.f32 0.0, %v1190
    %v1192 = vpop.f32.mrb[0].mxu0
    %1193 = vmatprep.mubr.bf16.mxu0 0
    %1194 = vmatmul.mubr.bf16.gmra.mrb[0].mxu0 %v1140
    %v1195 = vpop.f32.mrb[0].mxu0
    %v1196 = vadd.f32 0.0, %v1195
    %v1197 = vpop.f32.mrb[0].mxu0
    %v1198 = vpop.f32.mrb[0].mxu0
    %v1199 = vadd.f32 0.0, %v1198
    %v1200 = vpop.f32.mrb[0].mxu0
    %1201 = vmatprep.mubr.bf16.mxu0 0
    %1202 = vmatmul.mubr.bf16.gmra.mrb[0].mxu0 %v1143
    %v1203 = vpop.f32.mrb[0].mxu0
    %v1204 = vadd.f32 0.0, %v1203
    %v1205 = vpop.f32.mrb[0].mxu0
    %v1206 = vpop.f32.mrb[0].mxu0
    %v1207 = vadd.f32 0.0, %v1206
    %v1208 = vpop.f32.mrb[0].mxu0
    %1209 = vdwg.mxu0
    %v1210 = vadd.f32 %v779, %v1180
    %v1211 = vadd.f32 %v782, %v1183
    %v1212 = vadd.f32 %v787, %v1188
    %v1213 = vadd.f32 %v790, %v1191
    %v1214 = vadd.f32 %v795, %v1196
    %v1215 = vadd.f32 %v798, %v1199
    %v1216 = vadd.f32 %v803, %v1204
    %v1217 = vadd.f32 %v806, %v1207
    %s1218 = scalar_lea.vmem [#allocation6], 8
    %v1219 = vld [vmem:[%s1218] sm:$0xf]
    %v1221 = vsel %vm158, %v1219, 0
    %1223 = vmatprep.subr.bf16.mxu0 0
    %1224 = vmatpush1.bf16.msra.mxu0 %v1221
    %1225 = vmatprep.subr.bf16.mxu0 0
    %1226 = vmatpush1.bf16.msra.mxu0 0
    %1227 = vmatprep.subr.bf16.mxu0 0
    %1228 = vmatpush1.bf16.msra.mxu0 0
    %1229 = vmatprep.subr.bf16.mxu0 0
    %1230 = vmatpush1.bf16.msra.mxu0 0
    %1231 = vmatprep.subr.bf16.mxu0 0
    %1232 = vmatpush1.bf16.msra.mxu0 0
    %1233 = vmatprep.subr.bf16.mxu0 0
    %1234 = vmatpush1.bf16.msra.mxu0 0
    %1235 = vmatprep.subr.bf16.mxu0 0
    %1236 = vmatpush1.bf16.msra.mxu0 0
    %1237 = vmatprep.subr.bf16.mxu0 0
    %1238 = vmatpush1.bf16.msra.mxu0 0
    %1239 = vmatprep.subr.bf16.mxu0 0
    %1240 = vmatpush1.bf16.msra.mxu0 0
    %1241 = vmatprep.subr.bf16.mxu0 0
    %1242 = vmatpush1.bf16.msra.mxu0 0
    %1243 = vmatprep.subr.bf16.mxu0 0
    %1244 = vmatpush1.bf16.msra.mxu0 0
    %1245 = vmatprep.subr.bf16.mxu0 0
    %1246 = vmatpush1.bf16.msra.mxu0 0
    %1247 = vmatprep.subr.bf16.mxu0 0
    %1248 = vmatpush1.bf16.msra.mxu0 0
    %1249 = vmatprep.subr.bf16.mxu0 0
    %1250 = vmatpush1.bf16.msra.mxu0 0
    %1251 = vmatprep.subr.bf16.mxu0 0
    %1252 = vmatpush1.bf16.msra.mxu0 0
    %1253 = vmatprep.subr.bf16.mxu0 0
    %1254 = vmatpush1.bf16.msra.mxu0 0
    %1255 = vmatprep.mubr.bf16.mxu0 0
    %1256 = vmatmul.mubr.bf16.gmra.mrb[0].mxu0 %v1057
    %v1257 = vpop.f32.mrb[0].mxu0
    %v1258 = vadd.f32 0.0, %v1257
    %v1259 = vpop.f32.mrb[0].mxu0
    %v1260 = vpop.f32.mrb[0].mxu0
    %v1261 = vadd.f32 0.0, %v1260
    %v1262 = vpop.f32.mrb[0].mxu0
    %1263 = vmatprep.mubr.bf16.mxu0 0
    %1264 = vmatmul.mubr.bf16.gmra.mrb[0].mxu0 %v1060
    %v1265 = vpop.f32.mrb[0].mxu0
    %v1266 = vadd.f32 0.0, %v1265
    %v1267 = vpop.f32.mrb[0].mxu0
    %v1268 = vpop.f32.mrb[0].mxu0
    %v1269 = vadd.f32 0.0, %v1268
    %v1270 = vpop.f32.mrb[0].mxu0
    %1271 = vdwg.mxu0
    %s1272 = scalar_lea.vmem %s5, 64
    %v1273 = vld [vmem:[%s1272] sm:$0xf]
    %v1274 = vld [vmem:[%s1272 + $0x4] sm:$0xf]
    %v1275 = vld [vmem:[%s1272 + $0x8] sm:$0xf]
    %v1276 = vld [vmem:[%s1272 + $0xc] sm:$0xf]
    %v1277 = vpack.c.bf16 %v1261, %v1258
    %v1278 = vpack.c.bf16 %v1269, %v1266
    %s1279 = scalar_lea.vmem %s5, 80
    %v1280 = vld [vmem:[%s1279] sm:$0xf]
    %v1281 = vld [vmem:[%s1279 + $0x4] sm:$0xf]
    %v1282 = vld [vmem:[%s1279 + $0x8] sm:$0xf]
    %v1283 = vld [vmem:[%s1279 + $0xc] sm:$0xf]
    %v1288 = vunpack.c.l.b16 %v1280
    %v1289 = vunpack.c.l.b16 %v1281
    %v1290 = vunpack.c.l.b16 %v1282
    %v1291 = vunpack.c.l.b16 %v1283
    %v1292 = vpack.c.b16 %v1289, %v1288
    %v1293 = vpack.c.b16 %v1291, %v1290
    %1296 = vrot.lane.b32.xlu0 %v1277, 120
    %v1297 = vpop.permute.xlu0 %1296
    %1298 = vrot.lane.b32.xlu0 %v1278, 120
    %v1299 = vpop.permute.xlu0 %1298
    %v1303 = vsel %vm233, %v1292, 0
    %v1306 = vsel %vm233, %v1293, 0
    %1308 = vmatprep.subr.bf16.mxu0 0
    %1309 = vmatpush1.bf16.msra.mxu0 %v1297
    %1310 = vmatprep.subr.bf16.mxu0 0
    %1311 = vmatpush1.bf16.msra.mxu0 %v1299
    %1312 = vmatprep.subr.bf16.mxu0 0
    %1313 = vmatpush1.bf16.msra.mxu0 0
    %1314 = vmatprep.subr.bf16.mxu0 0
    %1315 = vmatpush1.bf16.msra.mxu0 0
    %1316 = vmatprep.subr.bf16.mxu0 0
    %1317 = vmatpush1.bf16.msra.mxu0 0
    %1318 = vmatprep.subr.bf16.mxu0 0
    %1319 = vmatpush1.bf16.msra.mxu0 0
    %1320 = vmatprep.subr.bf16.mxu0 0
    %1321 = vmatpush1.bf16.msra.mxu0 0
    %1322 = vmatprep.subr.bf16.mxu0 0
    %1323 = vmatpush1.bf16.msra.mxu0 0
    %1324 = vmatprep.subr.bf16.mxu0 0
    %1325 = vmatpush1.bf16.msra.mxu0 0
    %1326 = vmatprep.subr.bf16.mxu0 0
    %1327 = vmatpush1.bf16.msra.mxu0 0
    %1328 = vmatprep.subr.bf16.mxu0 0
    %1329 = vmatpush1.bf16.msra.mxu0 0
    %1330 = vmatprep.subr.bf16.mxu0 0
    %1331 = vmatpush1.bf16.msra.mxu0 0
    %1332 = vmatprep.subr.bf16.mxu0 0
    %1333 = vmatpush1.bf16.msra.mxu0 0
    %1334 = vmatprep.subr.bf16.mxu0 0
    %1335 = vmatpush1.bf16.msra.mxu0 0
    %1336 = vmatprep.subr.bf16.mxu0 0
    %1337 = vmatpush1.bf16.msra.mxu0 0
    %1338 = vmatprep.subr.bf16.mxu0 0
    %1339 = vmatpush1.bf16.msra.mxu0 0
    %1340 = vmatprep.mubr.bf16.mxu0 0
    %1341 = vmatmul.mubr.bf16.gmra.mrb[0].mxu0 %v1303
    %v1342 = vpop.f32.mrb[0].mxu0
    %v1343 = vadd.f32 0.0, %v1342
    %v1344 = vpop.f32.mrb[0].mxu0
    %v1345 = vpop.f32.mrb[0].mxu0
    %v1346 = vadd.f32 0.0, %v1345
    %v1347 = vpop.f32.mrb[0].mxu0
    %1348 = vmatprep.mubr.bf16.mxu0 0
    %1349 = vmatmul.mubr.bf16.gmra.mrb[0].mxu0 %v1306
    %v1350 = vpop.f32.mrb[0].mxu0
    %v1351 = vadd.f32 0.0, %v1350
    %v1352 = vpop.f32.mrb[0].mxu0
    %v1353 = vpop.f32.mrb[0].mxu0
    %v1354 = vadd.f32 0.0, %v1353
    %v1355 = vpop.f32.mrb[0].mxu0
    %1356 = vdwg.mxu0
    %v1361 = vunpack.c.l.b16 %v1273
    %v1362 = vunpack.c.l.b16 %v1274
    %v1363 = vunpack.c.l.b16 %v1275
    %v1364 = vunpack.c.l.b16 %v1276
    %v1365 = vpack.c.b16 %v1362, %v1361
    %v1366 = vpack.c.b16 %v1364, %v1363
    %v1368 = vsel %vm233, %v1365, 0
    %v1371 = vsel %vm233, %v1366, 0
    %1373 = vmatprep.subr.bf16.mxu0 0
    %1374 = vmatpush1.bf16.msra.mxu0 %v1277
    %1375 = vmatprep.subr.bf16.mxu0 0
    %1376 = vmatpush1.bf16.msra.mxu0 %v1278
    %1377 = vmatprep.subr.bf16.mxu0 0
    %1378 = vmatpush1.bf16.msra.mxu0 0
    %1379 = vmatprep.subr.bf16.mxu0 0
    %1380 = vmatpush1.bf16.msra.mxu0 0
    %1381 = vmatprep.subr.bf16.mxu0 0
    %1382 = vmatpush1.bf16.msra.mxu0 0
    %1383 = vmatprep.subr.bf16.mxu0 0
    %1384 = vmatpush1.bf16.msra.mxu0 0
    %1385 = vmatprep.subr.bf16.mxu0 0
    %1386 = vmatpush1.bf16.msra.mxu0 0
    %1387 = vmatprep.subr.bf16.mxu0 0
    %1388 = vmatpush1.bf16.msra.mxu0 0
    %1389 = vmatprep.subr.bf16.mxu0 0
    %1390 = vmatpush1.bf16.msra.mxu0 0
    %1391 = vmatprep.subr.bf16.mxu0 0
    %1392 = vmatpush1.bf16.msra.mxu0 0
    %1393 = vmatprep.subr.bf16.mxu0 0
    %1394 = vmatpush1.bf16.msra.mxu0 0
    %1395 = vmatprep.subr.bf16.mxu0 0
    %1396 = vmatpush1.bf16.msra.mxu0 0
    %1397 = vmatprep.subr.bf16.mxu0 0
    %1398 = vmatpush1.bf16.msra.mxu0 0
    %1399 = vmatprep.subr.bf16.mxu0 0
    %1400 = vmatpush1.bf16.msra.mxu0 0
    %1401 = vmatprep.subr.bf16.mxu0 0
    %1402 = vmatpush1.bf16.msra.mxu0 0
    %1403 = vmatprep.subr.bf16.mxu0 0
    %1404 = vmatpush1.bf16.msra.mxu0 0
    %1405 = vmatprep.mubr.bf16.mxu0 0
    %1406 = vmatmul.mubr.bf16.gmra.mrb[0].mxu0 %v1368
    %v1407 = vpop.f32.mrb[0].mxu0
    %v1408 = vadd.f32 %v1343, %v1407
    %v1409 = vpop.f32.mrb[0].mxu0
    %v1410 = vpop.f32.mrb[0].mxu0
    %v1411 = vadd.f32 %v1346, %v1410
    %v1412 = vpop.f32.mrb[0].mxu0
    %1413 = vmatprep.mubr.bf16.mxu0 0
    %1414 = vmatmul.mubr.bf16.gmra.mrb[0].mxu0 %v1371
    %v1415 = vpop.f32.mrb[0].mxu0
    %v1416 = vadd.f32 %v1351, %v1415
    %v1417 = vpop.f32.mrb[0].mxu0
    %v1418 = vpop.f32.mrb[0].mxu0
    %v1419 = vadd.f32 %v1354, %v1418
    %v1420 = vpop.f32.mrb[0].mxu0
    %1421 = vdwg.mxu0
    %v1422 = vlaneseq
    %v1423 = vshrl.u32 %v1422, 7
    %v1424 = vsub.s32 3, %v1423
    %v1425 = vrot.slane %v129, %v1424
    %v1426 = vadd.f32 %v1408, %v1425
    %v1427 = vadd.f32 %v1411, %v1425
    %v1428 = vadd.f32 %v1416, %v1425
    %v1429 = vadd.f32 %v1419, %v1425
    %vm1430 = vcmp.gt.f32.partialorder %v1426, 0.0
    %vm1431 = vcmp.gt.f32.partialorder %v1427, 0.0
    %vm1432 = vcmp.gt.f32.partialorder %v1428, 0.0
    %vm1433 = vcmp.gt.f32.partialorder %v1429, 0.0
    %v1434 = vmin.f32 %v1426, 0.0
    %v1435 = vmin.f32 %v1427, 0.0
    %v1436 = vmin.f32 %v1428, 0.0
    %v1437 = vmin.f32 %v1429, 0.0
    %v1438 = vmul.f32 %v1434, 1.442695
    %v1439 = vpow.pop %v1438
    %v1440 = vmul.f32 %v1435, 1.442695
    %v1441 = vpow.pop %v1440
    %v1442 = vmul.f32 %v1436, 1.442695
    %v1443 = vpow.pop %v1442
    %v1444 = vmul.f32 %v1437, 1.442695
    %v1445 = vpow.pop %v1444
    %v1446 = vsub.f32 %v1439, 1.0
    %v1447 = vsub.f32 %v1441, 1.0
    %v1448 = vsub.f32 %v1443, 1.0
    %v1449 = vsub.f32 %v1445, 1.0
    %v1450 = vsel %vm1430, %v1426, %v1446
    %v1451 = vsel %vm1431, %v1427, %v1447
    %v1452 = vsel %vm1432, %v1428, %v1448
    %v1453 = vsel %vm1433, %v1429, %v1449
    %s1454 = scalar_lea.vmem %s7, 96
    %v1455 = vld [vmem:[%s1454] sm:$0xf]
    %v1456 = vld [vmem:[%s1454 + $0x4] sm:$0xf]
    %v1457 = vld [vmem:[%s1454 + $0x8] sm:$0xf]
    %v1458 = vld [vmem:[%s1454 + $0xc] sm:$0xf]
    %v1459 = vld [vmem:[%s1454 + $0x10] sm:$0xf]
    %v1460 = vld [vmem:[%s1454 + $0x14] sm:$0xf]
    %v1461 = vld [vmem:[%s1454 + $0x18] sm:$0xf]
    %v1462 = vld [vmem:[%s1454 + $0x1c] sm:$0x3]
    %v1463 = vpack.c.bf16 %v1451, %v1450
    %v1464 = vpack.c.bf16 %v1453, %v1452
    %v1466 = vsel %vm151, %v1463, 0
    %v1469 = vsel %vm151, %v1464, 0
    %1471 = vmatprep.subr.bf16.mxu0 0
    %1472 = vmatpush1.bf16.msra.mxu0 %v562
    %1473 = vmatprep.subr.bf16.mxu0 0
    %1474 = vmatpush1.bf16.msra.mxu0 0
    %1475 = vmatprep.subr.bf16.mxu0 0
    %1476 = vmatpush1.bf16.msra.mxu0 0
    %1477 = vmatprep.subr.bf16.mxu0 0
    %1478 = vmatpush1.bf16.msra.mxu0 0
    %1479 = vmatprep.subr.bf16.mxu0 0
    %1480 = vmatpush1.bf16.msra.mxu0 0
    %1481 = vmatprep.subr.bf16.mxu0 0
    %1482 = vmatpush1.bf16.msra.mxu0 0
    %1483 = vmatprep.subr.bf16.mxu0 0
    %1484 = vmatpush1.bf16.msra.mxu0 0
    %1485 = vmatprep.subr.bf16.mxu0 0
    %1486 = vmatpush1.bf16.msra.mxu0 0
    %1487 = vmatprep.subr.bf16.mxu0 0
    %1488 = vmatpush1.bf16.msra.mxu0 0
    %1489 = vmatprep.subr.bf16.mxu0 0
    %1490 = vmatpush1.bf16.msra.mxu0 0
    %1491 = vmatprep.subr.bf16.mxu0 0
    %1492 = vmatpush1.bf16.msra.mxu0 0
    %1493 = vmatprep.subr.bf16.mxu0 0
    %1494 = vmatpush1.bf16.msra.mxu0 0
    %1495 = vmatprep.subr.bf16.mxu0 0
    %1496 = vmatpush1.bf16.msra.mxu0 0
    %1497 = vmatprep.subr.bf16.mxu0 0
    %1498 = vmatpush1.bf16.msra.mxu0 0
    %1499 = vmatprep.subr.bf16.mxu0 0
    %1500 = vmatpush1.bf16.msra.mxu0 0
    %1501 = vmatprep.subr.bf16.mxu0 0
    %1502 = vmatpush1.bf16.msra.mxu0 0
    %1503 = vmatprep.mubr.bf16.mxu0 0
    %1504 = vmatmul.mubr.bf16.gmra.mrb[0].mxu0 %v1466
    %v1505 = vpop.f32.mrb[0].mxu0
    %v1506 = vadd.f32 %v554, %v1505
    %v1507 = vpop.f32.mrb[0].mxu0
    %v1508 = vpop.f32.mrb[0].mxu0
    %v1509 = vadd.f32 %v554, %v1508
    %v1510 = vpop.f32.mrb[0].mxu0
    %1511 = vmatprep.mubr.bf16.mxu0 0
    %1512 = vmatmul.mubr.bf16.gmra.mrb[0].mxu0 %v1469
    %v1513 = vpop.f32.mrb[0].mxu0
    %v1514 = vadd.f32 %v554, %v1513
    %v1515 = vpop.f32.mrb[0].mxu0
    %v1516 = vpop.f32.mrb[0].mxu0
    %v1517 = vadd.f32 %v554, %v1516
    %v1518 = vpop.f32.mrb[0].mxu0
    %1519 = vdwg.mxu0
    %v1520 = vpack.c.bf16 %v1509, %v1506
    %v1521 = vpack.c.bf16 %v1517, %v1514
    %v1530 = vunpack.c.l.b16 %v1455
    %v1531 = vunpack.c.l.b16 %v1456
    %v1532 = vunpack.c.l.b16 %v1457
    %v1533 = vunpack.c.l.b16 %v1458
    %v1534 = vunpack.c.l.b16 %v1459
    %v1535 = vunpack.c.l.b16 %v1460
    %v1536 = vunpack.c.l.b16 %v1461
    %v1537 = vunpack.c.l.b16 %v1462
    %v1538 = vpack.c.b16 %v1531, %v1530
    %v1539 = vpack.c.b16 %v1533, %v1532
    %v1540 = vpack.c.b16 %v1535, %v1534
    %v1541 = vpack.c.b16 %v1537, %v1536
    %v1543 = vsel %vm233, %v1538, 0
    %v1546 = vsel %vm233, %v1539, 0
    %v1549 = vsel %vm233, %v1540, 0
    %v1552 = vsel %vm233, %v1541, 0
    %1554 = vmatprep.subr.bf16.mxu0 0
    %1555 = vmatpush1.bf16.msra.mxu0 %v1520
    %1556 = vmatprep.subr.bf16.mxu0 0
    %1557 = vmatpush1.bf16.msra.mxu0 %v1521
    %1558 = vmatprep.subr.bf16.mxu0 0
    %1559 = vmatpush1.bf16.msra.mxu0 0
    %1560 = vmatprep.subr.bf16.mxu0 0
    %1561 = vmatpush1.bf16.msra.mxu0 0
    %1562 = vmatprep.subr.bf16.mxu0 0
    %1563 = vmatpush1.bf16.msra.mxu0 0
    %1564 = vmatprep.subr.bf16.mxu0 0
    %1565 = vmatpush1.bf16.msra.mxu0 0
    %1566 = vmatprep.subr.bf16.mxu0 0
    %1567 = vmatpush1.bf16.msra.mxu0 0
    %1568 = vmatprep.subr.bf16.mxu0 0
    %1569 = vmatpush1.bf16.msra.mxu0 0
    %1570 = vmatprep.subr.bf16.mxu0 0
    %1571 = vmatpush1.bf16.msra.mxu0 0
    %1572 = vmatprep.subr.bf16.mxu0 0
    %1573 = vmatpush1.bf16.msra.mxu0 0
    %1574 = vmatprep.subr.bf16.mxu0 0
    %1575 = vmatpush1.bf16.msra.mxu0 0
    %1576 = vmatprep.subr.bf16.mxu0 0
    %1577 = vmatpush1.bf16.msra.mxu0 0
    %1578 = vmatprep.subr.bf16.mxu0 0
    %1579 = vmatpush1.bf16.msra.mxu0 0
    %1580 = vmatprep.subr.bf16.mxu0 0
    %1581 = vmatpush1.bf16.msra.mxu0 0
    %1582 = vmatprep.subr.bf16.mxu0 0
    %1583 = vmatpush1.bf16.msra.mxu0 0
    %1584 = vmatprep.subr.bf16.mxu0 0
    %1585 = vmatpush1.bf16.msra.mxu0 0
    %1586 = vmatprep.mubr.bf16.mxu0 0
    %1587 = vmatmul.mubr.bf16.gmra.mrb[0].mxu0 %v1543
    %v1588 = vpop.f32.mrb[0].mxu0
    %v1589 = vadd.f32 0.0, %v1588
    %v1590 = vpop.f32.mrb[0].mxu0
    %v1591 = vpop.f32.mrb[0].mxu0
    %v1592 = vadd.f32 0.0, %v1591
    %v1593 = vpop.f32.mrb[0].mxu0
    %1594 = vmatprep.mubr.bf16.mxu0 0
    %1595 = vmatmul.mubr.bf16.gmra.mrb[0].mxu0 %v1546
    %v1596 = vpop.f32.mrb[0].mxu0
    %v1597 = vadd.f32 0.0, %v1596
    %v1598 = vpop.f32.mrb[0].mxu0
    %v1599 = vpop.f32.mrb[0].mxu0
    %v1600 = vadd.f32 0.0, %v1599
    %v1601 = vpop.f32.mrb[0].mxu0
    %1602 = vmatprep.mubr.bf16.mxu0 0
    %1603 = vmatmul.mubr.bf16.gmra.mrb[0].mxu0 %v1549
    %v1604 = vpop.f32.mrb[0].mxu0
    %v1605 = vadd.f32 0.0, %v1604
    %v1606 = vpop.f32.mrb[0].mxu0
    %v1607 = vpop.f32.mrb[0].mxu0
    %v1608 = vadd.f32 0.0, %v1607
    %v1609 = vpop.f32.mrb[0].mxu0
    %1610 = vmatprep.mubr.bf16.mxu0 0
    %1611 = vmatmul.mubr.bf16.gmra.mrb[0].mxu0 %v1552
    %v1612 = vpop.f32.mrb[0].mxu0
    %v1613 = vadd.f32 0.0, %v1612
    %v1614 = vpop.f32.mrb[0].mxu0
    %v1615 = vpop.f32.mrb[0].mxu0
    %v1616 = vadd.f32 0.0, %v1615
    %v1617 = vpop.f32.mrb[0].mxu0
    %1618 = vdwg.mxu0
    %v1619 = vadd.f32 %v1210, %v1589
    %v1620 = vadd.f32 %v1211, %v1592
    %v1621 = vadd.f32 %v1212, %v1597
    %v1622 = vadd.f32 %v1213, %v1600
    %v1623 = vadd.f32 %v1214, %v1605
    %v1624 = vadd.f32 %v1215, %v1608
    %v1625 = vadd.f32 %v1216, %v1613
    %v1626 = vadd.f32 %v1217, %v1616
    %v1627 = vsel %vm233, %v1619, 0.0
    %1628 = vadd.xlane.f32.xlu0 %v1627
    %v1629 = vpop.xlane.xlu0 %1628
    %v1630 = vsel %vm233, %v1620, 0.0
    %1631 = vadd.xlane.f32.xlu0 %v1630
    %v1632 = vpop.xlane.xlu0 %1631
    %v1633 = vsel %vm233, %v1621, 0.0
    %1634 = vadd.xlane.f32.xlu0 %v1633
    %v1635 = vpop.xlane.xlu0 %1634
    %v1636 = vsel %vm233, %v1622, 0.0
    %1637 = vadd.xlane.f32.xlu0 %v1636
    %v1638 = vpop.xlane.xlu0 %1637
    %v1639 = vsel %vm233, %v1623, 0.0
    %1640 = vadd.xlane.f32.xlu0 %v1639
    %v1641 = vpop.xlane.xlu0 %1640
    %v1642 = vsel %vm233, %v1624, 0.0
    %1643 = vadd.xlane.f32.xlu0 %v1642
    %v1644 = vpop.xlane.xlu0 %1643
    %v1645 = vsel %vm233, %v1625, 0.0
    %1646 = vadd.xlane.f32.xlu0 %v1645
    %v1647 = vpop.xlane.xlu0 %1646
    %vm1648 = vcmask 257024
    %v1649 = vsel %vm1648, %v1626, 0.0
    %1650 = vadd.xlane.f32.xlu0 %v1649
    %v1651 = vpop.xlane.xlu0 %1650
    %v1652 = vrcp.pop 32.0
    %v1653 = vmul.f32 %v1629, %v1652
    %v1654 = vmul.f32 %v1632, %v1652
    %v1655 = vmul.f32 %v1635, %v1652
    %v1656 = vmul.f32 %v1638, %v1652
    %v1657 = vmul.f32 %v1641, %v1652
    %v1658 = vmul.f32 %v1644, %v1652
    %v1659 = vmul.f32 %v1647, %v1652
    %v1660 = vmul.f32 %v1651, %v1652
    %v1661 = vsub.f32 %v1619, %v1653
    %v1662 = vsub.f32 %v1620, %v1654
    %v1663 = vsub.f32 %v1621, %v1655
    %v1664 = vsub.f32 %v1622, %v1656
    %v1665 = vsub.f32 %v1623, %v1657
    %v1666 = vsub.f32 %v1624, %v1658
    %v1667 = vsub.f32 %v1625, %v1659
    %v1668 = vsub.f32 %v1626, %v1660
    %v1669 = vmul.f32 %v1661, %v1661
    %v1670 = vmul.f32 %v1662, %v1662
    %v1671 = vmul.f32 %v1663, %v1663
    %v1672 = vmul.f32 %v1664, %v1664
    %v1673 = vmul.f32 %v1665, %v1665
    %v1674 = vmul.f32 %v1666, %v1666
    %v1675 = vmul.f32 %v1667, %v1667
    %v1676 = vmul.f32 %v1668, %v1668
    %v1677 = vsel %vm233, %v1669, 0.0
    %1678 = vadd.xlane.f32.xlu0 %v1677
    %v1679 = vpop.xlane.xlu0 %1678
    %v1680 = vsel %vm233, %v1670, 0.0
    %1681 = vadd.xlane.f32.xlu0 %v1680
    %v1682 = vpop.xlane.xlu0 %1681
    %v1683 = vsel %vm233, %v1671, 0.0
    %1684 = vadd.xlane.f32.xlu0 %v1683
    %v1685 = vpop.xlane.xlu0 %1684
    %v1686 = vsel %vm233, %v1672, 0.0
    %1687 = vadd.xlane.f32.xlu0 %v1686
    %v1688 = vpop.xlane.xlu0 %1687
    %v1689 = vsel %vm233, %v1673, 0.0
    %1690 = vadd.xlane.f32.xlu0 %v1689
    %v1691 = vpop.xlane.xlu0 %1690
    %v1692 = vsel %vm233, %v1674, 0.0
    %1693 = vadd.xlane.f32.xlu0 %v1692
    %v1694 = vpop.xlane.xlu0 %1693
    %v1695 = vsel %vm233, %v1675, 0.0
    %1696 = vadd.xlane.f32.xlu0 %v1695
    %v1697 = vpop.xlane.xlu0 %1696
    %v1698 = vsel %vm1648, %v1676, 0.0
    %1699 = vadd.xlane.f32.xlu0 %v1698
    %v1700 = vpop.xlane.xlu0 %1699
    %v1701 = vmul.f32 %v1679, %v1652
    %v1702 = vmul.f32 %v1682, %v1652
    %v1703 = vmul.f32 %v1685, %v1652
    %v1704 = vmul.f32 %v1688, %v1652
    %v1705 = vmul.f32 %v1691, %v1652
    %v1706 = vmul.f32 %v1694, %v1652
    %v1707 = vmul.f32 %v1697, %v1652
    %v1708 = vmul.f32 %v1700, %v1652
    %v1709 = vadd.f32 %v1701, 1e-05
    %v1710 = vadd.f32 %v1702, 1e-05
    %v1711 = vadd.f32 %v1703, 1e-05
    %v1712 = vadd.f32 %v1704, 1e-05
    %v1713 = vadd.f32 %v1705, 1e-05
    %v1714 = vadd.f32 %v1706, 1e-05
    %v1715 = vadd.f32 %v1707, 1e-05
    %v1716 = vadd.f32 %v1708, 1e-05
    %v1717 = vrsqrt.pop %v1709
    %v1718 = vrsqrt.pop %v1710
    %v1719 = vrsqrt.pop %v1711
    %v1720 = vrsqrt.pop %v1712
    %v1721 = vrsqrt.pop %v1713
    %v1722 = vrsqrt.pop %v1714
    %v1723 = vrsqrt.pop %v1715
    %v1724 = vrsqrt.pop %v1716
    %v1725 = vmul.f32 %v1661, %v1717
    %v1726 = vmul.f32 %v1662, %v1718
    %v1727 = vmul.f32 %v1663, %v1719
    %v1728 = vmul.f32 %v1664, %v1720
    %v1729 = vmul.f32 %v1665, %v1721
    %v1730 = vmul.f32 %v1666, %v1722
    %v1731 = vmul.f32 %v1667, %v1723
    %v1732 = vmul.f32 %v1668, %v1724
    %v1733 = vlaneseq
    %v1734 = vshrl.u32 %v1733, 7
    %v1735 = vsub.s32 5, %v1734
    %v1736 = vrot.slane %v129, %v1735
    %v1737 = vmul.f32 %v1725, %v1736
    %v1738 = vmul.f32 %v1726, %v1736
    %v1739 = vmul.f32 %v1727, %v1736
    %v1740 = vmul.f32 %v1728, %v1736
    %v1741 = vmul.f32 %v1729, %v1736
    %v1742 = vmul.f32 %v1730, %v1736
    %v1743 = vmul.f32 %v1731, %v1736
    %v1744 = vmul.f32 %v1732, %v1736
    %v1745 = vlaneseq
    %v1746 = vshrl.u32 %v1745, 7
    %v1747 = vsub.s32 6, %v1746
    %v1748 = vrot.slane %v129, %v1747
    %v1749 = vadd.f32 %v1737, %v1748
    %v1750 = vadd.f32 %v1738, %v1748
    %v1751 = vadd.f32 %v1739, %v1748
    %v1752 = vadd.f32 %v1740, %v1748
    %v1753 = vadd.f32 %v1741, %v1748
    %v1754 = vadd.f32 %v1742, %v1748
    %v1755 = vadd.f32 %v1743, %v1748
    %v1756 = vadd.f32 %v1744, %v1748
    %v1757 = vld [vmem:[%s8] sm:$0xff]
    %v1758 = vld [vmem:[%s8 + $0x8] sm:$0xff]
    %v1759 = vld [vmem:[%s8 + $0x10] sm:$0xff]
    %v1760 = vld [vmem:[%s8 + $0x18] sm:$0xff]
    %v1761 = vld [vmem:[%s8 + $0x20] sm:$0xff]
    %v1762 = vld [vmem:[%s8 + $0x28] sm:$0xff]
    %v1763 = vld [vmem:[%s8 + $0x30] sm:$0xff]
    %v1764 = vld [vmem:[%s8 + $0x38] sm:$0xf]
    %v1765 = vpack.c.bf16 %v1750, %v1749
    %v1766 = vpack.c.bf16 %v1752, %v1751
    %v1767 = vpack.c.bf16 %v1754, %v1753
    %v1768 = vpack.c.bf16 %v1756, %v1755
    %v1769 = vld [vmem:[%s9] sm:$0xff]
    %v1770 = vld [vmem:[%s9 + $0x8] sm:$0xff]
    %v1771 = vld [vmem:[%s9 + $0x10] sm:$0xff]
    %v1772 = vld [vmem:[%s9 + $0x18] sm:$0xff]
    %v1777 = vunpack.c.l.b16 %v1769
    %v1778 = vunpack.c.h.b16 %v1769
    %v1779 = vunpack.c.l.b16 %v1770
    %v1780 = vunpack.c.h.b16 %v1770
    %v1781 = vunpack.c.l.b16 %v1771
    %v1782 = vunpack.c.h.b16 %v1771
    %v1783 = vunpack.c.l.b16 %v1772
    %v1784 = vunpack.c.h.b16 %v1772
    %v1785 = vpack.c.b16 %v1779, %v1777
    %v1786 = vpack.c.b16 %v1780, %v1778
    %v1787 = vpack.c.b16 %v1783, %v1781
    %v1788 = vpack.c.b16 %v1784, %v1782
    %v1794 = vsel %vm233, %v1765, 0
    %v1797 = vsel %vm233, %v1766, 0
    %v1800 = vsel %vm233, %v1767, 0
    %v1803 = vsel %vm233, %v1768, 0
    %1805 = vmatprep.subr.bf16.mxu0 %v1786
    %1806 = vmatpush1.bf16.msra.mxu0 %v1785
    %1807 = vmatprep.subr.bf16.mxu0 %v1788
    %1808 = vmatpush1.bf16.msra.mxu0 %v1787
    %1809 = vmatprep.subr.bf16.mxu0 0
    %1810 = vmatpush1.bf16.msra.mxu0 0
    %1811 = vmatprep.subr.bf16.mxu0 0
    %1812 = vmatpush1.bf16.msra.mxu0 0
    %1813 = vmatprep.subr.bf16.mxu0 0
    %1814 = vmatpush1.bf16.msra.mxu0 0
    %1815 = vmatprep.subr.bf16.mxu0 0
    %1816 = vmatpush1.bf16.msra.mxu0 0
    %1817 = vmatprep.subr.bf16.mxu0 0
    %1818 = vmatpush1.bf16.msra.mxu0 0
    %1819 = vmatprep.subr.bf16.mxu0 0
    %1820 = vmatpush1.bf16.msra.mxu0 0
    %1821 = vmatprep.subr.bf16.mxu0 0
    %1822 = vmatpush1.bf16.msra.mxu0 0
    %1823 = vmatprep.subr.bf16.mxu0 0
    %1824 = vmatpush1.bf16.msra.mxu0 0
    %1825 = vmatprep.subr.bf16.mxu0 0
    %1826 = vmatpush1.bf16.msra.mxu0 0
    %1827 = vmatprep.subr.bf16.mxu0 0
    %1828 = vmatpush1.bf16.msra.mxu0 0
    %1829 = vmatprep.subr.bf16.mxu0 0
    %1830 = vmatpush1.bf16.msra.mxu0 0
    %1831 = vmatprep.subr.bf16.mxu0 0
    %1832 = vmatpush1.bf16.msra.mxu0 0
    %1833 = vmatprep.subr.bf16.mxu0 0
    %1834 = vmatpush1.bf16.msra.mxu0 0
    %1835 = vmatprep.subr.bf16.mxu0 0
    %1836 = vmatpush1.bf16.msra.mxu0 0
    %1837 = vmatprep.mubr.bf16.mxu0 0
    %1838 = vmatmul.mubr.bf16.gmra.mrb[0].mxu0 %v1794
    %v1839 = vpop.f32.mrb[0].mxu0
    %v1840 = vadd.f32 0.0, %v1839
    %v1841 = vpop.f32.mrb[0].mxu0
    %v1842 = vadd.f32 0.0, %v1841
    %v1843 = vpop.f32.mrb[0].mxu0
    %v1844 = vadd.f32 0.0, %v1843
    %v1845 = vpop.f32.mrb[0].mxu0
    %v1846 = vadd.f32 0.0, %v1845
    %1847 = vmatprep.mubr.bf16.mxu0 0
    %1848 = vmatmul.mubr.bf16.gmra.mrb[0].mxu0 %v1797
    %v1849 = vpop.f32.mrb[0].mxu0
    %v1850 = vadd.f32 0.0, %v1849
    %v1851 = vpop.f32.mrb[0].mxu0
    %v1852 = vadd.f32 0.0, %v1851
    %v1853 = vpop.f32.mrb[0].mxu0
    %v1854 = vadd.f32 0.0, %v1853
    %v1855 = vpop.f32.mrb[0].mxu0
    %v1856 = vadd.f32 0.0, %v1855
    %1857 = vmatprep.mubr.bf16.mxu0 0
    %1858 = vmatmul.mubr.bf16.gmra.mrb[0].mxu0 %v1800
    %v1859 = vpop.f32.mrb[0].mxu0
    %v1860 = vadd.f32 0.0, %v1859
    %v1861 = vpop.f32.mrb[0].mxu0
    %v1862 = vadd.f32 0.0, %v1861
    %v1863 = vpop.f32.mrb[0].mxu0
    %v1864 = vadd.f32 0.0, %v1863
    %v1865 = vpop.f32.mrb[0].mxu0
    %v1866 = vadd.f32 0.0, %v1865
    %1867 = vmatprep.mubr.bf16.mxu0 0
    %1868 = vmatmul.mubr.bf16.gmra.mrb[0].mxu0 %v1803
    %v1869 = vpop.f32.mrb[0].mxu0
    %v1870 = vadd.f32 0.0, %v1869
    %v1871 = vpop.f32.mrb[0].mxu0
    %v1872 = vadd.f32 0.0, %v1871
    %v1873 = vpop.f32.mrb[0].mxu0
    %v1874 = vadd.f32 0.0, %v1873
    %v1875 = vpop.f32.mrb[0].mxu0
    %v1876 = vadd.f32 0.0, %v1875
    %1877 = vdwg.mxu0
    %v1878 = vpack.c.bf16 %v1844, %v1840
    %v1879 = vpack.c.bf16 %v1854, %v1850
    %v1880 = vpack.c.bf16 %v1864, %v1860
    %v1881 = vpack.c.bf16 %v1874, %v1870
    %v1883 = vsel %vm233, %v1878, 0
    %v1886 = vsel %vm233, %v1879, 0
    %v1889 = vsel %vm233, %v1880, 0
    %v1892 = vsel %vm233, %v1881, 0
    %1894 = vmatprep.subr.bf16.mxu0 0
    %1895 = vmatpush1.bf16.xpose.msra.mxu0 %v1794
    %1896 = vmatprep.subr.bf16.mxu0 0
    %1897 = vmatpush1.bf16.xpose.msra.mxu0 %v1797
    %1898 = vmatprep.subr.bf16.mxu0 0
    %1899 = vmatpush1.bf16.xpose.msra.mxu0 %v1800
    %1900 = vmatprep.subr.bf16.mxu0 0
    %1901 = vmatpush1.bf16.xpose.msra.mxu0 %v1803
    %1902 = vmatprep.subr.bf16.mxu0 0
    %1903 = vmatpush1.bf16.xpose.msra.mxu0 0
    %1904 = vmatprep.subr.bf16.mxu0 0
    %1905 = vmatpush1.bf16.xpose.msra.mxu0 0
    %1906 = vmatprep.subr.bf16.mxu0 0
    %1907 = vmatpush1.bf16.xpose.msra.mxu0 0
    %1908 = vmatprep.subr.bf16.mxu0 0
    %1909 = vmatpush1.bf16.xpose.msra.mxu0 0
    %1910 = vmatprep.subr.bf16.mxu0 0
    %1911 = vmatpush1.bf16.xpose.msra.mxu0 0
    %1912 = vmatprep.subr.bf16.mxu0 0
    %1913 = vmatpush1.bf16.xpose.msra.mxu0 0
    %1914 = vmatprep.subr.bf16.mxu0 0
    %1915 = vmatpush1.bf16.xpose.msra.mxu0 0
    %1916 = vmatprep.subr.bf16.mxu0 0
    %1917 = vmatpush1.bf16.xpose.msra.mxu0 0
    %1918 = vmatprep.subr.bf16.mxu0 0
    %1919 = vmatpush1.bf16.xpose.msra.mxu0 0
    %1920 = vmatprep.subr.bf16.mxu0 0
    %1921 = vmatpush1.bf16.xpose.msra.mxu0 0
    %1922 = vmatprep.subr.bf16.mxu0 0
    %1923 = vmatpush1.bf16.xpose.msra.mxu0 0
    %1924 = vmatprep.subr.bf16.mxu0 0
    %1925 = vmatpush1.bf16.xpose.msra.mxu0 0
    %1926 = vmatprep.mubr.bf16.mxu0 0
    %1927 = vmatmul.mubr.bf16.gmra.mrb[0].mxu0 %v1883
    %v1928 = vpop.f32.mrb[0].mxu0
    %v1929 = vadd.f32 %v1757, %v1928
    %v1930 = vpop.f32.mrb[0].mxu0
    %v1931 = vpop.f32.mrb[0].mxu0
    %v1932 = vadd.f32 %v1758, %v1931
    %v1933 = vpop.f32.mrb[0].mxu0
    %1934 = vmatprep.mubr.bf16.mxu0 0
    %1935 = vmatmul.mubr.bf16.gmra.mrb[0].mxu0 %v1886
    %v1936 = vpop.f32.mrb[0].mxu0
    %v1937 = vadd.f32 %v1759, %v1936
    %v1938 = vpop.f32.mrb[0].mxu0
    %v1939 = vpop.f32.mrb[0].mxu0
    %v1940 = vadd.f32 %v1760, %v1939
    %v1941 = vpop.f32.mrb[0].mxu0
    %1942 = vmatprep.mubr.bf16.mxu0 0
    %1943 = vmatmul.mubr.bf16.gmra.mrb[0].mxu0 %v1889
    %v1944 = vpop.f32.mrb[0].mxu0
    %v1945 = vadd.f32 %v1761, %v1944
    %v1946 = vpop.f32.mrb[0].mxu0
    %v1947 = vpop.f32.mrb[0].mxu0
    %v1948 = vadd.f32 %v1762, %v1947
    %v1949 = vpop.f32.mrb[0].mxu0
    %1950 = vmatprep.mubr.bf16.mxu0 0
    %1951 = vmatmul.mubr.bf16.gmra.mrb[0].mxu0 %v1892
    %v1952 = vpop.f32.mrb[0].mxu0
    %v1953 = vadd.f32 %v1763, %v1952
    %v1954 = vpop.f32.mrb[0].mxu0
    %v1955 = vpop.f32.mrb[0].mxu0
    %v1956 = vadd.f32 %v1764, %v1955
    %v1957 = vpop.f32.mrb[0].mxu0
    %1958 = vdwg.mxu0
    %vm1959 = vcmask 490496
    %v1960 = vsel %vm1959, %v1929, -inf
    %1961 = vmax.xlane.f32.xlu0 %v1960
    %v1962 = vpop.xlane.xlu0 %1961
    %v1963 = vsel %vm1959, %v1932, -inf
    %1964 = vmax.xlane.f32.xlu0 %v1963
    %v1965 = vpop.xlane.xlu0 %1964
    %v1966 = vsel %vm1959, %v1937, -inf
    %1967 = vmax.xlane.f32.xlu0 %v1966
    %v1968 = vpop.xlane.xlu0 %1967
    %v1969 = vsel %vm1959, %v1940, -inf
    %1970 = vmax.xlane.f32.xlu0 %v1969
    %v1971 = vpop.xlane.xlu0 %1970
    %v1972 = vsel %vm1959, %v1945, -inf
    %1973 = vmax.xlane.f32.xlu0 %v1972
    %v1974 = vpop.xlane.xlu0 %1973
    %v1975 = vsel %vm1959, %v1948, -inf
    %1976 = vmax.xlane.f32.xlu0 %v1975
    %v1977 = vpop.xlane.xlu0 %1976
    %v1978 = vsel %vm1959, %v1953, -inf
    %1979 = vmax.xlane.f32.xlu0 %v1978
    %v1980 = vpop.xlane.xlu0 %1979
    %vm1981 = vcmask 486400
    %v1982 = vsel %vm1981, %v1956, -inf
    %1983 = vmax.xlane.f32.xlu0 %v1982
    %v1984 = vpop.xlane.xlu0 %1983
    %v1985 = vsub.f32 %v1929, %v1962
    %v1986 = vsub.f32 %v1932, %v1965
    %v1987 = vsub.f32 %v1937, %v1968
    %v1988 = vsub.f32 %v1940, %v1971
    %v1989 = vsub.f32 %v1945, %v1974
    %v1990 = vsub.f32 %v1948, %v1977
    %v1991 = vsub.f32 %v1953, %v1980
    %v1992 = vsub.f32 %v1956, %v1984
    %v1993 = vmul.f32 %v1985, 1.442695
    %v1994 = vpow.pop %v1993
    %v1995 = vmul.f32 %v1986, 1.442695
    %v1996 = vpow.pop %v1995
    %v1997 = vmul.f32 %v1987, 1.442695
    %v1998 = vpow.pop %v1997
    %v1999 = vmul.f32 %v1988, 1.442695
    %v2000 = vpow.pop %v1999
    %v2001 = vmul.f32 %v1989, 1.442695
    %v2002 = vpow.pop %v2001
    %v2003 = vmul.f32 %v1990, 1.442695
    %v2004 = vpow.pop %v2003
    %v2005 = vmul.f32 %v1991, 1.442695
    %v2006 = vpow.pop %v2005
    %v2007 = vmul.f32 %v1992, 1.442695
    %v2008 = vpow.pop %v2007
    %v2009 = vsel %vm1959, %v1994, 0.0
    %2010 = vadd.xlane.f32.xlu0 %v2009
    %v2011 = vpop.xlane.xlu0 %2010
    %v2012 = vsel %vm1959, %v1996, 0.0
    %2013 = vadd.xlane.f32.xlu0 %v2012
    %v2014 = vpop.xlane.xlu0 %2013
    %v2015 = vsel %vm1959, %v1998, 0.0
    %2016 = vadd.xlane.f32.xlu0 %v2015
    %v2017 = vpop.xlane.xlu0 %2016
    %v2018 = vsel %vm1959, %v2000, 0.0
    %2019 = vadd.xlane.f32.xlu0 %v2018
    %v2020 = vpop.xlane.xlu0 %2019
    %v2021 = vsel %vm1959, %v2002, 0.0
    %2022 = vadd.xlane.f32.xlu0 %v2021
    %v2023 = vpop.xlane.xlu0 %2022
    %v2024 = vsel %vm1959, %v2004, 0.0
    %2025 = vadd.xlane.f32.xlu0 %v2024
    %v2026 = vpop.xlane.xlu0 %2025
    %v2027 = vsel %vm1959, %v2006, 0.0
    %2028 = vadd.xlane.f32.xlu0 %v2027
    %v2029 = vpop.xlane.xlu0 %2028
    %v2030 = vsel %vm1981, %v2008, 0.0
    %2031 = vadd.xlane.f32.xlu0 %v2030
    %v2032 = vpop.xlane.xlu0 %2031
    %v2033 = vrcp.pop %v2011
    %v2034 = vrcp.pop %v2014
    %v2035 = vrcp.pop %v2017
    %v2036 = vrcp.pop %v2020
    %v2037 = vrcp.pop %v2023
    %v2038 = vrcp.pop %v2026
    %v2039 = vrcp.pop %v2029
    %v2040 = vrcp.pop %v2032
    %v2041 = vmul.f32 %v1994, %v2033
    %v2042 = vmul.f32 %v1996, %v2034
    %v2043 = vmul.f32 %v1998, %v2035
    %v2044 = vmul.f32 %v2000, %v2036
    %v2045 = vmul.f32 %v2002, %v2037
    %v2046 = vmul.f32 %v2004, %v2038
    %v2047 = vmul.f32 %v2006, %v2039
    %v2048 = vmul.f32 %v2008, %v2040
    %v2049 = vpack.c.bf16 %v2042, %v2041
    %v2050 = vpack.c.bf16 %v2044, %v2043
    %v2051 = vpack.c.bf16 %v2046, %v2045
    %v2052 = vpack.c.bf16 %v2048, %v2047
    %v2053 = vpack.c.bf16 %v1846, %v1842
    %v2054 = vpack.c.bf16 %v1856, %v1852
    %v2055 = vpack.c.bf16 %v1866, %v1862
    %v2056 = vpack.c.bf16 %v1876, %v1872
    %2061 = vrot.lane.b32.xlu0 %v1878, 96
    %v2062 = vpop.permute.xlu0 %2061
    %2063 = vrot.lane.b32.xlu0 %v1879, 96
    %v2064 = vpop.permute.xlu0 %2063
    %2065 = vrot.lane.b32.xlu0 %v1880, 96
    %v2066 = vpop.permute.xlu0 %2065
    %2067 = vrot.lane.b32.xlu0 %v1881, 96
    %v2068 = vpop.permute.xlu0 %2067
    %v2070 = vsel %vm233, %v2062, 0
    %v2073 = vsel %vm233, %v2064, 0
    %v2076 = vsel %vm233, %v2066, 0
    %v2079 = vsel %vm233, %v2068, 0
    %2081 = vmatprep.subr.bf16.mxu0 0
    %2082 = vmatpush1.bf16.xpose.msra.mxu0 %v1794
    %2083 = vmatprep.subr.bf16.mxu0 0
    %2084 = vmatpush1.bf16.xpose.msra.mxu0 %v1797
    %2085 = vmatprep.subr.bf16.mxu0 0
    %2086 = vmatpush1.bf16.xpose.msra.mxu0 %v1800
    %2087 = vmatprep.subr.bf16.mxu0 0
    %2088 = vmatpush1.bf16.xpose.msra.mxu0 %v1803
    %2089 = vmatprep.subr.bf16.mxu0 0
    %2090 = vmatpush1.bf16.xpose.msra.mxu0 0
    %2091 = vmatprep.subr.bf16.mxu0 0
    %2092 = vmatpush1.bf16.xpose.msra.mxu0 0
    %2093 = vmatprep.subr.bf16.mxu0 0
    %2094 = vmatpush1.bf16.xpose.msra.mxu0 0
    %2095 = vmatprep.subr.bf16.mxu0 0
    %2096 = vmatpush1.bf16.xpose.msra.mxu0 0
    %2097 = vmatprep.subr.bf16.mxu0 0
    %2098 = vmatpush1.bf16.xpose.msra.mxu0 0
    %2099 = vmatprep.subr.bf16.mxu0 0
    %2100 = vmatpush1.bf16.xpose.msra.mxu0 0
    %2101 = vmatprep.subr.bf16.mxu0 0
    %2102 = vmatpush1.bf16.xpose.msra.mxu0 0
    %2103 = vmatprep.subr.bf16.mxu0 0
    %2104 = vmatpush1.bf16.xpose.msra.mxu0 0
    %2105 = vmatprep.subr.bf16.mxu0 0
    %2106 = vmatpush1.bf16.xpose.msra.mxu0 0
    %2107 = vmatprep.subr.bf16.mxu0 0
    %2108 = vmatpush1.bf16.xpose.msra.mxu0 0
    %2109 = vmatprep.subr.bf16.mxu0 0
    %2110 = vmatpush1.bf16.xpose.msra.mxu0 0
    %2111 = vmatprep.subr.bf16.mxu0 0
    %2112 = vmatpush1.bf16.xpose.msra.mxu0 0
    %2113 = vmatprep.mubr.bf16.mxu0 0
    %2114 = vmatmul.mubr.bf16.gmra.mrb[0].mxu0 %v2070
    %v2115 = vpop.f32.mrb[0].mxu0
    %v2116 = vadd.f32 %v1757, %v2115
    %v2117 = vpop.f32.mrb[0].mxu0
    %v2118 = vpop.f32.mrb[0].mxu0
    %v2119 = vadd.f32 %v1758, %v2118
    %v2120 = vpop.f32.mrb[0].mxu0
    %2121 = vmatprep.mubr.bf16.mxu0 0
    %2122 = vmatmul.mubr.bf16.gmra.mrb[0].mxu0 %v2073
    %v2123 = vpop.f32.mrb[0].mxu0
    %v2124 = vadd.f32 %v1759, %v2123
    %v2125 = vpop.f32.mrb[0].mxu0
    %v2126 = vpop.f32.mrb[0].mxu0
    %v2127 = vadd.f32 %v1760, %v2126
    %v2128 = vpop.f32.mrb[0].mxu0
    %2129 = vmatprep.mubr.bf16.mxu0 0
    %2130 = vmatmul.mubr.bf16.gmra.mrb[0].mxu0 %v2076
    %v2131 = vpop.f32.mrb[0].mxu0
    %v2132 = vadd.f32 %v1761, %v2131
    %v2133 = vpop.f32.mrb[0].mxu0
    %v2134 = vpop.f32.mrb[0].mxu0
    %v2135 = vadd.f32 %v1762, %v2134
    %v2136 = vpop.f32.mrb[0].mxu0
    %2137 = vmatprep.mubr.bf16.mxu0 0
    %2138 = vmatmul.mubr.bf16.gmra.mrb[0].mxu0 %v2079
    %v2139 = vpop.f32.mrb[0].mxu0
    %v2140 = vadd.f32 %v1763, %v2139
    %v2141 = vpop.f32.mrb[0].mxu0
    %v2142 = vpop.f32.mrb[0].mxu0
    %v2143 = vadd.f32 %v1764, %v2142
    %v2144 = vpop.f32.mrb[0].mxu0
    %2145 = vdwg.mxu0
    %v2146 = vsel %vm1959, %v2116, -inf
    %2147 = vmax.xlane.f32.xlu0 %v2146
    %v2148 = vpop.xlane.xlu0 %2147
    %v2149 = vsel %vm1959, %v2119, -inf
    %2150 = vmax.xlane.f32.xlu0 %v2149
    %v2151 = vpop.xlane.xlu0 %2150
    %v2152 = vsel %vm1959, %v2124, -inf
    %2153 = vmax.xlane.f32.xlu0 %v2152
    %v2154 = vpop.xlane.xlu0 %2153
    %v2155 = vsel %vm1959, %v2127, -inf
    %2156 = vmax.xlane.f32.xlu0 %v2155
    %v2157 = vpop.xlane.xlu0 %2156
    %v2158 = vsel %vm1959, %v2132, -inf
    %2159 = vmax.xlane.f32.xlu0 %v2158
    %v2160 = vpop.xlane.xlu0 %2159
    %v2161 = vsel %vm1959, %v2135, -inf
    %2162 = vmax.xlane.f32.xlu0 %v2161
    %v2163 = vpop.xlane.xlu0 %2162
    %v2164 = vsel %vm1959, %v2140, -inf
    %2165 = vmax.xlane.f32.xlu0 %v2164
    %v2166 = vpop.xlane.xlu0 %2165
    %v2167 = vsel %vm1981, %v2143, -inf
    %2168 = vmax.xlane.f32.xlu0 %v2167
    %v2169 = vpop.xlane.xlu0 %2168
    %v2170 = vsub.f32 %v2116, %v2148
    %v2171 = vsub.f32 %v2119, %v2151
    %v2172 = vsub.f32 %v2124, %v2154
    %v2173 = vsub.f32 %v2127, %v2157
    %v2174 = vsub.f32 %v2132, %v2160
    %v2175 = vsub.f32 %v2135, %v2163
    %v2176 = vsub.f32 %v2140, %v2166
    %v2177 = vsub.f32 %v2143, %v2169
    %v2178 = vmul.f32 %v2170, 1.442695
    %v2179 = vpow.pop %v2178
    %v2180 = vmul.f32 %v2171, 1.442695
    %v2181 = vpow.pop %v2180
    %v2182 = vmul.f32 %v2172, 1.442695
    %v2183 = vpow.pop %v2182
    %v2184 = vmul.f32 %v2173, 1.442695
    %v2185 = vpow.pop %v2184
    %v2186 = vmul.f32 %v2174, 1.442695
    %v2187 = vpow.pop %v2186
    %v2188 = vmul.f32 %v2175, 1.442695
    %v2189 = vpow.pop %v2188
    %v2190 = vmul.f32 %v2176, 1.442695
    %v2191 = vpow.pop %v2190
    %v2192 = vmul.f32 %v2177, 1.442695
    %v2193 = vpow.pop %v2192
    %v2194 = vsel %vm1959, %v2179, 0.0
    %2195 = vadd.xlane.f32.xlu0 %v2194
    %v2196 = vpop.xlane.xlu0 %2195
    %v2197 = vsel %vm1959, %v2181, 0.0
    %2198 = vadd.xlane.f32.xlu0 %v2197
    %v2199 = vpop.xlane.xlu0 %2198
    %v2200 = vsel %vm1959, %v2183, 0.0
    %2201 = vadd.xlane.f32.xlu0 %v2200
    %v2202 = vpop.xlane.xlu0 %2201
    %v2203 = vsel %vm1959, %v2185, 0.0
    %2204 = vadd.xlane.f32.xlu0 %v2203
    %v2205 = vpop.xlane.xlu0 %2204
    %v2206 = vsel %vm1959, %v2187, 0.0
    %2207 = vadd.xlane.f32.xlu0 %v2206
    %v2208 = vpop.xlane.xlu0 %2207
    %v2209 = vsel %vm1959, %v2189, 0.0
    %2210 = vadd.xlane.f32.xlu0 %v2209
    %v2211 = vpop.xlane.xlu0 %2210
    %v2212 = vsel %vm1959, %v2191, 0.0
    %2213 = vadd.xlane.f32.xlu0 %v2212
    %v2214 = vpop.xlane.xlu0 %2213
    %v2215 = vsel %vm1981, %v2193, 0.0
    %2216 = vadd.xlane.f32.xlu0 %v2215
    %v2217 = vpop.xlane.xlu0 %2216
    %v2218 = vrcp.pop %v2196
    %v2219 = vrcp.pop %v2199
    %v2220 = vrcp.pop %v2202
    %v2221 = vrcp.pop %v2205
    %v2222 = vrcp.pop %v2208
    %v2223 = vrcp.pop %v2211
    %v2224 = vrcp.pop %v2214
    %v2225 = vrcp.pop %v2217
    %v2226 = vmul.f32 %v2179, %v2218
    %v2227 = vmul.f32 %v2181, %v2219
    %v2228 = vmul.f32 %v2183, %v2220
    %v2229 = vmul.f32 %v2185, %v2221
    %v2230 = vmul.f32 %v2187, %v2222
    %v2231 = vmul.f32 %v2189, %v2223
    %v2232 = vmul.f32 %v2191, %v2224
    %v2233 = vmul.f32 %v2193, %v2225
    %v2234 = vpack.c.bf16 %v2227, %v2226
    %v2235 = vpack.c.bf16 %v2229, %v2228
    %v2236 = vpack.c.bf16 %v2231, %v2230
    %v2237 = vpack.c.bf16 %v2233, %v2232
    %2242 = vrot.lane.b32.xlu0 %v2053, 96
    %v2243 = vpop.permute.xlu0 %2242
    %2244 = vrot.lane.b32.xlu0 %v2054, 96
    %v2245 = vpop.permute.xlu0 %2244
    %2246 = vrot.lane.b32.xlu0 %v2055, 96
    %v2247 = vpop.permute.xlu0 %2246
    %2248 = vrot.lane.b32.xlu0 %v2056, 96
    %v2249 = vpop.permute.xlu0 %2248
    %v2254 = vsel %vm1959, %v2234, 0
    %v2257 = vsel %vm1959, %v2235, 0
    %v2260 = vsel %vm1959, %v2236, 0
    %v2263 = vsel %vm1959, %v2237, 0
    %vm2265 = vcmask 1045504
    %v2267 = vsel %vm2265, %v2249, 0
    %2269 = vmatprep.subr.bf16.mxu0 0
    %2270 = vmatpush1.bf16.msra.mxu0 %v2243
    %2271 = vmatprep.subr.bf16.mxu0 0
    %2272 = vmatpush1.bf16.msra.mxu0 %v2245
    %2273 = vmatprep.subr.bf16.mxu0 0
    %2274 = vmatpush1.bf16.msra.mxu0 %v2247
    %2275 = vmatprep.subr.bf16.mxu0 0
    %2276 = vmatpush1.bf16.msra.mxu0 %v2267
    %2277 = vmatprep.subr.bf16.mxu0 0
    %2278 = vmatpush1.bf16.msra.mxu0 0
    %2279 = vmatprep.subr.bf16.mxu0 0
    %2280 = vmatpush1.bf16.msra.mxu0 0
    %2281 = vmatprep.subr.bf16.mxu0 0
    %2282 = vmatpush1.bf16.msra.mxu0 0
    %2283 = vmatprep.subr.bf16.mxu0 0
    %2284 = vmatpush1.bf16.msra.mxu0 0
    %2285 = vmatprep.subr.bf16.mxu0 0
    %2286 = vmatpush1.bf16.msra.mxu0 0
    %2287 = vmatprep.subr.bf16.mxu0 0
    %2288 = vmatpush1.bf16.msra.mxu0 0
    %2289 = vmatprep.subr.bf16.mxu0 0
    %2290 = vmatpush1.bf16.msra.mxu0 0
    %2291 = vmatprep.subr.bf16.mxu0 0
    %2292 = vmatpush1.bf16.msra.mxu0 0
    %2293 = vmatprep.subr.bf16.mxu0 0
    %2294 = vmatpush1.bf16.msra.mxu0 0
    %2295 = vmatprep.subr.bf16.mxu0 0
    %2296 = vmatpush1.bf16.msra.mxu0 0
    %2297 = vmatprep.subr.bf16.mxu0 0
    %2298 = vmatpush1.bf16.msra.mxu0 0
    %2299 = vmatprep.subr.bf16.mxu0 0
    %2300 = vmatpush1.bf16.msra.mxu0 0
    %2301 = vmatprep.mubr.bf16.mxu0 0
    %2302 = vmatmul.mubr.bf16.gmra.mrb[0].mxu0 %v2254
    %v2303 = vpop.f32.mrb[0].mxu0
    %v2304 = vadd.f32 0.0, %v2303
    %v2305 = vpop.f32.mrb[0].mxu0
    %v2306 = vpop.f32.mrb[0].mxu0
    %v2307 = vadd.f32 0.0, %v2306
    %v2308 = vpop.f32.mrb[0].mxu0
    %2309 = vmatprep.mubr.bf16.mxu0 0
    %2310 = vmatmul.mubr.bf16.gmra.mrb[0].mxu0 %v2257
    %v2311 = vpop.f32.mrb[0].mxu0
    %v2312 = vadd.f32 0.0, %v2311
    %v2313 = vpop.f32.mrb[0].mxu0
    %v2314 = vpop.f32.mrb[0].mxu0
    %v2315 = vadd.f32 0.0, %v2314
    %v2316 = vpop.f32.mrb[0].mxu0
    %2317 = vmatprep.mubr.bf16.mxu0 0
    %2318 = vmatmul.mubr.bf16.gmra.mrb[0].mxu0 %v2260
    %v2319 = vpop.f32.mrb[0].mxu0
    %v2320 = vadd.f32 0.0, %v2319
    %v2321 = vpop.f32.mrb[0].mxu0
    %v2322 = vpop.f32.mrb[0].mxu0
    %v2323 = vadd.f32 0.0, %v2322
    %v2324 = vpop.f32.mrb[0].mxu0
    %2325 = vmatprep.mubr.bf16.mxu0 0
    %2326 = vmatmul.mubr.bf16.gmra.mrb[0].mxu0 %v2263
    %v2327 = vpop.f32.mrb[0].mxu0
    %v2328 = vadd.f32 0.0, %v2327
    %v2329 = vpop.f32.mrb[0].mxu0
    %v2330 = vpop.f32.mrb[0].mxu0
    %v2331 = vadd.f32 0.0, %v2330
    %v2332 = vpop.f32.mrb[0].mxu0
    %2333 = vdwg.mxu0
    %v2335 = vsel %vm1959, %v2049, 0
    %v2338 = vsel %vm1959, %v2050, 0
    %v2341 = vsel %vm1959, %v2051, 0
    %v2344 = vsel %vm1959, %v2052, 0
    %v2347 = vsel %vm2265, %v2056, 0
    %2349 = vmatprep.subr.bf16.mxu0 0
    %2350 = vmatpush1.bf16.msra.mxu0 %v2053
    %2351 = vmatprep.subr.bf16.mxu0 0
    %2352 = vmatpush1.bf16.msra.mxu0 %v2054
    %2353 = vmatprep.subr.bf16.mxu0 0
    %2354 = vmatpush1.bf16.msra.mxu0 %v2055
    %2355 = vmatprep.subr.bf16.mxu0 0
    %2356 = vmatpush1.bf16.msra.mxu0 %v2347
    %2357 = vmatprep.subr.bf16.mxu0 0
    %2358 = vmatpush1.bf16.msra.mxu0 0
    %2359 = vmatprep.subr.bf16.mxu0 0
    %2360 = vmatpush1.bf16.msra.mxu0 0
    %2361 = vmatprep.subr.bf16.mxu0 0
    %2362 = vmatpush1.bf16.msra.mxu0 0
    %2363 = vmatprep.subr.bf16.mxu0 0
    %2364 = vmatpush1.bf16.msra.mxu0 0
    %2365 = vmatprep.subr.bf16.mxu0 0
    %2366 = vmatpush1.bf16.msra.mxu0 0
    %2367 = vmatprep.subr.bf16.mxu0 0
    %2368 = vmatpush1.bf16.msra.mxu0 0
    %2369 = vmatprep.subr.bf16.mxu0 0
    %2370 = vmatpush1.bf16.msra.mxu0 0
    %2371 = vmatprep.subr.bf16.mxu0 0
    %2372 = vmatpush1.bf16.msra.mxu0 0
    %2373 = vmatprep.subr.bf16.mxu0 0
    %2374 = vmatpush1.bf16.msra.mxu0 0
    %2375 = vmatprep.subr.bf16.mxu0 0
    %2376 = vmatpush1.bf16.msra.mxu0 0
    %2377 = vmatprep.subr.bf16.mxu0 0
    %2378 = vmatpush1.bf16.msra.mxu0 0
    %2379 = vmatprep.subr.bf16.mxu0 0
    %2380 = vmatpush1.bf16.msra.mxu0 0
    %2381 = vmatprep.mubr.bf16.mxu0 0
    %2382 = vmatmul.mubr.bf16.gmra.mrb[0].mxu0 %v2335
    %v2383 = vpop.f32.mrb[0].mxu0
    %v2384 = vadd.f32 %v2304, %v2383
    %v2385 = vpop.f32.mrb[0].mxu0
    %v2386 = vpop.f32.mrb[0].mxu0
    %v2387 = vadd.f32 %v2307, %v2386
    %v2388 = vpop.f32.mrb[0].mxu0
    %2389 = vmatprep.mubr.bf16.mxu0 0
    %2390 = vmatmul.mubr.bf16.gmra.mrb[0].mxu0 %v2338
    %v2391 = vpop.f32.mrb[0].mxu0
    %v2392 = vadd.f32 %v2312, %v2391
    %v2393 = vpop.f32.mrb[0].mxu0
    %v2394 = vpop.f32.mrb[0].mxu0
    %v2395 = vadd.f32 %v2315, %v2394
    %v2396 = vpop.f32.mrb[0].mxu0
    %2397 = vmatprep.mubr.bf16.mxu0 0
    %2398 = vmatmul.mubr.bf16.gmra.mrb[0].mxu0 %v2341
    %v2399 = vpop.f32.mrb[0].mxu0
    %v2400 = vadd.f32 %v2320, %v2399
    %v2401 = vpop.f32.mrb[0].mxu0
    %v2402 = vpop.f32.mrb[0].mxu0
    %v2403 = vadd.f32 %v2323, %v2402
    %v2404 = vpop.f32.mrb[0].mxu0
    %2405 = vmatprep.mubr.bf16.mxu0 0
    %2406 = vmatmul.mubr.bf16.gmra.mrb[0].mxu0 %v2344
    %v2407 = vpop.f32.mrb[0].mxu0
    %v2408 = vadd.f32 %v2328, %v2407
    %v2409 = vpop.f32.mrb[0].mxu0
    %v2410 = vpop.f32.mrb[0].mxu0
    %v2411 = vadd.f32 %v2331, %v2410
    %v2412 = vpop.f32.mrb[0].mxu0
    %2413 = vdwg.mxu0
    %2414 = vrot.lane.b32.xlu0 %v1878, 64
    %v2415 = vpop.permute.xlu0 %2414
    %2416 = vrot.lane.b32.xlu0 %v1879, 64
    %v2417 = vpop.permute.xlu0 %2416
    %2418 = vrot.lane.b32.xlu0 %v1880, 64
    %v2419 = vpop.permute.xlu0 %2418
    %2420 = vrot.lane.b32.xlu0 %v1881, 64
    %v2421 = vpop.permute.xlu0 %2420
    %v2423 = vsel %vm233, %v2415, 0
    %v2426 = vsel %vm233, %v2417, 0
    %v2429 = vsel %vm233, %v2419, 0
    %v2432 = vsel %vm233, %v2421, 0
    %2434 = vmatprep.subr.bf16.mxu0 0
    %2435 = vmatpush1.bf16.xpose.msra.mxu0 %v1794
    %2436 = vmatprep.subr.bf16.mxu0 0
    %2437 = vmatpush1.bf16.xpose.msra.mxu0 %v1797
    %2438 = vmatprep.subr.bf16.mxu0 0
    %2439 = vmatpush1.bf16.xpose.msra.mxu0 %v1800
    %2440 = vmatprep.subr.bf16.mxu0 0
    %2441 = vmatpush1.bf16.xpose.msra.mxu0 %v1803
    %2442 = vmatprep.subr.bf16.mxu0 0
    %2443 = vmatpush1.bf16.xpose.msra.mxu0 0
    %2444 = vmatprep.subr.bf16.mxu0 0
    %2445 = vmatpush1.bf16.xpose.msra.mxu0 0
    %2446 = vmatprep.subr.bf16.mxu0 0
    %2447 = vmatpush1.bf16.xpose.msra.mxu0 0
    %2448 = vmatprep.subr.bf16.mxu0 0
    %2449 = vmatpush1.bf16.xpose.msra.mxu0 0
    %2450 = vmatprep.subr.bf16.mxu0 0
    %2451 = vmatpush1.bf16.xpose.msra.mxu0 0
    %2452 = vmatprep.subr.bf16.mxu0 0
    %2453 = vmatpush1.bf16.xpose.msra.mxu0 0
    %2454 = vmatprep.subr.bf16.mxu0 0
    %2455 = vmatpush1.bf16.xpose.msra.mxu0 0
    %2456 = vmatprep.subr.bf16.mxu0 0
    %2457 = vmatpush1.bf16.xpose.msra.mxu0 0
    %2458 = vmatprep.subr.bf16.mxu0 0
    %2459 = vmatpush1.bf16.xpose.msra.mxu0 0
    %2460 = vmatprep.subr.bf16.mxu0 0
    %2461 = vmatpush1.bf16.xpose.msra.mxu0 0
    %2462 = vmatprep.subr.bf16.mxu0 0
    %2463 = vmatpush1.bf16.xpose.msra.mxu0 0
    %2464 = vmatprep.subr.bf16.mxu0 0
    %2465 = vmatpush1.bf16.xpose.msra.mxu0 0
    %2466 = vmatprep.mubr.bf16.mxu0 0
    %2467 = vmatmul.mubr.bf16.gmra.mrb[0].mxu0 %v2423
    %v2468 = vpop.f32.mrb[0].mxu0
    %v2469 = vadd.f32 %v1757, %v2468
    %v2470 = vpop.f32.mrb[0].mxu0
    %v2471 = vpop.f32.mrb[0].mxu0
    %v2472 = vadd.f32 %v1758, %v2471
    %v2473 = vpop.f32.mrb[0].mxu0
    %2474 = vmatprep.mubr.bf16.mxu0 0
    %2475 = vmatmul.mubr.bf16.gmra.mrb[0].mxu0 %v2426
    %v2476 = vpop.f32.mrb[0].mxu0
    %v2477 = vadd.f32 %v1759, %v2476
    %v2478 = vpop.f32.mrb[0].mxu0
    %v2479 = vpop.f32.mrb[0].mxu0
    %v2480 = vadd.f32 %v1760, %v2479
    %v2481 = vpop.f32.mrb[0].mxu0
    %2482 = vmatprep.mubr.bf16.mxu0 0
    %2483 = vmatmul.mubr.bf16.gmra.mrb[0].mxu0 %v2429
    %v2484 = vpop.f32.mrb[0].mxu0
    %v2485 = vadd.f32 %v1761, %v2484
    %v2486 = vpop.f32.mrb[0].mxu0
    %v2487 = vpop.f32.mrb[0].mxu0
    %v2488 = vadd.f32 %v1762, %v2487
    %v2489 = vpop.f32.mrb[0].mxu0
    %2490 = vmatprep.mubr.bf16.mxu0 0
    %2491 = vmatmul.mubr.bf16.gmra.mrb[0].mxu0 %v2432
    %v2492 = vpop.f32.mrb[0].mxu0
    %v2493 = vadd.f32 %v1763, %v2492
    %v2494 = vpop.f32.mrb[0].mxu0
    %v2495 = vpop.f32.mrb[0].mxu0
    %v2496 = vadd.f32 %v1764, %v2495
    %v2497 = vpop.f32.mrb[0].mxu0
    %2498 = vdwg.mxu0
    %v2499 = vsel %vm1959, %v2469, -inf
    %2500 = vmax.xlane.f32.xlu0 %v2499
    %v2501 = vpop.xlane.xlu0 %2500
    %v2502 = vsel %vm1959, %v2472, -inf
    %2503 = vmax.xlane.f32.xlu0 %v2502
    %v2504 = vpop.xlane.xlu0 %2503
    %v2505 = vsel %vm1959, %v2477, -inf
    %2506 = vmax.xlane.f32.xlu0 %v2505
    %v2507 = vpop.xlane.xlu0 %2506
    %v2508 = vsel %vm1959, %v2480, -inf
    %2509 = vmax.xlane.f32.xlu0 %v2508
    %v2510 = vpop.xlane.xlu0 %2509
    %v2511 = vsel %vm1959, %v2485, -inf
    %2512 = vmax.xlane.f32.xlu0 %v2511
    %v2513 = vpop.xlane.xlu0 %2512
    %v2514 = vsel %vm1959, %v2488, -inf
    %2515 = vmax.xlane.f32.xlu0 %v2514
    %v2516 = vpop.xlane.xlu0 %2515
    %v2517 = vsel %vm1959, %v2493, -inf
    %2518 = vmax.xlane.f32.xlu0 %v2517
    %v2519 = vpop.xlane.xlu0 %2518
    %v2520 = vsel %vm1981, %v2496, -inf
    %2521 = vmax.xlane.f32.xlu0 %v2520
    %v2522 = vpop.xlane.xlu0 %2521
    %v2523 = vsub.f32 %v2469, %v2501
    %v2524 = vsub.f32 %v2472, %v2504
    %v2525 = vsub.f32 %v2477, %v2507
    %v2526 = vsub.f32 %v2480, %v2510
    %v2527 = vsub.f32 %v2485, %v2513
    %v2528 = vsub.f32 %v2488, %v2516
    %v2529 = vsub.f32 %v2493, %v2519
    %v2530 = vsub.f32 %v2496, %v2522
    %v2531 = vmul.f32 %v2523, 1.442695
    %v2532 = vpow.pop %v2531
    %v2533 = vmul.f32 %v2524, 1.442695
    %v2534 = vpow.pop %v2533
    %v2535 = vmul.f32 %v2525, 1.442695
    %v2536 = vpow.pop %v2535
    %v2537 = vmul.f32 %v2526, 1.442695
    %v2538 = vpow.pop %v2537
    %v2539 = vmul.f32 %v2527, 1.442695
    %v2540 = vpow.pop %v2539
    %v2541 = vmul.f32 %v2528, 1.442695
    %v2542 = vpow.pop %v2541
    %v2543 = vmul.f32 %v2529, 1.442695
    %v2544 = vpow.pop %v2543
    %v2545 = vmul.f32 %v2530, 1.442695
    %v2546 = vpow.pop %v2545
    %v2547 = vsel %vm1959, %v2532, 0.0
    %2548 = vadd.xlane.f32.xlu0 %v2547
    %v2549 = vpop.xlane.xlu0 %2548
    %v2550 = vsel %vm1959, %v2534, 0.0
    %2551 = vadd.xlane.f32.xlu0 %v2550
    %v2552 = vpop.xlane.xlu0 %2551
    %v2553 = vsel %vm1959, %v2536, 0.0
    %2554 = vadd.xlane.f32.xlu0 %v2553
    %v2555 = vpop.xlane.xlu0 %2554
    %v2556 = vsel %vm1959, %v2538, 0.0
    %2557 = vadd.xlane.f32.xlu0 %v2556
    %v2558 = vpop.xlane.xlu0 %2557
    %v2559 = vsel %vm1959, %v2540, 0.0
    %2560 = vadd.xlane.f32.xlu0 %v2559
    %v2561 = vpop.xlane.xlu0 %2560
    %v2562 = vsel %vm1959, %v2542, 0.0
    %2563 = vadd.xlane.f32.xlu0 %v2562
    %v2564 = vpop.xlane.xlu0 %2563
    %v2565 = vsel %vm1959, %v2544, 0.0
    %2566 = vadd.xlane.f32.xlu0 %v2565
    %v2567 = vpop.xlane.xlu0 %2566
    %v2568 = vsel %vm1981, %v2546, 0.0
    %2569 = vadd.xlane.f32.xlu0 %v2568
    %v2570 = vpop.xlane.xlu0 %2569
    %v2571 = vrcp.pop %v2549
    %v2572 = vrcp.pop %v2552
    %v2573 = vrcp.pop %v2555
    %v2574 = vrcp.pop %v2558
    %v2575 = vrcp.pop %v2561
    %v2576 = vrcp.pop %v2564
    %v2577 = vrcp.pop %v2567
    %v2578 = vrcp.pop %v2570
    %v2579 = vmul.f32 %v2532, %v2571
    %v2580 = vmul.f32 %v2534, %v2572
    %v2581 = vmul.f32 %v2536, %v2573
    %v2582 = vmul.f32 %v2538, %v2574
    %v2583 = vmul.f32 %v2540, %v2575
    %v2584 = vmul.f32 %v2542, %v2576
    %v2585 = vmul.f32 %v2544, %v2577
    %v2586 = vmul.f32 %v2546, %v2578
    %v2587 = vpack.c.bf16 %v2580, %v2579
    %v2588 = vpack.c.bf16 %v2582, %v2581
    %v2589 = vpack.c.bf16 %v2584, %v2583
    %v2590 = vpack.c.bf16 %v2586, %v2585
    %2591 = vrot.lane.b32.xlu0 %v2053, 64
    %v2592 = vpop.permute.xlu0 %2591
    %2593 = vrot.lane.b32.xlu0 %v2054, 64
    %v2594 = vpop.permute.xlu0 %2593
    %2595 = vrot.lane.b32.xlu0 %v2055, 64
    %v2596 = vpop.permute.xlu0 %2595
    %2597 = vrot.lane.b32.xlu0 %v2056, 64
    %v2598 = vpop.permute.xlu0 %2597
    %v2603 = vsel %vm1959, %v2587, 0
    %v2606 = vsel %vm1959, %v2588, 0
    %v2609 = vsel %vm1959, %v2589, 0
    %v2612 = vsel %vm1959, %v2590, 0
    %v2615 = vsel %vm2265, %v2598, 0
    %2617 = vmatprep.subr.bf16.mxu0 0
    %2618 = vmatpush1.bf16.msra.mxu0 %v2592
    %2619 = vmatprep.subr.bf16.mxu0 0
    %2620 = vmatpush1.bf16.msra.mxu0 %v2594
    %2621 = vmatprep.subr.bf16.mxu0 0
    %2622 = vmatpush1.bf16.msra.mxu0 %v2596
    %2623 = vmatprep.subr.bf16.mxu0 0
    %2624 = vmatpush1.bf16.msra.mxu0 %v2615
    %2625 = vmatprep.subr.bf16.mxu0 0
    %2626 = vmatpush1.bf16.msra.mxu0 0
    %2627 = vmatprep.subr.bf16.mxu0 0
    %2628 = vmatpush1.bf16.msra.mxu0 0
    %2629 = vmatprep.subr.bf16.mxu0 0
    %2630 = vmatpush1.bf16.msra.mxu0 0
    %2631 = vmatprep.subr.bf16.mxu0 0
    %2632 = vmatpush1.bf16.msra.mxu0 0
    %2633 = vmatprep.subr.bf16.mxu0 0
    %2634 = vmatpush1.bf16.msra.mxu0 0
    %2635 = vmatprep.subr.bf16.mxu0 0
    %2636 = vmatpush1.bf16.msra.mxu0 0
    %2637 = vmatprep.subr.bf16.mxu0 0
    %2638 = vmatpush1.bf16.msra.mxu0 0
    %2639 = vmatprep.subr.bf16.mxu0 0
    %2640 = vmatpush1.bf16.msra.mxu0 0
    %2641 = vmatprep.subr.bf16.mxu0 0
    %2642 = vmatpush1.bf16.msra.mxu0 0
    %2643 = vmatprep.subr.bf16.mxu0 0
    %2644 = vmatpush1.bf16.msra.mxu0 0
    %2645 = vmatprep.subr.bf16.mxu0 0
    %2646 = vmatpush1.bf16.msra.mxu0 0
    %2647 = vmatprep.subr.bf16.mxu0 0
    %2648 = vmatpush1.bf16.msra.mxu0 0
    %2649 = vmatprep.mubr.bf16.mxu0 0
    %2650 = vmatmul.mubr.bf16.gmra.mrb[0].mxu0 %v2603
    %v2651 = vpop.f32.mrb[0].mxu0
    %v2652 = vadd.f32 0.0, %v2651
    %v2653 = vpop.f32.mrb[0].mxu0
    %v2654 = vpop.f32.mrb[0].mxu0
    %v2655 = vadd.f32 0.0, %v2654
    %v2656 = vpop.f32.mrb[0].mxu0
    %2657 = vmatprep.mubr.bf16.mxu0 0
    %2658 = vmatmul.mubr.bf16.gmra.mrb[0].mxu0 %v2606
    %v2659 = vpop.f32.mrb[0].mxu0
    %v2660 = vadd.f32 0.0, %v2659
    %v2661 = vpop.f32.mrb[0].mxu0
    %v2662 = vpop.f32.mrb[0].mxu0
    %v2663 = vadd.f32 0.0, %v2662
    %v2664 = vpop.f32.mrb[0].mxu0
    %2665 = vmatprep.mubr.bf16.mxu0 0
    %2666 = vmatmul.mubr.bf16.gmra.mrb[0].mxu0 %v2609
    %v2667 = vpop.f32.mrb[0].mxu0
    %v2668 = vadd.f32 0.0, %v2667
    %v2669 = vpop.f32.mrb[0].mxu0
    %v2670 = vpop.f32.mrb[0].mxu0
    %v2671 = vadd.f32 0.0, %v2670
    %v2672 = vpop.f32.mrb[0].mxu0
    %2673 = vmatprep.mubr.bf16.mxu0 0
    %2674 = vmatmul.mubr.bf16.gmra.mrb[0].mxu0 %v2612
    %v2675 = vpop.f32.mrb[0].mxu0
    %v2676 = vadd.f32 0.0, %v2675
    %v2677 = vpop.f32.mrb[0].mxu0
    %v2678 = vpop.f32.mrb[0].mxu0
    %v2679 = vadd.f32 0.0, %v2678
    %v2680 = vpop.f32.mrb[0].mxu0
    %2681 = vdwg.mxu0
    %v2682 = vadd.f32 %v2384, %v2652
    %v2683 = vadd.f32 %v2387, %v2655
    %v2684 = vadd.f32 %v2392, %v2660
    %v2685 = vadd.f32 %v2395, %v2663
    %v2686 = vadd.f32 %v2400, %v2668
    %v2687 = vadd.f32 %v2403, %v2671
    %v2688 = vadd.f32 %v2408, %v2676
    %v2689 = vadd.f32 %v2411, %v2679
    %2690 = vrot.lane.b32.xlu0 %v1878, 32
    %v2691 = vpop.permute.xlu0 %2690
    %2692 = vrot.lane.b32.xlu0 %v1879, 32
    %v2693 = vpop.permute.xlu0 %2692
    %2694 = vrot.lane.b32.xlu0 %v1880, 32
    %v2695 = vpop.permute.xlu0 %2694
    %2696 = vrot.lane.b32.xlu0 %v1881, 32
    %v2697 = vpop.permute.xlu0 %2696
    %v2699 = vsel %vm233, %v2691, 0
    %v2702 = vsel %vm233, %v2693, 0
    %v2705 = vsel %vm233, %v2695, 0
    %v2708 = vsel %vm233, %v2697, 0
    %2710 = vmatprep.subr.bf16.mxu0 0
    %2711 = vmatpush1.bf16.xpose.msra.mxu0 %v1794
    %2712 = vmatprep.subr.bf16.mxu0 0
    %2713 = vmatpush1.bf16.xpose.msra.mxu0 %v1797
    %2714 = vmatprep.subr.bf16.mxu0 0
    %2715 = vmatpush1.bf16.xpose.msra.mxu0 %v1800
    %2716 = vmatprep.subr.bf16.mxu0 0
    %2717 = vmatpush1.bf16.xpose.msra.mxu0 %v1803
    %2718 = vmatprep.subr.bf16.mxu0 0
    %2719 = vmatpush1.bf16.xpose.msra.mxu0 0
    %2720 = vmatprep.subr.bf16.mxu0 0
    %2721 = vmatpush1.bf16.xpose.msra.mxu0 0
    %2722 = vmatprep.subr.bf16.mxu0 0
    %2723 = vmatpush1.bf16.xpose.msra.mxu0 0
    %2724 = vmatprep.subr.bf16.mxu0 0
    %2725 = vmatpush1.bf16.xpose.msra.mxu0 0
    %2726 = vmatprep.subr.bf16.mxu0 0
    %2727 = vmatpush1.bf16.xpose.msra.mxu0 0
    %2728 = vmatprep.subr.bf16.mxu0 0
    %2729 = vmatpush1.bf16.xpose.msra.mxu0 0
    %2730 = vmatprep.subr.bf16.mxu0 0
    %2731 = vmatpush1.bf16.xpose.msra.mxu0 0
    %2732 = vmatprep.subr.bf16.mxu0 0
    %2733 = vmatpush1.bf16.xpose.msra.mxu0 0
    %2734 = vmatprep.subr.bf16.mxu0 0
    %2735 = vmatpush1.bf16.xpose.msra.mxu0 0
    %2736 = vmatprep.subr.bf16.mxu0 0
    %2737 = vmatpush1.bf16.xpose.msra.mxu0 0
    %2738 = vmatprep.subr.bf16.mxu0 0
    %2739 = vmatpush1.bf16.xpose.msra.mxu0 0
    %2740 = vmatprep.subr.bf16.mxu0 0
    %2741 = vmatpush1.bf16.xpose.msra.mxu0 0
    %2742 = vmatprep.mubr.bf16.mxu0 0
    %2743 = vmatmul.mubr.bf16.gmra.mrb[0].mxu0 %v2699
    %v2744 = vpop.f32.mrb[0].mxu0
    %v2745 = vadd.f32 %v1757, %v2744
    %v2746 = vpop.f32.mrb[0].mxu0
    %v2747 = vpop.f32.mrb[0].mxu0
    %v2748 = vadd.f32 %v1758, %v2747
    %v2749 = vpop.f32.mrb[0].mxu0
    %2750 = vmatprep.mubr.bf16.mxu0 0
    %2751 = vmatmul.mubr.bf16.gmra.mrb[0].mxu0 %v2702
    %v2752 = vpop.f32.mrb[0].mxu0
    %v2753 = vadd.f32 %v1759, %v2752
    %v2754 = vpop.f32.mrb[0].mxu0
    %v2755 = vpop.f32.mrb[0].mxu0
    %v2756 = vadd.f32 %v1760, %v2755
    %v2757 = vpop.f32.mrb[0].mxu0
    %2758 = vmatprep.mubr.bf16.mxu0 0
    %2759 = vmatmul.mubr.bf16.gmra.mrb[0].mxu0 %v2705
    %v2760 = vpop.f32.mrb[0].mxu0
    %v2761 = vadd.f32 %v1761, %v2760
    %v2762 = vpop.f32.mrb[0].mxu0
    %v2763 = vpop.f32.mrb[0].mxu0
    %v2764 = vadd.f32 %v1762, %v2763
    %v2765 = vpop.f32.mrb[0].mxu0
    %2766 = vmatprep.mubr.bf16.mxu0 0
    %2767 = vmatmul.mubr.bf16.gmra.mrb[0].mxu0 %v2708
    %v2768 = vpop.f32.mrb[0].mxu0
    %v2769 = vadd.f32 %v1763, %v2768
    %v2770 = vpop.f32.mrb[0].mxu0
    %v2771 = vpop.f32.mrb[0].mxu0
    %v2772 = vadd.f32 %v1764, %v2771
    %v2773 = vpop.f32.mrb[0].mxu0
    %2774 = vdwg.mxu0
    %v2775 = vsel %vm1959, %v2745, -inf
    %2776 = vmax.xlane.f32.xlu0 %v2775
    %v2777 = vpop.xlane.xlu0 %2776
    %v2778 = vsel %vm1959, %v2748, -inf
    %2779 = vmax.xlane.f32.xlu0 %v2778
    %v2780 = vpop.xlane.xlu0 %2779
    %v2781 = vsel %vm1959, %v2753, -inf
    %2782 = vmax.xlane.f32.xlu0 %v2781
    %v2783 = vpop.xlane.xlu0 %2782
    %v2784 = vsel %vm1959, %v2756, -inf
    %2785 = vmax.xlane.f32.xlu0 %v2784
    %v2786 = vpop.xlane.xlu0 %2785
    %v2787 = vsel %vm1959, %v2761, -inf
    %2788 = vmax.xlane.f32.xlu0 %v2787
    %v2789 = vpop.xlane.xlu0 %2788
    %v2790 = vsel %vm1959, %v2764, -inf
    %2791 = vmax.xlane.f32.xlu0 %v2790
    %v2792 = vpop.xlane.xlu0 %2791
    %v2793 = vsel %vm1959, %v2769, -inf
    %2794 = vmax.xlane.f32.xlu0 %v2793
    %v2795 = vpop.xlane.xlu0 %2794
    %v2796 = vsel %vm1981, %v2772, -inf
    %2797 = vmax.xlane.f32.xlu0 %v2796
    %v2798 = vpop.xlane.xlu0 %2797
    %v2799 = vsub.f32 %v2745, %v2777
    %v2800 = vsub.f32 %v2748, %v2780
    %v2801 = vsub.f32 %v2753, %v2783
    %v2802 = vsub.f32 %v2756, %v2786
    %v2803 = vsub.f32 %v2761, %v2789
    %v2804 = vsub.f32 %v2764, %v2792
    %v2805 = vsub.f32 %v2769, %v2795
    %v2806 = vsub.f32 %v2772, %v2798
    %v2807 = vmul.f32 %v2799, 1.442695
    %v2808 = vpow.pop %v2807
    %v2809 = vmul.f32 %v2800, 1.442695
    %v2810 = vpow.pop %v2809
    %v2811 = vmul.f32 %v2801, 1.442695
    %v2812 = vpow.pop %v2811
    %v2813 = vmul.f32 %v2802, 1.442695
    %v2814 = vpow.pop %v2813
    %v2815 = vmul.f32 %v2803, 1.442695
    %v2816 = vpow.pop %v2815
    %v2817 = vmul.f32 %v2804, 1.442695
    %v2818 = vpow.pop %v2817
    %v2819 = vmul.f32 %v2805, 1.442695
    %v2820 = vpow.pop %v2819
    %v2821 = vmul.f32 %v2806, 1.442695
    %v2822 = vpow.pop %v2821
    %v2823 = vsel %vm1959, %v2808, 0.0
    %2824 = vadd.xlane.f32.xlu0 %v2823
    %v2825 = vpop.xlane.xlu0 %2824
    %v2826 = vsel %vm1959, %v2810, 0.0
    %2827 = vadd.xlane.f32.xlu0 %v2826
    %v2828 = vpop.xlane.xlu0 %2827
    %v2829 = vsel %vm1959, %v2812, 0.0
    %2830 = vadd.xlane.f32.xlu0 %v2829
    %v2831 = vpop.xlane.xlu0 %2830
    %v2832 = vsel %vm1959, %v2814, 0.0
    %2833 = vadd.xlane.f32.xlu0 %v2832
    %v2834 = vpop.xlane.xlu0 %2833
    %v2835 = vsel %vm1959, %v2816, 0.0
    %2836 = vadd.xlane.f32.xlu0 %v2835
    %v2837 = vpop.xlane.xlu0 %2836
    %v2838 = vsel %vm1959, %v2818, 0.0
    %2839 = vadd.xlane.f32.xlu0 %v2838
    %v2840 = vpop.xlane.xlu0 %2839
    %v2841 = vsel %vm1959, %v2820, 0.0
    %2842 = vadd.xlane.f32.xlu0 %v2841
    %v2843 = vpop.xlane.xlu0 %2842
    %v2844 = vsel %vm1981, %v2822, 0.0
    %2845 = vadd.xlane.f32.xlu0 %v2844
    %v2846 = vpop.xlane.xlu0 %2845
    %v2847 = vrcp.pop %v2825
    %v2848 = vrcp.pop %v2828
    %v2849 = vrcp.pop %v2831
    %v2850 = vrcp.pop %v2834
    %v2851 = vrcp.pop %v2837
    %v2852 = vrcp.pop %v2840
    %v2853 = vrcp.pop %v2843
    %v2854 = vrcp.pop %v2846
    %v2855 = vmul.f32 %v2808, %v2847
    %v2856 = vmul.f32 %v2810, %v2848
    %v2857 = vmul.f32 %v2812, %v2849
    %v2858 = vmul.f32 %v2814, %v2850
    %v2859 = vmul.f32 %v2816, %v2851
    %v2860 = vmul.f32 %v2818, %v2852
    %v2861 = vmul.f32 %v2820, %v2853
    %v2862 = vmul.f32 %v2822, %v2854
    %v2863 = vpack.c.bf16 %v2856, %v2855
    %v2864 = vpack.c.bf16 %v2858, %v2857
    %v2865 = vpack.c.bf16 %v2860, %v2859
    %v2866 = vpack.c.bf16 %v2862, %v2861
    %2867 = vrot.lane.b32.xlu0 %v2053, 32
    %v2868 = vpop.permute.xlu0 %2867
    %2869 = vrot.lane.b32.xlu0 %v2054, 32
    %v2870 = vpop.permute.xlu0 %2869
    %2871 = vrot.lane.b32.xlu0 %v2055, 32
    %v2872 = vpop.permute.xlu0 %2871
    %2873 = vrot.lane.b32.xlu0 %v2056, 32
    %v2874 = vpop.permute.xlu0 %2873
    %v2879 = vsel %vm1959, %v2863, 0
    %v2882 = vsel %vm1959, %v2864, 0
    %v2885 = vsel %vm1959, %v2865, 0
    %v2888 = vsel %vm1959, %v2866, 0
    %v2891 = vsel %vm2265, %v2874, 0
    %2893 = vmatprep.subr.bf16.mxu0 0
    %2894 = vmatpush1.bf16.msra.mxu0 %v2868
    %2895 = vmatprep.subr.bf16.mxu0 0
    %2896 = vmatpush1.bf16.msra.mxu0 %v2870
    %2897 = vmatprep.subr.bf16.mxu0 0
    %2898 = vmatpush1.bf16.msra.mxu0 %v2872
    %2899 = vmatprep.subr.bf16.mxu0 0
    %2900 = vmatpush1.bf16.msra.mxu0 %v2891
    %2901 = vmatprep.subr.bf16.mxu0 0
    %2902 = vmatpush1.bf16.msra.mxu0 0
    %2903 = vmatprep.subr.bf16.mxu0 0
    %2904 = vmatpush1.bf16.msra.mxu0 0
    %2905 = vmatprep.subr.bf16.mxu0 0
    %2906 = vmatpush1.bf16.msra.mxu0 0
    %2907 = vmatprep.subr.bf16.mxu0 0
    %2908 = vmatpush1.bf16.msra.mxu0 0
    %2909 = vmatprep.subr.bf16.mxu0 0
    %2910 = vmatpush1.bf16.msra.mxu0 0
    %2911 = vmatprep.subr.bf16.mxu0 0
    %2912 = vmatpush1.bf16.msra.mxu0 0
    %2913 = vmatprep.subr.bf16.mxu0 0
    %2914 = vmatpush1.bf16.msra.mxu0 0
    %2915 = vmatprep.subr.bf16.mxu0 0
    %2916 = vmatpush1.bf16.msra.mxu0 0
    %2917 = vmatprep.subr.bf16.mxu0 0
    %2918 = vmatpush1.bf16.msra.mxu0 0
    %2919 = vmatprep.subr.bf16.mxu0 0
    %2920 = vmatpush1.bf16.msra.mxu0 0
    %2921 = vmatprep.subr.bf16.mxu0 0
    %2922 = vmatpush1.bf16.msra.mxu0 0
    %2923 = vmatprep.subr.bf16.mxu0 0
    %2924 = vmatpush1.bf16.msra.mxu0 0
    %2925 = vmatprep.mubr.bf16.mxu0 0
    %2926 = vmatmul.mubr.bf16.gmra.mrb[0].mxu0 %v2879
    %v2927 = vpop.f32.mrb[0].mxu0
    %v2928 = vadd.f32 0.0, %v2927
    %v2929 = vpop.f32.mrb[0].mxu0
    %v2930 = vpop.f32.mrb[0].mxu0
    %v2931 = vadd.f32 0.0, %v2930
    %v2932 = vpop.f32.mrb[0].mxu0
    %2933 = vmatprep.mubr.bf16.mxu0 0
    %2934 = vmatmul.mubr.bf16.gmra.mrb[0].mxu0 %v2882
    %v2935 = vpop.f32.mrb[0].mxu0
    %v2936 = vadd.f32 0.0, %v2935
    %v2937 = vpop.f32.mrb[0].mxu0
    %v2938 = vpop.f32.mrb[0].mxu0
    %v2939 = vadd.f32 0.0, %v2938
    %v2940 = vpop.f32.mrb[0].mxu0
    %2941 = vmatprep.mubr.bf16.mxu0 0
    %2942 = vmatmul.mubr.bf16.gmra.mrb[0].mxu0 %v2885
    %v2943 = vpop.f32.mrb[0].mxu0
    %v2944 = vadd.f32 0.0, %v2943
    %v2945 = vpop.f32.mrb[0].mxu0
    %v2946 = vpop.f32.mrb[0].mxu0
    %v2947 = vadd.f32 0.0, %v2946
    %v2948 = vpop.f32.mrb[0].mxu0
    %2949 = vmatprep.mubr.bf16.mxu0 0
    %2950 = vmatmul.mubr.bf16.gmra.mrb[0].mxu0 %v2888
    %v2951 = vpop.f32.mrb[0].mxu0
    %v2952 = vadd.f32 0.0, %v2951
    %v2953 = vpop.f32.mrb[0].mxu0
    %v2954 = vpop.f32.mrb[0].mxu0
    %v2955 = vadd.f32 0.0, %v2954
    %v2956 = vpop.f32.mrb[0].mxu0
    %2957 = vdwg.mxu0
    %v2958 = vadd.f32 %v2682, %v2928
    %v2959 = vadd.f32 %v2683, %v2931
    %v2960 = vadd.f32 %v2684, %v2936
    %v2961 = vadd.f32 %v2685, %v2939
    %v2962 = vadd.f32 %v2686, %v2944
    %v2963 = vadd.f32 %v2687, %v2947
    %v2964 = vadd.f32 %v2688, %v2952
    %v2965 = vadd.f32 %v2689, %v2955
    %v2966 = vlaneseq
    %v2967 = vshrl.u32 %v2966, 7
    %v2968 = vsub.s32 7, %v2967
    %v2969 = vrot.slane %v129, %v2968
    %v2970 = vadd.f32 %v2958, %v2969
    %v2971 = vadd.f32 %v2959, %v2969
    %v2972 = vadd.f32 %v2960, %v2969
    %v2973 = vadd.f32 %v2961, %v2969
    %v2974 = vadd.f32 %v2962, %v2969
    %v2975 = vadd.f32 %v2963, %v2969
    %v2976 = vadd.f32 %v2964, %v2969
    %v2977 = vadd.f32 %v2965, %v2969
    %v2978 = vadd.f32 %v2970, %v1749
    %v2979 = vadd.f32 %v2971, %v1750
    %v2980 = vadd.f32 %v2972, %v1751
    %v2981 = vadd.f32 %v2973, %v1752
    %v2982 = vadd.f32 %v2974, %v1753
    %v2983 = vadd.f32 %v2975, %v1754
    %v2984 = vadd.f32 %v2976, %v1755
    %v2985 = vadd.f32 %v2977, %v1756
    %v2986 = vsel %vm233, %v2978, 0.0
    %2987 = vadd.xlane.f32.xlu0 %v2986
    %v2988 = vpop.xlane.xlu0 %2987
    %v2989 = vsel %vm233, %v2979, 0.0
    %2990 = vadd.xlane.f32.xlu0 %v2989
    %v2991 = vpop.xlane.xlu0 %2990
    %v2992 = vsel %vm233, %v2980, 0.0
    %2993 = vadd.xlane.f32.xlu0 %v2992
    %v2994 = vpop.xlane.xlu0 %2993
    %v2995 = vsel %vm233, %v2981, 0.0
    %2996 = vadd.xlane.f32.xlu0 %v2995
    %v2997 = vpop.xlane.xlu0 %2996
    %v2998 = vsel %vm233, %v2982, 0.0
    %2999 = vadd.xlane.f32.xlu0 %v2998
    %v3000 = vpop.xlane.xlu0 %2999
    %v3001 = vsel %vm233, %v2983, 0.0
    %3002 = vadd.xlane.f32.xlu0 %v3001
    %v3003 = vpop.xlane.xlu0 %3002
    %v3004 = vsel %vm233, %v2984, 0.0
    %3005 = vadd.xlane.f32.xlu0 %v3004
    %v3006 = vpop.xlane.xlu0 %3005
    %v3007 = vsel %vm1648, %v2985, 0.0
    %3008 = vadd.xlane.f32.xlu0 %v3007
    %v3009 = vpop.xlane.xlu0 %3008
    %v3010 = vmul.f32 %v2988, %v1652
    %v3011 = vmul.f32 %v2991, %v1652
    %v3012 = vmul.f32 %v2994, %v1652
    %v3013 = vmul.f32 %v2997, %v1652
    %v3014 = vmul.f32 %v3000, %v1652
    %v3015 = vmul.f32 %v3003, %v1652
    %v3016 = vmul.f32 %v3006, %v1652
    %v3017 = vmul.f32 %v3009, %v1652
    %v3018 = vsub.f32 %v2978, %v3010
    %v3019 = vsub.f32 %v2979, %v3011
    %v3020 = vsub.f32 %v2980, %v3012
    %v3021 = vsub.f32 %v2981, %v3013
    %v3022 = vsub.f32 %v2982, %v3014
    %v3023 = vsub.f32 %v2983, %v3015
    %v3024 = vsub.f32 %v2984, %v3016
    %v3025 = vsub.f32 %v2985, %v3017
    %v3026 = vmul.f32 %v3018, %v3018
    %v3027 = vmul.f32 %v3019, %v3019
    %v3028 = vmul.f32 %v3020, %v3020
    %v3029 = vmul.f32 %v3021, %v3021
    %v3030 = vmul.f32 %v3022, %v3022
    %v3031 = vmul.f32 %v3023, %v3023
    %v3032 = vmul.f32 %v3024, %v3024
    %v3033 = vmul.f32 %v3025, %v3025
    %v3034 = vsel %vm233, %v3026, 0.0
    %3035 = vadd.xlane.f32.xlu0 %v3034
    %v3036 = vpop.xlane.xlu0 %3035
    %v3037 = vsel %vm233, %v3027, 0.0
    %3038 = vadd.xlane.f32.xlu0 %v3037
    %v3039 = vpop.xlane.xlu0 %3038
    %v3040 = vsel %vm233, %v3028, 0.0
    %3041 = vadd.xlane.f32.xlu0 %v3040
    %v3042 = vpop.xlane.xlu0 %3041
    %v3043 = vsel %vm233, %v3029, 0.0
    %3044 = vadd.xlane.f32.xlu0 %v3043
    %v3045 = vpop.xlane.xlu0 %3044
    %v3046 = vsel %vm233, %v3030, 0.0
    %3047 = vadd.xlane.f32.xlu0 %v3046
    %v3048 = vpop.xlane.xlu0 %3047
    %v3049 = vsel %vm233, %v3031, 0.0
    %3050 = vadd.xlane.f32.xlu0 %v3049
    %v3051 = vpop.xlane.xlu0 %3050
    %v3052 = vsel %vm233, %v3032, 0.0
    %3053 = vadd.xlane.f32.xlu0 %v3052
    %v3054 = vpop.xlane.xlu0 %3053
    %v3055 = vsel %vm1648, %v3033, 0.0
    %3056 = vadd.xlane.f32.xlu0 %v3055
    %v3057 = vpop.xlane.xlu0 %3056
    %v3058 = vmul.f32 %v3036, %v1652
    %v3059 = vmul.f32 %v3039, %v1652
    %v3060 = vmul.f32 %v3042, %v1652
    %v3061 = vmul.f32 %v3045, %v1652
    %v3062 = vmul.f32 %v3048, %v1652
    %v3063 = vmul.f32 %v3051, %v1652
    %v3064 = vmul.f32 %v3054, %v1652
    %v3065 = vmul.f32 %v3057, %v1652
    %v3066 = vadd.f32 %v3058, 1e-06
    %v3067 = vadd.f32 %v3059, 1e-06
    %v3068 = vadd.f32 %v3060, 1e-06
    %v3069 = vadd.f32 %v3061, 1e-06
    %v3070 = vadd.f32 %v3062, 1e-06
    %v3071 = vadd.f32 %v3063, 1e-06
    %v3072 = vadd.f32 %v3064, 1e-06
    %v3073 = vadd.f32 %v3065, 1e-06
    %v3074 = vrsqrt.pop %v3066
    %v3075 = vrsqrt.pop %v3067
    %v3076 = vrsqrt.pop %v3068
    %v3077 = vrsqrt.pop %v3069
    %v3078 = vrsqrt.pop %v3070
    %v3079 = vrsqrt.pop %v3071
    %v3080 = vrsqrt.pop %v3072
    %v3081 = vrsqrt.pop %v3073
    %v3082 = vmul.f32 %v3018, %v3074
    %v3083 = vmul.f32 %v3019, %v3075
    %v3084 = vmul.f32 %v3020, %v3076
    %v3085 = vmul.f32 %v3021, %v3077
    %v3086 = vmul.f32 %v3022, %v3078
    %v3087 = vmul.f32 %v3023, %v3079
    %v3088 = vmul.f32 %v3024, %v3080
    %v3089 = vmul.f32 %v3025, %v3081
    %v3090 = vlaneseq
    %v3091 = vshrl.u32 %v3090, 7
    %v3092 = vsub.s32 1, %v3091
    %v3093 = vrot.slane %v130, %v3092
    %v3094 = vmul.f32 %v3082, %v3093
    %v3095 = vmul.f32 %v3083, %v3093
    %v3096 = vmul.f32 %v3084, %v3093
    %v3097 = vmul.f32 %v3085, %v3093
    %v3098 = vmul.f32 %v3086, %v3093
    %v3099 = vmul.f32 %v3087, %v3093
    %v3100 = vmul.f32 %v3088, %v3093
    %v3101 = vmul.f32 %v3089, %v3093
    %v3102 = vlaneseq
    %v3103 = vshrl.u32 %v3102, 7
    %v3104 = vsub.s32 3, %v3103
    %v3105 = vrot.slane %v130, %v3104
    %v3106 = vadd.f32 %v3094, %v3105
    %v3107 = vadd.f32 %v3095, %v3105
    %v3108 = vadd.f32 %v3096, %v3105
    %v3109 = vadd.f32 %v3097, %v3105
    %v3110 = vadd.f32 %v3098, %v3105
    %v3111 = vadd.f32 %v3099, %v3105
    %v3112 = vadd.f32 %v3100, %v3105
    %v3113 = vadd.f32 %v3101, %v3105
    %v3114 = vld [vmem:[#allocation9] sm:$0xf]
    %v3115 = vld [vmem:[#allocation9 + $0x4] sm:$0xf]
    %v3116 = vld [vmem:[#allocation9 + $0x8] sm:$0xf]
    %v3117 = vld [vmem:[#allocation9 + $0xc] sm:$0xf]
    %v3118 = vpack.c.bf16 %v3107, %v3106
    %v3119 = vpack.c.bf16 %v3109, %v3108
    %v3120 = vpack.c.bf16 %v3111, %v3110
    %v3121 = vpack.c.bf16 %v3113, %v3112
    %v3122 = vlaneseq
    %v3123 = vshrl.u32 %v3122, 7
    %v3124 = vsub.s32 5, %v3123
    %v3125 = vrot.slane %v130, %v3124
    %v3130 = vunpack.c.l.b16 %v3114
    %v3131 = vunpack.c.l.b16 %v3115
    %v3132 = vunpack.c.l.b16 %v3116
    %v3133 = vunpack.c.l.b16 %v3117
    %v3134 = vpack.c.b16 %v3131, %v3130
    %v3135 = vpack.c.b16 %v3133, %v3132
    %v3139 = vsel %vm233, %v3118, 0
    %v3142 = vsel %vm233, %v3119, 0
    %v3145 = vsel %vm233, %v3120, 0
    %v3148 = vsel %vm233, %v3121, 0
    %3150 = vmatprep.subr.bf16.mxu0 0
    %3151 = vmatpush1.bf16.msra.mxu0 %v3134
    %3152 = vmatprep.subr.bf16.mxu0 0
    %3153 = vmatpush1.bf16.msra.mxu0 %v3135
    %3154 = vmatprep.subr.bf16.mxu0 0
    %3155 = vmatpush1.bf16.msra.mxu0 0
    %3156 = vmatprep.subr.bf16.mxu0 0
    %3157 = vmatpush1.bf16.msra.mxu0 0
    %3158 = vmatprep.subr.bf16.mxu0 0
    %3159 = vmatpush1.bf16.msra.mxu0 0
    %3160 = vmatprep.subr.bf16.mxu0 0
    %3161 = vmatpush1.bf16.msra.mxu0 0
    %3162 = vmatprep.subr.bf16.mxu0 0
    %3163 = vmatpush1.bf16.msra.mxu0 0
    %3164 = vmatprep.subr.bf16.mxu0 0
    %3165 = vmatpush1.bf16.msra.mxu0 0
    %3166 = vmatprep.subr.bf16.mxu0 0
    %3167 = vmatpush1.bf16.msra.mxu0 0
    %3168 = vmatprep.subr.bf16.mxu0 0
    %3169 = vmatpush1.bf16.msra.mxu0 0
    %3170 = vmatprep.subr.bf16.mxu0 0
    %3171 = vmatpush1.bf16.msra.mxu0 0
    %3172 = vmatprep.subr.bf16.mxu0 0
    %3173 = vmatpush1.bf16.msra.mxu0 0
    %3174 = vmatprep.subr.bf16.mxu0 0
    %3175 = vmatpush1.bf16.msra.mxu0 0
    %3176 = vmatprep.subr.bf16.mxu0 0
    %3177 = vmatpush1.bf16.msra.mxu0 0
    %3178 = vmatprep.subr.bf16.mxu0 0
    %3179 = vmatpush1.bf16.msra.mxu0 0
    %3180 = vmatprep.subr.bf16.mxu0 0
    %3181 = vmatpush1.bf16.msra.mxu0 0
    %3182 = vmatprep.mubr.bf16.mxu0 0
    %3183 = vmatmul.mubr.bf16.gmra.mrb[0].mxu0 %v3139
    %v3184 = vpop.f32.mrb[0].mxu0
    %v3185 = vadd.f32 %v3125, %v3184
    %v3186 = vpop.f32.mrb[0].mxu0
    %v3187 = vpop.f32.mrb[0].mxu0
    %v3188 = vadd.f32 %v3125, %v3187
    %v3189 = vpop.f32.mrb[0].mxu0
    %3190 = vmatprep.mubr.bf16.mxu0 0
    %3191 = vmatmul.mubr.bf16.gmra.mrb[0].mxu0 %v3142
    %v3192 = vpop.f32.mrb[0].mxu0
    %v3193 = vadd.f32 %v3125, %v3192
    %v3194 = vpop.f32.mrb[0].mxu0
    %v3195 = vpop.f32.mrb[0].mxu0
    %v3196 = vadd.f32 %v3125, %v3195
    %v3197 = vpop.f32.mrb[0].mxu0
    %3198 = vmatprep.mubr.bf16.mxu0 0
    %3199 = vmatmul.mubr.bf16.gmra.mrb[0].mxu0 %v3145
    %v3200 = vpop.f32.mrb[0].mxu0
    %v3201 = vadd.f32 %v3125, %v3200
    %v3202 = vpop.f32.mrb[0].mxu0
    %v3203 = vpop.f32.mrb[0].mxu0
    %v3204 = vadd.f32 %v3125, %v3203
    %v3205 = vpop.f32.mrb[0].mxu0
    %3206 = vmatprep.mubr.bf16.mxu0 0
    %3207 = vmatmul.mubr.bf16.gmra.mrb[0].mxu0 %v3148
    %v3208 = vpop.f32.mrb[0].mxu0
    %v3209 = vadd.f32 %v3125, %v3208
    %v3210 = vpop.f32.mrb[0].mxu0
    %v3211 = vpop.f32.mrb[0].mxu0
    %v3212 = vadd.f32 %v3125, %v3211
    %v3213 = vpop.f32.mrb[0].mxu0
    %3214 = vdwg.mxu0
    %v3215 = vmul.f32 %v3185, 0.5
    %v3216 = vmul.f32 %v3188, 0.5
    %v3217 = vmul.f32 %v3193, 0.5
    %v3218 = vmul.f32 %v3196, 0.5
    %v3219 = vmul.f32 %v3201, 0.5
    %v3220 = vmul.f32 %v3204, 0.5
    %v3221 = vmul.f32 %v3209, 0.5
    %v3222 = vmul.f32 %v3212, 0.5
    %v3223 = vmul.f32 %v3185, 0.70710677
    %v3224 = vmul.f32 %v3188, 0.70710677
    %v3225 = vmul.f32 %v3193, 0.70710677
    %v3226 = vmul.f32 %v3196, 0.70710677
    %v3227 = vmul.f32 %v3201, 0.70710677
    %v3228 = vmul.f32 %v3204, 0.70710677
    %v3229 = vmul.f32 %v3209, 0.70710677
    %v3230 = vmul.f32 %v3212, 0.70710677
    %v3231 = verf.f32.pop %v3223
    %v3232 = verf.f32.pop %v3224
    %v3233 = verf.f32.pop %v3225
    %v3234 = verf.f32.pop %v3226
    %v3235 = verf.f32.pop %v3227
    %v3236 = verf.f32.pop %v3228
    %v3237 = verf.f32.pop %v3229
    %v3238 = verf.f32.pop %v3230
    %v3239 = vadd.f32 %v3231, 1.0
    %v3240 = vadd.f32 %v3232, 1.0
    %v3241 = vadd.f32 %v3233, 1.0
    %v3242 = vadd.f32 %v3234, 1.0
    %v3243 = vadd.f32 %v3235, 1.0
    %v3244 = vadd.f32 %v3236, 1.0
    %v3245 = vadd.f32 %v3237, 1.0
    %v3246 = vadd.f32 %v3238, 1.0
    %v3247 = vmul.f32 %v3215, %v3239
    %v3248 = vmul.f32 %v3216, %v3240
    %v3249 = vmul.f32 %v3217, %v3241
    %v3250 = vmul.f32 %v3218, %v3242
    %v3251 = vmul.f32 %v3219, %v3243
    %v3252 = vmul.f32 %v3220, %v3244
    %v3253 = vmul.f32 %v3221, %v3245
    %v3254 = vmul.f32 %v3222, %v3246
    %v3255 = vld [vmem:[%s11] sm:$0xf]
    %v3256 = vld [vmem:[%s11 + $0x4] sm:$0xf]
    %v3257 = vld [vmem:[%s11 + $0x8] sm:$0xf]
    %v3258 = vld [vmem:[%s11 + $0xc] sm:$0xf]
    %v3259 = vld [vmem:[%s11 + $0x10] sm:$0xf]
    %v3260 = vld [vmem:[%s11 + $0x14] sm:$0xf]
    %v3261 = vld [vmem:[%s11 + $0x18] sm:$0xf]
    %v3262 = vld [vmem:[%s11 + $0x1c] sm:$0xf]
    %v3263 = vpack.c.bf16 %v3248, %v3247
    %v3264 = vpack.c.bf16 %v3250, %v3249
    %v3265 = vpack.c.bf16 %v3252, %v3251
    %v3266 = vpack.c.bf16 %v3254, %v3253
    %v3267 = vlaneseq
    %v3268 = vshrl.u32 %v3267, 7
    %v3269 = vsub.s32 7, %v3268
    %v3270 = vrot.slane %v130, %v3269
    %v3279 = vunpack.c.l.b16 %v3255
    %v3280 = vunpack.c.l.b16 %v3256
    %v3281 = vunpack.c.l.b16 %v3257
    %v3282 = vunpack.c.l.b16 %v3258
    %v3283 = vunpack.c.l.b16 %v3259
    %v3284 = vunpack.c.l.b16 %v3260
    %v3285 = vunpack.c.l.b16 %v3261
    %v3286 = vunpack.c.l.b16 %v3262
    %v3287 = vpack.c.b16 %v3280, %v3279
    %v3288 = vpack.c.b16 %v3282, %v3281
    %v3289 = vpack.c.b16 %v3284, %v3283
    %v3290 = vpack.c.b16 %v3286, %v3285
    %vm3295 = vcmask 523264
    %v3297 = vsel %vm3295, %v3263, 0
    %v3300 = vsel %vm3295, %v3264, 0
    %v3303 = vsel %vm3295, %v3265, 0
    %v3306 = vsel %vm3295, %v3266, 0
    %3308 = vmatprep.subr.bf16.mxu0 0
    %3309 = vmatpush1.bf16.msra.mxu0 %v3287
    %3310 = vmatprep.subr.bf16.mxu0 0
    %3311 = vmatpush1.bf16.msra.mxu0 %v3288
    %3312 = vmatprep.subr.bf16.mxu0 0
    %3313 = vmatpush1.bf16.msra.mxu0 %v3289
    %3314 = vmatprep.subr.bf16.mxu0 0
    %3315 = vmatpush1.bf16.msra.mxu0 %v3290
    %3316 = vmatprep.subr.bf16.mxu0 0
    %3317 = vmatpush1.bf16.msra.mxu0 0
    %3318 = vmatprep.subr.bf16.mxu0 0
    %3319 = vmatpush1.bf16.msra.mxu0 0
    %3320 = vmatprep.subr.bf16.mxu0 0
    %3321 = vmatpush1.bf16.msra.mxu0 0
    %3322 = vmatprep.subr.bf16.mxu0 0
    %3323 = vmatpush1.bf16.msra.mxu0 0
    %3324 = vmatprep.subr.bf16.mxu0 0
    %3325 = vmatpush1.bf16.msra.mxu0 0
    %3326 = vmatprep.subr.bf16.mxu0 0
    %3327 = vmatpush1.bf16.msra.mxu0 0
    %3328 = vmatprep.subr.bf16.mxu0 0
    %3329 = vmatpush1.bf16.msra.mxu0 0
    %3330 = vmatprep.subr.bf16.mxu0 0
    %3331 = vmatpush1.bf16.msra.mxu0 0
    %3332 = vmatprep.subr.bf16.mxu0 0
    %3333 = vmatpush1.bf16.msra.mxu0 0
    %3334 = vmatprep.subr.bf16.mxu0 0
    %3335 = vmatpush1.bf16.msra.mxu0 0
    %3336 = vmatprep.subr.bf16.mxu0 0
    %3337 = vmatpush1.bf16.msra.mxu0 0
    %3338 = vmatprep.subr.bf16.mxu0 0
    %3339 = vmatpush1.bf16.msra.mxu0 0
    %3340 = vmatprep.mubr.bf16.mxu0 0
    %3341 = vmatmul.mubr.bf16.gmra.mrb[0].mxu0 %v3297
    %v3342 = vpop.f32.mrb[0].mxu0
    %v3343 = vadd.f32 %v3270, %v3342
    %v3344 = vpop.f32.mrb[0].mxu0
    %v3345 = vpop.f32.mrb[0].mxu0
    %v3346 = vadd.f32 %v3270, %v3345
    %v3347 = vpop.f32.mrb[0].mxu0
    %3348 = vmatprep.mubr.bf16.mxu0 0
    %3349 = vmatmul.mubr.bf16.gmra.mrb[0].mxu0 %v3300
    %v3350 = vpop.f32.mrb[0].mxu0
    %v3351 = vadd.f32 %v3270, %v3350
    %v3352 = vpop.f32.mrb[0].mxu0
    %v3353 = vpop.f32.mrb[0].mxu0
    %v3354 = vadd.f32 %v3270, %v3353
    %v3355 = vpop.f32.mrb[0].mxu0
    %3356 = vmatprep.mubr.bf16.mxu0 0
    %3357 = vmatmul.mubr.bf16.gmra.mrb[0].mxu0 %v3303
    %v3358 = vpop.f32.mrb[0].mxu0
    %v3359 = vadd.f32 %v3270, %v3358
    %v3360 = vpop.f32.mrb[0].mxu0
    %v3361 = vpop.f32.mrb[0].mxu0
    %v3362 = vadd.f32 %v3270, %v3361
    %v3363 = vpop.f32.mrb[0].mxu0
    %3364 = vmatprep.mubr.bf16.mxu0 0
    %3365 = vmatmul.mubr.bf16.gmra.mrb[0].mxu0 %v3306
    %v3366 = vpop.f32.mrb[0].mxu0
    %v3367 = vadd.f32 %v3270, %v3366
    %v3368 = vpop.f32.mrb[0].mxu0
    %v3369 = vpop.f32.mrb[0].mxu0
    %v3370 = vadd.f32 %v3270, %v3369
    %v3371 = vpop.f32.mrb[0].mxu0
    %3372 = vdwg.mxu0
    %v3373 = vadd.f32 %v3343, %v3106
    %v3374 = vadd.f32 %v3346, %v3107
    %v3375 = vadd.f32 %v3351, %v3108
    %v3376 = vadd.f32 %v3354, %v3109
    %v3377 = vadd.f32 %v3359, %v3110
    %v3378 = vadd.f32 %v3362, %v3111
    %v3379 = vadd.f32 %v3367, %v3112
    %v3380 = vadd.f32 %v3370, %v3113
    %v3381 = vsel %vm233, %v3373, 0.0
    %3382 = vadd.xlane.f32.xlu0 %v3381
    %v3383 = vpop.xlane.xlu0 %3382
    %v3384 = vsel %vm233, %v3374, 0.0
    %3385 = vadd.xlane.f32.xlu0 %v3384
    %v3386 = vpop.xlane.xlu0 %3385
    %v3387 = vsel %vm233, %v3375, 0.0
    %3388 = vadd.xlane.f32.xlu0 %v3387
    %v3389 = vpop.xlane.xlu0 %3388
    %v3390 = vsel %vm233, %v3376, 0.0
    %3391 = vadd.xlane.f32.xlu0 %v3390
    %v3392 = vpop.xlane.xlu0 %3391
    %v3393 = vsel %vm233, %v3377, 0.0
    %3394 = vadd.xlane.f32.xlu0 %v3393
    %v3395 = vpop.xlane.xlu0 %3394
    %v3396 = vsel %vm233, %v3378, 0.0
    %3397 = vadd.xlane.f32.xlu0 %v3396
    %v3398 = vpop.xlane.xlu0 %3397
    %v3399 = vsel %vm233, %v3379, 0.0
    %3400 = vadd.xlane.f32.xlu0 %v3399
    %v3401 = vpop.xlane.xlu0 %3400
    %v3402 = vsel %vm1648, %v3380, 0.0
    %3403 = vadd.xlane.f32.xlu0 %v3402
    %v3404 = vpop.xlane.xlu0 %3403
    %v3405 = vmul.f32 %v3383, %v1652
    %v3406 = vmul.f32 %v3386, %v1652
    %v3407 = vmul.f32 %v3389, %v1652
    %v3408 = vmul.f32 %v3392, %v1652
    %v3409 = vmul.f32 %v3395, %v1652
    %v3410 = vmul.f32 %v3398, %v1652
    %v3411 = vmul.f32 %v3401, %v1652
    %v3412 = vmul.f32 %v3404, %v1652
    %v3413 = vsub.f32 %v3373, %v3405
    %v3414 = vsub.f32 %v3374, %v3406
    %v3415 = vsub.f32 %v3375, %v3407
    %v3416 = vsub.f32 %v3376, %v3408
    %v3417 = vsub.f32 %v3377, %v3409
    %v3418 = vsub.f32 %v3378, %v3410
    %v3419 = vsub.f32 %v3379, %v3411
    %v3420 = vsub.f32 %v3380, %v3412
    %v3421 = vmul.f32 %v3413, %v3413
    %v3422 = vmul.f32 %v3414, %v3414
    %v3423 = vmul.f32 %v3415, %v3415
    %v3424 = vmul.f32 %v3416, %v3416
    %v3425 = vmul.f32 %v3417, %v3417
    %v3426 = vmul.f32 %v3418, %v3418
    %v3427 = vmul.f32 %v3419, %v3419
    %v3428 = vmul.f32 %v3420, %v3420
    %v3429 = vsel %vm233, %v3421, 0.0
    %3430 = vadd.xlane.f32.xlu0 %v3429
    %v3431 = vpop.xlane.xlu0 %3430
    %v3432 = vsel %vm233, %v3422, 0.0
    %3433 = vadd.xlane.f32.xlu0 %v3432
    %v3434 = vpop.xlane.xlu0 %3433
    %v3435 = vsel %vm233, %v3423, 0.0
    %3436 = vadd.xlane.f32.xlu0 %v3435
    %v3437 = vpop.xlane.xlu0 %3436
    %v3438 = vsel %vm233, %v3424, 0.0
    %3439 = vadd.xlane.f32.xlu0 %v3438
    %v3440 = vpop.xlane.xlu0 %3439
    %v3441 = vsel %vm233, %v3425, 0.0
    %3442 = vadd.xlane.f32.xlu0 %v3441
    %v3443 = vpop.xlane.xlu0 %3442
    %v3444 = vsel %vm233, %v3426, 0.0
    %3445 = vadd.xlane.f32.xlu0 %v3444
    %v3446 = vpop.xlane.xlu0 %3445
    %v3447 = vsel %vm233, %v3427, 0.0
    %3448 = vadd.xlane.f32.xlu0 %v3447
    %v3449 = vpop.xlane.xlu0 %3448
    %v3450 = vsel %vm1648, %v3428, 0.0
    %3451 = vadd.xlane.f32.xlu0 %v3450
    %v3452 = vpop.xlane.xlu0 %3451
    %v3453 = vmul.f32 %v3431, %v1652
    %v3454 = vmul.f32 %v3434, %v1652
    %v3455 = vmul.f32 %v3437, %v1652
    %v3456 = vmul.f32 %v3440, %v1652
    %v3457 = vmul.f32 %v3443, %v1652
    %v3458 = vmul.f32 %v3446, %v1652
    %v3459 = vmul.f32 %v3449, %v1652
    %v3460 = vmul.f32 %v3452, %v1652
    %v3461 = vadd.f32 %v3453, 1e-06
    %v3462 = vadd.f32 %v3454, 1e-06
    %v3463 = vadd.f32 %v3455, 1e-06
    %v3464 = vadd.f32 %v3456, 1e-06
    %v3465 = vadd.f32 %v3457, 1e-06
    %v3466 = vadd.f32 %v3458, 1e-06
    %v3467 = vadd.f32 %v3459, 1e-06
    %v3468 = vadd.f32 %v3460, 1e-06
    %v3469 = vrsqrt.pop %v3461
    %v3470 = vrsqrt.pop %v3462
    %v3471 = vrsqrt.pop %v3463
    %v3472 = vrsqrt.pop %v3464
    %v3473 = vrsqrt.pop %v3465
    %v3474 = vrsqrt.pop %v3466
    %v3475 = vrsqrt.pop %v3467
    %v3476 = vrsqrt.pop %v3468
    %v3477 = vmul.f32 %v3413, %v3469
    %v3478 = vmul.f32 %v3414, %v3470
    %v3479 = vmul.f32 %v3415, %v3471
    %v3480 = vmul.f32 %v3416, %v3472
    %v3481 = vmul.f32 %v3417, %v3473
    %v3482 = vmul.f32 %v3418, %v3474
    %v3483 = vmul.f32 %v3419, %v3475
    %v3484 = vmul.f32 %v3420, %v3476
    %v3485 = vlaneseq
    %v3486 = vshrl.u32 %v3485, 7
    %v3487 = vsub.s32 1, %v3486
    %v3488 = vrot.slane %v131, %v3487
    %v3489 = vmul.f32 %v3477, %v3488
    %v3490 = vmul.f32 %v3478, %v3488
    %v3491 = vmul.f32 %v3479, %v3488
    %v3492 = vmul.f32 %v3480, %v3488
    %v3493 = vmul.f32 %v3481, %v3488
    %v3494 = vmul.f32 %v3482, %v3488
    %v3495 = vmul.f32 %v3483, %v3488
    %v3496 = vmul.f32 %v3484, %v3488
    %v3497 = vlaneseq
    %v3498 = vshrl.u32 %v3497, 7
    %v3499 = vsub.s32 3, %v3498
    %v3500 = vrot.slane %v131, %v3499
    %v3501 = vadd.f32 %v3489, %v3500
    %v3502 = vadd.f32 %v3490, %v3500
    %v3503 = vadd.f32 %v3491, %v3500
    %v3504 = vadd.f32 %v3492, %v3500
    %v3505 = vadd.f32 %v3493, %v3500
    %v3506 = vadd.f32 %v3494, %v3500
    %v3507 = vadd.f32 %v3495, %v3500
    %v3508 = vadd.f32 %v3496, %v3500
    %v3509 = vpack.c.bf16 %v3502, %v3501
    %v3510 = vpack.c.bf16 %v3504, %v3503
    %v3511 = vpack.c.bf16 %v3506, %v3505
    %v3512 = vpack.c.bf16 %v3508, %v3507
    %s3513 = scalar_lea.vmem %s9, 32
    %v3514 = vld [vmem:[%s3513] sm:$0xff]
    %v3515 = vld [vmem:[%s3513 + $0x8] sm:$0xff]
    %v3516 = vld [vmem:[%s3513 + $0x10] sm:$0xff]
    %v3517 = vld [vmem:[%s3513 + $0x18] sm:$0xff]
    %v3522 = vunpack.c.l.b16 %v3514
    %v3523 = vunpack.c.h.b16 %v3514
    %v3524 = vunpack.c.l.b16 %v3515
    %v3525 = vunpack.c.h.b16 %v3515
    %v3526 = vunpack.c.l.b16 %v3516
    %v3527 = vunpack.c.h.b16 %v3516
    %v3528 = vunpack.c.l.b16 %v3517
    %v3529 = vunpack.c.h.b16 %v3517
    %v3530 = vpack.c.b16 %v3524, %v3522
    %v3531 = vpack.c.b16 %v3525, %v3523
    %v3532 = vpack.c.b16 %v3528, %v3526
    %v3533 = vpack.c.b16 %v3529, %v3527
    %v3539 = vsel %vm233, %v3509, 0
    %v3542 = vsel %vm233, %v3510, 0
    %v3545 = vsel %vm233, %v3511, 0
    %v3548 = vsel %vm233, %v3512, 0
    %3550 = vmatprep.subr.bf16.mxu0 %v3531
    %3551 = vmatpush1.bf16.msra.mxu0 %v3530
    %3552 = vmatprep.subr.bf16.mxu0 %v3533
    %3553 = vmatpush1.bf16.msra.mxu0 %v3532
    %3554 = vmatprep.subr.bf16.mxu0 0
    %3555 = vmatpush1.bf16.msra.mxu0 0
    %3556 = vmatprep.subr.bf16.mxu0 0
    %3557 = vmatpush1.bf16.msra.mxu0 0
    %3558 = vmatprep.subr.bf16.mxu0 0
    %3559 = vmatpush1.bf16.msra.mxu0 0
    %3560 = vmatprep.subr.bf16.mxu0 0
    %3561 = vmatpush1.bf16.msra.mxu0 0
    %3562 = vmatprep.subr.bf16.mxu0 0
    %3563 = vmatpush1.bf16.msra.mxu0 0
    %3564 = vmatprep.subr.bf16.mxu0 0
    %3565 = vmatpush1.bf16.msra.mxu0 0
    %3566 = vmatprep.subr.bf16.mxu0 0
    %3567 = vmatpush1.bf16.msra.mxu0 0
    %3568 = vmatprep.subr.bf16.mxu0 0
    %3569 = vmatpush1.bf16.msra.mxu0 0
    %3570 = vmatprep.subr.bf16.mxu0 0
    %3571 = vmatpush1.bf16.msra.mxu0 0
    %3572 = vmatprep.subr.bf16.mxu0 0
    %3573 = vmatpush1.bf16.msra.mxu0 0
    %3574 = vmatprep.subr.bf16.mxu0 0
    %3575 = vmatpush1.bf16.msra.mxu0 0
    %3576 = vmatprep.subr.bf16.mxu0 0
    %3577 = vmatpush1.bf16.msra.mxu0 0
    %3578 = vmatprep.subr.bf16.mxu0 0
    %3579 = vmatpush1.bf16.msra.mxu0 0
    %3580 = vmatprep.subr.bf16.mxu0 0
    %3581 = vmatpush1.bf16.msra.mxu0 0
    %3582 = vmatprep.mubr.bf16.mxu0 0
    %3583 = vmatmul.mubr.bf16.gmra.mrb[0].mxu0 %v3539
    %v3584 = vpop.f32.mrb[0].mxu0
    %v3585 = vadd.f32 0.0, %v3584
    %v3586 = vpop.f32.mrb[0].mxu0
    %v3587 = vadd.f32 0.0, %v3586
    %v3588 = vpop.f32.mrb[0].mxu0
    %v3589 = vadd.f32 0.0, %v3588
    %v3590 = vpop.f32.mrb[0].mxu0
    %v3591 = vadd.f32 0.0, %v3590
    %3592 = vmatprep.mubr.bf16.mxu0 0
    %3593 = vmatmul.mubr.bf16.gmra.mrb[0].mxu0 %v3542
    %v3594 = vpop.f32.mrb[0].mxu0
    %v3595 = vadd.f32 0.0, %v3594
    %v3596 = vpop.f32.mrb[0].mxu0
    %v3597 = vadd.f32 0.0, %v3596
    %v3598 = vpop.f32.mrb[0].mxu0
    %v3599 = vadd.f32 0.0, %v3598
    %v3600 = vpop.f32.mrb[0].mxu0
    %v3601 = vadd.f32 0.0, %v3600
    %3602 = vmatprep.mubr.bf16.mxu0 0
    %3603 = vmatmul.mubr.bf16.gmra.mrb[0].mxu0 %v3545
    %v3604 = vpop.f32.mrb[0].mxu0
    %v3605 = vadd.f32 0.0, %v3604
    %v3606 = vpop.f32.mrb[0].mxu0
    %v3607 = vadd.f32 0.0, %v3606
    %v3608 = vpop.f32.mrb[0].mxu0
    %v3609 = vadd.f32 0.0, %v3608
    %v3610 = vpop.f32.mrb[0].mxu0
    %v3611 = vadd.f32 0.0, %v3610
    %3612 = vmatprep.mubr.bf16.mxu0 0
    %3613 = vmatmul.mubr.bf16.gmra.mrb[0].mxu0 %v3548
    %v3614 = vpop.f32.mrb[0].mxu0
    %v3615 = vadd.f32 0.0, %v3614
    %v3616 = vpop.f32.mrb[0].mxu0
    %v3617 = vadd.f32 0.0, %v3616
    %v3618 = vpop.f32.mrb[0].mxu0
    %v3619 = vadd.f32 0.0, %v3618
    %v3620 = vpop.f32.mrb[0].mxu0
    %v3621 = vadd.f32 0.0, %v3620
    %3622 = vdwg.mxu0
    %v3623 = vpack.c.bf16 %v3589, %v3585
    %v3624 = vpack.c.bf16 %v3599, %v3595
    %v3625 = vpack.c.bf16 %v3609, %v3605
    %v3626 = vpack.c.bf16 %v3619, %v3615
    %v3628 = vsel %vm233, %v3623, 0
    %v3631 = vsel %vm233, %v3624, 0
    %v3634 = vsel %vm233, %v3625, 0
    %v3637 = vsel %vm233, %v3626, 0
    %3639 = vmatprep.subr.bf16.mxu0 0
    %3640 = vmatpush1.bf16.xpose.msra.mxu0 %v3539
    %3641 = vmatprep.subr.bf16.mxu0 0
    %3642 = vmatpush1.bf16.xpose.msra.mxu0 %v3542
    %3643 = vmatprep.subr.bf16.mxu0 0
    %3644 = vmatpush1.bf16.xpose.msra.mxu0 %v3545
    %3645 = vmatprep.subr.bf16.mxu0 0
    %3646 = vmatpush1.bf16.xpose.msra.mxu0 %v3548
    %3647 = vmatprep.subr.bf16.mxu0 0
    %3648 = vmatpush1.bf16.xpose.msra.mxu0 0
    %3649 = vmatprep.subr.bf16.mxu0 0
    %3650 = vmatpush1.bf16.xpose.msra.mxu0 0
    %3651 = vmatprep.subr.bf16.mxu0 0
    %3652 = vmatpush1.bf16.xpose.msra.mxu0 0
    %3653 = vmatprep.subr.bf16.mxu0 0
    %3654 = vmatpush1.bf16.xpose.msra.mxu0 0
    %3655 = vmatprep.subr.bf16.mxu0 0
    %3656 = vmatpush1.bf16.xpose.msra.mxu0 0
    %3657 = vmatprep.subr.bf16.mxu0 0
    %3658 = vmatpush1.bf16.xpose.msra.mxu0 0
    %3659 = vmatprep.subr.bf16.mxu0 0
    %3660 = vmatpush1.bf16.xpose.msra.mxu0 0
    %3661 = vmatprep.subr.bf16.mxu0 0
    %3662 = vmatpush1.bf16.xpose.msra.mxu0 0
    %3663 = vmatprep.subr.bf16.mxu0 0
    %3664 = vmatpush1.bf16.xpose.msra.mxu0 0
    %3665 = vmatprep.subr.bf16.mxu0 0
    %3666 = vmatpush1.bf16.xpose.msra.mxu0 0
    %3667 = vmatprep.subr.bf16.mxu0 0
    %3668 = vmatpush1.bf16.xpose.msra.mxu0 0
    %3669 = vmatprep.subr.bf16.mxu0 0
    %3670 = vmatpush1.bf16.xpose.msra.mxu0 0
    %3671 = vmatprep.mubr.bf16.mxu0 0
    %3672 = vmatmul.mubr.bf16.gmra.mrb[0].mxu0 %v3628
    %v3673 = vpop.f32.mrb[0].mxu0
    %v3674 = vadd.f32 %v1757, %v3673
    %v3675 = vpop.f32.mrb[0].mxu0
    %v3676 = vpop.f32.mrb[0].mxu0
    %v3677 = vadd.f32 %v1758, %v3676
    %v3678 = vpop.f32.mrb[0].mxu0
    %3679 = vmatprep.mubr.bf16.mxu0 0
    %3680 = vmatmul.mubr.bf16.gmra.mrb[0].mxu0 %v3631
    %v3681 = vpop.f32.mrb[0].mxu0
    %v3682 = vadd.f32 %v1759, %v3681
    %v3683 = vpop.f32.mrb[0].mxu0
    %v3684 = vpop.f32.mrb[0].mxu0
    %v3685 = vadd.f32 %v1760, %v3684
    %v3686 = vpop.f32.mrb[0].mxu0
    %3687 = vmatprep.mubr.bf16.mxu0 0
    %3688 = vmatmul.mubr.bf16.gmra.mrb[0].mxu0 %v3634
    %v3689 = vpop.f32.mrb[0].mxu0
    %v3690 = vadd.f32 %v1761, %v3689
    %v3691 = vpop.f32.mrb[0].mxu0
    %v3692 = vpop.f32.mrb[0].mxu0
    %v3693 = vadd.f32 %v1762, %v3692
    %v3694 = vpop.f32.mrb[0].mxu0
    %3695 = vmatprep.mubr.bf16.mxu0 0
    %3696 = vmatmul.mubr.bf16.gmra.mrb[0].mxu0 %v3637
    %v3697 = vpop.f32.mrb[0].mxu0
    %v3698 = vadd.f32 %v1763, %v3697
    %v3699 = vpop.f32.mrb[0].mxu0
    %v3700 = vpop.f32.mrb[0].mxu0
    %v3701 = vadd.f32 %v1764, %v3700
    %v3702 = vpop.f32.mrb[0].mxu0
    %3703 = vdwg.mxu0
    %v3704 = vsel %vm1959, %v3674, -inf
    %3705 = vmax.xlane.f32.xlu0 %v3704
    %v3706 = vpop.xlane.xlu0 %3705
    %v3707 = vsel %vm1959, %v3677, -inf
    %3708 = vmax.xlane.f32.xlu0 %v3707
    %v3709 = vpop.xlane.xlu0 %3708
    %v3710 = vsel %vm1959, %v3682, -inf
    %3711 = vmax.xlane.f32.xlu0 %v3710
    %v3712 = vpop.xlane.xlu0 %3711
    %v3713 = vsel %vm1959, %v3685, -inf
    %3714 = vmax.xlane.f32.xlu0 %v3713
    %v3715 = vpop.xlane.xlu0 %3714
    %v3716 = vsel %vm1959, %v3690, -inf
    %3717 = vmax.xlane.f32.xlu0 %v3716
    %v3718 = vpop.xlane.xlu0 %3717
    %v3719 = vsel %vm1959, %v3693, -inf
    %3720 = vmax.xlane.f32.xlu0 %v3719
    %v3721 = vpop.xlane.xlu0 %3720
    %v3722 = vsel %vm1959, %v3698, -inf
    %3723 = vmax.xlane.f32.xlu0 %v3722
    %v3724 = vpop.xlane.xlu0 %3723
    %v3725 = vsel %vm1981, %v3701, -inf
    %3726 = vmax.xlane.f32.xlu0 %v3725
    %v3727 = vpop.xlane.xlu0 %3726
    %v3728 = vsub.f32 %v3674, %v3706
    %v3729 = vsub.f32 %v3677, %v3709
    %v3730 = vsub.f32 %v3682, %v3712
    %v3731 = vsub.f32 %v3685, %v3715
    %v3732 = vsub.f32 %v3690, %v3718
    %v3733 = vsub.f32 %v3693, %v3721
    %v3734 = vsub.f32 %v3698, %v3724
    %v3735 = vsub.f32 %v3701, %v3727
    %v3736 = vmul.f32 %v3728, 1.442695
    %v3737 = vpow.pop %v3736
    %v3738 = vmul.f32 %v3729, 1.442695
    %v3739 = vpow.pop %v3738
    %v3740 = vmul.f32 %v3730, 1.442695
    %v3741 = vpow.pop %v3740
    %v3742 = vmul.f32 %v3731, 1.442695
    %v3743 = vpow.pop %v3742
    %v3744 = vmul.f32 %v3732, 1.442695
    %v3745 = vpow.pop %v3744
    %v3746 = vmul.f32 %v3733, 1.442695
    %v3747 = vpow.pop %v3746
    %v3748 = vmul.f32 %v3734, 1.442695
    %v3749 = vpow.pop %v3748
    %v3750 = vmul.f32 %v3735, 1.442695
    %v3751 = vpow.pop %v3750
    %v3752 = vsel %vm1959, %v3737, 0.0
    %3753 = vadd.xlane.f32.xlu0 %v3752
    %v3754 = vpop.xlane.xlu0 %3753
    %v3755 = vsel %vm1959, %v3739, 0.0
    %3756 = vadd.xlane.f32.xlu0 %v3755
    %v3757 = vpop.xlane.xlu0 %3756
    %v3758 = vsel %vm1959, %v3741, 0.0
    %3759 = vadd.xlane.f32.xlu0 %v3758
    %v3760 = vpop.xlane.xlu0 %3759
    %v3761 = vsel %vm1959, %v3743, 0.0
    %3762 = vadd.xlane.f32.xlu0 %v3761
    %v3763 = vpop.xlane.xlu0 %3762
    %v3764 = vsel %vm1959, %v3745, 0.0
    %3765 = vadd.xlane.f32.xlu0 %v3764
    %v3766 = vpop.xlane.xlu0 %3765
    %v3767 = vsel %vm1959, %v3747, 0.0
    %3768 = vadd.xlane.f32.xlu0 %v3767
    %v3769 = vpop.xlane.xlu0 %3768
    %v3770 = vsel %vm1959, %v3749, 0.0
    %3771 = vadd.xlane.f32.xlu0 %v3770
    %v3772 = vpop.xlane.xlu0 %3771
    %v3773 = vsel %vm1981, %v3751, 0.0
    %3774 = vadd.xlane.f32.xlu0 %v3773
    %v3775 = vpop.xlane.xlu0 %3774
    %v3776 = vrcp.pop %v3754
    %v3777 = vrcp.pop %v3757
    %v3778 = vrcp.pop %v3760
    %v3779 = vrcp.pop %v3763
    %v3780 = vrcp.pop %v3766
    %v3781 = vrcp.pop %v3769
    %v3782 = vrcp.pop %v3772
    %v3783 = vrcp.pop %v3775
    %v3784 = vmul.f32 %v3737, %v3776
    %v3785 = vmul.f32 %v3739, %v3777
    %v3786 = vmul.f32 %v3741, %v3778
    %v3787 = vmul.f32 %v3743, %v3779
    %v3788 = vmul.f32 %v3745, %v3780
    %v3789 = vmul.f32 %v3747, %v3781
    %v3790 = vmul.f32 %v3749, %v3782
    %v3791 = vmul.f32 %v3751, %v3783
    %v3792 = vpack.c.bf16 %v3785, %v3784
    %v3793 = vpack.c.bf16 %v3787, %v3786
    %v3794 = vpack.c.bf16 %v3789, %v3788
    %v3795 = vpack.c.bf16 %v3791, %v3790
    %v3796 = vpack.c.bf16 %v3591, %v3587
    %v3797 = vpack.c.bf16 %v3601, %v3597
    %v3798 = vpack.c.bf16 %v3611, %v3607
    %v3799 = vpack.c.bf16 %v3621, %v3617
    %3804 = vrot.lane.b32.xlu0 %v3623, 96
    %v3805 = vpop.permute.xlu0 %3804
    %3806 = vrot.lane.b32.xlu0 %v3624, 96
    %v3807 = vpop.permute.xlu0 %3806
    %3808 = vrot.lane.b32.xlu0 %v3625, 96
    %v3809 = vpop.permute.xlu0 %3808
    %3810 = vrot.lane.b32.xlu0 %v3626, 96
    %v3811 = vpop.permute.xlu0 %3810
    %v3813 = vsel %vm233, %v3805, 0
    %v3816 = vsel %vm233, %v3807, 0
    %v3819 = vsel %vm233, %v3809, 0
    %v3822 = vsel %vm233, %v3811, 0
    %3824 = vmatprep.subr.bf16.mxu0 0
    %3825 = vmatpush1.bf16.xpose.msra.mxu0 %v3539
    %3826 = vmatprep.subr.bf16.mxu0 0
    %3827 = vmatpush1.bf16.xpose.msra.mxu0 %v3542
    %3828 = vmatprep.subr.bf16.mxu0 0
    %3829 = vmatpush1.bf16.xpose.msra.mxu0 %v3545
    %3830 = vmatprep.subr.bf16.mxu0 0
    %3831 = vmatpush1.bf16.xpose.msra.mxu0 %v3548
    %3832 = vmatprep.subr.bf16.mxu0 0
    %3833 = vmatpush1.bf16.xpose.msra.mxu0 0
    %3834 = vmatprep.subr.bf16.mxu0 0
    %3835 = vmatpush1.bf16.xpose.msra.mxu0 0
    %3836 = vmatprep.subr.bf16.mxu0 0
    %3837 = vmatpush1.bf16.xpose.msra.mxu0 0
    %3838 = vmatprep.subr.bf16.mxu0 0
    %3839 = vmatpush1.bf16.xpose.msra.mxu0 0
    %3840 = vmatprep.subr.bf16.mxu0 0
    %3841 = vmatpush1.bf16.xpose.msra.mxu0 0
    %3842 = vmatprep.subr.bf16.mxu0 0
    %3843 = vmatpush1.bf16.xpose.msra.mxu0 0
    %3844 = vmatprep.subr.bf16.mxu0 0
    %3845 = vmatpush1.bf16.xpose.msra.mxu0 0
    %3846 = vmatprep.subr.bf16.mxu0 0
    %3847 = vmatpush1.bf16.xpose.msra.mxu0 0
    %3848 = vmatprep.subr.bf16.mxu0 0
    %3849 = vmatpush1.bf16.xpose.msra.mxu0 0
    %3850 = vmatprep.subr.bf16.mxu0 0
    %3851 = vmatpush1.bf16.xpose.msra.mxu0 0
    %3852 = vmatprep.subr.bf16.mxu0 0
    %3853 = vmatpush1.bf16.xpose.msra.mxu0 0
    %3854 = vmatprep.subr.bf16.mxu0 0
    %3855 = vmatpush1.bf16.xpose.msra.mxu0 0
    %3856 = vmatprep.mubr.bf16.mxu0 0
    %3857 = vmatmul.mubr.bf16.gmra.mrb[0].mxu0 %v3813
    %v3858 = vpop.f32.mrb[0].mxu0
    %v3859 = vadd.f32 %v1757, %v3858
    %v3860 = vpop.f32.mrb[0].mxu0
    %v3861 = vpop.f32.mrb[0].mxu0
    %v3862 = vadd.f32 %v1758, %v3861
    %v3863 = vpop.f32.mrb[0].mxu0
    %3864 = vmatprep.mubr.bf16.mxu0 0
    %3865 = vmatmul.mubr.bf16.gmra.mrb[0].mxu0 %v3816
    %v3866 = vpop.f32.mrb[0].mxu0
    %v3867 = vadd.f32 %v1759, %v3866
    %v3868 = vpop.f32.mrb[0].mxu0
    %v3869 = vpop.f32.mrb[0].mxu0
    %v3870 = vadd.f32 %v1760, %v3869
    %v3871 = vpop.f32.mrb[0].mxu0
    %3872 = vmatprep.mubr.bf16.mxu0 0
    %3873 = vmatmul.mubr.bf16.gmra.mrb[0].mxu0 %v3819
    %v3874 = vpop.f32.mrb[0].mxu0
    %v3875 = vadd.f32 %v1761, %v3874
    %v3876 = vpop.f32.mrb[0].mxu0
    %v3877 = vpop.f32.mrb[0].mxu0
    %v3878 = vadd.f32 %v1762, %v3877
    %v3879 = vpop.f32.mrb[0].mxu0
    %3880 = vmatprep.mubr.bf16.mxu0 0
    %3881 = vmatmul.mubr.bf16.gmra.mrb[0].mxu0 %v3822
    %v3882 = vpop.f32.mrb[0].mxu0
    %v3883 = vadd.f32 %v1763, %v3882
    %v3884 = vpop.f32.mrb[0].mxu0
    %v3885 = vpop.f32.mrb[0].mxu0
    %v3886 = vadd.f32 %v1764, %v3885
    %v3887 = vpop.f32.mrb[0].mxu0
    %3888 = vdwg.mxu0
    %v3889 = vsel %vm1959, %v3859, -inf
    %3890 = vmax.xlane.f32.xlu0 %v3889
    %v3891 = vpop.xlane.xlu0 %3890
    %v3892 = vsel %vm1959, %v3862, -inf
    %3893 = vmax.xlane.f32.xlu0 %v3892
    %v3894 = vpop.xlane.xlu0 %3893
    %v3895 = vsel %vm1959, %v3867, -inf
    %3896 = vmax.xlane.f32.xlu0 %v3895
    %v3897 = vpop.xlane.xlu0 %3896
    %v3898 = vsel %vm1959, %v3870, -inf
    %3899 = vmax.xlane.f32.xlu0 %v3898
    %v3900 = vpop.xlane.xlu0 %3899
    %v3901 = vsel %vm1959, %v3875, -inf
    %3902 = vmax.xlane.f32.xlu0 %v3901
    %v3903 = vpop.xlane.xlu0 %3902
    %v3904 = vsel %vm1959, %v3878, -inf
    %3905 = vmax.xlane.f32.xlu0 %v3904
    %v3906 = vpop.xlane.xlu0 %3905
    %v3907 = vsel %vm1959, %v3883, -inf
    %3908 = vmax.xlane.f32.xlu0 %v3907
    %v3909 = vpop.xlane.xlu0 %3908
    %v3910 = vsel %vm1981, %v3886, -inf
    %3911 = vmax.xlane.f32.xlu0 %v3910
    %v3912 = vpop.xlane.xlu0 %3911
    %v3913 = vsub.f32 %v3859, %v3891
    %v3914 = vsub.f32 %v3862, %v3894
    %v3915 = vsub.f32 %v3867, %v3897
    %v3916 = vsub.f32 %v3870, %v3900
    %v3917 = vsub.f32 %v3875, %v3903
    %v3918 = vsub.f32 %v3878, %v3906
    %v3919 = vsub.f32 %v3883, %v3909
    %v3920 = vsub.f32 %v3886, %v3912
    %v3921 = vmul.f32 %v3913, 1.442695
    %v3922 = vpow.pop %v3921
    %v3923 = vmul.f32 %v3914, 1.442695
    %v3924 = vpow.pop %v3923
    %v3925 = vmul.f32 %v3915, 1.442695
    %v3926 = vpow.pop %v3925
    %v3927 = vmul.f32 %v3916, 1.442695
    %v3928 = vpow.pop %v3927
    %v3929 = vmul.f32 %v3917, 1.442695
    %v3930 = vpow.pop %v3929
    %v3931 = vmul.f32 %v3918, 1.442695
    %v3932 = vpow.pop %v3931
    %v3933 = vmul.f32 %v3919, 1.442695
    %v3934 = vpow.pop %v3933
    %v3935 = vmul.f32 %v3920, 1.442695
    %v3936 = vpow.pop %v3935
    %v3937 = vsel %vm1959, %v3922, 0.0
    %3938 = vadd.xlane.f32.xlu0 %v3937
    %v3939 = vpop.xlane.xlu0 %3938
    %v3940 = vsel %vm1959, %v3924, 0.0
    %3941 = vadd.xlane.f32.xlu0 %v3940
    %v3942 = vpop.xlane.xlu0 %3941
    %v3943 = vsel %vm1959, %v3926, 0.0
    %3944 = vadd.xlane.f32.xlu0 %v3943
    %v3945 = vpop.xlane.xlu0 %3944
    %v3946 = vsel %vm1959, %v3928, 0.0
    %3947 = vadd.xlane.f32.xlu0 %v3946
    %v3948 = vpop.xlane.xlu0 %3947
    %v3949 = vsel %vm1959, %v3930, 0.0
    %3950 = vadd.xlane.f32.xlu0 %v3949
    %v3951 = vpop.xlane.xlu0 %3950
    %v3952 = vsel %vm1959, %v3932, 0.0
    %3953 = vadd.xlane.f32.xlu0 %v3952
    %v3954 = vpop.xlane.xlu0 %3953
    %v3955 = vsel %vm1959, %v3934, 0.0
    %3956 = vadd.xlane.f32.xlu0 %v3955
    %v3957 = vpop.xlane.xlu0 %3956
    %v3958 = vsel %vm1981, %v3936, 0.0
    %3959 = vadd.xlane.f32.xlu0 %v3958
    %v3960 = vpop.xlane.xlu0 %3959
    %v3961 = vrcp.pop %v3939
    %v3962 = vrcp.pop %v3942
    %v3963 = vrcp.pop %v3945
    %v3964 = vrcp.pop %v3948
    %v3965 = vrcp.pop %v3951
    %v3966 = vrcp.pop %v3954
    %v3967 = vrcp.pop %v3957
    %v3968 = vrcp.pop %v3960
    %v3969 = vmul.f32 %v3922, %v3961
    %v3970 = vmul.f32 %v3924, %v3962
    %v3971 = vmul.f32 %v3926, %v3963
    %v3972 = vmul.f32 %v3928, %v3964
    %v3973 = vmul.f32 %v3930, %v3965
    %v3974 = vmul.f32 %v3932, %v3966
    %v3975 = vmul.f32 %v3934, %v3967
    %v3976 = vmul.f32 %v3936, %v3968
    %v3977 = vpack.c.bf16 %v3970, %v3969
    %v3978 = vpack.c.bf16 %v3972, %v3971
    %v3979 = vpack.c.bf16 %v3974, %v3973
    %v3980 = vpack.c.bf16 %v3976, %v3975
    %3985 = vrot.lane.b32.xlu0 %v3796, 96
    %v3986 = vpop.permute.xlu0 %3985
    %3987 = vrot.lane.b32.xlu0 %v3797, 96
    %v3988 = vpop.permute.xlu0 %3987
    %3989 = vrot.lane.b32.xlu0 %v3798, 96
    %v3990 = vpop.permute.xlu0 %3989
    %3991 = vrot.lane.b32.xlu0 %v3799, 96
    %v3992 = vpop.permute.xlu0 %3991
    %v3997 = vsel %vm1959, %v3977, 0
    %v4000 = vsel %vm1959, %v3978, 0
    %v4003 = vsel %vm1959, %v3979, 0
    %v4006 = vsel %vm1959, %v3980, 0
    %v4009 = vsel %vm2265, %v3992, 0
    %4011 = vmatprep.subr.bf16.mxu0 0
    %4012 = vmatpush1.bf16.msra.mxu0 %v3986
    %4013 = vmatprep.subr.bf16.mxu0 0
    %4014 = vmatpush1.bf16.msra.mxu0 %v3988
    %4015 = vmatprep.subr.bf16.mxu0 0
    %4016 = vmatpush1.bf16.msra.mxu0 %v3990
    %4017 = vmatprep.subr.bf16.mxu0 0
    %4018 = vmatpush1.bf16.msra.mxu0 %v4009
    %4019 = vmatprep.subr.bf16.mxu0 0
    %4020 = vmatpush1.bf16.msra.mxu0 0
    %4021 = vmatprep.subr.bf16.mxu0 0
    %4022 = vmatpush1.bf16.msra.mxu0 0
    %4023 = vmatprep.subr.bf16.mxu0 0
    %4024 = vmatpush1.bf16.msra.mxu0 0
    %4025 = vmatprep.subr.bf16.mxu0 0
    %4026 = vmatpush1.bf16.msra.mxu0 0
    %4027 = vmatprep.subr.bf16.mxu0 0
    %4028 = vmatpush1.bf16.msra.mxu0 0
    %4029 = vmatprep.subr.bf16.mxu0 0
    %4030 = vmatpush1.bf16.msra.mxu0 0
    %4031 = vmatprep.subr.bf16.mxu0 0
    %4032 = vmatpush1.bf16.msra.mxu0 0
    %4033 = vmatprep.subr.bf16.mxu0 0
    %4034 = vmatpush1.bf16.msra.mxu0 0
    %4035 = vmatprep.subr.bf16.mxu0 0
    %4036 = vmatpush1.bf16.msra.mxu0 0
    %4037 = vmatprep.subr.bf16.mxu0 0
    %4038 = vmatpush1.bf16.msra.mxu0 0
    %4039 = vmatprep.subr.bf16.mxu0 0
    %4040 = vmatpush1.bf16.msra.mxu0 0
    %4041 = vmatprep.subr.bf16.mxu0 0
    %4042 = vmatpush1.bf16.msra.mxu0 0
    %4043 = vmatprep.mubr.bf16.mxu0 0
    %4044 = vmatmul.mubr.bf16.gmra.mrb[0].mxu0 %v3997
    %v4045 = vpop.f32.mrb[0].mxu0
    %v4046 = vadd.f32 0.0, %v4045
    %v4047 = vpop.f32.mrb[0].mxu0
    %v4048 = vpop.f32.mrb[0].mxu0
    %v4049 = vadd.f32 0.0, %v4048
    %v4050 = vpop.f32.mrb[0].mxu0
    %4051 = vmatprep.mubr.bf16.mxu0 0
    %4052 = vmatmul.mubr.bf16.gmra.mrb[0].mxu0 %v4000
    %v4053 = vpop.f32.mrb[0].mxu0
    %v4054 = vadd.f32 0.0, %v4053
    %v4055 = vpop.f32.mrb[0].mxu0
    %v4056 = vpop.f32.mrb[0].mxu0
    %v4057 = vadd.f32 0.0, %v4056
    %v4058 = vpop.f32.mrb[0].mxu0
    %4059 = vmatprep.mubr.bf16.mxu0 0
    %4060 = vmatmul.mubr.bf16.gmra.mrb[0].mxu0 %v4003
    %v4061 = vpop.f32.mrb[0].mxu0
    %v4062 = vadd.f32 0.0, %v4061
    %v4063 = vpop.f32.mrb[0].mxu0
    %v4064 = vpop.f32.mrb[0].mxu0
    %v4065 = vadd.f32 0.0, %v4064
    %v4066 = vpop.f32.mrb[0].mxu0
    %4067 = vmatprep.mubr.bf16.mxu0 0
    %4068 = vmatmul.mubr.bf16.gmra.mrb[0].mxu0 %v4006
    %v4069 = vpop.f32.mrb[0].mxu0
    %v4070 = vadd.f32 0.0, %v4069
    %v4071 = vpop.f32.mrb[0].mxu0
    %v4072 = vpop.f32.mrb[0].mxu0
    %v4073 = vadd.f32 0.0, %v4072
    %v4074 = vpop.f32.mrb[0].mxu0
    %4075 = vdwg.mxu0
    %v4077 = vsel %vm1959, %v3792, 0
    %v4080 = vsel %vm1959, %v3793, 0
    %v4083 = vsel %vm1959, %v3794, 0
    %v4086 = vsel %vm1959, %v3795, 0
    %v4089 = vsel %vm2265, %v3799, 0
    %4091 = vmatprep.subr.bf16.mxu0 0
    %4092 = vmatpush1.bf16.msra.mxu0 %v3796
    %4093 = vmatprep.subr.bf16.mxu0 0
    %4094 = vmatpush1.bf16.msra.mxu0 %v3797
    %4095 = vmatprep.subr.bf16.mxu0 0
    %4096 = vmatpush1.bf16.msra.mxu0 %v3798
    %4097 = vmatprep.subr.bf16.mxu0 0
    %4098 = vmatpush1.bf16.msra.mxu0 %v4089
    %4099 = vmatprep.subr.bf16.mxu0 0
    %4100 = vmatpush1.bf16.msra.mxu0 0
    %4101 = vmatprep.subr.bf16.mxu0 0
    %4102 = vmatpush1.bf16.msra.mxu0 0
    %4103 = vmatprep.subr.bf16.mxu0 0
    %4104 = vmatpush1.bf16.msra.mxu0 0
    %4105 = vmatprep.subr.bf16.mxu0 0
    %4106 = vmatpush1.bf16.msra.mxu0 0
    %4107 = vmatprep.subr.bf16.mxu0 0
    %4108 = vmatpush1.bf16.msra.mxu0 0
    %4109 = vmatprep.subr.bf16.mxu0 0
    %4110 = vmatpush1.bf16.msra.mxu0 0
    %4111 = vmatprep.subr.bf16.mxu0 0
    %4112 = vmatpush1.bf16.msra.mxu0 0
    %4113 = vmatprep.subr.bf16.mxu0 0
    %4114 = vmatpush1.bf16.msra.mxu0 0
    %4115 = vmatprep.subr.bf16.mxu0 0
    %4116 = vmatpush1.bf16.msra.mxu0 0
    %4117 = vmatprep.subr.bf16.mxu0 0
    %4118 = vmatpush1.bf16.msra.mxu0 0
    %4119 = vmatprep.subr.bf16.mxu0 0
    %4120 = vmatpush1.bf16.msra.mxu0 0
    %4121 = vmatprep.subr.bf16.mxu0 0
    %4122 = vmatpush1.bf16.msra.mxu0 0
    %4123 = vmatprep.mubr.bf16.mxu0 0
    %4124 = vmatmul.mubr.bf16.gmra.mrb[0].mxu0 %v4077
    %v4125 = vpop.f32.mrb[0].mxu0
    %v4126 = vadd.f32 %v4046, %v4125
    %v4127 = vpop.f32.mrb[0].mxu0
    %v4128 = vpop.f32.mrb[0].mxu0
    %v4129 = vadd.f32 %v4049, %v4128
    %v4130 = vpop.f32.mrb[0].mxu0
    %4131 = vmatprep.mubr.bf16.mxu0 0
    %4132 = vmatmul.mubr.bf16.gmra.mrb[0].mxu0 %v4080
    %v4133 = vpop.f32.mrb[0].mxu0
    %v4134 = vadd.f32 %v4054, %v4133
    %v4135 = vpop.f32.mrb[0].mxu0
    %v4136 = vpop.f32.mrb[0].mxu0
    %v4137 = vadd.f32 %v4057, %v4136
    %v4138 = vpop.f32.mrb[0].mxu0
    %4139 = vmatprep.mubr.bf16.mxu0 0
    %4140 = vmatmul.mubr.bf16.gmra.mrb[0].mxu0 %v4083
    %v4141 = vpop.f32.mrb[0].mxu0
    %v4142 = vadd.f32 %v4062, %v4141
    %v4143 = vpop.f32.mrb[0].mxu0
    %v4144 = vpop.f32.mrb[0].mxu0
    %v4145 = vadd.f32 %v4065, %v4144
    %v4146 = vpop.f32.mrb[0].mxu0
    %4147 = vmatprep.mubr.bf16.mxu0 0
    %4148 = vmatmul.mubr.bf16.gmra.mrb[0].mxu0 %v4086
    %v4149 = vpop.f32.mrb[0].mxu0
    %v4150 = vadd.f32 %v4070, %v4149
    %v4151 = vpop.f32.mrb[0].mxu0
    %v4152 = vpop.f32.mrb[0].mxu0
    %v4153 = vadd.f32 %v4073, %v4152
    %v4154 = vpop.f32.mrb[0].mxu0
    %4155 = vdwg.mxu0
    %4156 = vrot.lane.b32.xlu0 %v3623, 64
    %v4157 = vpop.permute.xlu0 %4156
    %4158 = vrot.lane.b32.xlu0 %v3624, 64
    %v4159 = vpop.permute.xlu0 %4158
    %4160 = vrot.lane.b32.xlu0 %v3625, 64
    %v4161 = vpop.permute.xlu0 %4160
    %4162 = vrot.lane.b32.xlu0 %v3626, 64
    %v4163 = vpop.permute.xlu0 %4162
    %v4165 = vsel %vm233, %v4157, 0
    %v4168 = vsel %vm233, %v4159, 0
    %v4171 = vsel %vm233, %v4161, 0
    %v4174 = vsel %vm233, %v4163, 0
    %4176 = vmatprep.subr.bf16.mxu0 0
    %4177 = vmatpush1.bf16.xpose.msra.mxu0 %v3539
    %4178 = vmatprep.subr.bf16.mxu0 0
    %4179 = vmatpush1.bf16.xpose.msra.mxu0 %v3542
    %4180 = vmatprep.subr.bf16.mxu0 0
    %4181 = vmatpush1.bf16.xpose.msra.mxu0 %v3545
    %4182 = vmatprep.subr.bf16.mxu0 0
    %4183 = vmatpush1.bf16.xpose.msra.mxu0 %v3548
    %4184 = vmatprep.subr.bf16.mxu0 0
    %4185 = vmatpush1.bf16.xpose.msra.mxu0 0
    %4186 = vmatprep.subr.bf16.mxu0 0
    %4187 = vmatpush1.bf16.xpose.msra.mxu0 0
    %4188 = vmatprep.subr.bf16.mxu0 0
    %4189 = vmatpush1.bf16.xpose.msra.mxu0 0
    %4190 = vmatprep.subr.bf16.mxu0 0
    %4191 = vmatpush1.bf16.xpose.msra.mxu0 0
    %4192 = vmatprep.subr.bf16.mxu0 0
    %4193 = vmatpush1.bf16.xpose.msra.mxu0 0
    %4194 = vmatprep.subr.bf16.mxu0 0
    %4195 = vmatpush1.bf16.xpose.msra.mxu0 0
    %4196 = vmatprep.subr.bf16.mxu0 0
    %4197 = vmatpush1.bf16.xpose.msra.mxu0 0
    %4198 = vmatprep.subr.bf16.mxu0 0
    %4199 = vmatpush1.bf16.xpose.msra.mxu0 0
    %4200 = vmatprep.subr.bf16.mxu0 0
    %4201 = vmatpush1.bf16.xpose.msra.mxu0 0
    %4202 = vmatprep.subr.bf16.mxu0 0
    %4203 = vmatpush1.bf16.xpose.msra.mxu0 0
    %4204 = vmatprep.subr.bf16.mxu0 0
    %4205 = vmatpush1.bf16.xpose.msra.mxu0 0
    %4206 = vmatprep.subr.bf16.mxu0 0
    %4207 = vmatpush1.bf16.xpose.msra.mxu0 0
    %4208 = vmatprep.mubr.bf16.mxu0 0
    %4209 = vmatmul.mubr.bf16.gmra.mrb[0].mxu0 %v4165
    %v4210 = vpop.f32.mrb[0].mxu0
    %v4211 = vadd.f32 %v1757, %v4210
    %v4212 = vpop.f32.mrb[0].mxu0
    %v4213 = vpop.f32.mrb[0].mxu0
    %v4214 = vadd.f32 %v1758, %v4213
    %v4215 = vpop.f32.mrb[0].mxu0
    %4216 = vmatprep.mubr.bf16.mxu0 0
    %4217 = vmatmul.mubr.bf16.gmra.mrb[0].mxu0 %v4168
    %v4218 = vpop.f32.mrb[0].mxu0
    %v4219 = vadd.f32 %v1759, %v4218
    %v4220 = vpop.f32.mrb[0].mxu0
    %v4221 = vpop.f32.mrb[0].mxu0
    %v4222 = vadd.f32 %v1760, %v4221
    %v4223 = vpop.f32.mrb[0].mxu0
    %4224 = vmatprep.mubr.bf16.mxu0 0
    %4225 = vmatmul.mubr.bf16.gmra.mrb[0].mxu0 %v4171
    %v4226 = vpop.f32.mrb[0].mxu0
    %v4227 = vadd.f32 %v1761, %v4226
    %v4228 = vpop.f32.mrb[0].mxu0
    %v4229 = vpop.f32.mrb[0].mxu0
    %v4230 = vadd.f32 %v1762, %v4229
    %v4231 = vpop.f32.mrb[0].mxu0
    %4232 = vmatprep.mubr.bf16.mxu0 0
    %4233 = vmatmul.mubr.bf16.gmra.mrb[0].mxu0 %v4174
    %v4234 = vpop.f32.mrb[0].mxu0
    %v4235 = vadd.f32 %v1763, %v4234
    %v4236 = vpop.f32.mrb[0].mxu0
    %v4237 = vpop.f32.mrb[0].mxu0
    %v4238 = vadd.f32 %v1764, %v4237
    %v4239 = vpop.f32.mrb[0].mxu0
    %4240 = vdwg.mxu0
    %v4241 = vsel %vm1959, %v4211, -inf
    %4242 = vmax.xlane.f32.xlu0 %v4241
    %v4243 = vpop.xlane.xlu0 %4242
    %v4244 = vsel %vm1959, %v4214, -inf
    %4245 = vmax.xlane.f32.xlu0 %v4244
    %v4246 = vpop.xlane.xlu0 %4245
    %v4247 = vsel %vm1959, %v4219, -inf
    %4248 = vmax.xlane.f32.xlu0 %v4247
    %v4249 = vpop.xlane.xlu0 %4248
    %v4250 = vsel %vm1959, %v4222, -inf
    %4251 = vmax.xlane.f32.xlu0 %v4250
    %v4252 = vpop.xlane.xlu0 %4251
    %v4253 = vsel %vm1959, %v4227, -inf
    %4254 = vmax.xlane.f32.xlu0 %v4253
    %v4255 = vpop.xlane.xlu0 %4254
    %v4256 = vsel %vm1959, %v4230, -inf
    %4257 = vmax.xlane.f32.xlu0 %v4256
    %v4258 = vpop.xlane.xlu0 %4257
    %v4259 = vsel %vm1959, %v4235, -inf
    %4260 = vmax.xlane.f32.xlu0 %v4259
    %v4261 = vpop.xlane.xlu0 %4260
    %v4262 = vsel %vm1981, %v4238, -inf
    %4263 = vmax.xlane.f32.xlu0 %v4262
    %v4264 = vpop.xlane.xlu0 %4263
    %v4265 = vsub.f32 %v4211, %v4243
    %v4266 = vsub.f32 %v4214, %v4246
    %v4267 = vsub.f32 %v4219, %v4249
    %v4268 = vsub.f32 %v4222, %v4252
    %v4269 = vsub.f32 %v4227, %v4255
    %v4270 = vsub.f32 %v4230, %v4258
    %v4271 = vsub.f32 %v4235, %v4261
    %v4272 = vsub.f32 %v4238, %v4264
    %v4273 = vmul.f32 %v4265, 1.442695
    %v4274 = vpow.pop %v4273
    %v4275 = vmul.f32 %v4266, 1.442695
    %v4276 = vpow.pop %v4275
    %v4277 = vmul.f32 %v4267, 1.442695
    %v4278 = vpow.pop %v4277
    %v4279 = vmul.f32 %v4268, 1.442695
    %v4280 = vpow.pop %v4279
    %v4281 = vmul.f32 %v4269, 1.442695
    %v4282 = vpow.pop %v4281
    %v4283 = vmul.f32 %v4270, 1.442695
    %v4284 = vpow.pop %v4283
    %v4285 = vmul.f32 %v4271, 1.442695
    %v4286 = vpow.pop %v4285
    %v4287 = vmul.f32 %v4272, 1.442695
    %v4288 = vpow.pop %v4287
    %v4289 = vsel %vm1959, %v4274, 0.0
    %4290 = vadd.xlane.f32.xlu0 %v4289
    %v4291 = vpop.xlane.xlu0 %4290
    %v4292 = vsel %vm1959, %v4276, 0.0
    %4293 = vadd.xlane.f32.xlu0 %v4292
    %v4294 = vpop.xlane.xlu0 %4293
    %v4295 = vsel %vm1959, %v4278, 0.0
    %4296 = vadd.xlane.f32.xlu0 %v4295
    %v4297 = vpop.xlane.xlu0 %4296
    %v4298 = vsel %vm1959, %v4280, 0.0
    %4299 = vadd.xlane.f32.xlu0 %v4298
    %v4300 = vpop.xlane.xlu0 %4299
    %v4301 = vsel %vm1959, %v4282, 0.0
    %4302 = vadd.xlane.f32.xlu0 %v4301
    %v4303 = vpop.xlane.xlu0 %4302
    %v4304 = vsel %vm1959, %v4284, 0.0
    %4305 = vadd.xlane.f32.xlu0 %v4304
    %v4306 = vpop.xlane.xlu0 %4305
    %v4307 = vsel %vm1959, %v4286, 0.0
    %4308 = vadd.xlane.f32.xlu0 %v4307
    %v4309 = vpop.xlane.xlu0 %4308
    %v4310 = vsel %vm1981, %v4288, 0.0
    %4311 = vadd.xlane.f32.xlu0 %v4310
    %v4312 = vpop.xlane.xlu0 %4311
    %v4313 = vrcp.pop %v4291
    %v4314 = vrcp.pop %v4294
    %v4315 = vrcp.pop %v4297
    %v4316 = vrcp.pop %v4300
    %v4317 = vrcp.pop %v4303
    %v4318 = vrcp.pop %v4306
    %v4319 = vrcp.pop %v4309
    %v4320 = vrcp.pop %v4312
    %v4321 = vmul.f32 %v4274, %v4313
    %v4322 = vmul.f32 %v4276, %v4314
    %v4323 = vmul.f32 %v4278, %v4315
    %v4324 = vmul.f32 %v4280, %v4316
    %v4325 = vmul.f32 %v4282, %v4317
    %v4326 = vmul.f32 %v4284, %v4318
    %v4327 = vmul.f32 %v4286, %v4319
    %v4328 = vmul.f32 %v4288, %v4320
    %v4329 = vpack.c.bf16 %v4322, %v4321
    %v4330 = vpack.c.bf16 %v4324, %v4323
    %v4331 = vpack.c.bf16 %v4326, %v4325
    %v4332 = vpack.c.bf16 %v4328, %v4327
    %4333 = vrot.lane.b32.xlu0 %v3796, 64
    %v4334 = vpop.permute.xlu0 %4333
    %4335 = vrot.lane.b32.xlu0 %v3797, 64
    %v4336 = vpop.permute.xlu0 %4335
    %4337 = vrot.lane.b32.xlu0 %v3798, 64
    %v4338 = vpop.permute.xlu0 %4337
    %4339 = vrot.lane.b32.xlu0 %v3799, 64
    %v4340 = vpop.permute.xlu0 %4339
    %v4345 = vsel %vm1959, %v4329, 0
    %v4348 = vsel %vm1959, %v4330, 0
    %v4351 = vsel %vm1959, %v4331, 0
    %v4354 = vsel %vm1959, %v4332, 0
    %v4357 = vsel %vm2265, %v4340, 0
    %4359 = vmatprep.subr.bf16.mxu0 0
    %4360 = vmatpush1.bf16.msra.mxu0 %v4334
    %4361 = vmatprep.subr.bf16.mxu0 0
    %4362 = vmatpush1.bf16.msra.mxu0 %v4336
    %4363 = vmatprep.subr.bf16.mxu0 0
    %4364 = vmatpush1.bf16.msra.mxu0 %v4338
    %4365 = vmatprep.subr.bf16.mxu0 0
    %4366 = vmatpush1.bf16.msra.mxu0 %v4357
    %4367 = vmatprep.subr.bf16.mxu0 0
    %4368 = vmatpush1.bf16.msra.mxu0 0
    %4369 = vmatprep.subr.bf16.mxu0 0
    %4370 = vmatpush1.bf16.msra.mxu0 0
    %4371 = vmatprep.subr.bf16.mxu0 0
    %4372 = vmatpush1.bf16.msra.mxu0 0
    %4373 = vmatprep.subr.bf16.mxu0 0
    %4374 = vmatpush1.bf16.msra.mxu0 0
    %4375 = vmatprep.subr.bf16.mxu0 0
    %4376 = vmatpush1.bf16.msra.mxu0 0
    %4377 = vmatprep.subr.bf16.mxu0 0
    %4378 = vmatpush1.bf16.msra.mxu0 0
    %4379 = vmatprep.subr.bf16.mxu0 0
    %4380 = vmatpush1.bf16.msra.mxu0 0
    %4381 = vmatprep.subr.bf16.mxu0 0
    %4382 = vmatpush1.bf16.msra.mxu0 0
    %4383 = vmatprep.subr.bf16.mxu0 0
    %4384 = vmatpush1.bf16.msra.mxu0 0
    %4385 = vmatprep.subr.bf16.mxu0 0
    %4386 = vmatpush1.bf16.msra.mxu0 0
    %4387 = vmatprep.subr.bf16.mxu0 0
    %4388 = vmatpush1.bf16.msra.mxu0 0
    %4389 = vmatprep.subr.bf16.mxu0 0
    %4390 = vmatpush1.bf16.msra.mxu0 0
    %4391 = vmatprep.mubr.bf16.mxu0 0
    %4392 = vmatmul.mubr.bf16.gmra.mrb[0].mxu0 %v4345
    %v4393 = vpop.f32.mrb[0].mxu0
    %v4394 = vadd.f32 0.0, %v4393
    %v4395 = vpop.f32.mrb[0].mxu0
    %v4396 = vpop.f32.mrb[0].mxu0
    %v4397 = vadd.f32 0.0, %v4396
    %v4398 = vpop.f32.mrb[0].mxu0
    %4399 = vmatprep.mubr.bf16.mxu0 0
    %4400 = vmatmul.mubr.bf16.gmra.mrb[0].mxu0 %v4348
    %v4401 = vpop.f32.mrb[0].mxu0
    %v4402 = vadd.f32 0.0, %v4401
    %v4403 = vpop.f32.mrb[0].mxu0
    %v4404 = vpop.f32.mrb[0].mxu0
    %v4405 = vadd.f32 0.0, %v4404
    %v4406 = vpop.f32.mrb[0].mxu0
    %4407 = vmatprep.mubr.bf16.mxu0 0
    %4408 = vmatmul.mubr.bf16.gmra.mrb[0].mxu0 %v4351
    %v4409 = vpop.f32.mrb[0].mxu0
    %v4410 = vadd.f32 0.0, %v4409
    %v4411 = vpop.f32.mrb[0].mxu0
    %v4412 = vpop.f32.mrb[0].mxu0
    %v4413 = vadd.f32 0.0, %v4412
    %v4414 = vpop.f32.mrb[0].mxu0
    %4415 = vmatprep.mubr.bf16.mxu0 0
    %4416 = vmatmul.mubr.bf16.gmra.mrb[0].mxu0 %v4354
    %v4417 = vpop.f32.mrb[0].mxu0
    %v4418 = vadd.f32 0.0, %v4417
    %v4419 = vpop.f32.mrb[0].mxu0
    %v4420 = vpop.f32.mrb[0].mxu0
    %v4421 = vadd.f32 0.0, %v4420
    %v4422 = vpop.f32.mrb[0].mxu0
    %4423 = vdwg.mxu0
    %v4424 = vadd.f32 %v4126, %v4394
    %v4425 = vadd.f32 %v4129, %v4397
    %v4426 = vadd.f32 %v4134, %v4402
    %v4427 = vadd.f32 %v4137, %v4405
    %v4428 = vadd.f32 %v4142, %v4410
    %v4429 = vadd.f32 %v4145, %v4413
    %v4430 = vadd.f32 %v4150, %v4418
    %v4431 = vadd.f32 %v4153, %v4421
    %4432 = vrot.lane.b32.xlu0 %v3623, 32
    %v4433 = vpop.permute.xlu0 %4432
    %4434 = vrot.lane.b32.xlu0 %v3624, 32
    %v4435 = vpop.permute.xlu0 %4434
    %4436 = vrot.lane.b32.xlu0 %v3625, 32
    %v4437 = vpop.permute.xlu0 %4436
    %4438 = vrot.lane.b32.xlu0 %v3626, 32
    %v4439 = vpop.permute.xlu0 %4438
    %v4441 = vsel %vm233, %v4433, 0
    %v4444 = vsel %vm233, %v4435, 0
    %v4447 = vsel %vm233, %v4437, 0
    %v4450 = vsel %vm233, %v4439, 0
    %4452 = vmatprep.subr.bf16.mxu0 0
    %4453 = vmatpush1.bf16.xpose.msra.mxu0 %v3539
    %4454 = vmatprep.subr.bf16.mxu0 0
    %4455 = vmatpush1.bf16.xpose.msra.mxu0 %v3542
    %4456 = vmatprep.subr.bf16.mxu0 0
    %4457 = vmatpush1.bf16.xpose.msra.mxu0 %v3545
    %4458 = vmatprep.subr.bf16.mxu0 0
    %4459 = vmatpush1.bf16.xpose.msra.mxu0 %v3548
    %4460 = vmatprep.subr.bf16.mxu0 0
    %4461 = vmatpush1.bf16.xpose.msra.mxu0 0
    %4462 = vmatprep.subr.bf16.mxu0 0
    %4463 = vmatpush1.bf16.xpose.msra.mxu0 0
    %4464 = vmatprep.subr.bf16.mxu0 0
    %4465 = vmatpush1.bf16.xpose.msra.mxu0 0
    %4466 = vmatprep.subr.bf16.mxu0 0
    %4467 = vmatpush1.bf16.xpose.msra.mxu0 0
    %4468 = vmatprep.subr.bf16.mxu0 0
    %4469 = vmatpush1.bf16.xpose.msra.mxu0 0
    %4470 = vmatprep.subr.bf16.mxu0 0
    %4471 = vmatpush1.bf16.xpose.msra.mxu0 0
    %4472 = vmatprep.subr.bf16.mxu0 0
    %4473 = vmatpush1.bf16.xpose.msra.mxu0 0
    %4474 = vmatprep.subr.bf16.mxu0 0
    %4475 = vmatpush1.bf16.xpose.msra.mxu0 0
    %4476 = vmatprep.subr.bf16.mxu0 0
    %4477 = vmatpush1.bf16.xpose.msra.mxu0 0
    %4478 = vmatprep.subr.bf16.mxu0 0
    %4479 = vmatpush1.bf16.xpose.msra.mxu0 0
    %4480 = vmatprep.subr.bf16.mxu0 0
    %4481 = vmatpush1.bf16.xpose.msra.mxu0 0
    %4482 = vmatprep.subr.bf16.mxu0 0
    %4483 = vmatpush1.bf16.xpose.msra.mxu0 0
    %4484 = vmatprep.mubr.bf16.mxu0 0
    %4485 = vmatmul.mubr.bf16.gmra.mrb[0].mxu0 %v4441
    %v4486 = vpop.f32.mrb[0].mxu0
    %v4487 = vadd.f32 %v1757, %v4486
    %v4488 = vpop.f32.mrb[0].mxu0
    %v4489 = vpop.f32.mrb[0].mxu0
    %v4490 = vadd.f32 %v1758, %v4489
    %v4491 = vpop.f32.mrb[0].mxu0
    %4492 = vmatprep.mubr.bf16.mxu0 0
    %4493 = vmatmul.mubr.bf16.gmra.mrb[0].mxu0 %v4444
    %v4494 = vpop.f32.mrb[0].mxu0
    %v4495 = vadd.f32 %v1759, %v4494
    %v4496 = vpop.f32.mrb[0].mxu0
    %v4497 = vpop.f32.mrb[0].mxu0
    %v4498 = vadd.f32 %v1760, %v4497
    %v4499 = vpop.f32.mrb[0].mxu0
    %4500 = vmatprep.mubr.bf16.mxu0 0
    %4501 = vmatmul.mubr.bf16.gmra.mrb[0].mxu0 %v4447
    %v4502 = vpop.f32.mrb[0].mxu0
    %v4503 = vadd.f32 %v1761, %v4502
    %v4504 = vpop.f32.mrb[0].mxu0
    %v4505 = vpop.f32.mrb[0].mxu0
    %v4506 = vadd.f32 %v1762, %v4505
    %v4507 = vpop.f32.mrb[0].mxu0
    %4508 = vmatprep.mubr.bf16.mxu0 0
    %4509 = vmatmul.mubr.bf16.gmra.mrb[0].mxu0 %v4450
    %v4510 = vpop.f32.mrb[0].mxu0
    %v4511 = vadd.f32 %v1763, %v4510
    %v4512 = vpop.f32.mrb[0].mxu0
    %v4513 = vpop.f32.mrb[0].mxu0
    %v4514 = vadd.f32 %v1764, %v4513
    %v4515 = vpop.f32.mrb[0].mxu0
    %4516 = vdwg.mxu0
    %v4517 = vsel %vm1959, %v4487, -inf
    %4518 = vmax.xlane.f32.xlu0 %v4517
    %v4519 = vpop.xlane.xlu0 %4518
    %v4520 = vsel %vm1959, %v4490, -inf
    %4521 = vmax.xlane.f32.xlu0 %v4520
    %v4522 = vpop.xlane.xlu0 %4521
    %v4523 = vsel %vm1959, %v4495, -inf
    %4524 = vmax.xlane.f32.xlu0 %v4523
    %v4525 = vpop.xlane.xlu0 %4524
    %v4526 = vsel %vm1959, %v4498, -inf
    %4527 = vmax.xlane.f32.xlu0 %v4526
    %v4528 = vpop.xlane.xlu0 %4527
    %v4529 = vsel %vm1959, %v4503, -inf
    %4530 = vmax.xlane.f32.xlu0 %v4529
    %v4531 = vpop.xlane.xlu0 %4530
    %v4532 = vsel %vm1959, %v4506, -inf
    %4533 = vmax.xlane.f32.xlu0 %v4532
    %v4534 = vpop.xlane.xlu0 %4533
    %v4535 = vsel %vm1959, %v4511, -inf
    %4536 = vmax.xlane.f32.xlu0 %v4535
    %v4537 = vpop.xlane.xlu0 %4536
    %v4538 = vsel %vm1981, %v4514, -inf
    %4539 = vmax.xlane.f32.xlu0 %v4538
    %v4540 = vpop.xlane.xlu0 %4539
    %v4541 = vsub.f32 %v4487, %v4519
    %v4542 = vsub.f32 %v4490, %v4522
    %v4543 = vsub.f32 %v4495, %v4525
    %v4544 = vsub.f32 %v4498, %v4528
    %v4545 = vsub.f32 %v4503, %v4531
    %v4546 = vsub.f32 %v4506, %v4534
    %v4547 = vsub.f32 %v4511, %v4537
    %v4548 = vsub.f32 %v4514, %v4540
    %v4549 = vmul.f32 %v4541, 1.442695
    %v4550 = vpow.pop %v4549
    %v4551 = vmul.f32 %v4542, 1.442695
    %v4552 = vpow.pop %v4551
    %v4553 = vmul.f32 %v4543, 1.442695
    %v4554 = vpow.pop %v4553
    %v4555 = vmul.f32 %v4544, 1.442695
    %v4556 = vpow.pop %v4555
    %v4557 = vmul.f32 %v4545, 1.442695
    %v4558 = vpow.pop %v4557
    %v4559 = vmul.f32 %v4546, 1.442695
    %v4560 = vpow.pop %v4559
    %v4561 = vmul.f32 %v4547, 1.442695
    %v4562 = vpow.pop %v4561
    %v4563 = vmul.f32 %v4548, 1.442695
    %v4564 = vpow.pop %v4563
    %v4565 = vsel %vm1959, %v4550, 0.0
    %4566 = vadd.xlane.f32.xlu0 %v4565
    %v4567 = vpop.xlane.xlu0 %4566
    %v4568 = vsel %vm1959, %v4552, 0.0
    %4569 = vadd.xlane.f32.xlu0 %v4568
    %v4570 = vpop.xlane.xlu0 %4569
    %v4571 = vsel %vm1959, %v4554, 0.0
    %4572 = vadd.xlane.f32.xlu0 %v4571
    %v4573 = vpop.xlane.xlu0 %4572
    %v4574 = vsel %vm1959, %v4556, 0.0
    %4575 = vadd.xlane.f32.xlu0 %v4574
    %v4576 = vpop.xlane.xlu0 %4575
    %v4577 = vsel %vm1959, %v4558, 0.0
    %4578 = vadd.xlane.f32.xlu0 %v4577
    %v4579 = vpop.xlane.xlu0 %4578
    %v4580 = vsel %vm1959, %v4560, 0.0
    %4581 = vadd.xlane.f32.xlu0 %v4580
    %v4582 = vpop.xlane.xlu0 %4581
    %v4583 = vsel %vm1959, %v4562, 0.0
    %4584 = vadd.xlane.f32.xlu0 %v4583
    %v4585 = vpop.xlane.xlu0 %4584
    %v4586 = vsel %vm1981, %v4564, 0.0
    %4587 = vadd.xlane.f32.xlu0 %v4586
    %v4588 = vpop.xlane.xlu0 %4587
    %v4589 = vrcp.pop %v4567
    %v4590 = vrcp.pop %v4570
    %v4591 = vrcp.pop %v4573
    %v4592 = vrcp.pop %v4576
    %v4593 = vrcp.pop %v4579
    %v4594 = vrcp.pop %v4582
    %v4595 = vrcp.pop %v4585
    %v4596 = vrcp.pop %v4588
    %v4597 = vmul.f32 %v4550, %v4589
    %v4598 = vmul.f32 %v4552, %v4590
    %v4599 = vmul.f32 %v4554, %v4591
    %v4600 = vmul.f32 %v4556, %v4592
    %v4601 = vmul.f32 %v4558, %v4593
    %v4602 = vmul.f32 %v4560, %v4594
    %v4603 = vmul.f32 %v4562, %v4595
    %v4604 = vmul.f32 %v4564, %v4596
    %v4605 = vpack.c.bf16 %v4598, %v4597
    %v4606 = vpack.c.bf16 %v4600, %v4599
    %v4607 = vpack.c.bf16 %v4602, %v4601
    %v4608 = vpack.c.bf16 %v4604, %v4603
    %4609 = vrot.lane.b32.xlu0 %v3796, 32
    %v4610 = vpop.permute.xlu0 %4609
    %4611 = vrot.lane.b32.xlu0 %v3797, 32
    %v4612 = vpop.permute.xlu0 %4611
    %4613 = vrot.lane.b32.xlu0 %v3798, 32
    %v4614 = vpop.permute.xlu0 %4613
    %4615 = vrot.lane.b32.xlu0 %v3799, 32
    %v4616 = vpop.permute.xlu0 %4615
    %v4621 = vsel %vm1959, %v4605, 0
    %v4624 = vsel %vm1959, %v4606, 0
    %v4627 = vsel %vm1959, %v4607, 0
    %v4630 = vsel %vm1959, %v4608, 0
    %v4633 = vsel %vm2265, %v4616, 0
    %4635 = vmatprep.subr.bf16.mxu0 0
    %4636 = vmatpush1.bf16.msra.mxu0 %v4610
    %4637 = vmatprep.subr.bf16.mxu0 0
    %4638 = vmatpush1.bf16.msra.mxu0 %v4612
    %4639 = vmatprep.subr.bf16.mxu0 0
    %4640 = vmatpush1.bf16.msra.mxu0 %v4614
    %4641 = vmatprep.subr.bf16.mxu0 0
    %4642 = vmatpush1.bf16.msra.mxu0 %v4633
    %4643 = vmatprep.subr.bf16.mxu0 0
    %4644 = vmatpush1.bf16.msra.mxu0 0
    %4645 = vmatprep.subr.bf16.mxu0 0
    %4646 = vmatpush1.bf16.msra.mxu0 0
    %4647 = vmatprep.subr.bf16.mxu0 0
    %4648 = vmatpush1.bf16.msra.mxu0 0
    %4649 = vmatprep.subr.bf16.mxu0 0
    %4650 = vmatpush1.bf16.msra.mxu0 0
    %4651 = vmatprep.subr.bf16.mxu0 0
    %4652 = vmatpush1.bf16.msra.mxu0 0
    %4653 = vmatprep.subr.bf16.mxu0 0
    %4654 = vmatpush1.bf16.msra.mxu0 0
    %4655 = vmatprep.subr.bf16.mxu0 0
    %4656 = vmatpush1.bf16.msra.mxu0 0
    %4657 = vmatprep.subr.bf16.mxu0 0
    %4658 = vmatpush1.bf16.msra.mxu0 0
    %4659 = vmatprep.subr.bf16.mxu0 0
    %4660 = vmatpush1.bf16.msra.mxu0 0
    %4661 = vmatprep.subr.bf16.mxu0 0
    %4662 = vmatpush1.bf16.msra.mxu0 0
    %4663 = vmatprep.subr.bf16.mxu0 0
    %4664 = vmatpush1.bf16.msra.mxu0 0
    %4665 = vmatprep.subr.bf16.mxu0 0
    %4666 = vmatpush1.bf16.msra.mxu0 0
    %4667 = vmatprep.mubr.bf16.mxu0 0
    %4668 = vmatmul.mubr.bf16.gmra.mrb[0].mxu0 %v4621
    %v4669 = vpop.f32.mrb[0].mxu0
    %v4670 = vadd.f32 0.0, %v4669
    %v4671 = vpop.f32.mrb[0].mxu0
    %v4672 = vpop.f32.mrb[0].mxu0
    %v4673 = vadd.f32 0.0, %v4672
    %v4674 = vpop.f32.mrb[0].mxu0
    %4675 = vmatprep.mubr.bf16.mxu0 0
    %4676 = vmatmul.mubr.bf16.gmra.mrb[0].mxu0 %v4624
    %v4677 = vpop.f32.mrb[0].mxu0
    %v4678 = vadd.f32 0.0, %v4677
    %v4679 = vpop.f32.mrb[0].mxu0
    %v4680 = vpop.f32.mrb[0].mxu0
    %v4681 = vadd.f32 0.0, %v4680
    %v4682 = vpop.f32.mrb[0].mxu0
    %4683 = vmatprep.mubr.bf16.mxu0 0
    %4684 = vmatmul.mubr.bf16.gmra.mrb[0].mxu0 %v4627
    %v4685 = vpop.f32.mrb[0].mxu0
    %v4686 = vadd.f32 0.0, %v4685
    %v4687 = vpop.f32.mrb[0].mxu0
    %v4688 = vpop.f32.mrb[0].mxu0
    %v4689 = vadd.f32 0.0, %v4688
    %v4690 = vpop.f32.mrb[0].mxu0
    %4691 = vmatprep.mubr.bf16.mxu0 0
    %4692 = vmatmul.mubr.bf16.gmra.mrb[0].mxu0 %v4630
    %v4693 = vpop.f32.mrb[0].mxu0
    %v4694 = vadd.f32 0.0, %v4693
    %v4695 = vpop.f32.mrb[0].mxu0
    %v4696 = vpop.f32.mrb[0].mxu0
    %v4697 = vadd.f32 0.0, %v4696
    %v4698 = vpop.f32.mrb[0].mxu0
    %4699 = vdwg.mxu0
    %v4700 = vadd.f32 %v4424, %v4670
    %v4701 = vadd.f32 %v4425, %v4673
    %v4702 = vadd.f32 %v4426, %v4678
    %v4703 = vadd.f32 %v4427, %v4681
    %v4704 = vadd.f32 %v4428, %v4686
    %v4705 = vadd.f32 %v4429, %v4689
    %v4706 = vadd.f32 %v4430, %v4694
    %v4707 = vadd.f32 %v4431, %v4697
    %v4708 = vlaneseq
    %v4709 = vshrl.u32 %v4708, 7
    %v4710 = vsub.s32 0, %v4709
    %v4711 = vrot.slane %v130, %v4710
    %v4712 = vadd.f32 %v4700, %v4711
    %v4713 = vadd.f32 %v4701, %v4711
    %v4714 = vadd.f32 %v4702, %v4711
    %v4715 = vadd.f32 %v4703, %v4711
    %v4716 = vadd.f32 %v4704, %v4711
    %v4717 = vadd.f32 %v4705, %v4711
    %v4718 = vadd.f32 %v4706, %v4711
    %v4719 = vadd.f32 %v4707, %v4711
    %v4720 = vadd.f32 %v4712, %v3501
    %v4721 = vadd.f32 %v4713, %v3502
    %v4722 = vadd.f32 %v4714, %v3503
    %v4723 = vadd.f32 %v4715, %v3504
    %v4724 = vadd.f32 %v4716, %v3505
    %v4725 = vadd.f32 %v4717, %v3506
    %v4726 = vadd.f32 %v4718, %v3507
    %v4727 = vadd.f32 %v4719, %v3508
    %v4728 = vsel %vm233, %v4720, 0.0
    %4729 = vadd.xlane.f32.xlu0 %v4728
    %v4730 = vpop.xlane.xlu0 %4729
    %v4731 = vsel %vm233, %v4721, 0.0
    %4732 = vadd.xlane.f32.xlu0 %v4731
    %v4733 = vpop.xlane.xlu0 %4732
    %v4734 = vsel %vm233, %v4722, 0.0
    %4735 = vadd.xlane.f32.xlu0 %v4734
    %v4736 = vpop.xlane.xlu0 %4735
    %v4737 = vsel %vm233, %v4723, 0.0
    %4738 = vadd.xlane.f32.xlu0 %v4737
    %v4739 = vpop.xlane.xlu0 %4738
    %v4740 = vsel %vm233, %v4724, 0.0
    %4741 = vadd.xlane.f32.xlu0 %v4740
    %v4742 = vpop.xlane.xlu0 %4741
    %v4743 = vsel %vm233, %v4725, 0.0
    %4744 = vadd.xlane.f32.xlu0 %v4743
    %v4745 = vpop.xlane.xlu0 %4744
    %v4746 = vsel %vm233, %v4726, 0.0
    %4747 = vadd.xlane.f32.xlu0 %v4746
    %v4748 = vpop.xlane.xlu0 %4747
    %v4749 = vsel %vm1648, %v4727, 0.0
    %4750 = vadd.xlane.f32.xlu0 %v4749
    %v4751 = vpop.xlane.xlu0 %4750
    %v4752 = vmul.f32 %v4730, %v1652
    %v4753 = vmul.f32 %v4733, %v1652
    %v4754 = vmul.f32 %v4736, %v1652
    %v4755 = vmul.f32 %v4739, %v1652
    %v4756 = vmul.f32 %v4742, %v1652
    %v4757 = vmul.f32 %v4745, %v1652
    %v4758 = vmul.f32 %v4748, %v1652
    %v4759 = vmul.f32 %v4751, %v1652
    %v4760 = vsub.f32 %v4720, %v4752
    %v4761 = vsub.f32 %v4721, %v4753
    %v4762 = vsub.f32 %v4722, %v4754
    %v4763 = vsub.f32 %v4723, %v4755
    %v4764 = vsub.f32 %v4724, %v4756
    %v4765 = vsub.f32 %v4725, %v4757
    %v4766 = vsub.f32 %v4726, %v4758
    %v4767 = vsub.f32 %v4727, %v4759
    %v4768 = vmul.f32 %v4760, %v4760
    %v4769 = vmul.f32 %v4761, %v4761
    %v4770 = vmul.f32 %v4762, %v4762
    %v4771 = vmul.f32 %v4763, %v4763
    %v4772 = vmul.f32 %v4764, %v4764
    %v4773 = vmul.f32 %v4765, %v4765
    %v4774 = vmul.f32 %v4766, %v4766
    %v4775 = vmul.f32 %v4767, %v4767
    %v4776 = vsel %vm233, %v4768, 0.0
    %4777 = vadd.xlane.f32.xlu0 %v4776
    %v4778 = vpop.xlane.xlu0 %4777
    %v4779 = vsel %vm233, %v4769, 0.0
    %4780 = vadd.xlane.f32.xlu0 %v4779
    %v4781 = vpop.xlane.xlu0 %4780
    %v4782 = vsel %vm233, %v4770, 0.0
    %4783 = vadd.xlane.f32.xlu0 %v4782
    %v4784 = vpop.xlane.xlu0 %4783
    %v4785 = vsel %vm233, %v4771, 0.0
    %4786 = vadd.xlane.f32.xlu0 %v4785
    %v4787 = vpop.xlane.xlu0 %4786
    %v4788 = vsel %vm233, %v4772, 0.0
    %4789 = vadd.xlane.f32.xlu0 %v4788
    %v4790 = vpop.xlane.xlu0 %4789
    %v4791 = vsel %vm233, %v4773, 0.0
    %4792 = vadd.xlane.f32.xlu0 %v4791
    %v4793 = vpop.xlane.xlu0 %4792
    %v4794 = vsel %vm233, %v4774, 0.0
    %4795 = vadd.xlane.f32.xlu0 %v4794
    %v4796 = vpop.xlane.xlu0 %4795
    %v4797 = vsel %vm1648, %v4775, 0.0
    %4798 = vadd.xlane.f32.xlu0 %v4797
    %v4799 = vpop.xlane.xlu0 %4798
    %v4800 = vmul.f32 %v4778, %v1652
    %v4801 = vmul.f32 %v4781, %v1652
    %v4802 = vmul.f32 %v4784, %v1652
    %v4803 = vmul.f32 %v4787, %v1652
    %v4804 = vmul.f32 %v4790, %v1652
    %v4805 = vmul.f32 %v4793, %v1652
    %v4806 = vmul.f32 %v4796, %v1652
    %v4807 = vmul.f32 %v4799, %v1652
    %v4808 = vadd.f32 %v4800, 1e-06
    %v4809 = vadd.f32 %v4801, 1e-06
    %v4810 = vadd.f32 %v4802, 1e-06
    %v4811 = vadd.f32 %v4803, 1e-06
    %v4812 = vadd.f32 %v4804, 1e-06
    %v4813 = vadd.f32 %v4805, 1e-06
    %v4814 = vadd.f32 %v4806, 1e-06
    %v4815 = vadd.f32 %v4807, 1e-06
    %v4816 = vrsqrt.pop %v4808
    %v4817 = vrsqrt.pop %v4809
    %v4818 = vrsqrt.pop %v4810
    %v4819 = vrsqrt.pop %v4811
    %v4820 = vrsqrt.pop %v4812
    %v4821 = vrsqrt.pop %v4813
    %v4822 = vrsqrt.pop %v4814
    %v4823 = vrsqrt.pop %v4815
    %v4824 = vmul.f32 %v4760, %v4816
    %v4825 = vmul.f32 %v4761, %v4817
    %v4826 = vmul.f32 %v4762, %v4818
    %v4827 = vmul.f32 %v4763, %v4819
    %v4828 = vmul.f32 %v4764, %v4820
    %v4829 = vmul.f32 %v4765, %v4821
    %v4830 = vmul.f32 %v4766, %v4822
    %v4831 = vmul.f32 %v4767, %v4823
    %v4832 = vlaneseq
    %v4833 = vshrl.u32 %v4832, 7
    %v4834 = vsub.s32 2, %v4833
    %v4835 = vrot.slane %v130, %v4834
    %v4836 = vmul.f32 %v4824, %v4835
    %v4837 = vmul.f32 %v4825, %v4835
    %v4838 = vmul.f32 %v4826, %v4835
    %v4839 = vmul.f32 %v4827, %v4835
    %v4840 = vmul.f32 %v4828, %v4835
    %v4841 = vmul.f32 %v4829, %v4835
    %v4842 = vmul.f32 %v4830, %v4835
    %v4843 = vmul.f32 %v4831, %v4835
    %v4844 = vlaneseq
    %v4845 = vshrl.u32 %v4844, 7
    %v4846 = vsub.s32 4, %v4845
    %v4847 = vrot.slane %v130, %v4846
    %v4848 = vadd.f32 %v4836, %v4847
    %v4849 = vadd.f32 %v4837, %v4847
    %v4850 = vadd.f32 %v4838, %v4847
    %v4851 = vadd.f32 %v4839, %v4847
    %v4852 = vadd.f32 %v4840, %v4847
    %v4853 = vadd.f32 %v4841, %v4847
    %v4854 = vadd.f32 %v4842, %v4847
    %v4855 = vadd.f32 %v4843, %v4847
    %s4856 = scalar_lea.vmem [#allocation9], 16
    %v4857 = vld [vmem:[%s4856] sm:$0xf]
    %v4858 = vld [vmem:[%s4856 + $0x4] sm:$0xf]
    %v4859 = vld [vmem:[%s4856 + $0x8] sm:$0xf]
    %v4860 = vld [vmem:[%s4856 + $0xc] sm:$0xf]
    %v4861 = vpack.c.bf16 %v4849, %v4848
    %v4862 = vpack.c.bf16 %v4851, %v4850
    %v4863 = vpack.c.bf16 %v4853, %v4852
    %v4864 = vpack.c.bf16 %v4855, %v4854
    %v4865 = vlaneseq
    %v4866 = vshrl.u32 %v4865, 7
    %v4867 = vsub.s32 6, %v4866
    %v4868 = vrot.slane %v130, %v4867
    %v4873 = vunpack.c.l.b16 %v4857
    %v4874 = vunpack.c.l.b16 %v4858
    %v4875 = vunpack.c.l.b16 %v4859
    %v4876 = vunpack.c.l.b16 %v4860
    %v4877 = vpack.c.b16 %v4874, %v4873
    %v4878 = vpack.c.b16 %v4876, %v4875
    %v4882 = vsel %vm233, %v4861, 0
    %v4885 = vsel %vm233, %v4862, 0
    %v4888 = vsel %vm233, %v4863, 0
    %v4891 = vsel %vm233, %v4864, 0
    %4893 = vmatprep.subr.bf16.mxu0 0
    %4894 = vmatpush1.bf16.msra.mxu0 %v4877
    %4895 = vmatprep.subr.bf16.mxu0 0
    %4896 = vmatpush1.bf16.msra.mxu0 %v4878
    %4897 = vmatprep.subr.bf16.mxu0 0
    %4898 = vmatpush1.bf16.msra.mxu0 0
    %4899 = vmatprep.subr.bf16.mxu0 0
    %4900 = vmatpush1.bf16.msra.mxu0 0
    %4901 = vmatprep.subr.bf16.mxu0 0
    %4902 = vmatpush1.bf16.msra.mxu0 0
    %4903 = vmatprep.subr.bf16.mxu0 0
    %4904 = vmatpush1.bf16.msra.mxu0 0
    %4905 = vmatprep.subr.bf16.mxu0 0
    %4906 = vmatpush1.bf16.msra.mxu0 0
    %4907 = vmatprep.subr.bf16.mxu0 0
    %4908 = vmatpush1.bf16.msra.mxu0 0
    %4909 = vmatprep.subr.bf16.mxu0 0
    %4910 = vmatpush1.bf16.msra.mxu0 0
    %4911 = vmatprep.subr.bf16.mxu0 0
    %4912 = vmatpush1.bf16.msra.mxu0 0
    %4913 = vmatprep.subr.bf16.mxu0 0
    %4914 = vmatpush1.bf16.msra.mxu0 0
    %4915 = vmatprep.subr.bf16.mxu0 0
    %4916 = vmatpush1.bf16.msra.mxu0 0
    %4917 = vmatprep.subr.bf16.mxu0 0
    %4918 = vmatpush1.bf16.msra.mxu0 0
    %4919 = vmatprep.subr.bf16.mxu0 0
    %4920 = vmatpush1.bf16.msra.mxu0 0
    %4921 = vmatprep.subr.bf16.mxu0 0
    %4922 = vmatpush1.bf16.msra.mxu0 0
    %4923 = vmatprep.subr.bf16.mxu0 0
    %4924 = vmatpush1.bf16.msra.mxu0 0
    %4925 = vmatprep.mubr.bf16.mxu0 0
    %4926 = vmatmul.mubr.bf16.gmra.mrb[0].mxu0 %v4882
    %v4927 = vpop.f32.mrb[0].mxu0
    %v4928 = vadd.f32 %v4868, %v4927
    %v4929 = vpop.f32.mrb[0].mxu0
    %v4930 = vpop.f32.mrb[0].mxu0
    %v4931 = vadd.f32 %v4868, %v4930
    %v4932 = vpop.f32.mrb[0].mxu0
    %4933 = vmatprep.mubr.bf16.mxu0 0
    %4934 = vmatmul.mubr.bf16.gmra.mrb[0].mxu0 %v4885
    %v4935 = vpop.f32.mrb[0].mxu0
    %v4936 = vadd.f32 %v4868, %v4935
    %v4937 = vpop.f32.mrb[0].mxu0
    %v4938 = vpop.f32.mrb[0].mxu0
    %v4939 = vadd.f32 %v4868, %v4938
    %v4940 = vpop.f32.mrb[0].mxu0
    %4941 = vmatprep.mubr.bf16.mxu0 0
    %4942 = vmatmul.mubr.bf16.gmra.mrb[0].mxu0 %v4888
    %v4943 = vpop.f32.mrb[0].mxu0
    %v4944 = vadd.f32 %v4868, %v4943
    %v4945 = vpop.f32.mrb[0].mxu0
    %v4946 = vpop.f32.mrb[0].mxu0
    %v4947 = vadd.f32 %v4868, %v4946
    %v4948 = vpop.f32.mrb[0].mxu0
    %4949 = vmatprep.mubr.bf16.mxu0 0
    %4950 = vmatmul.mubr.bf16.gmra.mrb[0].mxu0 %v4891
    %v4951 = vpop.f32.mrb[0].mxu0
    %v4952 = vadd.f32 %v4868, %v4951
    %v4953 = vpop.f32.mrb[0].mxu0
    %v4954 = vpop.f32.mrb[0].mxu0
    %v4955 = vadd.f32 %v4868, %v4954
    %v4956 = vpop.f32.mrb[0].mxu0
    %4957 = vdwg.mxu0
    %v4958 = vmul.f32 %v4928, 0.5
    %v4959 = vmul.f32 %v4931, 0.5
    %v4960 = vmul.f32 %v4936, 0.5
    %v4961 = vmul.f32 %v4939, 0.5
    %v4962 = vmul.f32 %v4944, 0.5
    %v4963 = vmul.f32 %v4947, 0.5
    %v4964 = vmul.f32 %v4952, 0.5
    %v4965 = vmul.f32 %v4955, 0.5
    %v4966 = vmul.f32 %v4928, 0.70710677
    %v4967 = vmul.f32 %v4931, 0.70710677
    %v4968 = vmul.f32 %v4936, 0.70710677
    %v4969 = vmul.f32 %v4939, 0.70710677
    %v4970 = vmul.f32 %v4944, 0.70710677
    %v4971 = vmul.f32 %v4947, 0.70710677
    %v4972 = vmul.f32 %v4952, 0.70710677
    %v4973 = vmul.f32 %v4955, 0.70710677
    %v4974 = verf.f32.pop %v4966
    %v4975 = verf.f32.pop %v4967
    %v4976 = verf.f32.pop %v4968
    %v4977 = verf.f32.pop %v4969
    %v4978 = verf.f32.pop %v4970
    %v4979 = verf.f32.pop %v4971
    %v4980 = verf.f32.pop %v4972
    %v4981 = verf.f32.pop %v4973
    %v4982 = vadd.f32 %v4974, 1.0
    %v4983 = vadd.f32 %v4975, 1.0
    %v4984 = vadd.f32 %v4976, 1.0
    %v4985 = vadd.f32 %v4977, 1.0
    %v4986 = vadd.f32 %v4978, 1.0
    %v4987 = vadd.f32 %v4979, 1.0
    %v4988 = vadd.f32 %v4980, 1.0
    %v4989 = vadd.f32 %v4981, 1.0
    %v4990 = vmul.f32 %v4958, %v4982
    %v4991 = vmul.f32 %v4959, %v4983
    %v4992 = vmul.f32 %v4960, %v4984
    %v4993 = vmul.f32 %v4961, %v4985
    %v4994 = vmul.f32 %v4962, %v4986
    %v4995 = vmul.f32 %v4963, %v4987
    %v4996 = vmul.f32 %v4964, %v4988
    %v4997 = vmul.f32 %v4965, %v4989
    %s4998 = scalar_lea.vmem %s11, 32
    %v4999 = vld [vmem:[%s4998] sm:$0xf]
    %v5000 = vld [vmem:[%s4998 + $0x4] sm:$0xf]
    %v5001 = vld [vmem:[%s4998 + $0x8] sm:$0xf]
    %v5002 = vld [vmem:[%s4998 + $0xc] sm:$0xf]
    %v5003 = vld [vmem:[%s4998 + $0x10] sm:$0xf]
    %v5004 = vld [vmem:[%s4998 + $0x14] sm:$0xf]
    %v5005 = vld [vmem:[%s4998 + $0x18] sm:$0xf]
    %v5006 = vld [vmem:[%s4998 + $0x1c] sm:$0xf]
    %v5007 = vpack.c.bf16 %v4991, %v4990
    %v5008 = vpack.c.bf16 %v4993, %v4992
    %v5009 = vpack.c.bf16 %v4995, %v4994
    %v5010 = vpack.c.bf16 %v4997, %v4996
    %v5011 = vlaneseq
    %v5012 = vshrl.u32 %v5011, 7
    %v5013 = vsub.s32 0, %v5012
    %v5014 = vrot.slane %v131, %v5013
    %v5023 = vunpack.c.l.b16 %v4999
    %v5024 = vunpack.c.l.b16 %v5000
    %v5025 = vunpack.c.l.b16 %v5001
    %v5026 = vunpack.c.l.b16 %v5002
    %v5027 = vunpack.c.l.b16 %v5003
    %v5028 = vunpack.c.l.b16 %v5004
    %v5029 = vunpack.c.l.b16 %v5005
    %v5030 = vunpack.c.l.b16 %v5006
    %v5031 = vpack.c.b16 %v5024, %v5023
    %v5032 = vpack.c.b16 %v5026, %v5025
    %v5033 = vpack.c.b16 %v5028, %v5027
    %v5034 = vpack.c.b16 %v5030, %v5029
    %v5040 = vsel %vm3295, %v5007, 0
    %v5043 = vsel %vm3295, %v5008, 0
    %v5046 = vsel %vm3295, %v5009, 0
    %v5049 = vsel %vm3295, %v5010, 0
    %5051 = vmatprep.subr.bf16.mxu0 0
    %5052 = vmatpush1.bf16.msra.mxu0 %v5031
    %5053 = vmatprep.subr.bf16.mxu0 0
    %5054 = vmatpush1.bf16.msra.mxu0 %v5032
    %5055 = vmatprep.subr.bf16.mxu0 0
    %5056 = vmatpush1.bf16.msra.mxu0 %v5033
    %5057 = vmatprep.subr.bf16.mxu0 0
    %5058 = vmatpush1.bf16.msra.mxu0 %v5034
    %5059 = vmatprep.subr.bf16.mxu0 0
    %5060 = vmatpush1.bf16.msra.mxu0 0
    %5061 = vmatprep.subr.bf16.mxu0 0
    %5062 = vmatpush1.bf16.msra.mxu0 0
    %5063 = vmatprep.subr.bf16.mxu0 0
    %5064 = vmatpush1.bf16.msra.mxu0 0
    %5065 = vmatprep.subr.bf16.mxu0 0
    %5066 = vmatpush1.bf16.msra.mxu0 0
    %5067 = vmatprep.subr.bf16.mxu0 0
    %5068 = vmatpush1.bf16.msra.mxu0 0
    %5069 = vmatprep.subr.bf16.mxu0 0
    %5070 = vmatpush1.bf16.msra.mxu0 0
    %5071 = vmatprep.subr.bf16.mxu0 0
    %5072 = vmatpush1.bf16.msra.mxu0 0
    %5073 = vmatprep.subr.bf16.mxu0 0
    %5074 = vmatpush1.bf16.msra.mxu0 0
    %5075 = vmatprep.subr.bf16.mxu0 0
    %5076 = vmatpush1.bf16.msra.mxu0 0
    %5077 = vmatprep.subr.bf16.mxu0 0
    %5078 = vmatpush1.bf16.msra.mxu0 0
    %5079 = vmatprep.subr.bf16.mxu0 0
    %5080 = vmatpush1.bf16.msra.mxu0 0
    %5081 = vmatprep.subr.bf16.mxu0 0
    %5082 = vmatpush1.bf16.msra.mxu0 0
    %5083 = vmatprep.mubr.bf16.mxu0 0
    %5084 = vmatmul.mubr.bf16.gmra.mrb[0].mxu0 %v5040
    %v5085 = vpop.f32.mrb[0].mxu0
    %v5086 = vadd.f32 %v5014, %v5085
    %v5087 = vpop.f32.mrb[0].mxu0
    %v5088 = vpop.f32.mrb[0].mxu0
    %v5089 = vadd.f32 %v5014, %v5088
    %v5090 = vpop.f32.mrb[0].mxu0
    %5091 = vmatprep.mubr.bf16.mxu0 0
    %5092 = vmatmul.mubr.bf16.gmra.mrb[0].mxu0 %v5043
    %v5093 = vpop.f32.mrb[0].mxu0
    %v5094 = vadd.f32 %v5014, %v5093
    %v5095 = vpop.f32.mrb[0].mxu0
    %v5096 = vpop.f32.mrb[0].mxu0
    %v5097 = vadd.f32 %v5014, %v5096
    %v5098 = vpop.f32.mrb[0].mxu0
    %5099 = vmatprep.mubr.bf16.mxu0 0
    %5100 = vmatmul.mubr.bf16.gmra.mrb[0].mxu0 %v5046
    %v5101 = vpop.f32.mrb[0].mxu0
    %v5102 = vadd.f32 %v5014, %v5101
    %v5103 = vpop.f32.mrb[0].mxu0
    %v5104 = vpop.f32.mrb[0].mxu0
    %v5105 = vadd.f32 %v5014, %v5104
    %v5106 = vpop.f32.mrb[0].mxu0
    %5107 = vmatprep.mubr.bf16.mxu0 0
    %5108 = vmatmul.mubr.bf16.gmra.mrb[0].mxu0 %v5049
    %v5109 = vpop.f32.mrb[0].mxu0
    %v5110 = vadd.f32 %v5014, %v5109
    %v5111 = vpop.f32.mrb[0].mxu0
    %v5112 = vpop.f32.mrb[0].mxu0
    %v5113 = vadd.f32 %v5014, %v5112
    %v5114 = vpop.f32.mrb[0].mxu0
    %5115 = vdwg.mxu0
    %v5116 = vadd.f32 %v5086, %v4848
    %v5117 = vadd.f32 %v5089, %v4849
    %v5118 = vadd.f32 %v5094, %v4850
    %v5119 = vadd.f32 %v5097, %v4851
    %v5120 = vadd.f32 %v5102, %v4852
    %v5121 = vadd.f32 %v5105, %v4853
    %v5122 = vadd.f32 %v5110, %v4854
    %v5123 = vadd.f32 %v5113, %v4855
    %v5124 = vsel %vm233, %v5116, 0.0
    %5125 = vadd.xlane.f32.xlu0 %v5124
    %v5126 = vpop.xlane.xlu0 %5125
    %v5127 = vsel %vm233, %v5117, 0.0
    %5128 = vadd.xlane.f32.xlu0 %v5127
    %v5129 = vpop.xlane.xlu0 %5128
    %v5130 = vsel %vm233, %v5118, 0.0
    %5131 = vadd.xlane.f32.xlu0 %v5130
    %v5132 = vpop.xlane.xlu0 %5131
    %v5133 = vsel %vm233, %v5119, 0.0
    %5134 = vadd.xlane.f32.xlu0 %v5133
    %v5135 = vpop.xlane.xlu0 %5134
    %v5136 = vsel %vm233, %v5120, 0.0
    %5137 = vadd.xlane.f32.xlu0 %v5136
    %v5138 = vpop.xlane.xlu0 %5137
    %v5139 = vsel %vm233, %v5121, 0.0
    %5140 = vadd.xlane.f32.xlu0 %v5139
    %v5141 = vpop.xlane.xlu0 %5140
    %v5142 = vsel %vm233, %v5122, 0.0
    %5143 = vadd.xlane.f32.xlu0 %v5142
    %v5144 = vpop.xlane.xlu0 %5143
    %v5145 = vsel %vm1648, %v5123, 0.0
    %5146 = vadd.xlane.f32.xlu0 %v5145
    %v5147 = vpop.xlane.xlu0 %5146
    %v5148 = vmul.f32 %v5126, %v1652
    %v5149 = vmul.f32 %v5129, %v1652
    %v5150 = vmul.f32 %v5132, %v1652
    %v5151 = vmul.f32 %v5135, %v1652
    %v5152 = vmul.f32 %v5138, %v1652
    %v5153 = vmul.f32 %v5141, %v1652
    %v5154 = vmul.f32 %v5144, %v1652
    %v5155 = vmul.f32 %v5147, %v1652
    %v5156 = vsub.f32 %v5116, %v5148
    %v5157 = vsub.f32 %v5117, %v5149
    %v5158 = vsub.f32 %v5118, %v5150
    %v5159 = vsub.f32 %v5119, %v5151
    %v5160 = vsub.f32 %v5120, %v5152
    %v5161 = vsub.f32 %v5121, %v5153
    %v5162 = vsub.f32 %v5122, %v5154
    %v5163 = vsub.f32 %v5123, %v5155
    %v5164 = vmul.f32 %v5156, %v5156
    %v5165 = vmul.f32 %v5157, %v5157
    %v5166 = vmul.f32 %v5158, %v5158
    %v5167 = vmul.f32 %v5159, %v5159
    %v5168 = vmul.f32 %v5160, %v5160
    %v5169 = vmul.f32 %v5161, %v5161
    %v5170 = vmul.f32 %v5162, %v5162
    %v5171 = vmul.f32 %v5163, %v5163
    %v5172 = vsel %vm233, %v5164, 0.0
    %5173 = vadd.xlane.f32.xlu0 %v5172
    %v5174 = vpop.xlane.xlu0 %5173
    %v5175 = vsel %vm233, %v5165, 0.0
    %5176 = vadd.xlane.f32.xlu0 %v5175
    %v5177 = vpop.xlane.xlu0 %5176
    %v5178 = vsel %vm233, %v5166, 0.0
    %5179 = vadd.xlane.f32.xlu0 %v5178
    %v5180 = vpop.xlane.xlu0 %5179
    %v5181 = vsel %vm233, %v5167, 0.0
    %5182 = vadd.xlane.f32.xlu0 %v5181
    %v5183 = vpop.xlane.xlu0 %5182
    %v5184 = vsel %vm233, %v5168, 0.0
    %5185 = vadd.xlane.f32.xlu0 %v5184
    %v5186 = vpop.xlane.xlu0 %5185
    %v5187 = vsel %vm233, %v5169, 0.0
    %5188 = vadd.xlane.f32.xlu0 %v5187
    %v5189 = vpop.xlane.xlu0 %5188
    %v5190 = vsel %vm233, %v5170, 0.0
    %5191 = vadd.xlane.f32.xlu0 %v5190
    %v5192 = vpop.xlane.xlu0 %5191
    %v5193 = vsel %vm1648, %v5171, 0.0
    %5194 = vadd.xlane.f32.xlu0 %v5193
    %v5195 = vpop.xlane.xlu0 %5194
    %v5196 = vmul.f32 %v5174, %v1652
    %v5197 = vmul.f32 %v5177, %v1652
    %v5198 = vmul.f32 %v5180, %v1652
    %v5199 = vmul.f32 %v5183, %v1652
    %v5200 = vmul.f32 %v5186, %v1652
    %v5201 = vmul.f32 %v5189, %v1652
    %v5202 = vmul.f32 %v5192, %v1652
    %v5203 = vmul.f32 %v5195, %v1652
    %v5204 = vadd.f32 %v5196, 1e-06
    %v5205 = vadd.f32 %v5197, 1e-06
    %v5206 = vadd.f32 %v5198, 1e-06
    %v5207 = vadd.f32 %v5199, 1e-06
    %v5208 = vadd.f32 %v5200, 1e-06
    %v5209 = vadd.f32 %v5201, 1e-06
    %v5210 = vadd.f32 %v5202, 1e-06
    %v5211 = vadd.f32 %v5203, 1e-06
    %v5212 = vrsqrt.pop %v5204
    %v5213 = vrsqrt.pop %v5205
    %v5214 = vrsqrt.pop %v5206
    %v5215 = vrsqrt.pop %v5207
    %v5216 = vrsqrt.pop %v5208
    %v5217 = vrsqrt.pop %v5209
    %v5218 = vrsqrt.pop %v5210
    %v5219 = vrsqrt.pop %v5211
    %v5220 = vmul.f32 %v5156, %v5212
    %v5221 = vmul.f32 %v5157, %v5213
    %v5222 = vmul.f32 %v5158, %v5214
    %v5223 = vmul.f32 %v5159, %v5215
    %v5224 = vmul.f32 %v5160, %v5216
    %v5225 = vmul.f32 %v5161, %v5217
    %v5226 = vmul.f32 %v5162, %v5218
    %v5227 = vmul.f32 %v5163, %v5219
    %v5228 = vlaneseq
    %v5229 = vshrl.u32 %v5228, 7
    %v5230 = vsub.s32 2, %v5229
    %v5231 = vrot.slane %v131, %v5230
    %v5232 = vmul.f32 %v5220, %v5231
    %v5233 = vmul.f32 %v5221, %v5231
    %v5234 = vmul.f32 %v5222, %v5231
    %v5235 = vmul.f32 %v5223, %v5231
    %v5236 = vmul.f32 %v5224, %v5231
    %v5237 = vmul.f32 %v5225, %v5231
    %v5238 = vmul.f32 %v5226, %v5231
    %v5239 = vmul.f32 %v5227, %v5231
    %v5240 = vlaneseq
    %v5241 = vshrl.u32 %v5240, 7
    %v5242 = vsub.s32 4, %v5241
    %v5243 = vrot.slane %v131, %v5242
    %v5244 = vadd.f32 %v5232, %v5243
    %v5245 = vadd.f32 %v5233, %v5243
    %v5246 = vadd.f32 %v5234, %v5243
    %v5247 = vadd.f32 %v5235, %v5243
    %v5248 = vadd.f32 %v5236, %v5243
    %v5249 = vadd.f32 %v5237, %v5243
    %v5250 = vadd.f32 %v5238, %v5243
    %v5251 = vadd.f32 %v5239, %v5243
    %v5252 = vld [vmem:[%s12] sm:$0xf]
    %v5253 = vld [vmem:[%s12 + $0x4] sm:$0xf]
    %v5254 = vld [vmem:[%s12 + $0x8] sm:$0xf]
    %v5255 = vld [vmem:[%s12 + $0xc] sm:$0xf]
    %v5256 = vpack.c.bf16 %v5245, %v5244
    %v5257 = vpack.c.bf16 %v5247, %v5246
    %v5258 = vpack.c.bf16 %v5249, %v5248
    %v5259 = vpack.c.bf16 %v5251, %v5250
    %v5264 = vunpack.c.l.b16 %v5252
    %v5265 = vunpack.c.l.b16 %v5253
    %v5266 = vunpack.c.l.b16 %v5254
    %v5267 = vunpack.c.l.b16 %v5255
    %v5268 = vpack.c.b16 %v5265, %v5264
    %v5269 = vpack.c.b16 %v5267, %v5266
    %v5271 = vsel %vm1959, %v5268, 0
    %v5274 = vsel %vm1959, %v5269, 0
    %v5277 = vsel %vm2265, %v5259, 0
    %5279 = vmatprep.subr.bf16.mxu0 0
    %5280 = vmatpush1.bf16.msra.mxu0 %v5256
    %5281 = vmatprep.subr.bf16.mxu0 0
    %5282 = vmatpush1.bf16.msra.mxu0 %v5257
    %5283 = vmatprep.subr.bf16.mxu0 0
    %5284 = vmatpush1.bf16.msra.mxu0 %v5258
    %5285 = vmatprep.subr.bf16.mxu0 0
    %5286 = vmatpush1.bf16.msra.mxu0 %v5277
    %5287 = vmatprep.subr.bf16.mxu0 0
    %5288 = vmatpush1.bf16.msra.mxu0 0
    %5289 = vmatprep.subr.bf16.mxu0 0
    %5290 = vmatpush1.bf16.msra.mxu0 0
    %5291 = vmatprep.subr.bf16.mxu0 0
    %5292 = vmatpush1.bf16.msra.mxu0 0
    %5293 = vmatprep.subr.bf16.mxu0 0
    %5294 = vmatpush1.bf16.msra.mxu0 0
    %5295 = vmatprep.subr.bf16.mxu0 0
    %5296 = vmatpush1.bf16.msra.mxu0 0
    %5297 = vmatprep.subr.bf16.mxu0 0
    %5298 = vmatpush1.bf16.msra.mxu0 0
    %5299 = vmatprep.subr.bf16.mxu0 0
    %5300 = vmatpush1.bf16.msra.mxu0 0
    %5301 = vmatprep.subr.bf16.mxu0 0
    %5302 = vmatpush1.bf16.msra.mxu0 0
    %5303 = vmatprep.subr.bf16.mxu0 0
    %5304 = vmatpush1.bf16.msra.mxu0 0
    %5305 = vmatprep.subr.bf16.mxu0 0
    %5306 = vmatpush1.bf16.msra.mxu0 0
    %5307 = vmatprep.subr.bf16.mxu0 0
    %5308 = vmatpush1.bf16.msra.mxu0 0
    %5309 = vmatprep.subr.bf16.mxu0 0
    %5310 = vmatpush1.bf16.msra.mxu0 0
    %5311 = vmatprep.mubr.bf16.mxu0 0
    %5312 = vmatmul.mubr.bf16.gmra.mrb[0].mxu0 %v5271
    %v5313 = vpop.f32.mrb[0].mxu0
    %v5314 = vadd.f32 0.0, %v5313
    %v5315 = vpop.f32.mrb[0].mxu0
    %v5316 = vpop.f32.mrb[0].mxu0
    %v5317 = vadd.f32 0.0, %v5316
    %v5318 = vpop.f32.mrb[0].mxu0
    %5319 = vmatprep.mubr.bf16.mxu0 0
    %5320 = vmatmul.mubr.bf16.gmra.mrb[0].mxu0 %v5274
    %v5321 = vpop.f32.mrb[0].mxu0
    %v5322 = vadd.f32 0.0, %v5321
    %v5323 = vpop.f32.mrb[0].mxu0
    %v5324 = vpop.f32.mrb[0].mxu0
    %v5325 = vadd.f32 0.0, %v5324
    %v5326 = vpop.f32.mrb[0].mxu0
    %5327 = vdwg.mxu0
    %v5328 = vld [vmem:[%s13] sm:$0xf]
    %v5329 = vld [vmem:[%s13 + $0x4] sm:$0xf]
    %v5330 = vld [vmem:[%s13 + $0x8] sm:$0xf]
    %v5331 = vld [vmem:[%s13 + $0xc] sm:$0xf]
    %v5332 = vpack.c.bf16 %v5317, %v5314
    %v5333 = vpack.c.bf16 %v5325, %v5322
    %s5334 = scalar_lea.vmem %s12, 16
    %v5335 = vld [vmem:[%s5334] sm:$0xf]
    %v5336 = vld [vmem:[%s5334 + $0x4] sm:$0xf]
    %v5337 = vld [vmem:[%s5334 + $0x8] sm:$0xf]
    %v5338 = vld [vmem:[%s5334 + $0xc] sm:$0xf]
    %v5343 = vunpack.c.l.b16 %v5335
    %v5344 = vunpack.c.l.b16 %v5336
    %v5345 = vunpack.c.l.b16 %v5337
    %v5346 = vunpack.c.l.b16 %v5338
    %v5347 = vpack.c.b16 %v5344, %v5343
    %v5348 = vpack.c.b16 %v5346, %v5345
    %v5350 = vsel %vm1959, %v5347, 0
    %v5353 = vsel %vm1959, %v5348, 0
    %5355 = vmatprep.subr.bf16.mxu0 0
    %5356 = vmatpush1.bf16.msra.mxu0 %v5256
    %5357 = vmatprep.subr.bf16.mxu0 0
    %5358 = vmatpush1.bf16.msra.mxu0 %v5257
    %5359 = vmatprep.subr.bf16.mxu0 0
    %5360 = vmatpush1.bf16.msra.mxu0 %v5258
    %5361 = vmatprep.subr.bf16.mxu0 0
    %5362 = vmatpush1.bf16.msra.mxu0 %v5277
    %5363 = vmatprep.subr.bf16.mxu0 0
    %5364 = vmatpush1.bf16.msra.mxu0 0
    %5365 = vmatprep.subr.bf16.mxu0 0
    %5366 = vmatpush1.bf16.msra.mxu0 0
    %5367 = vmatprep.subr.bf16.mxu0 0
    %5368 = vmatpush1.bf16.msra.mxu0 0
    %5369 = vmatprep.subr.bf16.mxu0 0
    %5370 = vmatpush1.bf16.msra.mxu0 0
    %5371 = vmatprep.subr.bf16.mxu0 0
    %5372 = vmatpush1.bf16.msra.mxu0 0
    %5373 = vmatprep.subr.bf16.mxu0 0
    %5374 = vmatpush1.bf16.msra.mxu0 0
    %5375 = vmatprep.subr.bf16.mxu0 0
    %5376 = vmatpush1.bf16.msra.mxu0 0
    %5377 = vmatprep.subr.bf16.mxu0 0
    %5378 = vmatpush1.bf16.msra.mxu0 0
    %5379 = vmatprep.subr.bf16.mxu0 0
    %5380 = vmatpush1.bf16.msra.mxu0 0
    %5381 = vmatprep.subr.bf16.mxu0 0
    %5382 = vmatpush1.bf16.msra.mxu0 0
    %5383 = vmatprep.subr.bf16.mxu0 0
    %5384 = vmatpush1.bf16.msra.mxu0 0
    %5385 = vmatprep.subr.bf16.mxu0 0
    %5386 = vmatpush1.bf16.msra.mxu0 0
    %5387 = vmatprep.mubr.bf16.mxu0 0
    %5388 = vmatmul.mubr.bf16.gmra.mrb[0].mxu0 %v5350
    %v5389 = vpop.f32.mrb[0].mxu0
    %v5390 = vadd.f32 0.0, %v5389
    %v5391 = vpop.f32.mrb[0].mxu0
    %v5392 = vpop.f32.mrb[0].mxu0
    %v5393 = vadd.f32 0.0, %v5392
    %v5394 = vpop.f32.mrb[0].mxu0
    %5395 = vmatprep.mubr.bf16.mxu0 0
    %5396 = vmatmul.mubr.bf16.gmra.mrb[0].mxu0 %v5353
    %v5397 = vpop.f32.mrb[0].mxu0
    %v5398 = vadd.f32 0.0, %v5397
    %v5399 = vpop.f32.mrb[0].mxu0
    %v5400 = vpop.f32.mrb[0].mxu0
    %v5401 = vadd.f32 0.0, %v5400
    %v5402 = vpop.f32.mrb[0].mxu0
    %5403 = vdwg.mxu0
    %s5404 = scalar_lea.vmem %s13, 16
    %v5405 = vld [vmem:[%s5404] sm:$0xf]
    %v5406 = vld [vmem:[%s5404 + $0x4] sm:$0xf]
    %v5407 = vld [vmem:[%s5404 + $0x8] sm:$0xf]
    %v5408 = vld [vmem:[%s5404 + $0xc] sm:$0xf]
    %v5409 = vpack.c.bf16 %v5393, %v5390
    %v5410 = vpack.c.bf16 %v5401, %v5398
    %v5415 = vunpack.c.l.b16 %v5405
    %v5416 = vunpack.c.l.b16 %v5406
    %v5417 = vunpack.c.l.b16 %v5407
    %v5418 = vunpack.c.l.b16 %v5408
    %v5419 = vpack.c.b16 %v5416, %v5415
    %v5420 = vpack.c.b16 %v5418, %v5417
    %v5424 = vsel %vm233, %v5409, 0
    %v5427 = vsel %vm233, %v5410, 0
    %5429 = vmatprep.subr.bf16.mxu0 0
    %5430 = vmatpush1.bf16.msra.mxu0 %v5419
    %5431 = vmatprep.subr.bf16.mxu0 0
    %5432 = vmatpush1.bf16.msra.mxu0 %v5420
    %5433 = vmatprep.subr.bf16.mxu0 0
    %5434 = vmatpush1.bf16.msra.mxu0 0
    %5435 = vmatprep.subr.bf16.mxu0 0
    %5436 = vmatpush1.bf16.msra.mxu0 0
    %5437 = vmatprep.subr.bf16.mxu0 0
    %5438 = vmatpush1.bf16.msra.mxu0 0
    %5439 = vmatprep.subr.bf16.mxu0 0
    %5440 = vmatpush1.bf16.msra.mxu0 0
    %5441 = vmatprep.subr.bf16.mxu0 0
    %5442 = vmatpush1.bf16.msra.mxu0 0
    %5443 = vmatprep.subr.bf16.mxu0 0
    %5444 = vmatpush1.bf16.msra.mxu0 0
    %5445 = vmatprep.subr.bf16.mxu0 0
    %5446 = vmatpush1.bf16.msra.mxu0 0
    %5447 = vmatprep.subr.bf16.mxu0 0
    %5448 = vmatpush1.bf16.msra.mxu0 0
    %5449 = vmatprep.subr.bf16.mxu0 0
    %5450 = vmatpush1.bf16.msra.mxu0 0
    %5451 = vmatprep.subr.bf16.mxu0 0
    %5452 = vmatpush1.bf16.msra.mxu0 0
    %5453 = vmatprep.subr.bf16.mxu0 0
    %5454 = vmatpush1.bf16.msra.mxu0 0
    %5455 = vmatprep.subr.bf16.mxu0 0
    %5456 = vmatpush1.bf16.msra.mxu0 0
    %5457 = vmatprep.subr.bf16.mxu0 0
    %5458 = vmatpush1.bf16.msra.mxu0 0
    %5459 = vmatprep.subr.bf16.mxu0 0
    %5460 = vmatpush1.bf16.msra.mxu0 0
    %5461 = vmatprep.mubr.bf16.mxu0 0
    %5462 = vmatmul.mubr.bf16.gmra.mrb[0].mxu0 %v5424
    %v5463 = vpop.f32.mrb[0].mxu0
    %v5464 = vadd.f32 0.0, %v5463
    %v5465 = vpop.f32.mrb[0].mxu0
    %v5466 = vpop.f32.mrb[0].mxu0
    %v5467 = vadd.f32 0.0, %v5466
    %v5468 = vpop.f32.mrb[0].mxu0
    %5469 = vmatprep.mubr.bf16.mxu0 0
    %5470 = vmatmul.mubr.bf16.gmra.mrb[0].mxu0 %v5427
    %v5471 = vpop.f32.mrb[0].mxu0
    %v5472 = vadd.f32 0.0, %v5471
    %v5473 = vpop.f32.mrb[0].mxu0
    %v5474 = vpop.f32.mrb[0].mxu0
    %v5475 = vadd.f32 0.0, %v5474
    %v5476 = vpop.f32.mrb[0].mxu0
    %5477 = vdwg.mxu0
    %v5482 = vunpack.c.l.b16 %v5328
    %v5483 = vunpack.c.l.b16 %v5329
    %v5484 = vunpack.c.l.b16 %v5330
    %v5485 = vunpack.c.l.b16 %v5331
    %v5486 = vpack.c.b16 %v5483, %v5482
    %v5487 = vpack.c.b16 %v5485, %v5484
    %v5491 = vsel %vm233, %v5332, 0
    %v5494 = vsel %vm233, %v5333, 0
    %5496 = vmatprep.subr.bf16.mxu0 0
    %5497 = vmatpush1.bf16.msra.mxu0 %v5486
    %5498 = vmatprep.subr.bf16.mxu0 0
    %5499 = vmatpush1.bf16.msra.mxu0 %v5487
    %5500 = vmatprep.subr.bf16.mxu0 0
    %5501 = vmatpush1.bf16.msra.mxu0 0
    %5502 = vmatprep.subr.bf16.mxu0 0
    %5503 = vmatpush1.bf16.msra.mxu0 0
    %5504 = vmatprep.subr.bf16.mxu0 0
    %5505 = vmatpush1.bf16.msra.mxu0 0
    %5506 = vmatprep.subr.bf16.mxu0 0
    %5507 = vmatpush1.bf16.msra.mxu0 0
    %5508 = vmatprep.subr.bf16.mxu0 0
    %5509 = vmatpush1.bf16.msra.mxu0 0
    %5510 = vmatprep.subr.bf16.mxu0 0
    %5511 = vmatpush1.bf16.msra.mxu0 0
    %5512 = vmatprep.subr.bf16.mxu0 0
    %5513 = vmatpush1.bf16.msra.mxu0 0
    %5514 = vmatprep.subr.bf16.mxu0 0
    %5515 = vmatpush1.bf16.msra.mxu0 0
    %5516 = vmatprep.subr.bf16.mxu0 0
    %5517 = vmatpush1.bf16.msra.mxu0 0
    %5518 = vmatprep.subr.bf16.mxu0 0
    %5519 = vmatpush1.bf16.msra.mxu0 0
    %5520 = vmatprep.subr.bf16.mxu0 0
    %5521 = vmatpush1.bf16.msra.mxu0 0
    %5522 = vmatprep.subr.bf16.mxu0 0
    %5523 = vmatpush1.bf16.msra.mxu0 0
    %5524 = vmatprep.subr.bf16.mxu0 0
    %5525 = vmatpush1.bf16.msra.mxu0 0
    %5526 = vmatprep.subr.bf16.mxu0 0
    %5527 = vmatpush1.bf16.msra.mxu0 0
    %5528 = vmatprep.mubr.bf16.mxu0 0
    %5529 = vmatmul.mubr.bf16.gmra.mrb[0].mxu0 %v5491
    %v5530 = vpop.f32.mrb[0].mxu0
    %v5531 = vadd.f32 %v5464, %v5530
    %v5532 = vpop.f32.mrb[0].mxu0
    %v5533 = vpop.f32.mrb[0].mxu0
    %v5534 = vadd.f32 %v5467, %v5533
    %v5535 = vpop.f32.mrb[0].mxu0
    %5536 = vmatprep.mubr.bf16.mxu0 0
    %5537 = vmatmul.mubr.bf16.gmra.mrb[0].mxu0 %v5494
    %v5538 = vpop.f32.mrb[0].mxu0
    %v5539 = vadd.f32 %v5472, %v5538
    %v5540 = vpop.f32.mrb[0].mxu0
    %v5541 = vpop.f32.mrb[0].mxu0
    %v5542 = vadd.f32 %v5475, %v5541
    %v5543 = vpop.f32.mrb[0].mxu0
    %5544 = vdwg.mxu0
    %s5545 = scalar_lea.vmem %s12, 32
    %v5546 = vld [vmem:[%s5545] sm:$0xf]
    %v5547 = vld [vmem:[%s5545 + $0x4] sm:$0xf]
    %v5548 = vld [vmem:[%s5545 + $0x8] sm:$0xf]
    %v5549 = vld [vmem:[%s5545 + $0xc] sm:$0xf]
    %v5554 = vunpack.c.l.b16 %v5546
    %v5555 = vunpack.c.l.b16 %v5547
    %v5556 = vunpack.c.l.b16 %v5548
    %v5557 = vunpack.c.l.b16 %v5549
    %v5558 = vpack.c.b16 %v5555, %v5554
    %v5559 = vpack.c.b16 %v5557, %v5556
    %v5561 = vsel %vm1959, %v5558, 0
    %v5564 = vsel %vm1959, %v5559, 0
    %5566 = vmatprep.subr.bf16.mxu0 0
    %5567 = vmatpush1.bf16.msra.mxu0 %v5256
    %5568 = vmatprep.subr.bf16.mxu0 0
    %5569 = vmatpush1.bf16.msra.mxu0 %v5257
    %5570 = vmatprep.subr.bf16.mxu0 0
    %5571 = vmatpush1.bf16.msra.mxu0 %v5258
    %5572 = vmatprep.subr.bf16.mxu0 0
    %5573 = vmatpush1.bf16.msra.mxu0 %v5277
    %5574 = vmatprep.subr.bf16.mxu0 0
    %5575 = vmatpush1.bf16.msra.mxu0 0
    %5576 = vmatprep.subr.bf16.mxu0 0
    %5577 = vmatpush1.bf16.msra.mxu0 0
    %5578 = vmatprep.subr.bf16.mxu0 0
    %5579 = vmatpush1.bf16.msra.mxu0 0
    %5580 = vmatprep.subr.bf16.mxu0 0
    %5581 = vmatpush1.bf16.msra.mxu0 0
    %5582 = vmatprep.subr.bf16.mxu0 0
    %5583 = vmatpush1.bf16.msra.mxu0 0
    %5584 = vmatprep.subr.bf16.mxu0 0
    %5585 = vmatpush1.bf16.msra.mxu0 0
    %5586 = vmatprep.subr.bf16.mxu0 0
    %5587 = vmatpush1.bf16.msra.mxu0 0
    %5588 = vmatprep.subr.bf16.mxu0 0
    %5589 = vmatpush1.bf16.msra.mxu0 0
    %5590 = vmatprep.subr.bf16.mxu0 0
    %5591 = vmatpush1.bf16.msra.mxu0 0
    %5592 = vmatprep.subr.bf16.mxu0 0
    %5593 = vmatpush1.bf16.msra.mxu0 0
    %5594 = vmatprep.subr.bf16.mxu0 0
    %5595 = vmatpush1.bf16.msra.mxu0 0
    %5596 = vmatprep.subr.bf16.mxu0 0
    %5597 = vmatpush1.bf16.msra.mxu0 0
    %5598 = vmatprep.mubr.bf16.mxu0 0
    %5599 = vmatmul.mubr.bf16.gmra.mrb[0].mxu0 %v5561
    %v5600 = vpop.f32.mrb[0].mxu0
    %v5601 = vadd.f32 0.0, %v5600
    %v5602 = vpop.f32.mrb[0].mxu0
    %v5603 = vpop.f32.mrb[0].mxu0
    %v5604 = vadd.f32 0.0, %v5603
    %v5605 = vpop.f32.mrb[0].mxu0
    %5606 = vmatprep.mubr.bf16.mxu0 0
    %5607 = vmatmul.mubr.bf16.gmra.mrb[0].mxu0 %v5564
    %v5608 = vpop.f32.mrb[0].mxu0
    %v5609 = vadd.f32 0.0, %v5608
    %v5610 = vpop.f32.mrb[0].mxu0
    %v5611 = vpop.f32.mrb[0].mxu0
    %v5612 = vadd.f32 0.0, %v5611
    %v5613 = vpop.f32.mrb[0].mxu0
    %5614 = vdwg.mxu0
    %s5615 = scalar_lea.vmem %s13, 32
    %v5616 = vld [vmem:[%s5615] sm:$0xf]
    %v5617 = vld [vmem:[%s5615 + $0x4] sm:$0xf]
    %v5618 = vld [vmem:[%s5615 + $0x8] sm:$0xf]
    %v5619 = vld [vmem:[%s5615 + $0xc] sm:$0xf]
    %v5620 = vpack.c.bf16 %v5604, %v5601
    %v5621 = vpack.c.bf16 %v5612, %v5609
    %v5626 = vunpack.c.l.b16 %v5616
    %v5627 = vunpack.c.l.b16 %v5617
    %v5628 = vunpack.c.l.b16 %v5618
    %v5629 = vunpack.c.l.b16 %v5619
    %v5630 = vpack.c.b16 %v5627, %v5626
    %v5631 = vpack.c.b16 %v5629, %v5628
    %v5635 = vsel %vm233, %v5620, 0
    %v5638 = vsel %vm233, %v5621, 0
    %5640 = vmatprep.subr.bf16.mxu0 0
    %5641 = vmatpush1.bf16.msra.mxu0 %v5630
    %5642 = vmatprep.subr.bf16.mxu0 0
    %5643 = vmatpush1.bf16.msra.mxu0 %v5631
    %5644 = vmatprep.subr.bf16.mxu0 0
    %5645 = vmatpush1.bf16.msra.mxu0 0
    %5646 = vmatprep.subr.bf16.mxu0 0
    %5647 = vmatpush1.bf16.msra.mxu0 0
    %5648 = vmatprep.subr.bf16.mxu0 0
    %5649 = vmatpush1.bf16.msra.mxu0 0
    %5650 = vmatprep.subr.bf16.mxu0 0
    %5651 = vmatpush1.bf16.msra.mxu0 0
    %5652 = vmatprep.subr.bf16.mxu0 0
    %5653 = vmatpush1.bf16.msra.mxu0 0
    %5654 = vmatprep.subr.bf16.mxu0 0
    %5655 = vmatpush1.bf16.msra.mxu0 0
    %5656 = vmatprep.subr.bf16.mxu0 0
    %5657 = vmatpush1.bf16.msra.mxu0 0
    %5658 = vmatprep.subr.bf16.mxu0 0
    %5659 = vmatpush1.bf16.msra.mxu0 0
    %5660 = vmatprep.subr.bf16.mxu0 0
    %5661 = vmatpush1.bf16.msra.mxu0 0
    %5662 = vmatprep.subr.bf16.mxu0 0
    %5663 = vmatpush1.bf16.msra.mxu0 0
    %5664 = vmatprep.subr.bf16.mxu0 0
    %5665 = vmatpush1.bf16.msra.mxu0 0
    %5666 = vmatprep.subr.bf16.mxu0 0
    %5667 = vmatpush1.bf16.msra.mxu0 0
    %5668 = vmatprep.subr.bf16.mxu0 0
    %5669 = vmatpush1.bf16.msra.mxu0 0
    %5670 = vmatprep.subr.bf16.mxu0 0
    %5671 = vmatpush1.bf16.msra.mxu0 0
    %5672 = vmatprep.mubr.bf16.mxu0 0
    %5673 = vmatmul.mubr.bf16.gmra.mrb[0].mxu0 %v5635
    %v5674 = vpop.f32.mrb[0].mxu0
    %v5675 = vadd.f32 0.0, %v5674
    %v5676 = vpop.f32.mrb[0].mxu0
    %v5677 = vpop.f32.mrb[0].mxu0
    %v5678 = vadd.f32 0.0, %v5677
    %v5679 = vpop.f32.mrb[0].mxu0
    %5680 = vmatprep.mubr.bf16.mxu0 0
    %5681 = vmatmul.mubr.bf16.gmra.mrb[0].mxu0 %v5638
    %v5682 = vpop.f32.mrb[0].mxu0
    %v5683 = vadd.f32 0.0, %v5682
    %v5684 = vpop.f32.mrb[0].mxu0
    %v5685 = vpop.f32.mrb[0].mxu0
    %v5686 = vadd.f32 0.0, %v5685
    %v5687 = vpop.f32.mrb[0].mxu0
    %5688 = vdwg.mxu0
    %v5689 = vadd.f32 %v5531, %v5675
    %v5690 = vadd.f32 %v5534, %v5678
    %v5691 = vadd.f32 %v5539, %v5683
    %v5692 = vadd.f32 %v5542, %v5686
    %s5693 = scalar_lea.vmem %s12, 48
    %v5694 = vld [vmem:[%s5693] sm:$0xf]
    %v5695 = vld [vmem:[%s5693 + $0x4] sm:$0xf]
    %v5696 = vld [vmem:[%s5693 + $0x8] sm:$0xf]
    %v5697 = vld [vmem:[%s5693 + $0xc] sm:$0xf]
    %v5702 = vunpack.c.l.b16 %v5694
    %v5703 = vunpack.c.l.b16 %v5695
    %v5704 = vunpack.c.l.b16 %v5696
    %v5705 = vunpack.c.l.b16 %v5697
    %v5706 = vpack.c.b16 %v5703, %v5702
    %v5707 = vpack.c.b16 %v5705, %v5704
    %v5709 = vsel %vm1959, %v5706, 0
    %v5712 = vsel %vm1959, %v5707, 0
    %5714 = vmatprep.subr.bf16.mxu0 0
    %5715 = vmatpush1.bf16.msra.mxu0 %v5256
    %5716 = vmatprep.subr.bf16.mxu0 0
    %5717 = vmatpush1.bf16.msra.mxu0 %v5257
    %5718 = vmatprep.subr.bf16.mxu0 0
    %5719 = vmatpush1.bf16.msra.mxu0 %v5258
    %5720 = vmatprep.subr.bf16.mxu0 0
    %5721 = vmatpush1.bf16.msra.mxu0 %v5277
    %5722 = vmatprep.subr.bf16.mxu0 0
    %5723 = vmatpush1.bf16.msra.mxu0 0
    %5724 = vmatprep.subr.bf16.mxu0 0
    %5725 = vmatpush1.bf16.msra.mxu0 0
    %5726 = vmatprep.subr.bf16.mxu0 0
    %5727 = vmatpush1.bf16.msra.mxu0 0
    %5728 = vmatprep.subr.bf16.mxu0 0
    %5729 = vmatpush1.bf16.msra.mxu0 0
    %5730 = vmatprep.subr.bf16.mxu0 0
    %5731 = vmatpush1.bf16.msra.mxu0 0
    %5732 = vmatprep.subr.bf16.mxu0 0
    %5733 = vmatpush1.bf16.msra.mxu0 0
    %5734 = vmatprep.subr.bf16.mxu0 0
    %5735 = vmatpush1.bf16.msra.mxu0 0
    %5736 = vmatprep.subr.bf16.mxu0 0
    %5737 = vmatpush1.bf16.msra.mxu0 0
    %5738 = vmatprep.subr.bf16.mxu0 0
    %5739 = vmatpush1.bf16.msra.mxu0 0
    %5740 = vmatprep.subr.bf16.mxu0 0
    %5741 = vmatpush1.bf16.msra.mxu0 0
    %5742 = vmatprep.subr.bf16.mxu0 0
    %5743 = vmatpush1.bf16.msra.mxu0 0
    %5744 = vmatprep.subr.bf16.mxu0 0
    %5745 = vmatpush1.bf16.msra.mxu0 0
    %5746 = vmatprep.mubr.bf16.mxu0 0
    %5747 = vmatmul.mubr.bf16.gmra.mrb[0].mxu0 %v5709
    %v5748 = vpop.f32.mrb[0].mxu0
    %v5749 = vadd.f32 0.0, %v5748
    %v5750 = vpop.f32.mrb[0].mxu0
    %v5751 = vpop.f32.mrb[0].mxu0
    %v5752 = vadd.f32 0.0, %v5751
    %v5753 = vpop.f32.mrb[0].mxu0
    %5754 = vmatprep.mubr.bf16.mxu0 0
    %5755 = vmatmul.mubr.bf16.gmra.mrb[0].mxu0 %v5712
    %v5756 = vpop.f32.mrb[0].mxu0
    %v5757 = vadd.f32 0.0, %v5756
    %v5758 = vpop.f32.mrb[0].mxu0
    %v5759 = vpop.f32.mrb[0].mxu0
    %v5760 = vadd.f32 0.0, %v5759
    %v5761 = vpop.f32.mrb[0].mxu0
    %5762 = vdwg.mxu0
    %s5763 = scalar_lea.vmem %s13, 48
    %v5764 = vld [vmem:[%s5763] sm:$0xf]
    %v5765 = vld [vmem:[%s5763 + $0x4] sm:$0xf]
    %v5766 = vld [vmem:[%s5763 + $0x8] sm:$0xf]
    %v5767 = vld [vmem:[%s5763 + $0xc] sm:$0xf]
    %v5768 = vpack.c.bf16 %v5752, %v5749
    %v5769 = vpack.c.bf16 %v5760, %v5757
    %v5774 = vunpack.c.l.b16 %v5764
    %v5775 = vunpack.c.l.b16 %v5765
    %v5776 = vunpack.c.l.b16 %v5766
    %v5777 = vunpack.c.l.b16 %v5767
    %v5778 = vpack.c.b16 %v5775, %v5774
    %v5779 = vpack.c.b16 %v5777, %v5776
    %v5783 = vsel %vm233, %v5768, 0
    %v5786 = vsel %vm233, %v5769, 0
    %5788 = vmatprep.subr.bf16.mxu0 0
    %5789 = vmatpush1.bf16.msra.mxu0 %v5778
    %5790 = vmatprep.subr.bf16.mxu0 0
    %5791 = vmatpush1.bf16.msra.mxu0 %v5779
    %5792 = vmatprep.subr.bf16.mxu0 0
    %5793 = vmatpush1.bf16.msra.mxu0 0
    %5794 = vmatprep.subr.bf16.mxu0 0
    %5795 = vmatpush1.bf16.msra.mxu0 0
    %5796 = vmatprep.subr.bf16.mxu0 0
    %5797 = vmatpush1.bf16.msra.mxu0 0
    %5798 = vmatprep.subr.bf16.mxu0 0
    %5799 = vmatpush1.bf16.msra.mxu0 0
    %5800 = vmatprep.subr.bf16.mxu0 0
    %5801 = vmatpush1.bf16.msra.mxu0 0
    %5802 = vmatprep.subr.bf16.mxu0 0
    %5803 = vmatpush1.bf16.msra.mxu0 0
    %5804 = vmatprep.subr.bf16.mxu0 0
    %5805 = vmatpush1.bf16.msra.mxu0 0
    %5806 = vmatprep.subr.bf16.mxu0 0
    %5807 = vmatpush1.bf16.msra.mxu0 0
    %5808 = vmatprep.subr.bf16.mxu0 0
    %5809 = vmatpush1.bf16.msra.mxu0 0
    %5810 = vmatprep.subr.bf16.mxu0 0
    %5811 = vmatpush1.bf16.msra.mxu0 0
    %5812 = vmatprep.subr.bf16.mxu0 0
    %5813 = vmatpush1.bf16.msra.mxu0 0
    %5814 = vmatprep.subr.bf16.mxu0 0
    %5815 = vmatpush1.bf16.msra.mxu0 0
    %5816 = vmatprep.subr.bf16.mxu0 0
    %5817 = vmatpush1.bf16.msra.mxu0 0
    %5818 = vmatprep.subr.bf16.mxu0 0
    %5819 = vmatpush1.bf16.msra.mxu0 0
    %5820 = vmatprep.mubr.bf16.mxu0 0
    %5821 = vmatmul.mubr.bf16.gmra.mrb[0].mxu0 %v5783
    %v5822 = vpop.f32.mrb[0].mxu0
    %v5823 = vadd.f32 0.0, %v5822
    %v5824 = vpop.f32.mrb[0].mxu0
    %v5825 = vpop.f32.mrb[0].mxu0
    %v5826 = vadd.f32 0.0, %v5825
    %v5827 = vpop.f32.mrb[0].mxu0
    %5828 = vmatprep.mubr.bf16.mxu0 0
    %5829 = vmatmul.mubr.bf16.gmra.mrb[0].mxu0 %v5786
    %v5830 = vpop.f32.mrb[0].mxu0
    %v5831 = vadd.f32 0.0, %v5830
    %v5832 = vpop.f32.mrb[0].mxu0
    %v5833 = vpop.f32.mrb[0].mxu0
    %v5834 = vadd.f32 0.0, %v5833
    %v5835 = vpop.f32.mrb[0].mxu0
    %5836 = vdwg.mxu0
    %v5837 = vadd.f32 %v5689, %v5823
    %v5838 = vadd.f32 %v5690, %v5826
    %v5839 = vadd.f32 %v5691, %v5831
    %v5840 = vadd.f32 %v5692, %v5834
    %vm5841 = vcmp.gt.f32.partialorder %v5837, 20.0
    %vm5842 = vcmp.gt.f32.partialorder %v5838, 20.0
    %vm5843 = vcmp.gt.f32.partialorder %v5839, 20.0
    %vm5844 = vcmp.gt.f32.partialorder %v5840, 20.0
    %v5845 = vmin.f32 %v5837, 20.0
    %v5846 = vmin.f32 %v5838, 20.0
    %v5847 = vmin.f32 %v5839, 20.0
    %v5848 = vmin.f32 %v5840, 20.0
    %v5849 = vmul.f32 %v5845, 1.442695
    %v5850 = vpow.pop %v5849
    %v5851 = vmul.f32 %v5846, 1.442695
    %v5852 = vpow.pop %v5851
    %v5853 = vmul.f32 %v5847, 1.442695
    %v5854 = vpow.pop %v5853
    %v5855 = vmul.f32 %v5848, 1.442695
    %v5856 = vpow.pop %v5855
    %v5857 = vadd.f32 %v5850, 1.0
    %v5858 = vlog2.pop %v5857
    %v5859 = vmul.f32 %v5858, 0.6931472
    %v5860 = vmul.f32 -0.5, %v5850
    %v5861 = vadd.f32 %v5860, 1.0
    %v5862 = vmul.f32 %v5861, %v5850
    %v5863 = vand.u32 2147483647, %v5850
    %vm5864 = vcmp.lt.f32.partialorder %v5863, 0.0004427343
    %v5865 = vsel %vm5864, %v5862, %v5859
    %v5866 = vadd.f32 %v5852, 1.0
    %v5867 = vlog2.pop %v5866
    %v5868 = vmul.f32 %v5867, 0.6931472
    %v5869 = vmul.f32 -0.5, %v5852
    %v5870 = vadd.f32 %v5869, 1.0
    %v5871 = vmul.f32 %v5870, %v5852
    %v5872 = vand.u32 2147483647, %v5852
    %vm5873 = vcmp.lt.f32.partialorder %v5872, 0.0004427343
    %v5874 = vsel %vm5873, %v5871, %v5868
    %v5875 = vadd.f32 %v5854, 1.0
    %v5876 = vlog2.pop %v5875
    %v5877 = vmul.f32 %v5876, 0.6931472
    %v5878 = vmul.f32 -0.5, %v5854
    %v5879 = vadd.f32 %v5878, 1.0
    %v5880 = vmul.f32 %v5879, %v5854
    %v5881 = vand.u32 2147483647, %v5854
    %vm5882 = vcmp.lt.f32.partialorder %v5881, 0.0004427343
    %v5883 = vsel %vm5882, %v5880, %v5877
    %v5884 = vadd.f32 %v5856, 1.0
    %v5885 = vlog2.pop %v5884
    %v5886 = vmul.f32 %v5885, 0.6931472
    %v5887 = vmul.f32 -0.5, %v5856
    %v5888 = vadd.f32 %v5887, 1.0
    %v5889 = vmul.f32 %v5888, %v5856
    %v5890 = vand.u32 2147483647, %v5856
    %vm5891 = vcmp.lt.f32.partialorder %v5890, 0.0004427343
    %v5892 = vsel %vm5891, %v5889, %v5886
    %v5893 = vsel %vm5841, %v5837, %v5865
    %v5894 = vsel %vm5842, %v5838, %v5874
    %v5895 = vsel %vm5843, %v5839, %v5883
    %v5896 = vsel %vm5844, %v5840, %v5892
    %5897 = vst [vmem:[%s15] sm:$0xff] %v5893
    %5898 = vst [vmem:[%s15 + $0x8] sm:$0xff] %v5894
    %5899 = vst [vmem:[%s15 + $0x10] sm:$0xff] %v5895
    %5900 = vst [vmem:[%s15 + $0x18] sm:$0xff] %v5896
    // Predicated region
    $region86: #{forward.1} parent=1 // pred_check
      _
    $region87: #{forward.1} parent=1 // pred_check_branch
      %5902 = sbr.rel (0) target = $region89
    $region88: #{forward.1} parent=1 // pred_region
      _
    $region89: #{forward.1} parent=1 // pred_fallthru
      _
    // Predicated region
    $region90: #{forward.1} parent=1 // pred_check
      _
    $region91: #{forward.1} parent=1 // pred_check_branch
      %5904 = sbr.rel (0) target = $region93
    $region92: #{forward.1} parent=1 // pred_region
      _
    $region93: #{forward.1} parent=1 // pred_fallthru
      _
    %5905 = vsyncpa [#allocation3], 1
    %5906 = vsyncpa [#allocation5], 1
    %5907 = vsyncpa [#allocation8], 1
    %5908 = vsyncpa [#allocation11], 1

</llo_original>
